<compile_context>
chip_gen: v6e
topology: v6e:2x2x1
jax: 0.10.0
libtpu: 0.0.40
codegen_flags: <defaults>
</compile_context>

<pallas_src>
import functools

import jax
import jax.numpy as jnp
from jax import lax
from jax.experimental import pallas as pl
from jax.experimental.pallas import tpu as pltpu


# ----------------------------------------------------------------------------- in-kernel helpers

def _sigmoid(x):
    # exp on the EUP, reciprocal on the EUP (approx) -> keeps VPU slots free.
    return pl.reciprocal(1.0 + jnp.exp(-x), approx=True)


def _layernorm(x, g, b, eps=1e-5):
    mean = jnp.mean(x, axis=-1, keepdims=True)
    xc = x - mean
    var = jnp.mean(xc * xc, axis=-1, keepdims=True)
    return xc * lax.rsqrt(var + eps) * g + b


# ----------------------------------------------------------------------------- fused Conformer block

def _conformer_block_kernel(
    x_ref,
    # FFN module 1
    ffn1_ln_g, ffn1_ln_b, ffn1_w1, ffn1_b1, ffn1_w2, ffn1_b2,
    # MHSA module
    mhsa_ln_g, mhsa_ln_b, wqkv, bqkv, wo, bo,
    # Convolution module
    conv_ln_g, conv_ln_b, pw1_w, pw1_b, dw_w, dw_b, bn_g, bn_b, pw2_w, pw2_b,
    # FFN module 2
    ffn2_ln_g, ffn2_ln_b, ffn2_w1, ffn2_b1, ffn2_w2, ffn2_b2,
    # final block LayerNorm
    fin_ln_g, fin_ln_b,
    o_ref,
    *, num_heads, kernel_size):
    h = x_ref[0]                      # (T, D) for this batch element
    T, D = h.shape
    H = num_heads
    dh = D // H
    K = kernel_size
    pad = (K - 1) // 2

    # ---------------- feed-forward module 1 (half-step residual), fused
    y = _layernorm(h, ffn1_ln_g[...], ffn1_ln_b[...])
    y = jnp.dot(y, ffn1_w1[...], preferred_element_type=jnp.float32) + ffn1_b1[...]
    y = y * _sigmoid(y)                                         # SiLU
    y = jnp.dot(y, ffn1_w2[...], preferred_element_type=jnp.float32) + ffn1_b2[...]
    h = h + 0.5 * y

    # ---------------- multi-head self-attention module, fused
    y = _layernorm(h, mhsa_ln_g[...], mhsa_ln_b[...])
    qkv = jnp.dot(y, wqkv[...], preferred_element_type=jnp.float32) + bqkv[...]   # (T, 3D)
    scale = 1.0 / float(dh) ** 0.5
    ctx_heads = []
    for hh in range(H):               # unrolled over values; single dense store below
        qh = qkv[:, hh * dh:(hh + 1) * dh]
        kh = qkv[:, D + hh * dh:D + (hh + 1) * dh]
        vh = qkv[:, 2 * D + hh * dh:2 * D + (hh + 1) * dh]
        s = jnp.dot(qh, kh.T, preferred_element_type=jnp.float32) * scale
        m = jnp.max(s, axis=-1, keepdims=True)
        p = jnp.exp(s - m)
        p = p * pl.reciprocal(jnp.sum(p, axis=-1, keepdims=True), approx=True)
        ctx_heads.append(jnp.dot(p, vh, preferred_element_type=jnp.float32))
    attn = jnp.concatenate(ctx_heads, axis=-1)                  # (T, D) lane-dense
    attn = jnp.dot(attn, wo[...], preferred_element_type=jnp.float32) + bo[...]
    h = h + attn

    # ---------------- convolution module, fused
    y = _layernorm(h, conv_ln_g[...], conv_ln_b[...])
    y = jnp.dot(y, pw1_w[...], preferred_element_type=jnp.float32) + pw1_b[...]   # (T, 2D)
    a = y[:, :D]
    g = y[:, D:]
    y = a * _sigmoid(g)                                         # GLU
    # depthwise conv along time, 'same' zero padding, via XLU roll + edge masks
    w_all = dw_w[...]                                           # (K, D), loaded once
    t_idx = lax.broadcasted_iota(jnp.int32, (T, D), 0)
    acc = jnp.broadcast_to(dw_b[...], (T, D))
    for k in range(K):
        off = k - pad                                           # tap reads y[t + off]
        if off == 0:
            tap = y
        else:
            shifted = pltpu.roll(y, shift=(-off) % T, axis=0)   # out[t] = y[t + off] (cyclic)
            valid = (t_idx >= -off) & (t_idx < T - off)
            tap = jnp.where(valid, shifted, 0.0)
        acc = acc + tap * w_all[k:k + 1, :]
    # BatchNorm1d (eval, running_mean=0, running_var=1) -> scale/shift only
    bn_inv_std = (1.0 + 1e-5) ** -0.5
    acc = acc * (bn_g[...] * bn_inv_std) + bn_b[...]
    acc = acc * _sigmoid(acc)                                   # Swish
    y = jnp.dot(acc, pw2_w[...], preferred_element_type=jnp.float32) + pw2_b[...]
    h = h + y

    # ---------------- feed-forward module 2 (half-step residual), fused
    y = _layernorm(h, ffn2_ln_g[...], ffn2_ln_b[...])
    y = jnp.dot(y, ffn2_w1[...], preferred_element_type=jnp.float32) + ffn2_b1[...]
    y = y * _sigmoid(y)                                         # SiLU
    y = jnp.dot(y, ffn2_w2[...], preferred_element_type=jnp.float32) + ffn2_b2[...]
    h = h + 0.5 * y

    # ---------------- final block layer norm, single full-width store
    h = _layernorm(h, fin_ln_g[...], fin_ln_b[...])
    o_ref[...] = h[None, :, :]


_BLOCK_WEIGHT_ORDER = (
    "ffn1_ln_g", "ffn1_ln_b", "ffn1_w1", "ffn1_b1", "ffn1_w2", "ffn1_b2",
    "mhsa_ln_g", "mhsa_ln_b", "wqkv", "bqkv", "wo", "bo",
    "conv_ln_g", "conv_ln_b", "pw1_w", "pw1_b", "dw_w", "dw_b", "bn_g", "bn_b",
    "pw2_w", "pw2_b",
    "ffn2_ln_g", "ffn2_ln_b", "ffn2_w1", "ffn2_b1", "ffn2_w2", "ffn2_b2",
    "fin_ln_g", "fin_ln_b",
)


def pallas_conformer_block(h, layer, *, num_heads, kernel_size):
    B, T, D = h.shape
    weights = [layer[name] for name in _BLOCK_WEIGHT_ORDER]

    def full_spec(arr):
        nd = arr.ndim
        return pl.BlockSpec(arr.shape, lambda b, _nd=nd: (0,) * _nd)

    x_spec = pl.BlockSpec((1, T, D), lambda b: (b, 0, 0))
    return pl.pallas_call(
        functools.partial(_conformer_block_kernel,
                          num_heads=num_heads, kernel_size=kernel_size),
        grid=(B,),
        in_specs=[x_spec] + [full_spec(w) for w in weights],
        out_specs=x_spec,
        out_shape=jax.ShapeDtypeStruct((B, T, D), jnp.float32),
        compiler_params=pltpu.CompilerParams(dimension_semantics=("parallel",)),
    )(h, *weights)


# ----------------------------------------------------------------------------- small front/back kernels

def _in_proj_kernel(x_ref, w_ref, b_ref, o_ref):
    o_ref[...] = (jnp.dot(x_ref[...], w_ref[...],
                          preferred_element_type=jnp.float32) + b_ref[...])


def pallas_in_proj(x2d, w, b):
    n = x2d.shape[0]
    dout = w.shape[1]
    return pl.pallas_call(
        _in_proj_kernel,
        out_shape=jax.ShapeDtypeStruct((n, dout), jnp.float32),
        in_specs=[pl.BlockSpec(memory_space=pltpu.MemorySpace.VMEM)] * 3,
        out_specs=pl.BlockSpec(memory_space=pltpu.MemorySpace.VMEM),
    )(x2d, w, b)


def _classifier_kernel(x_ref, w_ref, b_ref, o_ref):
    # Weight/bias are padded to a lane-dense 128 classes (padded biases are
    # -1e30 so they contribute exp(.)=0 to the log-softmax denominator).
    y = jnp.dot(x_ref[...], w_ref[...], preferred_element_type=jnp.float32) + b_ref[...]
    m = jnp.max(y, axis=-1, keepdims=True)
    z = y - m
    o_ref[...] = z - jnp.log(jnp.sum(jnp.exp(z), axis=-1, keepdims=True))


def pallas_classifier(x2d, w_pad, b_pad):
    n = x2d.shape[0]
    c_pad = w_pad.shape[1]
    return pl.pallas_call(
        _classifier_kernel,
        out_shape=jax.ShapeDtypeStruct((n, c_pad), jnp.float32),
        in_specs=[pl.BlockSpec(memory_space=pltpu.MemorySpace.VMEM)] * 3,
        out_specs=pl.BlockSpec(memory_space=pltpu.MemorySpace.VMEM),
    )(x2d, w_pad, b_pad)


# ----------------------------------------------------------------------------- model glue

def conformer_forward(src_audio, params, *, num_heads, kernel_size, num_classes):
    B, T, F = src_audio.shape
    D = params["in_proj_w"].shape[1]

    h = pallas_in_proj(src_audio.reshape(B * T, F),
                       params["in_proj_w"], params["in_proj_b"]).reshape(B, T, D)

    for layer in params["layers"]:
        h = pallas_conformer_block(h, layer,
                                   num_heads=num_heads, kernel_size=kernel_size)

    logp = pallas_classifier(h.reshape(B * T, D),
                             params["fc_w_pad"], params["fc_b_pad"])
    return logp[:, :num_classes].reshape(B, T, num_classes)


def init_params(key, cfg):
    D = cfg["encoder_dim"]
    F = cfg["input_dim"]
    C = cfg["num_classes"]
    C_pad = cfg["num_classes_padded"]
    K = cfg["conv_kernel_size"]
    E = cfg["ffn_expansion"] * D

    def dense(k, din, dout, scale=0.02):
        return (scale * jax.random.normal(k, (din, dout), jnp.float32),
                jnp.zeros((1, dout), jnp.float32))

    def ln(d):
        return jnp.ones((1, d), jnp.float32), jnp.zeros((1, d), jnp.float32)

    keys = jax.random.split(key, 2 + cfg["num_encoder_layers"])
    params = {}
    params["in_proj_w"], params["in_proj_b"] = dense(keys[0], F, D)

    fc_w, fc_b = dense(keys[1], D, C)
    params["fc_w_pad"] = jnp.concatenate(
        [fc_w, jnp.zeros((D, C_pad - C), jnp.float32)], axis=1)
    params["fc_b_pad"] = jnp.concatenate(
        [fc_b, jnp.full((1, C_pad - C), -1e30, jnp.float32)], axis=1)

    layers = []
    for li in range(cfg["num_encoder_layers"]):
        lk = jax.random.split(keys[2 + li], 11)
        layer = {}
        layer["ffn1_ln_g"], layer["ffn1_ln_b"] = ln(D)
        layer["ffn1_w1"], layer["ffn1_b1"] = dense(lk[0], D, E)
        layer["ffn1_w2"], layer["ffn1_b2"] = dense(lk[1], E, D)
        layer["mhsa_ln_g"], layer["mhsa_ln_b"] = ln(D)
        wq, bq = dense(lk[2], D, D)
        wk, bk = dense(lk[3], D, D)
        wv, bv = dense(lk[4], D, D)
        layer["wqkv"] = jnp.concatenate([wq, wk, wv], axis=1)   # (D, 3D), one matmul
        layer["bqkv"] = jnp.concatenate([bq, bk, bv], axis=1)   # (1, 3D)
        layer["wo"], layer["bo"] = dense(lk[5], D, D)
        layer["conv_ln_g"], layer["conv_ln_b"] = ln(D)
        layer["pw1_w"], layer["pw1_b"] = dense(lk[6], D, 2 * D)
        layer["dw_w"] = 0.02 * jax.random.normal(lk[7], (K, D), jnp.float32)
        layer["dw_b"] = jnp.zeros((1, D), jnp.float32)
        layer["bn_g"], layer["bn_b"] = ln(D)
        layer["pw2_w"], layer["pw2_b"] = dense(lk[8], D, D)
        layer["ffn2_ln_g"], layer["ffn2_ln_b"] = ln(D)
        layer["ffn2_w1"], layer["ffn2_b1"] = dense(lk[9], D, E)
        layer["ffn2_w2"], layer["ffn2_b2"] = dense(lk[10], E, D)
        layer["fin_ln_g"], layer["fin_ln_b"] = ln(D)
        layers.append(layer)
    params["layers"] = layers
    return params


# ----------------------------------------------------------------------------- main

if __name__ == "__main__":
    # Small synthetic config consistent with Phoneme_Transcriber.__init__
    config = dict(encoder_dim=32, num_encoder_layers=2, num_attention_heads=4,
                  conv_kernel_size=7, decoder_dim=16, num_decoder_layers=1)
    cfg = dict(input_dim=80, num_classes=15, num_classes_padded=128, ffn_expansion=4,
               encoder_dim=config["encoder_dim"],
               num_encoder_layers=config["num_encoder_layers"],
               conv_kernel_size=config["conv_kernel_size"])

    key = jax.random.PRNGKey(0)
    pkey, xkey = jax.random.split(key)
    params = init_params(pkey, cfg)

    B, T = 2, 8
    src_audio = jax.random.normal(xkey, (B, T, cfg["input_dim"]), jnp.float32)

    fwd = jax.jit(functools.partial(
        conformer_forward,
        num_heads=config["num_attention_heads"],
        kernel_size=config["conv_kernel_size"],
        num_classes=cfg["num_classes"]))

    out = jax.block_until_ready(fwd(src_audio, params))
    assert out.shape == (B, T, cfg["num_classes"])
    assert bool(jnp.all(jnp.isfinite(out)))
    print("KERNEL_OK")
</pallas_src>

<mosaic_0001>
module attributes {stable_mosaic.version = 11 : i64} {
  func.func @_in_proj_kernel(%arg0: memref<16x80xf32, #tpu.memory_space<vmem>>, %arg1: memref<80x32xf32, #tpu.memory_space<vmem>>, %arg2: memref<1x32xf32, #tpu.memory_space<vmem>>, %arg3: memref<16x32xf32, #tpu.memory_space<vmem>>) attributes {dimension_semantics = [], scalar_prefetch = 0 : i64, scratch_operands = 0 : i64, tpu.core_type = #tpu.core_type<tc>} {
    %c0 = arith.constant 0 : index
    %c0_0 = arith.constant 0 : index
    %0 = vector.load %arg0[%c0, %c0_0] : memref<16x80xf32, #tpu.memory_space<vmem>>, vector<16x80xf32>
    %c0_1 = arith.constant 0 : index
    %c0_2 = arith.constant 0 : index
    %1 = vector.load %arg1[%c0_1, %c0_2] : memref<80x32xf32, #tpu.memory_space<vmem>>, vector<80x32xf32>
    %cst = arith.constant dense<0.000000e+00> : vector<16x32xf32>
    %2 = tpu.matmul %0, %1, %cst {dimension_numbers = #tpu.dot_dimension_numbers<[1], [0], [0], [1], [0, 0, 1, 1], [], []>} : vector<16x80xf32>, vector<80x32xf32>, vector<16x32xf32> -> vector<16x32xf32>
    %c0_3 = arith.constant 0 : index
    %c0_4 = arith.constant 0 : index
    %3 = vector.load %arg2[%c0_3, %c0_4] : memref<1x32xf32, #tpu.memory_space<vmem>>, vector<1x32xf32>
    %4 = vector.broadcast %3 : vector<1x32xf32> to vector<16x32xf32>
    %5 = arith.addf %2, %4 : vector<16x32xf32>
    %c0_5 = arith.constant 0 : index
    %c0_6 = arith.constant 0 : index
    %6 = vector.load %arg3[%c0_5, %c0_6] : memref<16x32xf32, #tpu.memory_space<vmem>>, vector<16x32xf32>
    tpu.vector_store %arg3[%c0_5, %c0_6], %5 {strides = array<i32>} : memref<16x32xf32, #tpu.memory_space<vmem>>, vector<16x32xf32>,
    return
  }
}

module attributes {stable_mosaic.version = 11 : i64} {
  func.func @_conformer_block_kernel(%arg0: i32, %arg1: memref<1x8x32xf32, #tpu.memory_space<vmem>>, %arg2: memref<1x32xf32, #tpu.memory_space<vmem>>, %arg3: memref<1x32xf32, #tpu.memory_space<vmem>>, %arg4: memref<32x128xf32, #tpu.memory_space<vmem>>, %arg5: memref<1x128xf32, #tpu.memory_space<vmem>>, %arg6: memref<128x32xf32, #tpu.memory_space<vmem>>, %arg7: memref<1x32xf32, #tpu.memory_space<vmem>>, %arg8: memref<1x32xf32, #tpu.memory_space<vmem>>, %arg9: memref<1x32xf32, #tpu.memory_space<vmem>>, %arg10: memref<32x96xf32, #tpu.memory_space<vmem>>, %arg11: memref<1x96xf32, #tpu.memory_space<vmem>>, %arg12: memref<32x32xf32, #tpu.memory_space<vmem>>, %arg13: memref<1x32xf32, #tpu.memory_space<vmem>>, %arg14: memref<1x32xf32, #tpu.memory_space<vmem>>, %arg15: memref<1x32xf32, #tpu.memory_space<vmem>>, %arg16: memref<32x64xf32, #tpu.memory_space<vmem>>, %arg17: memref<1x64xf32, #tpu.memory_space<vmem>>, %arg18: memref<7x32xf32, #tpu.memory_space<vmem>>, %arg19: memref<1x32xf32, #tpu.memory_space<vmem>>, %arg20: memref<1x32xf32, #tpu.memory_space<vmem>>, %arg21: memref<1x32xf32, #tpu.memory_space<vmem>>, %arg22: memref<32x32xf32, #tpu.memory_space<vmem>>, %arg23: memref<1x32xf32, #tpu.memory_space<vmem>>, %arg24: memref<1x32xf32, #tpu.memory_space<vmem>>, %arg25: memref<1x32xf32, #tpu.memory_space<vmem>>, %arg26: memref<32x128xf32, #tpu.memory_space<vmem>>, %arg27: memref<1x128xf32, #tpu.memory_space<vmem>>, %arg28: memref<128x32xf32, #tpu.memory_space<vmem>>, %arg29: memref<1x32xf32, #tpu.memory_space<vmem>>, %arg30: memref<1x32xf32, #tpu.memory_space<vmem>>, %arg31: memref<1x32xf32, #tpu.memory_space<vmem>>, %arg32: memref<1x8x32xf32, #tpu.memory_space<vmem>>) attributes {dimension_semantics = [#tpu.dimension_semantics<parallel>], iteration_bounds = array<i64: 2>, scalar_prefetch = 0 : i64, scratch_operands = 0 : i64, tpu.core_type = #tpu.core_type<tc>, window_params = [{transform_indices = @transform_0, window_bounds = array<i64: 1, 8, 32>}, {pipeline_mode = #tpu.pipeline_mode<synchronous>, transform_indices = @transform_1, window_bounds = array<i64: 1, 32>}, {pipeline_mode = #tpu.pipeline_mode<synchronous>, transform_indices = @transform_2, window_bounds = array<i64: 1, 32>}, {pipeline_mode = #tpu.pipeline_mode<synchronous>, transform_indices = @transform_3, window_bounds = array<i64: 32, 128>}, {pipeline_mode = #tpu.pipeline_mode<synchronous>, transform_indices = @transform_4, window_bounds = array<i64: 1, 128>}, {pipeline_mode = #tpu.pipeline_mode<synchronous>, transform_indices = @transform_5, window_bounds = array<i64: 128, 32>}, {pipeline_mode = #tpu.pipeline_mode<synchronous>, transform_indices = @transform_6, window_bounds = array<i64: 1, 32>}, {pipeline_mode = #tpu.pipeline_mode<synchronous>, transform_indices = @transform_7, window_bounds = array<i64: 1, 32>}, {pipeline_mode = #tpu.pipeline_mode<synchronous>, transform_indices = @transform_8, window_bounds = array<i64: 1, 32>}, {pipeline_mode = #tpu.pipeline_mode<synchronous>, transform_indices = @transform_9, window_bounds = array<i64: 32, 96>}, {pipeline_mode = #tpu.pipeline_mode<synchronous>, transform_indices = @transform_10, window_bounds = array<i64: 1, 96>}, {pipeline_mode = #tpu.pipeline_mode<synchronous>, transform_indices = @transform_11, window_bounds = array<i64: 32, 32>}, {pipeline_mode = #tpu.pipeline_mode<synchronous>, transform_indices = @transform_12, window_bounds = array<i64: 1, 32>}, {pipeline_mode = #tpu.pipeline_mode<synchronous>, transform_indices = @transform_13, window_bounds = array<i64: 1, 32>}, {pipeline_mode = #tpu.pipeline_mode<synchronous>, transform_indices = @transform_14, window_bounds = array<i64: 1, 32>}, {pipeline_mode = #tpu.pipeline_mode<synchronous>, transform_indices = @transform_15, window_bounds = array<i64: 32, 64>}, {pipeline_mode = #tpu.pipeline_mode<synchronous>, transform_indices = @transform_16, window_bounds = array<i64: 1, 64>}, {pipeline_mode = #tpu.pipeline_mode<synchronous>, transform_indices = @transform_17, window_bounds = array<i64: 7, 32>}, {pipeline_mode = #tpu.pipeline_mode<synchronous>, transform_indices = @transform_18, window_bounds = array<i64: 1, 32>}, {pipeline_mode = #tpu.pipeline_mode<synchronous>, transform_indices = @transform_19, window_bounds = array<i64: 1, 32>}, {pipeline_mode = #tpu.pipeline_mode<synchronous>, transform_indices = @transform_20, window_bounds = array<i64: 1, 32>}, {pipeline_mode = #tpu.pipeline_mode<synchronous>, transform_indices = @transform_21, window_bounds = array<i64: 32, 32>}, {pipeline_mode = #tpu.pipeline_mode<synchronous>, transform_indices = @transform_22, window_bounds = array<i64: 1, 32>}, {pipeline_mode = #tpu.pipeline_mode<synchronous>, transform_indices = @transform_23, window_bounds = array<i64: 1, 32>}, {pipeline_mode = #tpu.pipeline_mode<synchronous>, transform_indices = @transform_24, window_bounds = array<i64: 1, 32>}, {pipeline_mode = #tpu.pipeline_mode<synchronous>, transform_indices = @transform_25, window_bounds = array<i64: 32, 128>}, {pipeline_mode = #tpu.pipeline_mode<synchronous>, transform_indices = @transform_26, window_bounds = array<i64: 1, 128>}, {pipeline_mode = #tpu.pipeline_mode<synchronous>, transform_indices = @transform_27, window_bounds = array<i64: 128, 32>}, {pipeline_mode = #tpu.pipeline_mode<synchronous>, transform_indices = @transform_28, window_bounds = array<i64: 1, 32>}, {pipeline_mode = #tpu.pipeline_mode<synchronous>, transform_indices = @transform_29, window_bounds = array<i64: 1, 32>}, {pipeline_mode = #tpu.pipeline_mode<synchronous>, transform_indices = @transform_30, window_bounds = array<i64: 1, 32>}, {transform_indices = @transform_31, window_bounds = array<i64: 1, 8, 32>}]} {
    %c0 = arith.constant 0 : index
    %c0_0 = arith.constant 0 : index
    %c0_1 = arith.constant 0 : index
    %0 = vector.load %arg1[%c0, %c0_0, %c0_1] : memref<1x8x32xf32, #tpu.memory_space<vmem>>, vector<1x8x32xf32>
    %1 = vector.shape_cast %0 : vector<1x8x32xf32> to vector<8x32xf32>
    %c0_2 = arith.constant 0 : index
    %c0_3 = arith.constant 0 : index
    %2 = vector.load %arg2[%c0_2, %c0_3] : memref<1x32xf32, #tpu.memory_space<vmem>>, vector<1x32xf32>
    %c0_4 = arith.constant 0 : index
    %c0_5 = arith.constant 0 : index
    %3 = vector.load %arg3[%c0_4, %c0_5] : memref<1x32xf32, #tpu.memory_space<vmem>>, vector<1x32xf32>
    %cst = arith.constant dense<0.000000e+00> : vector<8xf32>
    %4 = vector.multi_reduction <add>, %1, %cst [1] : vector<8x32xf32> to vector<8xf32>
    %5 = vector.shape_cast %4 : vector<8xf32> to vector<8x1xf32>
    %cst_6 = arith.constant 3.200000e+01 : f32
    %6 = vector.broadcast %cst_6 : f32 to vector<8x1xf32>
    %7 = arith.divf %5, %6 : vector<8x1xf32>
    %8 = vector.broadcast %7 : vector<8x1xf32> to vector<8x32xf32>
    %9 = arith.subf %1, %8 : vector<8x32xf32>
    %10 = arith.mulf %9, %9 : vector<8x32xf32>
    %cst_7 = arith.constant dense<0.000000e+00> : vector<8xf32>
    %11 = vector.multi_reduction <add>, %10, %cst_7 [1] : vector<8x32xf32> to vector<8xf32>
    %12 = vector.shape_cast %11 : vector<8xf32> to vector<8x1xf32>
    %cst_8 = arith.constant 3.200000e+01 : f32
    %13 = vector.broadcast %cst_8 : f32 to vector<8x1xf32>
    %14 = arith.divf %12, %13 : vector<8x1xf32>
    %cst_9 = arith.constant 9.99999974E-6 : f32
    %15 = vector.broadcast %cst_9 : f32 to vector<8x1xf32>
    %16 = arith.addf %14, %15 : vector<8x1xf32>
    %17 = math.rsqrt %16 : vector<8x1xf32>
    %18 = vector.broadcast %17 : vector<8x1xf32> to vector<8x32xf32>
    %19 = arith.mulf %9, %18 : vector<8x32xf32>
    %20 = vector.broadcast %2 : vector<1x32xf32> to vector<8x32xf32>
    %21 = arith.mulf %19, %20 : vector<8x32xf32>
    %22 = vector.broadcast %3 : vector<1x32xf32> to vector<8x32xf32>
    %23 = arith.addf %21, %22 : vector<8x32xf32>
    %c0_10 = arith.constant 0 : index
    %c0_11 = arith.constant 0 : index
    %24 = vector.load %arg4[%c0_10, %c0_11] : memref<32x128xf32, #tpu.memory_space<vmem>>, vector<32x128xf32>
    %cst_12 = arith.constant dense<0.000000e+00> : vector<8x128xf32>
    %25 = tpu.matmul %23, %24, %cst_12 {dimension_numbers = #tpu.dot_dimension_numbers<[1], [0], [0], [1], [0, 0, 1, 1], [], []>} : vector<8x32xf32>, vector<32x128xf32>, vector<8x128xf32> -> vector<8x128xf32>
    %c0_13 = arith.constant 0 : index
    %c0_14 = arith.constant 0 : index
    %26 = vector.load %arg5[%c0_13, %c0_14] : memref<1x128xf32, #tpu.memory_space<vmem>>, vector<1x128xf32>
    %27 = vector.broadcast %26 : vector<1x128xf32> to vector<8x128xf32>
    %28 = arith.addf %25, %27 : vector<8x128xf32>
    %cst_15 = arith.constant 0.000000e+00 : f32
    %29 = vector.broadcast %cst_15 : f32 to vector<8x128xf32>
    %30 = arith.subf %29, %28 : vector<8x128xf32>
    %31 = math.exp %30 : vector<8x128xf32>
    %cst_16 = arith.constant 1.000000e+00 : f32
    %32 = vector.broadcast %cst_16 : f32 to vector<8x128xf32>
    %33 = arith.addf %32, %31 : vector<8x128xf32>
    %34 = tpu.reciprocal %33 {approx = true} : vector<8x128xf32> -> vector<8x128xf32>
    %35 = arith.mulf %28, %34 : vector<8x128xf32>
    %c0_17 = arith.constant 0 : index
    %c0_18 = arith.constant 0 : index
    %36 = vector.load %arg6[%c0_17, %c0_18] : memref<128x32xf32, #tpu.memory_space<vmem>>, vector<128x32xf32>
    %cst_19 = arith.constant dense<0.000000e+00> : vector<8x32xf32>
    %37 = tpu.matmul %35, %36, %cst_19 {dimension_numbers = #tpu.dot_dimension_numbers<[1], [0], [0], [1], [0, 0, 1, 1], [], []>} : vector<8x128xf32>, vector<128x32xf32>, vector<8x32xf32> -> vector<8x32xf32>
    %c0_20 = arith.constant 0 : index
    %c0_21 = arith.constant 0 : index
    %38 = vector.load %arg7[%c0_20, %c0_21] : memref<1x32xf32, #tpu.memory_space<vmem>>, vector<1x32xf32>
    %39 = vector.broadcast %38 : vector<1x32xf32> to vector<8x32xf32>
    %40 = arith.addf %37, %39 : vector<8x32xf32>
    %cst_22 = arith.constant 5.000000e-01 : f32
    %41 = vector.broadcast %cst_22 : f32 to vector<8x32xf32>
    %42 = arith.mulf %41, %40 : vector<8x32xf32>
    %43 = arith.addf %1, %42 : vector<8x32xf32>
    %c0_23 = arith.constant 0 : index
    %c0_24 = arith.constant 0 : index
    %44 = vector.load %arg8[%c0_23, %c0_24] : memref<1x32xf32, #tpu.memory_space<vmem>>, vector<1x32xf32>
    %c0_25 = arith.constant 0 : index
    %c0_26 = arith.constant 0 : index
    %45 = vector.load %arg9[%c0_25, %c0_26] : memref<1x32xf32, #tpu.memory_space<vmem>>, vector<1x32xf32>
    %cst_27 = arith.constant dense<0.000000e+00> : vector<8xf32>
    %46 = vector.multi_reduction <add>, %43, %cst_27 [1] : vector<8x32xf32> to vector<8xf32>
    %47 = vector.shape_cast %46 : vector<8xf32> to vector<8x1xf32>
    %cst_28 = arith.constant 3.200000e+01 : f32
    %48 = vector.broadcast %cst_28 : f32 to vector<8x1xf32>
    %49 = arith.divf %47, %48 : vector<8x1xf32>
    %50 = vector.broadcast %49 : vector<8x1xf32> to vector<8x32xf32>
    %51 = arith.subf %43, %50 : vector<8x32xf32>
    %52 = arith.mulf %51, %51 : vector<8x32xf32>
    %cst_29 = arith.constant dense<0.000000e+00> : vector<8xf32>
    %53 = vector.multi_reduction <add>, %52, %cst_29 [1] : vector<8x32xf32> to vector<8xf32>
    %54 = vector.shape_cast %53 : vector<8xf32> to vector<8x1xf32>
    %cst_30 = arith.constant 3.200000e+01 : f32
    %55 = vector.broadcast %cst_30 : f32 to vector<8x1xf32>
    %56 = arith.divf %54, %55 : vector<8x1xf32>
    %cst_31 = arith.constant 9.99999974E-6 : f32
    %57 = vector.broadcast %cst_31 : f32 to vector<8x1xf32>
    %58 = arith.addf %56, %57 : vector<8x1xf32>
    %59 = math.rsqrt %58 : vector<8x1xf32>
    %60 = vector.broadcast %59 : vector<8x1xf32> to vector<8x32xf32>
    %61 = arith.mulf %51, %60 : vector<8x32xf32>
    %62 = vector.broadcast %44 : vector<1x32xf32> to vector<8x32xf32>
    %63 = arith.mulf %61, %62 : vector<8x32xf32>
    %64 = vector.broadcast %45 : vector<1x32xf32> to vector<8x32xf32>
    %65 = arith.addf %63, %64 : vector<8x32xf32>
    %c0_32 = arith.constant 0 : index
    %c0_33 = arith.constant 0 : index
    %66 = vector.load %arg10[%c0_32, %c0_33] : memref<32x96xf32, #tpu.memory_space<vmem>>, vector<32x96xf32>
    %cst_34 = arith.constant dense<0.000000e+00> : vector<8x96xf32>
    %67 = tpu.matmul %65, %66, %cst_34 {dimension_numbers = #tpu.dot_dimension_numbers<[1], [0], [0], [1], [0, 0, 1, 1], [], []>} : vector<8x32xf32>, vector<32x96xf32>, vector<8x96xf32> -> vector<8x96xf32>
    %c0_35 = arith.constant 0 : index
    %c0_36 = arith.constant 0 : index
    %68 = vector.load %arg11[%c0_35, %c0_36] : memref<1x96xf32, #tpu.memory_space<vmem>>, vector<1x96xf32>
    %69 = vector.broadcast %68 : vector<1x96xf32> to vector<8x96xf32>
    %70 = arith.addf %67, %69 : vector<8x96xf32>
    %71 = vector.extract_strided_slice %70 {offsets = [0, 0], sizes = [8, 8], strides = [1, 1]} : vector<8x96xf32> to vector<8x8xf32>
    %72 = vector.extract_strided_slice %70 {offsets = [0, 32], sizes = [8, 8], strides = [1, 1]} : vector<8x96xf32> to vector<8x8xf32>
    %73 = vector.extract_strided_slice %70 {offsets = [0, 64], sizes = [8, 8], strides = [1, 1]} : vector<8x96xf32> to vector<8x8xf32>
    %74 = tpu.transpose %72, [1, 0] : vector<8x8xf32> -> vector<8x8xf32>
    %cst_37 = arith.constant dense<0.000000e+00> : vector<8x8xf32>
    %75 = tpu.matmul %71, %74, %cst_37 {dimension_numbers = #tpu.dot_dimension_numbers<[1], [0], [0], [1], [0, 0, 1, 1], [], []>} : vector<8x8xf32>, vector<8x8xf32>, vector<8x8xf32> -> vector<8x8xf32>
    %cst_38 = arith.constant 0.353553385 : f32
    %76 = vector.broadcast %cst_38 : f32 to vector<8x8xf32>
    %77 = arith.mulf %75, %76 : vector<8x8xf32>
    %cst_39 = arith.constant dense<0xFF800000> : vector<8xf32>
    %78 = vector.multi_reduction <maximumf>, %77, %cst_39 [1] : vector<8x8xf32> to vector<8xf32>
    %79 = vector.shape_cast %78 : vector<8xf32> to vector<8x1xf32>
    %80 = vector.broadcast %79 : vector<8x1xf32> to vector<8x8xf32>
    %81 = arith.subf %77, %80 : vector<8x8xf32>
    %82 = math.exp %81 : vector<8x8xf32>
    %cst_40 = arith.constant dense<0.000000e+00> : vector<8xf32>
    %83 = vector.multi_reduction <add>, %82, %cst_40 [1] : vector<8x8xf32> to vector<8xf32>
    %84 = vector.shape_cast %83 : vector<8xf32> to vector<8x1xf32>
    %85 = tpu.reciprocal %84 {approx = true} : vector<8x1xf32> -> vector<8x1xf32>
    %86 = vector.broadcast %85 : vector<8x1xf32> to vector<8x8xf32>
    %87 = arith.mulf %82, %86 : vector<8x8xf32>
    %cst_41 = arith.constant dense<0.000000e+00> : vector<8x8xf32>
    %88 = tpu.matmul %87, %73, %cst_41 {dimension_numbers = #tpu.dot_dimension_numbers<[1], [0], [0], [1], [0, 0, 1, 1], [], []>} : vector<8x8xf32>, vector<8x8xf32>, vector<8x8xf32> -> vector<8x8xf32>
    %89 = vector.extract_strided_slice %70 {offsets = [0, 8], sizes = [8, 8], strides = [1, 1]} : vector<8x96xf32> to vector<8x8xf32>
    %90 = vector.extract_strided_slice %70 {offsets = [0, 40], sizes = [8, 8], strides = [1, 1]} : vector<8x96xf32> to vector<8x8xf32>
    %91 = vector.extract_strided_slice %70 {offsets = [0, 72], sizes = [8, 8], strides = [1, 1]} : vector<8x96xf32> to vector<8x8xf32>
    %92 = tpu.transpose %90, [1, 0] : vector<8x8xf32> -> vector<8x8xf32>
    %cst_42 = arith.constant dense<0.000000e+00> : vector<8x8xf32>
    %93 = tpu.matmul %89, %92, %cst_42 {dimension_numbers = #tpu.dot_dimension_numbers<[1], [0], [0], [1], [0, 0, 1, 1], [], []>} : vector<8x8xf32>, vector<8x8xf32>, vector<8x8xf32> -> vector<8x8xf32>
    %cst_43 = arith.constant 0.353553385 : f32
    %94 = vector.broadcast %cst_43 : f32 to vector<8x8xf32>
    %95 = arith.mulf %93, %94 : vector<8x8xf32>
    %cst_44 = arith.constant dense<0xFF800000> : vector<8xf32>
    %96 = vector.multi_reduction <maximumf>, %95, %cst_44 [1] : vector<8x8xf32> to vector<8xf32>
    %97 = vector.shape_cast %96 : vector<8xf32> to vector<8x1xf32>
    %98 = vector.broadcast %97 : vector<8x1xf32> to vector<8x8xf32>
    %99 = arith.subf %95, %98 : vector<8x8xf32>
    %100 = math.exp %99 : vector<8x8xf32>
    %cst_45 = arith.constant dense<0.000000e+00> : vector<8xf32>
    %101 = vector.multi_reduction <add>, %100, %cst_45 [1] : vector<8x8xf32> to vector<8xf32>
    %102 = vector.shape_cast %101 : vector<8xf32> to vector<8x1xf32>
    %103 = tpu.reciprocal %102 {approx = true} : vector<8x1xf32> -> vector<8x1xf32>
    %104 = vector.broadcast %103 : vector<8x1xf32> to vector<8x8xf32>
    %105 = arith.mulf %100, %104 : vector<8x8xf32>
    %cst_46 = arith.constant dense<0.000000e+00> : vector<8x8xf32>
    %106 = tpu.matmul %105, %91, %cst_46 {dimension_numbers = #tpu.dot_dimension_numbers<[1], [0], [0], [1], [0, 0, 1, 1], [], []>} : vector<8x8xf32>, vector<8x8xf32>, vector<8x8xf32> -> vector<8x8xf32>
    %107 = vector.extract_strided_slice %70 {offsets = [0, 16], sizes = [8, 8], strides = [1, 1]} : vector<8x96xf32> to vector<8x8xf32>
    %108 = vector.extract_strided_slice %70 {offsets = [0, 48], sizes = [8, 8], strides = [1, 1]} : vector<8x96xf32> to vector<8x8xf32>
    %109 = vector.extract_strided_slice %70 {offsets = [0, 80], sizes = [8, 8], strides = [1, 1]} : vector<8x96xf32> to vector<8x8xf32>
    %110 = tpu.transpose %108, [1, 0] : vector<8x8xf32> -> vector<8x8xf32>
    %cst_47 = arith.constant dense<0.000000e+00> : vector<8x8xf32>
    %111 = tpu.matmul %107, %110, %cst_47 {dimension_numbers = #tpu.dot_dimension_numbers<[1], [0], [0], [1], [0, 0, 1, 1], [], []>} : vector<8x8xf32>, vector<8x8xf32>, vector<8x8xf32> -> vector<8x8xf32>
    %cst_48 = arith.constant 0.353553385 : f32
    %112 = vector.broadcast %cst_48 : f32 to vector<8x8xf32>
    %113 = arith.mulf %111, %112 : vector<8x8xf32>
    %cst_49 = arith.constant dense<0xFF800000> : vector<8xf32>
    %114 = vector.multi_reduction <maximumf>, %113, %cst_49 [1] : vector<8x8xf32> to vector<8xf32>
    %115 = vector.shape_cast %114 : vector<8xf32> to vector<8x1xf32>
    %116 = vector.broadcast %115 : vector<8x1xf32> to vector<8x8xf32>
    %117 = arith.subf %113, %116 : vector<8x8xf32>
    %118 = math.exp %117 : vector<8x8xf32>
    %cst_50 = arith.constant dense<0.000000e+00> : vector<8xf32>
    %119 = vector.multi_reduction <add>, %118, %cst_50 [1] : vector<8x8xf32> to vector<8xf32>
    %120 = vector.shape_cast %119 : vector<8xf32> to vector<8x1xf32>
    %121 = tpu.reciprocal %120 {approx = true} : vector<8x1xf32> -> vector<8x1xf32>
    %122 = vector.broadcast %121 : vector<8x1xf32> to vector<8x8xf32>
    %123 = arith.mulf %118, %122 : vector<8x8xf32>
    %cst_51 = arith.constant dense<0.000000e+00> : vector<8x8xf32>
    %124 = tpu.matmul %123, %109, %cst_51 {dimension_numbers = #tpu.dot_dimension_numbers<[1], [0], [0], [1], [0, 0, 1, 1], [], []>} : vector<8x8xf32>, vector<8x8xf32>, vector<8x8xf32> -> vector<8x8xf32>
    %125 = vector.extract_strided_slice %70 {offsets = [0, 24], sizes = [8, 8], strides = [1, 1]} : vector<8x96xf32> to vector<8x8xf32>
    %126 = vector.extract_strided_slice %70 {offsets = [0, 56], sizes = [8, 8], strides = [1, 1]} : vector<8x96xf32> to vector<8x8xf32>
    %127 = vector.extract_strided_slice %70 {offsets = [0, 88], sizes = [8, 8], strides = [1, 1]} : vector<8x96xf32> to vector<8x8xf32>
    %128 = tpu.transpose %126, [1, 0] : vector<8x8xf32> -> vector<8x8xf32>
    %cst_52 = arith.constant dense<0.000000e+00> : vector<8x8xf32>
    %129 = tpu.matmul %125, %128, %cst_52 {dimension_numbers = #tpu.dot_dimension_numbers<[1], [0], [0], [1], [0, 0, 1, 1], [], []>} : vector<8x8xf32>, vector<8x8xf32>, vector<8x8xf32> -> vector<8x8xf32>
    %cst_53 = arith.constant 0.353553385 : f32
    %130 = vector.broadcast %cst_53 : f32 to vector<8x8xf32>
    %131 = arith.mulf %129, %130 : vector<8x8xf32>
    %cst_54 = arith.constant dense<0xFF800000> : vector<8xf32>
    %132 = vector.multi_reduction <maximumf>, %131, %cst_54 [1] : vector<8x8xf32> to vector<8xf32>
    %133 = vector.shape_cast %132 : vector<8xf32> to vector<8x1xf32>
    %134 = vector.broadcast %133 : vector<8x1xf32> to vector<8x8xf32>
    %135 = arith.subf %131, %134 : vector<8x8xf32>
    %136 = math.exp %135 : vector<8x8xf32>
    %cst_55 = arith.constant dense<0.000000e+00> : vector<8xf32>
    %137 = vector.multi_reduction <add>, %136, %cst_55 [1] : vector<8x8xf32> to vector<8xf32>
    %138 = vector.shape_cast %137 : vector<8xf32> to vector<8x1xf32>
    %139 = tpu.reciprocal %138 {approx = true} : vector<8x1xf32> -> vector<8x1xf32>
    %140 = vector.broadcast %139 : vector<8x1xf32> to vector<8x8xf32>
    %141 = arith.mulf %136, %140 : vector<8x8xf32>
    %cst_56 = arith.constant dense<0.000000e+00> : vector<8x8xf32>
    %142 = tpu.matmul %141, %127, %cst_56 {dimension_numbers = #tpu.dot_dimension_numbers<[1], [0], [0], [1], [0, 0, 1, 1], [], []>} : vector<8x8xf32>, vector<8x8xf32>, vector<8x8xf32> -> vector<8x8xf32>
    %143 = tpu.concatenate %88, %106, %124, %142 in 1 : vector<8x8xf32>, vector<8x8xf32>, vector<8x8xf32>, vector<8x8xf32> -> vector<8x32xf32>
    %c0_57 = arith.constant 0 : index
    %c0_58 = arith.constant 0 : index
    %144 = vector.load %arg12[%c0_57, %c0_58] : memref<32x32xf32, #tpu.memory_space<vmem>>, vector<32x32xf32>
    %cst_59 = arith.constant dense<0.000000e+00> : vector<8x32xf32>
    %145 = tpu.matmul %143, %144, %cst_59 {dimension_numbers = #tpu.dot_dimension_numbers<[1], [0], [0], [1], [0, 0, 1, 1], [], []>} : vector<8x32xf32>, vector<32x32xf32>, vector<8x32xf32> -> vector<8x32xf32>
    %c0_60 = arith.constant 0 : index
    %c0_61 = arith.constant 0 : index
    %146 = vector.load %arg13[%c0_60, %c0_61] : memref<1x32xf32, #tpu.memory_space<vmem>>, vector<1x32xf32>
    %147 = vector.broadcast %146 : vector<1x32xf32> to vector<8x32xf32>
    %148 = arith.addf %145, %147 : vector<8x32xf32>
    %149 = arith.addf %43, %148 : vector<8x32xf32>
    %c0_62 = arith.constant 0 : index
    %c0_63 = arith.constant 0 : index
    %150 = vector.load %arg14[%c0_62, %c0_63] : memref<1x32xf32, #tpu.memory_space<vmem>>, vector<1x32xf32>
    %c0_64 = arith.constant 0 : index
    %c0_65 = arith.constant 0 : index
    %151 = vector.load %arg15[%c0_64, %c0_65] : memref<1x32xf32, #tpu.memory_space<vmem>>, vector<1x32xf32>
    %cst_66 = arith.constant dense<0.000000e+00> : vector<8xf32>
    %152 = vector.multi_reduction <add>, %149, %cst_66 [1] : vector<8x32xf32> to vector<8xf32>
    %153 = vector.shape_cast %152 : vector<8xf32> to vector<8x1xf32>
    %cst_67 = arith.constant 3.200000e+01 : f32
    %154 = vector.broadcast %cst_67 : f32 to vector<8x1xf32>
    %155 = arith.divf %153, %154 : vector<8x1xf32>
    %156 = vector.broadcast %155 : vector<8x1xf32> to vector<8x32xf32>
    %157 = arith.subf %149, %156 : vector<8x32xf32>
    %158 = arith.mulf %157, %157 : vector<8x32xf32>
    %cst_68 = arith.constant dense<0.000000e+00> : vector<8xf32>
    %159 = vector.multi_reduction <add>, %158, %cst_68 [1] : vector<8x32xf32> to vector<8xf32>
    %160 = vector.shape_cast %159 : vector<8xf32> to vector<8x1xf32>
    %cst_69 = arith.constant 3.200000e+01 : f32
    %161 = vector.broadcast %cst_69 : f32 to vector<8x1xf32>
    %162 = arith.divf %160, %161 : vector<8x1xf32>
    %cst_70 = arith.constant 9.99999974E-6 : f32
    %163 = vector.broadcast %cst_70 : f32 to vector<8x1xf32>
    %164 = arith.addf %162, %163 : vector<8x1xf32>
    %165 = math.rsqrt %164 : vector<8x1xf32>
    %166 = vector.broadcast %165 : vector<8x1xf32> to vector<8x32xf32>
    %167 = arith.mulf %157, %166 : vector<8x32xf32>
    %168 = vector.broadcast %150 : vector<1x32xf32> to vector<8x32xf32>
    %169 = arith.mulf %167, %168 : vector<8x32xf32>
    %170 = vector.broadcast %151 : vector<1x32xf32> to vector<8x32xf32>
    %171 = arith.addf %169, %170 : vector<8x32xf32>
    %c0_71 = arith.constant 0 : index
    %c0_72 = arith.constant 0 : index
    %172 = vector.load %arg16[%c0_71, %c0_72] : memref<32x64xf32, #tpu.memory_space<vmem>>, vector<32x64xf32>
    %cst_73 = arith.constant dense<0.000000e+00> : vector<8x64xf32>
    %173 = tpu.matmul %171, %172, %cst_73 {dimension_numbers = #tpu.dot_dimension_numbers<[1], [0], [0], [1], [0, 0, 1, 1], [], []>} : vector<8x32xf32>, vector<32x64xf32>, vector<8x64xf32> -> vector<8x64xf32>
    %c0_74 = arith.constant 0 : index
    %c0_75 = arith.constant 0 : index
    %174 = vector.load %arg17[%c0_74, %c0_75] : memref<1x64xf32, #tpu.memory_space<vmem>>, vector<1x64xf32>
    %175 = vector.broadcast %174 : vector<1x64xf32> to vector<8x64xf32>
    %176 = arith.addf %173, %175 : vector<8x64xf32>
    %177 = vector.extract_strided_slice %176 {offsets = [0, 0], sizes = [8, 32], strides = [1, 1]} : vector<8x64xf32> to vector<8x32xf32>
    %178 = vector.extract_strided_slice %176 {offsets = [0, 32], sizes = [8, 32], strides = [1, 1]} : vector<8x64xf32> to vector<8x32xf32>
    %cst_76 = arith.constant 0.000000e+00 : f32
    %179 = vector.broadcast %cst_76 : f32 to vector<8x32xf32>
    %180 = arith.subf %179, %178 : vector<8x32xf32>
    %181 = math.exp %180 : vector<8x32xf32>
    %cst_77 = arith.constant 1.000000e+00 : f32
    %182 = vector.broadcast %cst_77 : f32 to vector<8x32xf32>
    %183 = arith.addf %182, %181 : vector<8x32xf32>
    %184 = tpu.reciprocal %183 {approx = true} : vector<8x32xf32> -> vector<8x32xf32>
    %185 = arith.mulf %177, %184 : vector<8x32xf32>
    %c0_78 = arith.constant 0 : index
    %c0_79 = arith.constant 0 : index
    %186 = vector.load %arg18[%c0_78, %c0_79] : memref<7x32xf32, #tpu.memory_space<vmem>>, vector<7x32xf32>
    %187 = tpu.iota {dimensions = array<i32: 0>} : vector<8x32xi32>
    %c0_80 = arith.constant 0 : index
    %c0_81 = arith.constant 0 : index
    %188 = vector.load %arg19[%c0_80, %c0_81] : memref<1x32xf32, #tpu.memory_space<vmem>>, vector<1x32xf32>
    %189 = vector.shape_cast %188 : vector<1x32xf32> to vector<1x32xf32>
    %190 = vector.broadcast %189 : vector<1x32xf32> to vector<8x32xf32>
    %c3_i32 = arith.constant 3 : i32
    %191 = tpu.dynamic_rotate %185 by %c3_i32 dim 0 : vector<8x32xf32>, i32 -> vector<8x32xf32>
    %c3_i32_82 = arith.constant 3 : i32
    %192 = vector.broadcast %c3_i32_82 : i32 to vector<8x32xi32>
    %193 = arith.cmpi sge, %187, %192 : vector<8x32xi32>
    %c11_i32 = arith.constant 11 : i32
    %194 = vector.broadcast %c11_i32 : i32 to vector<8x32xi32>
    %195 = arith.cmpi slt, %187, %194 : vector<8x32xi32>
    %196 = arith.andi %193, %195 : vector<8x32xi1>
    %cst_83 = arith.constant 0.000000e+00 : f32
    %197 = vector.broadcast %cst_83 : f32 to vector<8x32xf32>
    %198 = arith.select %196, %191, %197 : vector<8x32xi1>, vector<8x32xf32>
    %199 = vector.extract_strided_slice %186 {offsets = [0, 0], sizes = [1, 32], strides = [1, 1]} : vector<7x32xf32> to vector<1x32xf32>
    %200 = vector.broadcast %199 : vector<1x32xf32> to vector<8x32xf32>
    %201 = arith.mulf %198, %200 : vector<8x32xf32>
    %202 = arith.addf %190, %201 : vector<8x32xf32>
    %c2_i32 = arith.constant 2 : i32
    %203 = tpu.dynamic_rotate %185 by %c2_i32 dim 0 : vector<8x32xf32>, i32 -> vector<8x32xf32>
    %c2_i32_84 = arith.constant 2 : i32
    %204 = vector.broadcast %c2_i32_84 : i32 to vector<8x32xi32>
    %205 = arith.cmpi sge, %187, %204 : vector<8x32xi32>
    %c10_i32 = arith.constant 10 : i32
    %206 = vector.broadcast %c10_i32 : i32 to vector<8x32xi32>
    %207 = arith.cmpi slt, %187, %206 : vector<8x32xi32>
    %208 = arith.andi %205, %207 : vector<8x32xi1>
    %cst_85 = arith.constant 0.000000e+00 : f32
    %209 = vector.broadcast %cst_85 : f32 to vector<8x32xf32>
    %210 = arith.select %208, %203, %209 : vector<8x32xi1>, vector<8x32xf32>
    %211 = vector.extract_strided_slice %186 {offsets = [1, 0], sizes = [1, 32], strides = [1, 1]} : vector<7x32xf32> to vector<1x32xf32>
    %212 = vector.broadcast %211 : vector<1x32xf32> to vector<8x32xf32>
    %213 = arith.mulf %210, %212 : vector<8x32xf32>
    %214 = arith.addf %202, %213 : vector<8x32xf32>
    %c1_i32 = arith.constant 1 : i32
    %215 = tpu.dynamic_rotate %185 by %c1_i32 dim 0 : vector<8x32xf32>, i32 -> vector<8x32xf32>
    %c1_i32_86 = arith.constant 1 : i32
    %216 = vector.broadcast %c1_i32_86 : i32 to vector<8x32xi32>
    %217 = arith.cmpi sge, %187, %216 : vector<8x32xi32>
    %c9_i32 = arith.constant 9 : i32
    %218 = vector.broadcast %c9_i32 : i32 to vector<8x32xi32>
    %219 = arith.cmpi slt, %187, %218 : vector<8x32xi32>
    %220 = arith.andi %217, %219 : vector<8x32xi1>
    %cst_87 = arith.constant 0.000000e+00 : f32
    %221 = vector.broadcast %cst_87 : f32 to vector<8x32xf32>
    %222 = arith.select %220, %215, %221 : vector<8x32xi1>, vector<8x32xf32>
    %223 = vector.extract_strided_slice %186 {offsets = [2, 0], sizes = [1, 32], strides = [1, 1]} : vector<7x32xf32> to vector<1x32xf32>
    %224 = vector.broadcast %223 : vector<1x32xf32> to vector<8x32xf32>
    %225 = arith.mulf %222, %224 : vector<8x32xf32>
    %226 = arith.addf %214, %225 : vector<8x32xf32>
    %227 = vector.extract_strided_slice %186 {offsets = [3, 0], sizes = [1, 32], strides = [1, 1]} : vector<7x32xf32> to vector<1x32xf32>
    %228 = vector.broadcast %227 : vector<1x32xf32> to vector<8x32xf32>
    %229 = arith.mulf %185, %228 : vector<8x32xf32>
    %230 = arith.addf %226, %229 : vector<8x32xf32>
    %c7_i32 = arith.constant 7 : i32
    %231 = tpu.dynamic_rotate %185 by %c7_i32 dim 0 : vector<8x32xf32>, i32 -> vector<8x32xf32>
    %c-1_i32 = arith.constant -1 : i32
    %232 = vector.broadcast %c-1_i32 : i32 to vector<8x32xi32>
    %233 = arith.cmpi sge, %187, %232 : vector<8x32xi32>
    %c7_i32_88 = arith.constant 7 : i32
    %234 = vector.broadcast %c7_i32_88 : i32 to vector<8x32xi32>
    %235 = arith.cmpi slt, %187, %234 : vector<8x32xi32>
    %236 = arith.andi %233, %235 : vector<8x32xi1>
    %cst_89 = arith.constant 0.000000e+00 : f32
    %237 = vector.broadcast %cst_89 : f32 to vector<8x32xf32>
    %238 = arith.select %236, %231, %237 : vector<8x32xi1>, vector<8x32xf32>
    %239 = vector.extract_strided_slice %186 {offsets = [4, 0], sizes = [1, 32], strides = [1, 1]} : vector<7x32xf32> to vector<1x32xf32>
    %240 = vector.broadcast %239 : vector<1x32xf32> to vector<8x32xf32>
    %241 = arith.mulf %238, %240 : vector<8x32xf32>
    %242 = arith.addf %230, %241 : vector<8x32xf32>
    %c6_i32 = arith.constant 6 : i32
    %243 = tpu.dynamic_rotate %185 by %c6_i32 dim 0 : vector<8x32xf32>, i32 -> vector<8x32xf32>
    %c-2_i32 = arith.constant -2 : i32
    %244 = vector.broadcast %c-2_i32 : i32 to vector<8x32xi32>
    %245 = arith.cmpi sge, %187, %244 : vector<8x32xi32>
    %c6_i32_90 = arith.constant 6 : i32
    %246 = vector.broadcast %c6_i32_90 : i32 to vector<8x32xi32>
    %247 = arith.cmpi slt, %187, %246 : vector<8x32xi32>
    %248 = arith.andi %245, %247 : vector<8x32xi1>
    %cst_91 = arith.constant 0.000000e+00 : f32
    %249 = vector.broadcast %cst_91 : f32 to vector<8x32xf32>
    %250 = arith.select %248, %243, %249 : vector<8x32xi1>, vector<8x32xf32>
    %251 = vector.extract_strided_slice %186 {offsets = [5, 0], sizes = [1, 32], strides = [1, 1]} : vector<7x32xf32> to vector<1x32xf32>
    %252 = vector.broadcast %251 : vector<1x32xf32> to vector<8x32xf32>
    %253 = arith.mulf %250, %252 : vector<8x32xf32>
    %254 = arith.addf %242, %253 : vector<8x32xf32>
    %c5_i32 = arith.constant 5 : i32
    %255 = tpu.dynamic_rotate %185 by %c5_i32 dim 0 : vector<8x32xf32>, i32 -> vector<8x32xf32>
    %c-3_i32 = arith.constant -3 : i32
    %256 = vector.broadcast %c-3_i32 : i32 to vector<8x32xi32>
    %257 = arith.cmpi sge, %187, %256 : vector<8x32xi32>
    %c5_i32_92 = arith.constant 5 : i32
    %258 = vector.broadcast %c5_i32_92 : i32 to vector<8x32xi32>
    %259 = arith.cmpi slt, %187, %258 : vector<8x32xi32>
    %260 = arith.andi %257, %259 : vector<8x32xi1>
    %cst_93 = arith.constant 0.000000e+00 : f32
    %261 = vector.broadcast %cst_93 : f32 to vector<8x32xf32>
    %262 = arith.select %260, %255, %261 : vector<8x32xi1>, vector<8x32xf32>
    %263 = vector.extract_strided_slice %186 {offsets = [6, 0], sizes = [1, 32], strides = [1, 1]} : vector<7x32xf32> to vector<1x32xf32>
    %264 = vector.broadcast %263 : vector<1x32xf32> to vector<8x32xf32>
    %265 = arith.mulf %262, %264 : vector<8x32xf32>
    %266 = arith.addf %254, %265 : vector<8x32xf32>
    %c0_94 = arith.constant 0 : index
    %c0_95 = arith.constant 0 : index
    %267 = vector.load %arg20[%c0_94, %c0_95] : memref<1x32xf32, #tpu.memory_space<vmem>>, vector<1x32xf32>
    %cst_96 = arith.constant 0.999994993 : f32
    %268 = vector.broadcast %cst_96 : f32 to vector<1x32xf32>
    %269 = arith.mulf %267, %268 : vector<1x32xf32>
    %270 = vector.broadcast %269 : vector<1x32xf32> to vector<8x32xf32>
    %271 = arith.mulf %266, %270 : vector<8x32xf32>
    %c0_97 = arith.constant 0 : index
    %c0_98 = arith.constant 0 : index
    %272 = vector.load %arg21[%c0_97, %c0_98] : memref<1x32xf32, #tpu.memory_space<vmem>>, vector<1x32xf32>
    %273 = vector.broadcast %272 : vector<1x32xf32> to vector<8x32xf32>
    %274 = arith.addf %271, %273 : vector<8x32xf32>
    %cst_99 = arith.constant 0.000000e+00 : f32
    %275 = vector.broadcast %cst_99 : f32 to vector<8x32xf32>
    %276 = arith.subf %275, %274 : vector<8x32xf32>
    %277 = math.exp %276 : vector<8x32xf32>
    %cst_100 = arith.constant 1.000000e+00 : f32
    %278 = vector.broadcast %cst_100 : f32 to vector<8x32xf32>
    %279 = arith.addf %278, %277 : vector<8x32xf32>
    %280 = tpu.reciprocal %279 {approx = true} : vector<8x32xf32> -> vector<8x32xf32>
    %281 = arith.mulf %274, %280 : vector<8x32xf32>
    %c0_101 = arith.constant 0 : index
    %c0_102 = arith.constant 0 : index
    %282 = vector.load %arg22[%c0_101, %c0_102] : memref<32x32xf32, #tpu.memory_space<vmem>>, vector<32x32xf32>
    %cst_103 = arith.constant dense<0.000000e+00> : vector<8x32xf32>
    %283 = tpu.matmul %281, %282, %cst_103 {dimension_numbers = #tpu.dot_dimension_numbers<[1], [0], [0], [1], [0, 0, 1, 1], [], []>} : vector<8x32xf32>, vector<32x32xf32>, vector<8x32xf32> -> vector<8x32xf32>
    %c0_104 = arith.constant 0 : index
    %c0_105 = arith.constant 0 : index
    %284 = vector.load %arg23[%c0_104, %c0_105] : memref<1x32xf32, #tpu.memory_space<vmem>>, vector<1x32xf32>
    %285 = vector.broadcast %284 : vector<1x32xf32> to vector<8x32xf32>
    %286 = arith.addf %283, %285 : vector<8x32xf32>
    %287 = arith.addf %149, %286 : vector<8x32xf32>
    %c0_106 = arith.constant 0 : index
    %c0_107 = arith.constant 0 : index
    %288 = vector.load %arg24[%c0_106, %c0_107] : memref<1x32xf32, #tpu.memory_space<vmem>>, vector<1x32xf32>
    %c0_108 = arith.constant 0 : index
    %c0_109 = arith.constant 0 : index
    %289 = vector.load %arg25[%c0_108, %c0_109] : memref<1x32xf32, #tpu.memory_space<vmem>>, vector<1x32xf32>
    %cst_110 = arith.constant dense<0.000000e+00> : vector<8xf32>
    %290 = vector.multi_reduction <add>, %287, %cst_110 [1] : vector<8x32xf32> to vector<8xf32>
    %291 = vector.shape_cast %290 : vector<8xf32> to vector<8x1xf32>
    %cst_111 = arith.constant 3.200000e+01 : f32
    %292 = vector.broadcast %cst_111 : f32 to vector<8x1xf32>
    %293 = arith.divf %291, %292 : vector<8x1xf32>
    %294 = vector.broadcast %293 : vector<8x1xf32> to vector<8x32xf32>
    %295 = arith.subf %287, %294 : vector<8x32xf32>
    %296 = arith.mulf %295, %295 : vector<8x32xf32>
    %cst_112 = arith.constant dense<0.000000e+00> : vector<8xf32>
    %297 = vector.multi_reduction <add>, %296, %cst_112 [1] : vector<8x32xf32> to vector<8xf32>
    %298 = vector.shape_cast %297 : vector<8xf32> to vector<8x1xf32>
    %cst_113 = arith.constant 3.200000e+01 : f32
    %299 = vector.broadcast %cst_113 : f32 to vector<8x1xf32>
    %300 = arith.divf %298, %299 : vector<8x1xf32>
    %cst_114 = arith.constant 9.99999974E-6 : f32
    %301 = vector.broadcast %cst_114 : f32 to vector<8x1xf32>
    %302 = arith.addf %300, %301 : vector<8x1xf32>
    %303 = math.rsqrt %302 : vector<8x1xf32>
    %304 = vector.broadcast %303 : vector<8x1xf32> to vector<8x32xf32>
    %305 = arith.mulf %295, %304 : vector<8x32xf32>
    %306 = vector.broadcast %288 : vector<1x32xf32> to vector<8x32xf32>
    %307 = arith.mulf %305, %306 : vector<8x32xf32>
    %308 = vector.broadcast %289 : vector<1x32xf32> to vector<8x32xf32>
    %309 = arith.addf %307, %308 : vector<8x32xf32>
    %c0_115 = arith.constant 0 : index
    %c0_116 = arith.constant 0 : index
    %310 = vector.load %arg26[%c0_115, %c0_116] : memref<32x128xf32, #tpu.memory_space<vmem>>, vector<32x128xf32>
    %cst_117 = arith.constant dense<0.000000e+00> : vector<8x128xf32>
    %311 = tpu.matmul %309, %310, %cst_117 {dimension_numbers = #tpu.dot_dimension_numbers<[1], [0], [0], [1], [0, 0, 1, 1], [], []>} : vector<8x32xf32>, vector<32x128xf32>, vector<8x128xf32> -> vector<8x128xf32>
    %c0_118 = arith.constant 0 : index
    %c0_119 = arith.constant 0 : index
    %312 = vector.load %arg27[%c0_118, %c0_119] : memref<1x128xf32, #tpu.memory_space<vmem>>, vector<1x128xf32>
    %313 = vector.broadcast %312 : vector<1x128xf32> to vector<8x128xf32>
    %314 = arith.addf %311, %313 : vector<8x128xf32>
    %cst_120 = arith.constant 0.000000e+00 : f32
    %315 = vector.broadcast %cst_120 : f32 to vector<8x128xf32>
    %316 = arith.subf %315, %314 : vector<8x128xf32>
    %317 = math.exp %316 : vector<8x128xf32>
    %cst_121 = arith.constant 1.000000e+00 : f32
    %318 = vector.broadcast %cst_121 : f32 to vector<8x128xf32>
    %319 = arith.addf %318, %317 : vector<8x128xf32>
    %320 = tpu.reciprocal %319 {approx = true} : vector<8x128xf32> -> vector<8x128xf32>
    %321 = arith.mulf %314, %320 : vector<8x128xf32>
    %c0_122 = arith.constant 0 : index
    %c0_123 = arith.constant 0 : index
    %322 = vector.load %arg28[%c0_122, %c0_123] : memref<128x32xf32, #tpu.memory_space<vmem>>, vector<128x32xf32>
    %cst_124 = arith.constant dense<0.000000e+00> : vector<8x32xf32>
    %323 = tpu.matmul %321, %322, %cst_124 {dimension_numbers = #tpu.dot_dimension_numbers<[1], [0], [0], [1], [0, 0, 1, 1], [], []>} : vector<8x128xf32>, vector<128x32xf32>, vector<8x32xf32> -> vector<8x32xf32>
    %c0_125 = arith.constant 0 : index
    %c0_126 = arith.constant 0 : index
    %324 = vector.load %arg29[%c0_125, %c0_126] : memref<1x32xf32, #tpu.memory_space<vmem>>, vector<1x32xf32>
    %325 = vector.broadcast %324 : vector<1x32xf32> to vector<8x32xf32>
    %326 = arith.addf %323, %325 : vector<8x32xf32>
    %cst_127 = arith.constant 5.000000e-01 : f32
    %327 = vector.broadcast %cst_127 : f32 to vector<8x32xf32>
    %328 = arith.mulf %327, %326 : vector<8x32xf32>
    %329 = arith.addf %287, %328 : vector<8x32xf32>
    %c0_128 = arith.constant 0 : index
    %c0_129 = arith.constant 0 : index
    %330 = vector.load %arg30[%c0_128, %c0_129] : memref<1x32xf32, #tpu.memory_space<vmem>>, vector<1x32xf32>
    %c0_130 = arith.constant 0 : index
    %c0_131 = arith.constant 0 : index
    %331 = vector.load %arg31[%c0_130, %c0_131] : memref<1x32xf32, #tpu.memory_space<vmem>>, vector<1x32xf32>
    %cst_132 = arith.constant dense<0.000000e+00> : vector<8xf32>
    %332 = vector.multi_reduction <add>, %329, %cst_132 [1] : vector<8x32xf32> to vector<8xf32>
    %333 = vector.shape_cast %332 : vector<8xf32> to vector<8x1xf32>
    %cst_133 = arith.constant 3.200000e+01 : f32
    %334 = vector.broadcast %cst_133 : f32 to vector<8x1xf32>
    %335 = arith.divf %333, %334 : vector<8x1xf32>
    %336 = vector.broadcast %335 : vector<8x1xf32> to vector<8x32xf32>
    %337 = arith.subf %329, %336 : vector<8x32xf32>
    %338 = arith.mulf %337, %337 : vector<8x32xf32>
    %cst_134 = arith.constant dense<0.000000e+00> : vector<8xf32>
    %339 = vector.multi_reduction <add>, %338, %cst_134 [1] : vector<8x32xf32> to vector<8xf32>
    %340 = vector.shape_cast %339 : vector<8xf32> to vector<8x1xf32>
    %cst_135 = arith.constant 3.200000e+01 : f32
    %341 = vector.broadcast %cst_135 : f32 to vector<8x1xf32>
    %342 = arith.divf %340, %341 : vector<8x1xf32>
    %cst_136 = arith.constant 9.99999974E-6 : f32
    %343 = vector.broadcast %cst_136 : f32 to vector<8x1xf32>
    %344 = arith.addf %342, %343 : vector<8x1xf32>
    %345 = math.rsqrt %344 : vector<8x1xf32>
    %346 = vector.broadcast %345 : vector<8x1xf32> to vector<8x32xf32>
    %347 = arith.mulf %337, %346 : vector<8x32xf32>
    %348 = vector.broadcast %330 : vector<1x32xf32> to vector<8x32xf32>
    %349 = arith.mulf %347, %348 : vector<8x32xf32>
    %350 = vector.broadcast %331 : vector<1x32xf32> to vector<8x32xf32>
    %351 = arith.addf %349, %350 : vector<8x32xf32>
    %352 = vector.shape_cast %351 : vector<8x32xf32> to vector<1x8x32xf32>
    %c0_137 = arith.constant 0 : index
    %c0_138 = arith.constant 0 : index
    %c0_139 = arith.constant 0 : index
    %353 = vector.load %arg32[%c0_137, %c0_138, %c0_139] : memref<1x8x32xf32, #tpu.memory_space<vmem>>, vector<1x8x32xf32>
    tpu.vector_store %arg32[%c0_137, %c0_138, %c0_139], %352 {strides = array<i32>} : memref<1x8x32xf32, #tpu.memory_space<vmem>>, vector<1x8x32xf32>,
    return
  }
  func.func @transform_0(%arg0: i32) -> (i32, i32, i32) {
    %c0_i32 = arith.constant 0 : i32
    %c0_i32_0 = arith.constant 0 : i32
    %c0_i32_1 = arith.constant 0 : i32
    return %arg0, %c0_i32, %c0_i32_0 : i32, i32, i32
  }
  func.func @transform_1(%arg0: i32) -> (i32, i32) {
    %c0_i32 = arith.constant 0 : i32
    %c0_i32_0 = arith.constant 0 : i32
    %c0_i32_1 = arith.constant 0 : i32
    return %c0_i32, %c0_i32_0 : i32, i32
  }
  func.func @transform_2(%arg0: i32) -> (i32, i32) {
    %c0_i32 = arith.constant 0 : i32
    %c0_i32_0 = arith.constant 0 : i32
    %c0_i32_1 = arith.constant 0 : i32
    return %c0_i32, %c0_i32_0 : i32, i32
  }
  func.func @transform_3(%arg0: i32) -> (i32, i32) {
    %c0_i32 = arith.constant 0 : i32
    %c0_i32_0 = arith.constant 0 : i32
    %c0_i32_1 = arith.constant 0 : i32
    return %c0_i32, %c0_i32_0 : i32, i32
  }
  func.func @transform_4(%arg0: i32) -> (i32, i32) {
    %c0_i32 = arith.constant 0 : i32
    %c0_i32_0 = arith.constant 0 : i32
    %c0_i32_1 = arith.constant 0 : i32
    return %c0_i32, %c0_i32_0 : i32, i32
  }
  func.func @transform_5(%arg0: i32) -> (i32, i32) {
    %c0_i32 = arith.constant 0 : i32
    %c0_i32_0 = arith.constant 0 : i32
    %c0_i32_1 = arith.constant 0 : i32
    return %c0_i32, %c0_i32_0 : i32, i32
  }
  func.func @transform_6(%arg0: i32) -> (i32, i32) {
    %c0_i32 = arith.constant 0 : i32
    %c0_i32_0 = arith.constant 0 : i32
    %c0_i32_1 = arith.constant 0 : i32
    return %c0_i32, %c0_i32_0 : i32, i32
  }
  func.func @transform_7(%arg0: i32) -> (i32, i32) {
    %c0_i32 = arith.constant 0 : i32
    %c0_i32_0 = arith.constant 0 : i32
    %c0_i32_1 = arith.constant 0 : i32
    return %c0_i32, %c0_i32_0 : i32, i32
  }
  func.func @transform_8(%arg0: i32) -> (i32, i32) {
    %c0_i32 = arith.constant 0 : i32
    %c0_i32_0 = arith.constant 0 : i32
    %c0_i32_1 = arith.constant 0 : i32
    return %c0_i32, %c0_i32_0 : i32, i32
  }
  func.func @transform_9(%arg0: i32) -> (i32, i32) {
    %c0_i32 = arith.constant 0 : i32
    %c0_i32_0 = arith.constant 0 : i32
    %c0_i32_1 = arith.constant 0 : i32
    return %c0_i32, %c0_i32_0 : i32, i32
  }
  func.func @transform_10(%arg0: i32) -> (i32, i32) {
    %c0_i32 = arith.constant 0 : i32
    %c0_i32_0 = arith.constant 0 : i32
    %c0_i32_1 = arith.constant 0 : i32
    return %c0_i32, %c0_i32_0 : i32, i32
  }
  func.func @transform_11(%arg0: i32) -> (i32, i32) {
    %c0_i32 = arith.constant 0 : i32
    %c0_i32_0 = arith.constant 0 : i32
    %c0_i32_1 = arith.constant 0 : i32
    return %c0_i32, %c0_i32_0 : i32, i32
  }
  func.func @transform_12(%arg0: i32) -> (i32, i32) {
    %c0_i32 = arith.constant 0 : i32
    %c0_i32_0 = arith.constant 0 : i32
    %c0_i32_1 = arith.constant 0 : i32
    return %c0_i32, %c0_i32_0 : i32, i32
  }
  func.func @transform_13(%arg0: i32) -> (i32, i32) {
    %c0_i32 = arith.constant 0 : i32
    %c0_i32_0 = arith.constant 0 : i32
    %c0_i32_1 = arith.constant 0 : i32
    return %c0_i32, %c0_i32_0 : i32, i32
  }
  func.func @transform_14(%arg0: i32) -> (i32, i32) {
    %c0_i32 = arith.constant 0 : i32
    %c0_i32_0 = arith.constant 0 : i32
    %c0_i32_1 = arith.constant 0 : i32
    return %c0_i32, %c0_i32_0 : i32, i32
  }
  func.func @transform_15(%arg0: i32) -> (i32, i32) {
    %c0_i32 = arith.constant 0 : i32
    %c0_i32_0 = arith.constant 0 : i32
    %c0_i32_1 = arith.constant 0 : i32
    return %c0_i32, %c0_i32_0 : i32, i32
  }
  func.func @transform_16(%arg0: i32) -> (i32, i32) {
    %c0_i32 = arith.constant 0 : i32
    %c0_i32_0 = arith.constant 0 : i32
    %c0_i32_1 = arith.constant 0 : i32
    return %c0_i32, %c0_i32_0 : i32, i32
  }
  func.func @transform_17(%arg0: i32) -> (i32, i32) {
    %c0_i32 = arith.constant 0 : i32
    %c0_i32_0 = arith.constant 0 : i32
    %c0_i32_1 = arith.constant 0 : i32
    return %c0_i32, %c0_i32_0 : i32, i32
  }
  func.func @transform_18(%arg0: i32) -> (i32, i32) {
    %c0_i32 = arith.constant 0 : i32
    %c0_i32_0 = arith.constant 0 : i32
    %c0_i32_1 = arith.constant 0 : i32
    return %c0_i32, %c0_i32_0 : i32, i32
  }
  func.func @transform_19(%arg0: i32) -> (i32, i32) {
    %c0_i32 = arith.constant 0 : i32
    %c0_i32_0 = arith.constant 0 : i32
    %c0_i32_1 = arith.constant 0 : i32
    return %c0_i32, %c0_i32_0 : i32, i32
  }
  func.func @transform_20(%arg0: i32) -> (i32, i32) {
    %c0_i32 = arith.constant 0 : i32
    %c0_i32_0 = arith.constant 0 : i32
    %c0_i32_1 = arith.constant 0 : i32
    return %c0_i32, %c0_i32_0 : i32, i32
  }
  func.func @transform_21(%arg0: i32) -> (i32, i32) {
    %c0_i32 = arith.constant 0 : i32
    %c0_i32_0 = arith.constant 0 : i32
    %c0_i32_1 = arith.constant 0 : i32
    return %c0_i32, %c0_i32_0 : i32, i32
  }
  func.func @transform_22(%arg0: i32) -> (i32, i32) {
    %c0_i32 = arith.constant 0 : i32
    %c0_i32_0 = arith.constant 0 : i32
    %c0_i32_1 = arith.constant 0 : i32
    return %c0_i32, %c0_i32_0 : i32, i32
  }
  func.func @transform_23(%arg0: i32) -> (i32, i32) {
    %c0_i32 = arith.constant 0 : i32
    %c0_i32_0 = arith.constant 0 : i32
    %c0_i32_1 = arith.constant 0 : i32
    return %c0_i32, %c0_i32_0 : i32, i32
  }
  func.func @transform_24(%arg0: i32) -> (i32, i32) {
    %c0_i32 = arith.constant 0 : i32
    %c0_i32_0 = arith.constant 0 : i32
    %c0_i32_1 = arith.constant 0 : i32
    return %c0_i32, %c0_i32_0 : i32, i32
  }
  func.func @transform_25(%arg0: i32) -> (i32, i32) {
    %c0_i32 = arith.constant 0 : i32
    %c0_i32_0 = arith.constant 0 : i32
    %c0_i32_1 = arith.constant 0 : i32
    return %c0_i32, %c0_i32_0 : i32, i32
  }
  func.func @transform_26(%arg0: i32) -> (i32, i32) {
    %c0_i32 = arith.constant 0 : i32
    %c0_i32_0 = arith.constant 0 : i32
    %c0_i32_1 = arith.constant 0 : i32
    return %c0_i32, %c0_i32_0 : i32, i32
  }
  func.func @transform_27(%arg0: i32) -> (i32, i32) {
    %c0_i32 = arith.constant 0 : i32
    %c0_i32_0 = arith.constant 0 : i32
    %c0_i32_1 = arith.constant 0 : i32
    return %c0_i32, %c0_i32_0 : i32, i32
  }
  func.func @transform_28(%arg0: i32) -> (i32, i32) {
    %c0_i32 = arith.constant 0 : i32
    %c0_i32_0 = arith.constant 0 : i32
    %c0_i32_1 = arith.constant 0 : i32
    return %c0_i32, %c0_i32_0 : i32, i32
  }
  func.func @transform_29(%arg0: i32) -> (i32, i32) {
    %c0_i32 = arith.constant 0 : i32
    %c0_i32_0 = arith.constant 0 : i32
    %c0_i32_1 = arith.constant 0 : i32
    return %c0_i32, %c0_i32_0 : i32, i32
  }
  func.func @transform_30(%arg0: i32) -> (i32, i32) {
    %c0_i32 = arith.constant 0 : i32
    %c0_i32_0 = arith.constant 0 : i32
    %c0_i32_1 = arith.constant 0 : i32
    return %c0_i32, %c0_i32_0 : i32, i32
  }
  func.func @transform_31(%arg0: i32) -> (i32, i32, i32) {
    %c0_i32 = arith.constant 0 : i32
    %c0_i32_0 = arith.constant 0 : i32
    %c0_i32_1 = arith.constant 0 : i32
    return %arg0, %c0_i32, %c0_i32_0 : i32, i32, i32
  }
}

module attributes {stable_mosaic.version = 11 : i64} {
  func.func @_classifier_kernel(%arg0: memref<16x32xf32, #tpu.memory_space<vmem>>, %arg1: memref<32x128xf32, #tpu.memory_space<vmem>>, %arg2: memref<1x128xf32, #tpu.memory_space<vmem>>, %arg3: memref<16x128xf32, #tpu.memory_space<vmem>>) attributes {dimension_semantics = [], scalar_prefetch = 0 : i64, scratch_operands = 0 : i64, tpu.core_type = #tpu.core_type<tc>} {
    %c0 = arith.constant 0 : index
    %c0_0 = arith.constant 0 : index
    %0 = vector.load %arg0[%c0, %c0_0] : memref<16x32xf32, #tpu.memory_space<vmem>>, vector<16x32xf32>
    %c0_1 = arith.constant 0 : index
    %c0_2 = arith.constant 0 : index
    %1 = vector.load %arg1[%c0_1, %c0_2] : memref<32x128xf32, #tpu.memory_space<vmem>>, vector<32x128xf32>
    %cst = arith.constant dense<0.000000e+00> : vector<16x128xf32>
    %2 = tpu.matmul %0, %1, %cst {dimension_numbers = #tpu.dot_dimension_numbers<[1], [0], [0], [1], [0, 0, 1, 1], [], []>} : vector<16x32xf32>, vector<32x128xf32>, vector<16x128xf32> -> vector<16x128xf32>
    %c0_3 = arith.constant 0 : index
    %c0_4 = arith.constant 0 : index
    %3 = vector.load %arg2[%c0_3, %c0_4] : memref<1x128xf32, #tpu.memory_space<vmem>>, vector<1x128xf32>
    %4 = vector.broadcast %3 : vector<1x128xf32> to vector<16x128xf32>
    %5 = arith.addf %2, %4 : vector<16x128xf32>
    %cst_5 = arith.constant dense<0xFF800000> : vector<16xf32>
    %6 = vector.multi_reduction <maximumf>, %5, %cst_5 [1] : vector<16x128xf32> to vector<16xf32>
    %7 = vector.shape_cast %6 : vector<16xf32> to vector<16x1xf32>
    %8 = vector.broadcast %7 : vector<16x1xf32> to vector<16x128xf32>
    %9 = arith.subf %5, %8 : vector<16x128xf32>
    %10 = math.exp %9 : vector<16x128xf32>
    %cst_6 = arith.constant dense<0.000000e+00> : vector<16xf32>
    %11 = vector.multi_reduction <add>, %10, %cst_6 [1] : vector<16x128xf32> to vector<16xf32>
    %12 = vector.shape_cast %11 : vector<16xf32> to vector<16x1xf32>
    %13 = math.log %12 : vector<16x1xf32>
    %14 = vector.broadcast %13 : vector<16x1xf32> to vector<16x128xf32>
    %15 = arith.subf %9, %14 : vector<16x128xf32>
    %c0_7 = arith.constant 0 : index
    %c0_8 = arith.constant 0 : index
    %16 = vector.load %arg3[%c0_7, %c0_8] : memref<16x128xf32, #tpu.memory_space<vmem>>, vector<16x128xf32>
    tpu.vector_store %arg3[%c0_7, %c0_8], %15 {strides = array<i32>} : memref<16x128xf32, #tpu.memory_space<vmem>>, vector<16x128xf32>,
    return
  }
}

module attributes {stable_mosaic.version = 11 : i64} {
  func.func @_conformer_block_kernel(%arg0: i32, %arg1: memref<1x8x32xf32, #tpu.memory_space<vmem>>, %arg2: memref<1x32xf32, #tpu.memory_space<vmem>>, %arg3: memref<1x32xf32, #tpu.memory_space<vmem>>, %arg4: memref<32x128xf32, #tpu.memory_space<vmem>>, %arg5: memref<1x128xf32, #tpu.memory_space<vmem>>, %arg6: memref<128x32xf32, #tpu.memory_space<vmem>>, %arg7: memref<1x32xf32, #tpu.memory_space<vmem>>, %arg8: memref<1x32xf32, #tpu.memory_space<vmem>>, %arg9: memref<1x32xf32, #tpu.memory_space<vmem>>, %arg10: memref<32x96xf32, #tpu.memory_space<vmem>>, %arg11: memref<1x96xf32, #tpu.memory_space<vmem>>, %arg12: memref<32x32xf32, #tpu.memory_space<vmem>>, %arg13: memref<1x32xf32, #tpu.memory_space<vmem>>, %arg14: memref<1x32xf32, #tpu.memory_space<vmem>>, %arg15: memref<1x32xf32, #tpu.memory_space<vmem>>, %arg16: memref<32x64xf32, #tpu.memory_space<vmem>>, %arg17: memref<1x64xf32, #tpu.memory_space<vmem>>, %arg18: memref<7x32xf32, #tpu.memory_space<vmem>>, %arg19: memref<1x32xf32, #tpu.memory_space<vmem>>, %arg20: memref<1x32xf32, #tpu.memory_space<vmem>>, %arg21: memref<1x32xf32, #tpu.memory_space<vmem>>, %arg22: memref<32x32xf32, #tpu.memory_space<vmem>>, %arg23: memref<1x32xf32, #tpu.memory_space<vmem>>, %arg24: memref<1x32xf32, #tpu.memory_space<vmem>>, %arg25: memref<1x32xf32, #tpu.memory_space<vmem>>, %arg26: memref<32x128xf32, #tpu.memory_space<vmem>>, %arg27: memref<1x128xf32, #tpu.memory_space<vmem>>, %arg28: memref<128x32xf32, #tpu.memory_space<vmem>>, %arg29: memref<1x32xf32, #tpu.memory_space<vmem>>, %arg30: memref<1x32xf32, #tpu.memory_space<vmem>>, %arg31: memref<1x32xf32, #tpu.memory_space<vmem>>, %arg32: memref<1x8x32xf32, #tpu.memory_space<vmem>>) attributes {dimension_semantics = [#tpu.dimension_semantics<parallel>], iteration_bounds = array<i64: 2>, scalar_prefetch = 0 : i64, scratch_operands = 0 : i64, tpu.core_type = #tpu.core_type<tc>, window_params = [{transform_indices = @transform_0, window_bounds = array<i64: 1, 8, 32>}, {pipeline_mode = #tpu.pipeline_mode<synchronous>, transform_indices = @transform_1, window_bounds = array<i64: 1, 32>}, {pipeline_mode = #tpu.pipeline_mode<synchronous>, transform_indices = @transform_2, window_bounds = array<i64: 1, 32>}, {pipeline_mode = #tpu.pipeline_mode<synchronous>, transform_indices = @transform_3, window_bounds = array<i64: 32, 128>}, {pipeline_mode = #tpu.pipeline_mode<synchronous>, transform_indices = @transform_4, window_bounds = array<i64: 1, 128>}, {pipeline_mode = #tpu.pipeline_mode<synchronous>, transform_indices = @transform_5, window_bounds = array<i64: 128, 32>}, {pipeline_mode = #tpu.pipeline_mode<synchronous>, transform_indices = @transform_6, window_bounds = array<i64: 1, 32>}, {pipeline_mode = #tpu.pipeline_mode<synchronous>, transform_indices = @transform_7, window_bounds = array<i64: 1, 32>}, {pipeline_mode = #tpu.pipeline_mode<synchronous>, transform_indices = @transform_8, window_bounds = array<i64: 1, 32>}, {pipeline_mode = #tpu.pipeline_mode<synchronous>, transform_indices = @transform_9, window_bounds = array<i64: 32, 96>}, {pipeline_mode = #tpu.pipeline_mode<synchronous>, transform_indices = @transform_10, window_bounds = array<i64: 1, 96>}, {pipeline_mode = #tpu.pipeline_mode<synchronous>, transform_indices = @transform_11, window_bounds = array<i64: 32, 32>}, {pipeline_mode = #tpu.pipeline_mode<synchronous>, transform_indices = @transform_12, window_bounds = array<i64: 1, 32>}, {pipeline_mode = #tpu.pipeline_mode<synchronous>, transform_indices = @transform_13, window_bounds = array<i64: 1, 32>}, {pipeline_mode = #tpu.pipeline_mode<synchronous>, transform_indices = @transform_14, window_bounds = array<i64: 1, 32>}, {pipeline_mode = #tpu.pipeline_mode<synchronous>, transform_indices = @transform_15, window_bounds = array<i64: 32, 64>}, {pipeline_mode = #tpu.pipeline_mode<synchronous>, transform_indices = @transform_16, window_bounds = array<i64: 1, 64>}, {pipeline_mode = #tpu.pipeline_mode<synchronous>, transform_indices = @transform_17, window_bounds = array<i64: 7, 32>}, {pipeline_mode = #tpu.pipeline_mode<synchronous>, transform_indices = @transform_18, window_bounds = array<i64: 1, 32>}, {pipeline_mode = #tpu.pipeline_mode<synchronous>, transform_indices = @transform_19, window_bounds = array<i64: 1, 32>}, {pipeline_mode = #tpu.pipeline_mode<synchronous>, transform_indices = @transform_20, window_bounds = array<i64: 1, 32>}, {pipeline_mode = #tpu.pipeline_mode<synchronous>, transform_indices = @transform_21, window_bounds = array<i64: 32, 32>}, {pipeline_mode = #tpu.pipeline_mode<synchronous>, transform_indices = @transform_22, window_bounds = array<i64: 1, 32>}, {pipeline_mode = #tpu.pipeline_mode<synchronous>, transform_indices = @transform_23, window_bounds = array<i64: 1, 32>}, {pipeline_mode = #tpu.pipeline_mode<synchronous>, transform_indices = @transform_24, window_bounds = array<i64: 1, 32>}, {pipeline_mode = #tpu.pipeline_mode<synchronous>, transform_indices = @transform_25, window_bounds = array<i64: 32, 128>}, {pipeline_mode = #tpu.pipeline_mode<synchronous>, transform_indices = @transform_26, window_bounds = array<i64: 1, 128>}, {pipeline_mode = #tpu.pipeline_mode<synchronous>, transform_indices = @transform_27, window_bounds = array<i64: 128, 32>}, {pipeline_mode = #tpu.pipeline_mode<synchronous>, transform_indices = @transform_28, window_bounds = array<i64: 1, 32>}, {pipeline_mode = #tpu.pipeline_mode<synchronous>, transform_indices = @transform_29, window_bounds = array<i64: 1, 32>}, {pipeline_mode = #tpu.pipeline_mode<synchronous>, transform_indices = @transform_30, window_bounds = array<i64: 1, 32>}, {transform_indices = @transform_31, window_bounds = array<i64: 1, 8, 32>}]} {
    %c0 = arith.constant 0 : index
    %c0_0 = arith.constant 0 : index
    %c0_1 = arith.constant 0 : index
    %0 = vector.load %arg1[%c0, %c0_0, %c0_1] : memref<1x8x32xf32, #tpu.memory_space<vmem>>, vector<1x8x32xf32>
    %1 = vector.shape_cast %0 : vector<1x8x32xf32> to vector<8x32xf32>
    %c0_2 = arith.constant 0 : index
    %c0_3 = arith.constant 0 : index
    %2 = vector.load %arg2[%c0_2, %c0_3] : memref<1x32xf32, #tpu.memory_space<vmem>>, vector<1x32xf32>
    %c0_4 = arith.constant 0 : index
    %c0_5 = arith.constant 0 : index
    %3 = vector.load %arg3[%c0_4, %c0_5] : memref<1x32xf32, #tpu.memory_space<vmem>>, vector<1x32xf32>
    %cst = arith.constant dense<0.000000e+00> : vector<8xf32>
    %4 = vector.multi_reduction <add>, %1, %cst [1] : vector<8x32xf32> to vector<8xf32>
    %5 = vector.shape_cast %4 : vector<8xf32> to vector<8x1xf32>
    %cst_6 = arith.constant 3.200000e+01 : f32
    %6 = vector.broadcast %cst_6 : f32 to vector<8x1xf32>
    %7 = arith.divf %5, %6 : vector<8x1xf32>
    %8 = vector.broadcast %7 : vector<8x1xf32> to vector<8x32xf32>
    %9 = arith.subf %1, %8 : vector<8x32xf32>
    %10 = arith.mulf %9, %9 : vector<8x32xf32>
    %cst_7 = arith.constant dense<0.000000e+00> : vector<8xf32>
    %11 = vector.multi_reduction <add>, %10, %cst_7 [1] : vector<8x32xf32> to vector<8xf32>
    %12 = vector.shape_cast %11 : vector<8xf32> to vector<8x1xf32>
    %cst_8 = arith.constant 3.200000e+01 : f32
    %13 = vector.broadcast %cst_8 : f32 to vector<8x1xf32>
    %14 = arith.divf %12, %13 : vector<8x1xf32>
    %cst_9 = arith.constant 9.99999974E-6 : f32
    %15 = vector.broadcast %cst_9 : f32 to vector<8x1xf32>
    %16 = arith.addf %14, %15 : vector<8x1xf32>
    %17 = math.rsqrt %16 : vector<8x1xf32>
    %18 = vector.broadcast %17 : vector<8x1xf32> to vector<8x32xf32>
    %19 = arith.mulf %9, %18 : vector<8x32xf32>
    %20 = vector.broadcast %2 : vector<1x32xf32> to vector<8x32xf32>
    %21 = arith.mulf %19, %20 : vector<8x32xf32>
    %22 = vector.broadcast %3 : vector<1x32xf32> to vector<8x32xf32>
    %23 = arith.addf %21, %22 : vector<8x32xf32>
    %c0_10 = arith.constant 0 : index
    %c0_11 = arith.constant 0 : index
    %24 = vector.load %arg4[%c0_10, %c0_11] : memref<32x128xf32, #tpu.memory_space<vmem>>, vector<32x128xf32>
    %cst_12 = arith.constant dense<0.000000e+00> : vector<8x128xf32>
    %25 = tpu.matmul %23, %24, %cst_12 {dimension_numbers = #tpu.dot_dimension_numbers<[1], [0], [0], [1], [0, 0, 1, 1], [], []>} : vector<8x32xf32>, vector<32x128xf32>, vector<8x128xf32> -> vector<8x128xf32>
    %c0_13 = arith.constant 0 : index
    %c0_14 = arith.constant 0 : index
    %26 = vector.load %arg5[%c0_13, %c0_14] : memref<1x128xf32, #tpu.memory_space<vmem>>, vector<1x128xf32>
    %27 = vector.broadcast %26 : vector<1x128xf32> to vector<8x128xf32>
    %28 = arith.addf %25, %27 : vector<8x128xf32>
    %cst_15 = arith.constant 0.000000e+00 : f32
    %29 = vector.broadcast %cst_15 : f32 to vector<8x128xf32>
    %30 = arith.subf %29, %28 : vector<8x128xf32>
    %31 = math.exp %30 : vector<8x128xf32>
    %cst_16 = arith.constant 1.000000e+00 : f32
    %32 = vector.broadcast %cst_16 : f32 to vector<8x128xf32>
    %33 = arith.addf %32, %31 : vector<8x128xf32>
    %34 = tpu.reciprocal %33 {approx = true} : vector<8x128xf32> -> vector<8x128xf32>
    %35 = arith.mulf %28, %34 : vector<8x128xf32>
    %c0_17 = arith.constant 0 : index
    %c0_18 = arith.constant 0 : index
    %36 = vector.load %arg6[%c0_17, %c0_18] : memref<128x32xf32, #tpu.memory_space<vmem>>, vector<128x32xf32>
    %cst_19 = arith.constant dense<0.000000e+00> : vector<8x32xf32>
    %37 = tpu.matmul %35, %36, %cst_19 {dimension_numbers = #tpu.dot_dimension_numbers<[1], [0], [0], [1], [0, 0, 1, 1], [], []>} : vector<8x128xf32>, vector<128x32xf32>, vector<8x32xf32> -> vector<8x32xf32>
    %c0_20 = arith.constant 0 : index
    %c0_21 = arith.constant 0 : index
    %38 = vector.load %arg7[%c0_20, %c0_21] : memref<1x32xf32, #tpu.memory_space<vmem>>, vector<1x32xf32>
    %39 = vector.broadcast %38 : vector<1x32xf32> to vector<8x32xf32>
    %40 = arith.addf %37, %39 : vector<8x32xf32>
    %cst_22 = arith.constant 5.000000e-01 : f32
    %41 = vector.broadcast %cst_22 : f32 to vector<8x32xf32>
    %42 = arith.mulf %41, %40 : vector<8x32xf32>
    %43 = arith.addf %1, %42 : vector<8x32xf32>
    %c0_23 = arith.constant 0 : index
    %c0_24 = arith.constant 0 : index
    %44 = vector.load %arg8[%c0_23, %c0_24] : memref<1x32xf32, #tpu.memory_space<vmem>>, vector<1x32xf32>
    %c0_25 = arith.constant 0 : index
    %c0_26 = arith.constant 0 : index
    %45 = vector.load %arg9[%c0_25, %c0_26] : memref<1x32xf32, #tpu.memory_space<vmem>>, vector<1x32xf32>
    %cst_27 = arith.constant dense<0.000000e+00> : vector<8xf32>
    %46 = vector.multi_reduction <add>, %43, %cst_27 [1] : vector<8x32xf32> to vector<8xf32>
    %47 = vector.shape_cast %46 : vector<8xf32> to vector<8x1xf32>
    %cst_28 = arith.constant 3.200000e+01 : f32
    %48 = vector.broadcast %cst_28 : f32 to vector<8x1xf32>
    %49 = arith.divf %47, %48 : vector<8x1xf32>
    %50 = vector.broadcast %49 : vector<8x1xf32> to vector<8x32xf32>
    %51 = arith.subf %43, %50 : vector<8x32xf32>
    %52 = arith.mulf %51, %51 : vector<8x32xf32>
    %cst_29 = arith.constant dense<0.000000e+00> : vector<8xf32>
    %53 = vector.multi_reduction <add>, %52, %cst_29 [1] : vector<8x32xf32> to vector<8xf32>
    %54 = vector.shape_cast %53 : vector<8xf32> to vector<8x1xf32>
    %cst_30 = arith.constant 3.200000e+01 : f32
    %55 = vector.broadcast %cst_30 : f32 to vector<8x1xf32>
    %56 = arith.divf %54, %55 : vector<8x1xf32>
    %cst_31 = arith.constant 9.99999974E-6 : f32
    %57 = vector.broadcast %cst_31 : f32 to vector<8x1xf32>
    %58 = arith.addf %56, %57 : vector<8x1xf32>
    %59 = math.rsqrt %58 : vector<8x1xf32>
    %60 = vector.broadcast %59 : vector<8x1xf32> to vector<8x32xf32>
    %61 = arith.mulf %51, %60 : vector<8x32xf32>
    %62 = vector.broadcast %44 : vector<1x32xf32> to vector<8x32xf32>
    %63 = arith.mulf %61, %62 : vector<8x32xf32>
    %64 = vector.broadcast %45 : vector<1x32xf32> to vector<8x32xf32>
    %65 = arith.addf %63, %64 : vector<8x32xf32>
    %c0_32 = arith.constant 0 : index
    %c0_33 = arith.constant 0 : index
    %66 = vector.load %arg10[%c0_32, %c0_33] : memref<32x96xf32, #tpu.memory_space<vmem>>, vector<32x96xf32>
    %cst_34 = arith.constant dense<0.000000e+00> : vector<8x96xf32>
    %67 = tpu.matmul %65, %66, %cst_34 {dimension_numbers = #tpu.dot_dimension_numbers<[1], [0], [0], [1], [0, 0, 1, 1], [], []>} : vector<8x32xf32>, vector<32x96xf32>, vector<8x96xf32> -> vector<8x96xf32>
    %c0_35 = arith.constant 0 : index
    %c0_36 = arith.constant 0 : index
    %68 = vector.load %arg11[%c0_35, %c0_36] : memref<1x96xf32, #tpu.memory_space<vmem>>, vector<1x96xf32>
    %69 = vector.broadcast %68 : vector<1x96xf32> to vector<8x96xf32>
    %70 = arith.addf %67, %69 : vector<8x96xf32>
    %71 = vector.extract_strided_slice %70 {offsets = [0, 0], sizes = [8, 8], strides = [1, 1]} : vector<8x96xf32> to vector<8x8xf32>
    %72 = vector.extract_strided_slice %70 {offsets = [0, 32], sizes = [8, 8], strides = [1, 1]} : vector<8x96xf32> to vector<8x8xf32>
    %73 = vector.extract_strided_slice %70 {offsets = [0, 64], sizes = [8, 8], strides = [1, 1]} : vector<8x96xf32> to vector<8x8xf32>
    %74 = tpu.transpose %72, [1, 0] : vector<8x8xf32> -> vector<8x8xf32>
    %cst_37 = arith.constant dense<0.000000e+00> : vector<8x8xf32>
    %75 = tpu.matmul %71, %74, %cst_37 {dimension_numbers = #tpu.dot_dimension_numbers<[1], [0], [0], [1], [0, 0, 1, 1], [], []>} : vector<8x8xf32>, vector<8x8xf32>, vector<8x8xf32> -> vector<8x8xf32>
    %cst_38 = arith.constant 0.353553385 : f32
    %76 = vector.broadcast %cst_38 : f32 to vector<8x8xf32>
    %77 = arith.mulf %75, %76 : vector<8x8xf32>
    %cst_39 = arith.constant dense<0xFF800000> : vector<8xf32>
    %78 = vector.multi_reduction <maximumf>, %77, %cst_39 [1] : vector<8x8xf32> to vector<8xf32>
    %79 = vector.shape_cast %78 : vector<8xf32> to vector<8x1xf32>
    %80 = vector.broadcast %79 : vector<8x1xf32> to vector<8x8xf32>
    %81 = arith.subf %77, %80 : vector<8x8xf32>
    %82 = math.exp %81 : vector<8x8xf32>
    %cst_40 = arith.constant dense<0.000000e+00> : vector<8xf32>
    %83 = vector.multi_reduction <add>, %82, %cst_40 [1] : vector<8x8xf32> to vector<8xf32>
    %84 = vector.shape_cast %83 : vector<8xf32> to vector<8x1xf32>
    %85 = tpu.reciprocal %84 {approx = true} : vector<8x1xf32> -> vector<8x1xf32>
    %86 = vector.broadcast %85 : vector<8x1xf32> to vector<8x8xf32>
    %87 = arith.mulf %82, %86 : vector<8x8xf32>
    %cst_41 = arith.constant dense<0.000000e+00> : vector<8x8xf32>
    %88 = tpu.matmul %87, %73, %cst_41 {dimension_numbers = #tpu.dot_dimension_numbers<[1], [0], [0], [1], [0, 0, 1, 1], [], []>} : vector<8x8xf32>, vector<8x8xf32>, vector<8x8xf32> -> vector<8x8xf32>
    %89 = vector.extract_strided_slice %70 {offsets = [0, 8], sizes = [8, 8], strides = [1, 1]} : vector<8x96xf32> to vector<8x8xf32>
    %90 = vector.extract_strided_slice %70 {offsets = [0, 40], sizes = [8, 8], strides = [1, 1]} : vector<8x96xf32> to vector<8x8xf32>
    %91 = vector.extract_strided_slice %70 {offsets = [0, 72], sizes = [8, 8], strides = [1, 1]} : vector<8x96xf32> to vector<8x8xf32>
    %92 = tpu.transpose %90, [1, 0] : vector<8x8xf32> -> vector<8x8xf32>
    %cst_42 = arith.constant dense<0.000000e+00> : vector<8x8xf32>
    %93 = tpu.matmul %89, %92, %cst_42 {dimension_numbers = #tpu.dot_dimension_numbers<[1], [0], [0], [1], [0, 0, 1, 1], [], []>} : vector<8x8xf32>, vector<8x8xf32>, vector<8x8xf32> -> vector<8x8xf32>
    %cst_43 = arith.constant 0.353553385 : f32
    %94 = vector.broadcast %cst_43 : f32 to vector<8x8xf32>
    %95 = arith.mulf %93, %94 : vector<8x8xf32>
    %cst_44 = arith.constant dense<0xFF800000> : vector<8xf32>
    %96 = vector.multi_reduction <maximumf>, %95, %cst_44 [1] : vector<8x8xf32> to vector<8xf32>
    %97 = vector.shape_cast %96 : vector<8xf32> to vector<8x1xf32>
    %98 = vector.broadcast %97 : vector<8x1xf32> to vector<8x8xf32>
    %99 = arith.subf %95, %98 : vector<8x8xf32>
    %100 = math.exp %99 : vector<8x8xf32>
    %cst_45 = arith.constant dense<0.000000e+00> : vector<8xf32>
    %101 = vector.multi_reduction <add>, %100, %cst_45 [1] : vector<8x8xf32> to vector<8xf32>
    %102 = vector.shape_cast %101 : vector<8xf32> to vector<8x1xf32>
    %103 = tpu.reciprocal %102 {approx = true} : vector<8x1xf32> -> vector<8x1xf32>
    %104 = vector.broadcast %103 : vector<8x1xf32> to vector<8x8xf32>
    %105 = arith.mulf %100, %104 : vector<8x8xf32>
    %cst_46 = arith.constant dense<0.000000e+00> : vector<8x8xf32>
    %106 = tpu.matmul %105, %91, %cst_46 {dimension_numbers = #tpu.dot_dimension_numbers<[1], [0], [0], [1], [0, 0, 1, 1], [], []>} : vector<8x8xf32>, vector<8x8xf32>, vector<8x8xf32> -> vector<8x8xf32>
    %107 = vector.extract_strided_slice %70 {offsets = [0, 16], sizes = [8, 8], strides = [1, 1]} : vector<8x96xf32> to vector<8x8xf32>
    %108 = vector.extract_strided_slice %70 {offsets = [0, 48], sizes = [8, 8], strides = [1, 1]} : vector<8x96xf32> to vector<8x8xf32>
    %109 = vector.extract_strided_slice %70 {offsets = [0, 80], sizes = [8, 8], strides = [1, 1]} : vector<8x96xf32> to vector<8x8xf32>
    %110 = tpu.transpose %108, [1, 0] : vector<8x8xf32> -> vector<8x8xf32>
    %cst_47 = arith.constant dense<0.000000e+00> : vector<8x8xf32>
    %111 = tpu.matmul %107, %110, %cst_47 {dimension_numbers = #tpu.dot_dimension_numbers<[1], [0], [0], [1], [0, 0, 1, 1], [], []>} : vector<8x8xf32>, vector<8x8xf32>, vector<8x8xf32> -> vector<8x8xf32>
    %cst_48 = arith.constant 0.353553385 : f32
    %112 = vector.broadcast %cst_48 : f32 to vector<8x8xf32>
    %113 = arith.mulf %111, %112 : vector<8x8xf32>
    %cst_49 = arith.constant dense<0xFF800000> : vector<8xf32>
    %114 = vector.multi_reduction <maximumf>, %113, %cst_49 [1] : vector<8x8xf32> to vector<8xf32>
    %115 = vector.shape_cast %114 : vector<8xf32> to vector<8x1xf32>
    %116 = vector.broadcast %115 : vector<8x1xf32> to vector<8x8xf32>
    %117 = arith.subf %113, %116 : vector<8x8xf32>
    %118 = math.exp %117 : vector<8x8xf32>
    %cst_50 = arith.constant dense<0.000000e+00> : vector<8xf32>
    %119 = vector.multi_reduction <add>, %118, %cst_50 [1] : vector<8x8xf32> to vector<8xf32>
    %120 = vector.shape_cast %119 : vector<8xf32> to vector<8x1xf32>
    %121 = tpu.reciprocal %120 {approx = true} : vector<8x1xf32> -> vector<8x1xf32>
    %122 = vector.broadcast %121 : vector<8x1xf32> to vector<8x8xf32>
    %123 = arith.mulf %118, %122 : vector<8x8xf32>
    %cst_51 = arith.constant dense<0.000000e+00> : vector<8x8xf32>
    %124 = tpu.matmul %123, %109, %cst_51 {dimension_numbers = #tpu.dot_dimension_numbers<[1], [0], [0], [1], [0, 0, 1, 1], [], []>} : vector<8x8xf32>, vector<8x8xf32>, vector<8x8xf32> -> vector<8x8xf32>
    %125 = vector.extract_strided_slice %70 {offsets = [0, 24], sizes = [8, 8], strides = [1, 1]} : vector<8x96xf32> to vector<8x8xf32>
    %126 = vector.extract_strided_slice %70 {offsets = [0, 56], sizes = [8, 8], strides = [1, 1]} : vector<8x96xf32> to vector<8x8xf32>
    %127 = vector.extract_strided_slice %70 {offsets = [0, 88], sizes = [8, 8], strides = [1, 1]} : vector<8x96xf32> to vector<8x8xf32>
    %128 = tpu.transpose %126, [1, 0] : vector<8x8xf32> -> vector<8x8xf32>
    %cst_52 = arith.constant dense<0.000000e+00> : vector<8x8xf32>
    %129 = tpu.matmul %125, %128, %cst_52 {dimension_numbers = #tpu.dot_dimension_numbers<[1], [0], [0], [1], [0, 0, 1, 1], [], []>} : vector<8x8xf32>, vector<8x8xf32>, vector<8x8xf32> -> vector<8x8xf32>
    %cst_53 = arith.constant 0.353553385 : f32
    %130 = vector.broadcast %cst_53 : f32 to vector<8x8xf32>
    %131 = arith.mulf %129, %130 : vector<8x8xf32>
    %cst_54 = arith.constant dense<0xFF800000> : vector<8xf32>
    %132 = vector.multi_reduction <maximumf>, %131, %cst_54 [1] : vector<8x8xf32> to vector<8xf32>
    %133 = vector.shape_cast %132 : vector<8xf32> to vector<8x1xf32>
    %134 = vector.broadcast %133 : vector<8x1xf32> to vector<8x8xf32>
    %135 = arith.subf %131, %134 : vector<8x8xf32>
    %136 = math.exp %135 : vector<8x8xf32>
    %cst_55 = arith.constant dense<0.000000e+00> : vector<8xf32>
    %137 = vector.multi_reduction <add>, %136, %cst_55 [1] : vector<8x8xf32> to vector<8xf32>
    %138 = vector.shape_cast %137 : vector<8xf32> to vector<8x1xf32>
    %139 = tpu.reciprocal %138 {approx = true} : vector<8x1xf32> -> vector<8x1xf32>
    %140 = vector.broadcast %139 : vector<8x1xf32> to vector<8x8xf32>
    %141 = arith.mulf %136, %140 : vector<8x8xf32>
    %cst_56 = arith.constant dense<0.000000e+00> : vector<8x8xf32>
    %142 = tpu.matmul %141, %127, %cst_56 {dimension_numbers = #tpu.dot_dimension_numbers<[1], [0], [0], [1], [0, 0, 1, 1], [], []>} : vector<8x8xf32>, vector<8x8xf32>, vector<8x8xf32> -> vector<8x8xf32>
    %143 = tpu.concatenate %88, %106, %124, %142 in 1 : vector<8x8xf32>, vector<8x8xf32>, vector<8x8xf32>, vector<8x8xf32> -> vector<8x32xf32>
    %c0_57 = arith.constant 0 : index
    %c0_58 = arith.constant 0 : index
    %144 = vector.load %arg12[%c0_57, %c0_58] : memref<32x32xf32, #tpu.memory_space<vmem>>, vector<32x32xf32>
    %cst_59 = arith.constant dense<0.000000e+00> : vector<8x32xf32>
    %145 = tpu.matmul %143, %144, %cst_59 {dimension_numbers = #tpu.dot_dimension_numbers<[1], [0], [0], [1], [0, 0, 1, 1], [], []>} : vector<8x32xf32>, vector<32x32xf32>, vector<8x32xf32> -> vector<8x32xf32>
    %c0_60 = arith.constant 0 : index
    %c0_61 = arith.constant 0 : index
    %146 = vector.load %arg13[%c0_60, %c0_61] : memref<1x32xf32, #tpu.memory_space<vmem>>, vector<1x32xf32>
    %147 = vector.broadcast %146 : vector<1x32xf32> to vector<8x32xf32>
    %148 = arith.addf %145, %147 : vector<8x32xf32>
    %149 = arith.addf %43, %148 : vector<8x32xf32>
    %c0_62 = arith.constant 0 : index
    %c0_63 = arith.constant 0 : index
    %150 = vector.load %arg14[%c0_62, %c0_63] : memref<1x32xf32, #tpu.memory_space<vmem>>, vector<1x32xf32>
    %c0_64 = arith.constant 0 : index
    %c0_65 = arith.constant 0 : index
    %151 = vector.load %arg15[%c0_64, %c0_65] : memref<1x32xf32, #tpu.memory_space<vmem>>, vector<1x32xf32>
    %cst_66 = arith.constant dense<0.000000e+00> : vector<8xf32>
    %152 = vector.multi_reduction <add>, %149, %cst_66 [1] : vector<8x32xf32> to vector<8xf32>
    %153 = vector.shape_cast %152 : vector<8xf32> to vector<8x1xf32>
    %cst_67 = arith.constant 3.200000e+01 : f32
    %154 = vector.broadcast %cst_67 : f32 to vector<8x1xf32>
    %155 = arith.divf %153, %154 : vector<8x1xf32>
    %156 = vector.broadcast %155 : vector<8x1xf32> to vector<8x32xf32>
    %157 = arith.subf %149, %156 : vector<8x32xf32>
    %158 = arith.mulf %157, %157 : vector<8x32xf32>
    %cst_68 = arith.constant dense<0.000000e+00> : vector<8xf32>
    %159 = vector.multi_reduction <add>, %158, %cst_68 [1] : vector<8x32xf32> to vector<8xf32>
    %160 = vector.shape_cast %159 : vector<8xf32> to vector<8x1xf32>
    %cst_69 = arith.constant 3.200000e+01 : f32
    %161 = vector.broadcast %cst_69 : f32 to vector<8x1xf32>
    %162 = arith.divf %160, %161 : vector<8x1xf32>
    %cst_70 = arith.constant 9.99999974E-6 : f32
    %163 = vector.broadcast %cst_70 : f32 to vector<8x1xf32>
    %164 = arith.addf %162, %163 : vector<8x1xf32>
    %165 = math.rsqrt %164 : vector<8x1xf32>
    %166 = vector.broadcast %165 : vector<8x1xf32> to vector<8x32xf32>
    %167 = arith.mulf %157, %166 : vector<8x32xf32>
    %168 = vector.broadcast %150 : vector<1x32xf32> to vector<8x32xf32>
    %169 = arith.mulf %167, %168 : vector<8x32xf32>
    %170 = vector.broadcast %151 : vector<1x32xf32> to vector<8x32xf32>
    %171 = arith.addf %169, %170 : vector<8x32xf32>
    %c0_71 = arith.constant 0 : index
    %c0_72 = arith.constant 0 : index
    %172 = vector.load %arg16[%c0_71, %c0_72] : memref<32x64xf32, #tpu.memory_space<vmem>>, vector<32x64xf32>
    %cst_73 = arith.constant dense<0.000000e+00> : vector<8x64xf32>
    %173 = tpu.matmul %171, %172, %cst_73 {dimension_numbers = #tpu.dot_dimension_numbers<[1], [0], [0], [1], [0, 0, 1, 1], [], []>} : vector<8x32xf32>, vector<32x64xf32>, vector<8x64xf32> -> vector<8x64xf32>
    %c0_74 = arith.constant 0 : index
    %c0_75 = arith.constant 0 : index
    %174 = vector.load %arg17[%c0_74, %c0_75] : memref<1x64xf32, #tpu.memory_space<vmem>>, vector<1x64xf32>
    %175 = vector.broadcast %174 : vector<1x64xf32> to vector<8x64xf32>
    %176 = arith.addf %173, %175 : vector<8x64xf32>
    %177 = vector.extract_strided_slice %176 {offsets = [0, 0], sizes = [8, 32], strides = [1, 1]} : vector<8x64xf32> to vector<8x32xf32>
    %178 = vector.extract_strided_slice %176 {offsets = [0, 32], sizes = [8, 32], strides = [1, 1]} : vector<8x64xf32> to vector<8x32xf32>
    %cst_76 = arith.constant 0.000000e+00 : f32
    %179 = vector.broadcast %cst_76 : f32 to vector<8x32xf32>
    %180 = arith.subf %179, %178 : vector<8x32xf32>
    %181 = math.exp %180 : vector<8x32xf32>
    %cst_77 = arith.constant 1.000000e+00 : f32
    %182 = vector.broadcast %cst_77 : f32 to vector<8x32xf32>
    %183 = arith.addf %182, %181 : vector<8x32xf32>
    %184 = tpu.reciprocal %183 {approx = true} : vector<8x32xf32> -> vector<8x32xf32>
    %185 = arith.mulf %177, %184 : vector<8x32xf32>
    %c0_78 = arith.constant 0 : index
    %c0_79 = arith.constant 0 : index
    %186 = vector.load %arg18[%c0_78, %c0_79] : memref<7x32xf32, #tpu.memory_space<vmem>>, vector<7x32xf32>
    %187 = tpu.iota {dimensions = array<i32: 0>} : vector<8x32xi32>
    %c0_80 = arith.constant 0 : index
    %c0_81 = arith.constant 0 : index
    %188 = vector.load %arg19[%c0_80, %c0_81] : memref<1x32xf32, #tpu.memory_space<vmem>>, vector<1x32xf32>
    %189 = vector.shape_cast %188 : vector<1x32xf32> to vector<1x32xf32>
    %190 = vector.broadcast %189 : vector<1x32xf32> to vector<8x32xf32>
    %c3_i32 = arith.constant 3 : i32
    %191 = tpu.dynamic_rotate %185 by %c3_i32 dim 0 : vector<8x32xf32>, i32 -> vector<8x32xf32>
    %c3_i32_82 = arith.constant 3 : i32
    %192 = vector.broadcast %c3_i32_82 : i32 to vector<8x32xi32>
    %193 = arith.cmpi sge, %187, %192 : vector<8x32xi32>
    %c11_i32 = arith.constant 11 : i32
    %194 = vector.broadcast %c11_i32 : i32 to vector<8x32xi32>
    %195 = arith.cmpi slt, %187, %194 : vector<8x32xi32>
    %196 = arith.andi %193, %195 : vector<8x32xi1>
    %cst_83 = arith.constant 0.000000e+00 : f32
    %197 = vector.broadcast %cst_83 : f32 to vector<8x32xf32>
    %198 = arith.select %196, %191, %197 : vector<8x32xi1>, vector<8x32xf32>
    %199 = vector.extract_strided_slice %186 {offsets = [0, 0], sizes = [1, 32], strides = [1, 1]} : vector<7x32xf32> to vector<1x32xf32>
    %200 = vector.broadcast %199 : vector<1x32xf32> to vector<8x32xf32>
    %201 = arith.mulf %198, %200 : vector<8x32xf32>
    %202 = arith.addf %190, %201 : vector<8x32xf32>
    %c2_i32 = arith.constant 2 : i32
    %203 = tpu.dynamic_rotate %185 by %c2_i32 dim 0 : vector<8x32xf32>, i32 -> vector<8x32xf32>
    %c2_i32_84 = arith.constant 2 : i32
    %204 = vector.broadcast %c2_i32_84 : i32 to vector<8x32xi32>
    %205 = arith.cmpi sge, %187, %204 : vector<8x32xi32>
    %c10_i32 = arith.constant 10 : i32
    %206 = vector.broadcast %c10_i32 : i32 to vector<8x32xi32>
    %207 = arith.cmpi slt, %187, %206 : vector<8x32xi32>
    %208 = arith.andi %205, %207 : vector<8x32xi1>
    %cst_85 = arith.constant 0.000000e+00 : f32
    %209 = vector.broadcast %cst_85 : f32 to vector<8x32xf32>
    %210 = arith.select %208, %203, %209 : vector<8x32xi1>, vector<8x32xf32>
    %211 = vector.extract_strided_slice %186 {offsets = [1, 0], sizes = [1, 32], strides = [1, 1]} : vector<7x32xf32> to vector<1x32xf32>
    %212 = vector.broadcast %211 : vector<1x32xf32> to vector<8x32xf32>
    %213 = arith.mulf %210, %212 : vector<8x32xf32>
    %214 = arith.addf %202, %213 : vector<8x32xf32>
    %c1_i32 = arith.constant 1 : i32
    %215 = tpu.dynamic_rotate %185 by %c1_i32 dim 0 : vector<8x32xf32>, i32 -> vector<8x32xf32>
    %c1_i32_86 = arith.constant 1 : i32
    %216 = vector.broadcast %c1_i32_86 : i32 to vector<8x32xi32>
    %217 = arith.cmpi sge, %187, %216 : vector<8x32xi32>
    %c9_i32 = arith.constant 9 : i32
    %218 = vector.broadcast %c9_i32 : i32 to vector<8x32xi32>
    %219 = arith.cmpi slt, %187, %218 : vector<8x32xi32>
    %220 = arith.andi %217, %219 : vector<8x32xi1>
    %cst_87 = arith.constant 0.000000e+00 : f32
    %221 = vector.broadcast %cst_87 : f32 to vector<8x32xf32>
    %222 = arith.select %220, %215, %221 : vector<8x32xi1>, vector<8x32xf32>
    %223 = vector.extract_strided_slice %186 {offsets = [2, 0], sizes = [1, 32], strides = [1, 1]} : vector<7x32xf32> to vector<1x32xf32>
    %224 = vector.broadcast %223 : vector<1x32xf32> to vector<8x32xf32>
    %225 = arith.mulf %222, %224 : vector<8x32xf32>
    %226 = arith.addf %214, %225 : vector<8x32xf32>
    %227 = vector.extract_strided_slice %186 {offsets = [3, 0], sizes = [1, 32], strides = [1, 1]} : vector<7x32xf32> to vector<1x32xf32>
    %228 = vector.broadcast %227 : vector<1x32xf32> to vector<8x32xf32>
    %229 = arith.mulf %185, %228 : vector<8x32xf32>
    %230 = arith.addf %226, %229 : vector<8x32xf32>
    %c7_i32 = arith.constant 7 : i32
    %231 = tpu.dynamic_rotate %185 by %c7_i32 dim 0 : vector<8x32xf32>, i32 -> vector<8x32xf32>
    %c-1_i32 = arith.constant -1 : i32
    %232 = vector.broadcast %c-1_i32 : i32 to vector<8x32xi32>
    %233 = arith.cmpi sge, %187, %232 : vector<8x32xi32>
    %c7_i32_88 = arith.constant 7 : i32
    %234 = vector.broadcast %c7_i32_88 : i32 to vector<8x32xi32>
    %235 = arith.cmpi slt, %187, %234 : vector<8x32xi32>
    %236 = arith.andi %233, %235 : vector<8x32xi1>
    %cst_89 = arith.constant 0.000000e+00 : f32
    %237 = vector.broadcast %cst_89 : f32 to vector<8x32xf32>
    %238 = arith.select %236, %231, %237 : vector<8x32xi1>, vector<8x32xf32>
    %239 = vector.extract_strided_slice %186 {offsets = [4, 0], sizes = [1, 32], strides = [1, 1]} : vector<7x32xf32> to vector<1x32xf32>
    %240 = vector.broadcast %239 : vector<1x32xf32> to vector<8x32xf32>
    %241 = arith.mulf %238, %240 : vector<8x32xf32>
    %242 = arith.addf %230, %241 : vector<8x32xf32>
    %c6_i32 = arith.constant 6 : i32
    %243 = tpu.dynamic_rotate %185 by %c6_i32 dim 0 : vector<8x32xf32>, i32 -> vector<8x32xf32>
    %c-2_i32 = arith.constant -2 : i32
    %244 = vector.broadcast %c-2_i32 : i32 to vector<8x32xi32>
    %245 = arith.cmpi sge, %187, %244 : vector<8x32xi32>
    %c6_i32_90 = arith.constant 6 : i32
    %246 = vector.broadcast %c6_i32_90 : i32 to vector<8x32xi32>
    %247 = arith.cmpi slt, %187, %246 : vector<8x32xi32>
    %248 = arith.andi %245, %247 : vector<8x32xi1>
    %cst_91 = arith.constant 0.000000e+00 : f32
    %249 = vector.broadcast %cst_91 : f32 to vector<8x32xf32>
    %250 = arith.select %248, %243, %249 : vector<8x32xi1>, vector<8x32xf32>
    %251 = vector.extract_strided_slice %186 {offsets = [5, 0], sizes = [1, 32], strides = [1, 1]} : vector<7x32xf32> to vector<1x32xf32>
    %252 = vector.broadcast %251 : vector<1x32xf32> to vector<8x32xf32>
    %253 = arith.mulf %250, %252 : vector<8x32xf32>
    %254 = arith.addf %242, %253 : vector<8x32xf32>
    %c5_i32 = arith.constant 5 : i32
    %255 = tpu.dynamic_rotate %185 by %c5_i32 dim 0 : vector<8x32xf32>, i32 -> vector<8x32xf32>
    %c-3_i32 = arith.constant -3 : i32
    %256 = vector.broadcast %c-3_i32 : i32 to vector<8x32xi32>
    %257 = arith.cmpi sge, %187, %256 : vector<8x32xi32>
    %c5_i32_92 = arith.constant 5 : i32
    %258 = vector.broadcast %c5_i32_92 : i32 to vector<8x32xi32>
    %259 = arith.cmpi slt, %187, %258 : vector<8x32xi32>
    %260 = arith.andi %257, %259 : vector<8x32xi1>
    %cst_93 = arith.constant 0.000000e+00 : f32
    %261 = vector.broadcast %cst_93 : f32 to vector<8x32xf32>
    %262 = arith.select %260, %255, %261 : vector<8x32xi1>, vector<8x32xf32>
    %263 = vector.extract_strided_slice %186 {offsets = [6, 0], sizes = [1, 32], strides = [1, 1]} : vector<7x32xf32> to vector<1x32xf32>
    %264 = vector.broadcast %263 : vector<1x32xf32> to vector<8x32xf32>
    %265 = arith.mulf %262, %264 : vector<8x32xf32>
    %266 = arith.addf %254, %265 : vector<8x32xf32>
    %c0_94 = arith.constant 0 : index
    %c0_95 = arith.constant 0 : index
    %267 = vector.load %arg20[%c0_94, %c0_95] : memref<1x32xf32, #tpu.memory_space<vmem>>, vector<1x32xf32>
    %cst_96 = arith.constant 0.999994993 : f32
    %268 = vector.broadcast %cst_96 : f32 to vector<1x32xf32>
    %269 = arith.mulf %267, %268 : vector<1x32xf32>
    %270 = vector.broadcast %269 : vector<1x32xf32> to vector<8x32xf32>
    %271 = arith.mulf %266, %270 : vector<8x32xf32>
    %c0_97 = arith.constant 0 : index
    %c0_98 = arith.constant 0 : index
    %272 = vector.load %arg21[%c0_97, %c0_98] : memref<1x32xf32, #tpu.memory_space<vmem>>, vector<1x32xf32>
    %273 = vector.broadcast %272 : vector<1x32xf32> to vector<8x32xf32>
    %274 = arith.addf %271, %273 : vector<8x32xf32>
    %cst_99 = arith.constant 0.000000e+00 : f32
    %275 = vector.broadcast %cst_99 : f32 to vector<8x32xf32>
    %276 = arith.subf %275, %274 : vector<8x32xf32>
    %277 = math.exp %276 : vector<8x32xf32>
    %cst_100 = arith.constant 1.000000e+00 : f32
    %278 = vector.broadcast %cst_100 : f32 to vector<8x32xf32>
    %279 = arith.addf %278, %277 : vector<8x32xf32>
    %280 = tpu.reciprocal %279 {approx = true} : vector<8x32xf32> -> vector<8x32xf32>
    %281 = arith.mulf %274, %280 : vector<8x32xf32>
    %c0_101 = arith.constant 0 : index
    %c0_102 = arith.constant 0 : index
    %282 = vector.load %arg22[%c0_101, %c0_102] : memref<32x32xf32, #tpu.memory_space<vmem>>, vector<32x32xf32>
    %cst_103 = arith.constant dense<0.000000e+00> : vector<8x32xf32>
    %283 = tpu.matmul %281, %282, %cst_103 {dimension_numbers = #tpu.dot_dimension_numbers<[1], [0], [0], [1], [0, 0, 1, 1], [], []>} : vector<8x32xf32>, vector<32x32xf32>, vector<8x32xf32> -> vector<8x32xf32>
    %c0_104 = arith.constant 0 : index
    %c0_105 = arith.constant 0 : index
    %284 = vector.load %arg23[%c0_104, %c0_105] : memref<1x32xf32, #tpu.memory_space<vmem>>, vector<1x32xf32>
    %285 = vector.broadcast %284 : vector<1x32xf32> to vector<8x32xf32>
    %286 = arith.addf %283, %285 : vector<8x32xf32>
    %287 = arith.addf %149, %286 : vector<8x32xf32>
    %c0_106 = arith.constant 0 : index
    %c0_107 = arith.constant 0 : index
    %288 = vector.load %arg24[%c0_106, %c0_107] : memref<1x32xf32, #tpu.memory_space<vmem>>, vector<1x32xf32>
    %c0_108 = arith.constant 0 : index
    %c0_109 = arith.constant 0 : index
    %289 = vector.load %arg25[%c0_108, %c0_109] : memref<1x32xf32, #tpu.memory_space<vmem>>, vector<1x32xf32>
    %cst_110 = arith.constant dense<0.000000e+00> : vector<8xf32>
    %290 = vector.multi_reduction <add>, %287, %cst_110 [1] : vector<8x32xf32> to vector<8xf32>
    %291 = vector.shape_cast %290 : vector<8xf32> to vector<8x1xf32>
    %cst_111 = arith.constant 3.200000e+01 : f32
    %292 = vector.broadcast %cst_111 : f32 to vector<8x1xf32>
    %293 = arith.divf %291, %292 : vector<8x1xf32>
    %294 = vector.broadcast %293 : vector<8x1xf32> to vector<8x32xf32>
    %295 = arith.subf %287, %294 : vector<8x32xf32>
    %296 = arith.mulf %295, %295 : vector<8x32xf32>
    %cst_112 = arith.constant dense<0.000000e+00> : vector<8xf32>
    %297 = vector.multi_reduction <add>, %296, %cst_112 [1] : vector<8x32xf32> to vector<8xf32>
    %298 = vector.shape_cast %297 : vector<8xf32> to vector<8x1xf32>
    %cst_113 = arith.constant 3.200000e+01 : f32
    %299 = vector.broadcast %cst_113 : f32 to vector<8x1xf32>
    %300 = arith.divf %298, %299 : vector<8x1xf32>
    %cst_114 = arith.constant 9.99999974E-6 : f32
    %301 = vector.broadcast %cst_114 : f32 to vector<8x1xf32>
    %302 = arith.addf %300, %301 : vector<8x1xf32>
    %303 = math.rsqrt %302 : vector<8x1xf32>
    %304 = vector.broadcast %303 : vector<8x1xf32> to vector<8x32xf32>
    %305 = arith.mulf %295, %304 : vector<8x32xf32>
    %306 = vector.broadcast %288 : vector<1x32xf32> to vector<8x32xf32>
    %307 = arith.mulf %305, %306 : vector<8x32xf32>
    %308 = vector.broadcast %289 : vector<1x32xf32> to vector<8x32xf32>
    %309 = arith.addf %307, %308 : vector<8x32xf32>
    %c0_115 = arith.constant 0 : index
    %c0_116 = arith.constant 0 : index
    %310 = vector.load %arg26[%c0_115, %c0_116] : memref<32x128xf32, #tpu.memory_space<vmem>>, vector<32x128xf32>
    %cst_117 = arith.constant dense<0.000000e+00> : vector<8x128xf32>
    %311 = tpu.matmul %309, %310, %cst_117 {dimension_numbers = #tpu.dot_dimension_numbers<[1], [0], [0], [1], [0, 0, 1, 1], [], []>} : vector<8x32xf32>, vector<32x128xf32>, vector<8x128xf32> -> vector<8x128xf32>
    %c0_118 = arith.constant 0 : index
    %c0_119 = arith.constant 0 : index
    %312 = vector.load %arg27[%c0_118, %c0_119] : memref<1x128xf32, #tpu.memory_space<vmem>>, vector<1x128xf32>
    %313 = vector.broadcast %312 : vector<1x128xf32> to vector<8x128xf32>
    %314 = arith.addf %311, %313 : vector<8x128xf32>
    %cst_120 = arith.constant 0.000000e+00 : f32
    %315 = vector.broadcast %cst_120 : f32 to vector<8x128xf32>
    %316 = arith.subf %315, %314 : vector<8x128xf32>
    %317 = math.exp %316 : vector<8x128xf32>
    %cst_121 = arith.constant 1.000000e+00 : f32
    %318 = vector.broadcast %cst_121 : f32 to vector<8x128xf32>
    %319 = arith.addf %318, %317 : vector<8x128xf32>
    %320 = tpu.reciprocal %319 {approx = true} : vector<8x128xf32> -> vector<8x128xf32>
    %321 = arith.mulf %314, %320 : vector<8x128xf32>
    %c0_122 = arith.constant 0 : index
    %c0_123 = arith.constant 0 : index
    %322 = vector.load %arg28[%c0_122, %c0_123] : memref<128x32xf32, #tpu.memory_space<vmem>>, vector<128x32xf32>
    %cst_124 = arith.constant dense<0.000000e+00> : vector<8x32xf32>
    %323 = tpu.matmul %321, %322, %cst_124 {dimension_numbers = #tpu.dot_dimension_numbers<[1], [0], [0], [1], [0, 0, 1, 1], [], []>} : vector<8x128xf32>, vector<128x32xf32>, vector<8x32xf32> -> vector<8x32xf32>
    %c0_125 = arith.constant 0 : index
    %c0_126 = arith.constant 0 : index
    %324 = vector.load %arg29[%c0_125, %c0_126] : memref<1x32xf32, #tpu.memory_space<vmem>>, vector<1x32xf32>
    %325 = vector.broadcast %324 : vector<1x32xf32> to vector<8x32xf32>
    %326 = arith.addf %323, %325 : vector<8x32xf32>
    %cst_127 = arith.constant 5.000000e-01 : f32
    %327 = vector.broadcast %cst_127 : f32 to vector<8x32xf32>
    %328 = arith.mulf %327, %326 : vector<8x32xf32>
    %329 = arith.addf %287, %328 : vector<8x32xf32>
    %c0_128 = arith.constant 0 : index
    %c0_129 = arith.constant 0 : index
    %330 = vector.load %arg30[%c0_128, %c0_129] : memref<1x32xf32, #tpu.memory_space<vmem>>, vector<1x32xf32>
    %c0_130 = arith.constant 0 : index
    %c0_131 = arith.constant 0 : index
    %331 = vector.load %arg31[%c0_130, %c0_131] : memref<1x32xf32, #tpu.memory_space<vmem>>, vector<1x32xf32>
    %cst_132 = arith.constant dense<0.000000e+00> : vector<8xf32>
    %332 = vector.multi_reduction <add>, %329, %cst_132 [1] : vector<8x32xf32> to vector<8xf32>
    %333 = vector.shape_cast %332 : vector<8xf32> to vector<8x1xf32>
    %cst_133 = arith.constant 3.200000e+01 : f32
    %334 = vector.broadcast %cst_133 : f32 to vector<8x1xf32>
    %335 = arith.divf %333, %334 : vector<8x1xf32>
    %336 = vector.broadcast %335 : vector<8x1xf32> to vector<8x32xf32>
    %337 = arith.subf %329, %336 : vector<8x32xf32>
    %338 = arith.mulf %337, %337 : vector<8x32xf32>
    %cst_134 = arith.constant dense<0.000000e+00> : vector<8xf32>
    %339 = vector.multi_reduction <add>, %338, %cst_134 [1] : vector<8x32xf32> to vector<8xf32>
    %340 = vector.shape_cast %339 : vector<8xf32> to vector<8x1xf32>
    %cst_135 = arith.constant 3.200000e+01 : f32
    %341 = vector.broadcast %cst_135 : f32 to vector<8x1xf32>
    %342 = arith.divf %340, %341 : vector<8x1xf32>
    %cst_136 = arith.constant 9.99999974E-6 : f32
    %343 = vector.broadcast %cst_136 : f32 to vector<8x1xf32>
    %344 = arith.addf %342, %343 : vector<8x1xf32>
    %345 = math.rsqrt %344 : vector<8x1xf32>
    %346 = vector.broadcast %345 : vector<8x1xf32> to vector<8x32xf32>
    %347 = arith.mulf %337, %346 : vector<8x32xf32>
    %348 = vector.broadcast %330 : vector<1x32xf32> to vector<8x32xf32>
    %349 = arith.mulf %347, %348 : vector<8x32xf32>
    %350 = vector.broadcast %331 : vector<1x32xf32> to vector<8x32xf32>
    %351 = arith.addf %349, %350 : vector<8x32xf32>
    %352 = vector.shape_cast %351 : vector<8x32xf32> to vector<1x8x32xf32>
    %c0_137 = arith.constant 0 : index
    %c0_138 = arith.constant 0 : index
    %c0_139 = arith.constant 0 : index
    %353 = vector.load %arg32[%c0_137, %c0_138, %c0_139] : memref<1x8x32xf32, #tpu.memory_space<vmem>>, vector<1x8x32xf32>
    tpu.vector_store %arg32[%c0_137, %c0_138, %c0_139], %352 {strides = array<i32>} : memref<1x8x32xf32, #tpu.memory_space<vmem>>, vector<1x8x32xf32>,
    return
  }
  func.func @transform_0(%arg0: i32) -> (i32, i32, i32) {
    %c0_i32 = arith.constant 0 : i32
    %c0_i32_0 = arith.constant 0 : i32
    %c0_i32_1 = arith.constant 0 : i32
    return %arg0, %c0_i32, %c0_i32_0 : i32, i32, i32
  }
  func.func @transform_1(%arg0: i32) -> (i32, i32) {
    %c0_i32 = arith.constant 0 : i32
    %c0_i32_0 = arith.constant 0 : i32
    %c0_i32_1 = arith.constant 0 : i32
    return %c0_i32, %c0_i32_0 : i32, i32
  }
  func.func @transform_2(%arg0: i32) -> (i32, i32) {
    %c0_i32 = arith.constant 0 : i32
    %c0_i32_0 = arith.constant 0 : i32
    %c0_i32_1 = arith.constant 0 : i32
    return %c0_i32, %c0_i32_0 : i32, i32
  }
  func.func @transform_3(%arg0: i32) -> (i32, i32) {
    %c0_i32 = arith.constant 0 : i32
    %c0_i32_0 = arith.constant 0 : i32
    %c0_i32_1 = arith.constant 0 : i32
    return %c0_i32, %c0_i32_0 : i32, i32
  }
  func.func @transform_4(%arg0: i32) -> (i32, i32) {
    %c0_i32 = arith.constant 0 : i32
    %c0_i32_0 = arith.constant 0 : i32
    %c0_i32_1 = arith.constant 0 : i32
    return %c0_i32, %c0_i32_0 : i32, i32
  }
  func.func @transform_5(%arg0: i32) -> (i32, i32) {
    %c0_i32 = arith.constant 0 : i32
    %c0_i32_0 = arith.constant 0 : i32
    %c0_i32_1 = arith.constant 0 : i32
    return %c0_i32, %c0_i32_0 : i32, i32
  }
  func.func @transform_6(%arg0: i32) -> (i32, i32) {
    %c0_i32 = arith.constant 0 : i32
    %c0_i32_0 = arith.constant 0 : i32
    %c0_i32_1 = arith.constant 0 : i32
    return %c0_i32, %c0_i32_0 : i32, i32
  }
  func.func @transform_7(%arg0: i32) -> (i32, i32) {
    %c0_i32 = arith.constant 0 : i32
    %c0_i32_0 = arith.constant 0 : i32
    %c0_i32_1 = arith.constant 0 : i32
    return %c0_i32, %c0_i32_0 : i32, i32
  }
  func.func @transform_8(%arg0: i32) -> (i32, i32) {
    %c0_i32 = arith.constant 0 : i32
    %c0_i32_0 = arith.constant 0 : i32
    %c0_i32_1 = arith.constant 0 : i32
    return %c0_i32, %c0_i32_0 : i32, i32
  }
  func.func @transform_9(%arg0: i32) -> (i32, i32) {
    %c0_i32 = arith.constant 0 : i32
    %c0_i32_0 = arith.constant 0 : i32
    %c0_i32_1 = arith.constant 0 : i32
    return %c0_i32, %c0_i32_0 : i32, i32
  }
  func.func @transform_10(%arg0: i32) -> (i32, i32) {
    %c0_i32 = arith.constant 0 : i32
    %c0_i32_0 = arith.constant 0 : i32
    %c0_i32_1 = arith.constant 0 : i32
    return %c0_i32, %c0_i32_0 : i32, i32
  }
  func.func @transform_11(%arg0: i32) -> (i32, i32) {
    %c0_i32 = arith.constant 0 : i32
    %c0_i32_0 = arith.constant 0 : i32
    %c0_i32_1 = arith.constant 0 : i32
    return %c0_i32, %c0_i32_0 : i32, i32
  }
  func.func @transform_12(%arg0: i32) -> (i32, i32) {
    %c0_i32 = arith.constant 0 : i32
    %c0_i32_0 = arith.constant 0 : i32
    %c0_i32_1 = arith.constant 0 : i32
    return %c0_i32, %c0_i32_0 : i32, i32
  }
  func.func @transform_13(%arg0: i32) -> (i32, i32) {
    %c0_i32 = arith.constant 0 : i32
    %c0_i32_0 = arith.constant 0 : i32
    %c0_i32_1 = arith.constant 0 : i32
    return %c0_i32, %c0_i32_0 : i32, i32
  }
  func.func @transform_14(%arg0: i32) -> (i32, i32) {
    %c0_i32 = arith.constant 0 : i32
    %c0_i32_0 = arith.constant 0 : i32
    %c0_i32_1 = arith.constant 0 : i32
    return %c0_i32, %c0_i32_0 : i32, i32
  }
  func.func @transform_15(%arg0: i32) -> (i32, i32) {
    %c0_i32 = arith.constant 0 : i32
    %c0_i32_0 = arith.constant 0 : i32
    %c0_i32_1 = arith.constant 0 : i32
    return %c0_i32, %c0_i32_0 : i32, i32
  }
  func.func @transform_16(%arg0: i32) -> (i32, i32) {
    %c0_i32 = arith.constant 0 : i32
    %c0_i32_0 = arith.constant 0 : i32
    %c0_i32_1 = arith.constant 0 : i32
    return %c0_i32, %c0_i32_0 : i32, i32
  }
  func.func @transform_17(%arg0: i32) -> (i32, i32) {
    %c0_i32 = arith.constant 0 : i32
    %c0_i32_0 = arith.constant 0 : i32
    %c0_i32_1 = arith.constant 0 : i32
    return %c0_i32, %c0_i32_0 : i32, i32
  }
  func.func @transform_18(%arg0: i32) -> (i32, i32) {
    %c0_i32 = arith.constant 0 : i32
    %c0_i32_0 = arith.constant 0 : i32
    %c0_i32_1 = arith.constant 0 : i32
    return %c0_i32, %c0_i32_0 : i32, i32
  }
  func.func @transform_19(%arg0: i32) -> (i32, i32) {
    %c0_i32 = arith.constant 0 : i32
    %c0_i32_0 = arith.constant 0 : i32
    %c0_i32_1 = arith.constant 0 : i32
    return %c0_i32, %c0_i32_0 : i32, i32
  }
  func.func @transform_20(%arg0: i32) -> (i32, i32) {
    %c0_i32 = arith.constant 0 : i32
    %c0_i32_0 = arith.constant 0 : i32
    %c0_i32_1 = arith.constant 0 : i32
    return %c0_i32, %c0_i32_0 : i32, i32
  }
  func.func @transform_21(%arg0: i32) -> (i32, i32) {
    %c0_i32 = arith.constant 0 : i32
    %c0_i32_0 = arith.constant 0 : i32
    %c0_i32_1 = arith.constant 0 : i32
    return %c0_i32, %c0_i32_0 : i32, i32
  }
  func.func @transform_22(%arg0: i32) -> (i32, i32) {
    %c0_i32 = arith.constant 0 : i32
    %c0_i32_0 = arith.constant 0 : i32
    %c0_i32_1 = arith.constant 0 : i32
    return %c0_i32, %c0_i32_0 : i32, i32
  }
  func.func @transform_23(%arg0: i32) -> (i32, i32) {
    %c0_i32 = arith.constant 0 : i32
    %c0_i32_0 = arith.constant 0 : i32
    %c0_i32_1 = arith.constant 0 : i32
    return %c0_i32, %c0_i32_0 : i32, i32
  }
  func.func @transform_24(%arg0: i32) -> (i32, i32) {
    %c0_i32 = arith.constant 0 : i32
    %c0_i32_0 = arith.constant 0 : i32
    %c0_i32_1 = arith.constant 0 : i32
    return %c0_i32, %c0_i32_0 : i32, i32
  }
  func.func @transform_25(%arg0: i32) -> (i32, i32) {
    %c0_i32 = arith.constant 0 : i32
    %c0_i32_0 = arith.constant 0 : i32
    %c0_i32_1 = arith.constant 0 : i32
    return %c0_i32, %c0_i32_0 : i32, i32
  }
  func.func @transform_26(%arg0: i32) -> (i32, i32) {
    %c0_i32 = arith.constant 0 : i32
    %c0_i32_0 = arith.constant 0 : i32
    %c0_i32_1 = arith.constant 0 : i32
    return %c0_i32, %c0_i32_0 : i32, i32
  }
  func.func @transform_27(%arg0: i32) -> (i32, i32) {
    %c0_i32 = arith.constant 0 : i32
    %c0_i32_0 = arith.constant 0 : i32
    %c0_i32_1 = arith.constant 0 : i32
    return %c0_i32, %c0_i32_0 : i32, i32
  }
  func.func @transform_28(%arg0: i32) -> (i32, i32) {
    %c0_i32 = arith.constant 0 : i32
    %c0_i32_0 = arith.constant 0 : i32
    %c0_i32_1 = arith.constant 0 : i32
    return %c0_i32, %c0_i32_0 : i32, i32
  }
  func.func @transform_29(%arg0: i32) -> (i32, i32) {
    %c0_i32 = arith.constant 0 : i32
    %c0_i32_0 = arith.constant 0 : i32
    %c0_i32_1 = arith.constant 0 : i32
    return %c0_i32, %c0_i32_0 : i32, i32
  }
  func.func @transform_30(%arg0: i32) -> (i32, i32) {
    %c0_i32 = arith.constant 0 : i32
    %c0_i32_0 = arith.constant 0 : i32
    %c0_i32_1 = arith.constant 0 : i32
    return %c0_i32, %c0_i32_0 : i32, i32
  }
  func.func @transform_31(%arg0: i32) -> (i32, i32, i32) {
    %c0_i32 = arith.constant 0 : i32
    %c0_i32_0 = arith.constant 0 : i32
    %c0_i32_1 = arith.constant 0 : i32
    return %arg0, %c0_i32, %c0_i32_0 : i32, i32, i32
  }
}

</mosaic_0001>

<llo_original>
// kernel: conformer_forward.4
$region0: #{conformer_forward.4}
  #allocation0 [shape = 'u32[]', space=smem, size = 0x4, offset = 0x4, fixed_abs, tag = 'smem constant byte address 0x4 - core index']
  #allocation1 [shape = 'u32[144,128]{1,0:T(1,128)}', space=vmem, size = 0x12000, scoped, tag = 'internal scratch']
  %s0 = inlined_call_operand.vmem [shape: f32[16,80], index: 0, kind: input, shape index: {}]
  %s1 = inlined_call_operand.vmem [shape: f32[80,32], index: 1, kind: input, shape index: {}]
  %s2 = inlined_call_operand.vmem [shape: f32[1,32], index: 2, kind: input, shape index: {}]
  %s3 = inlined_call_operand.vmem [shape: f32[16,32], index: 3, kind: output, shape index: {}]
  %s4 = sld [smem:[#allocation0]]
  $region22: #{conformer_forward.4} parent=0
    _
  %s6 = ssub.s32 1, %s4
  %s7 = scalar_select 0, %s6, %s4
  // Predicated region
  $region2: #{conformer_forward.4} parent=0 // pred_check
    _
  $region3: #{conformer_forward.4} parent=0 // pred_check_branch
    %9 = sbr.rel (0) target = $region5
  $region4: #{conformer_forward.4} parent=0 // pred_region
    _
  $region5: #{conformer_forward.4} parent=0 // pred_fallthru
    _
  // Predicated region
  $region6: #{conformer_forward.4} parent=0 // pred_check
    _
  $region7: #{conformer_forward.4} parent=0 // pred_check_branch
    %11 = sbr.rel (0) target = $region9
  $region8: #{conformer_forward.4} parent=0 // pred_region
    _
  $region9: #{conformer_forward.4} parent=0 // pred_fallthru
    _
  // Predicated region
  $region10: #{conformer_forward.4} parent=0 // pred_check
    _
  $region11: #{conformer_forward.4} parent=0 // pred_check_branch
    %13 = sbr.rel (0) target = $region13
  $region12: #{conformer_forward.4} parent=0 // pred_region
    _
  $region13: #{conformer_forward.4} parent=0 // pred_fallthru
    _
  %v14 = vld [vmem:[%s0] sm:$0xff]
  %v15 = vld [vmem:[%s0 + $0x8] sm:$0xff]
  %v16 = vld [vmem:[%s1] sm:$0xff]
  %v17 = vld [vmem:[%s1 + $0x8] sm:$0xff]
  %v18 = vld [vmem:[%s1 + $0x10] sm:$0xff]
  %v19 = vld [vmem:[%s1 + $0x18] sm:$0xff]
  %v20 = vld [vmem:[%s1 + $0x20] sm:$0xff]
  %v21 = vld [vmem:[%s1 + $0x28] sm:$0xff]
  %v22 = vld [vmem:[%s1 + $0x30] sm:$0xff]
  %v23 = vld [vmem:[%s1 + $0x38] sm:$0xff]
  %v24 = vld [vmem:[%s1 + $0x40] sm:$0xff]
  %v25 = vld [vmem:[%s1 + $0x48] sm:$0xff]
  %v26 = vld [vmem:[%s2] sm:$0x1]
  %v28 = vlaneseq
  %v29 = vshrl.u32 %v28, 7
  %v30 = vsub.s32 0, %v29
  %v31 = vrot.slane %v26, %v30
  %vm33 = vcmask 654336
  %v35 = vsel %vm33, %v14, 0
  %v38 = vsel %vm33, %v15, 0
  %40 = vmatprep.subr.mxu0 0.0
  %41 = vmatpush1.msra.mxu0 0.0
  %42 = vmatprep.subr.mxu0 0.0
  %43 = vmatpush1.msra.mxu0 0.0
  %44 = vmatprep.subr.mxu0 0.0
  %45 = vmatpush1.msra.mxu0 0.0
  %46 = vmatprep.subr.mxu0 0.0
  %47 = vmatpush1.msra.mxu0 0.0
  %48 = vmatprep.subr.mxu0 0.0
  %49 = vmatpush1.msra.mxu0 0.0
  %50 = vmatprep.subr.mxu0 0.0
  %51 = vmatpush1.msra.mxu0 0.0
  %52 = vmatprep.subr.mxu0 0.0
  %53 = vmatpush1.msra.mxu0 %v25
  %54 = vmatprep.subr.mxu0 0.0
  %55 = vmatpush1.msra.mxu0 %v24
  %56 = vmatprep.subr.mxu0 0.0
  %57 = vmatpush1.msra.mxu0 %v23
  %58 = vmatprep.subr.mxu0 0.0
  %59 = vmatpush1.msra.mxu0 %v22
  %60 = vmatprep.subr.mxu0 0.0
  %61 = vmatpush1.msra.mxu0 %v21
  %62 = vmatprep.subr.mxu0 0.0
  %63 = vmatpush1.msra.mxu0 %v20
  %64 = vmatprep.subr.mxu0 0.0
  %65 = vmatpush1.msra.mxu0 %v19
  %66 = vmatprep.subr.mxu0 0.0
  %67 = vmatpush1.msra.mxu0 %v18
  %68 = vmatprep.subr.mxu0 0.0
  %69 = vmatpush1.msra.mxu0 %v17
  %70 = vmatprep.subr.mxu0 0.0
  %71 = vmatpush1.msra.mxu0 %v16
  %72 = vmatprep.subr.mxu0 0.0
  %73 = vmatpush2.msra.mxu0 0.0
  %74 = vmatprep.subr.mxu0 0.0
  %75 = vmatpush2.msra.mxu0 0.0
  %76 = vmatprep.subr.mxu0 0.0
  %77 = vmatpush2.msra.mxu0 0.0
  %78 = vmatprep.subr.mxu0 0.0
  %79 = vmatpush2.msra.mxu0 0.0
  %80 = vmatprep.subr.mxu0 0.0
  %81 = vmatpush2.msra.mxu0 0.0
  %82 = vmatprep.subr.mxu0 0.0
  %83 = vmatpush2.msra.mxu0 0.0
  %84 = vmatprep.subr.mxu0 0.0
  %85 = vmatpush2.msra.mxu0 0.0
  %86 = vmatprep.subr.mxu0 0.0
  %87 = vmatpush2.msra.mxu0 0.0
  %88 = vmatprep.subr.mxu0 0.0
  %89 = vmatpush2.msra.mxu0 0.0
  %90 = vmatprep.subr.mxu0 0.0
  %91 = vmatpush2.msra.mxu0 0.0
  %92 = vmatprep.subr.mxu0 0.0
  %93 = vmatpush2.msra.mxu0 0.0
  %94 = vmatprep.subr.mxu0 0.0
  %95 = vmatpush2.msra.mxu0 0.0
  %96 = vmatprep.subr.mxu0 0.0
  %97 = vmatpush2.msra.mxu0 0.0
  %98 = vmatprep.subr.mxu0 0.0
  %99 = vmatpush2.msra.mxu0 0.0
  %100 = vmatprep.subr.mxu0 0.0
  %101 = vmatpush2.msra.mxu0 0.0
  %102 = vmatprep.subr.mxu0 0.0
  %103 = vmatpush2.msra.mxu0 0.0
  %104 = vmatprep.mubr.f32.mxu0 0.0
  %105 = vmatmul.mubr.f32.gmra.mxu0 %v35
  %v106 = vpop.f32.mrf.mxu0
  %v107 = vadd.f32 %v31, %v106
  %v108 = vpop.f32.mrf.mxu0
  %109 = vmatprep.mubr.f32.mxu0 0.0
  %110 = vmatmul.mubr.f32.gmra.mxu0 %v38
  %v111 = vpop.f32.mrf.mxu0
  %v112 = vadd.f32 %v31, %v111
  %v113 = vpop.f32.mrf.mxu0
  %114 = vdwg.mxu0
  %vm115 = vcmask 261120
  %116 = vst.msk [vmem:[%s3] sm:$0xff] %vm115, %v107
  %117 = vst.msk [vmem:[%s3 + $0x8] sm:$0xff] %vm115, %v112
  // Predicated region
  $region14: #{conformer_forward.4} parent=0 // pred_check
    _
  $region15: #{conformer_forward.4} parent=0 // pred_check_branch
    %119 = sbr.rel (0) target = $region17
  $region16: #{conformer_forward.4} parent=0 // pred_region
    _
  $region17: #{conformer_forward.4} parent=0 // pred_fallthru
    _
  // Predicated region
  $region18: #{conformer_forward.4} parent=0 // pred_check
    _
  $region19: #{conformer_forward.4} parent=0 // pred_check_branch
    %121 = sbr.rel (0) target = $region21
  $region20: #{conformer_forward.4} parent=0 // pred_region
    _
  $region21: #{conformer_forward.4} parent=0 // pred_fallthru
    _

// kernel: conformer_forward.7
$region0: #{conformer_forward.7}
  #allocation0 [shape = 'u32[]', space=smem, size = 0x4, offset = 0x4, fixed_abs, tag = 'smem constant byte address 0x4 - core index']
  #allocation1 [shape = 'u32[144,128]{1,0:T(1,128)}', space=vmem, size = 0x12000, scoped, tag = 'internal scratch']
  %s0 = inlined_call_operand.vmem [shape: f32[16,32], index: 0, kind: input, shape index: {}]
  %s1 = inlined_call_operand.vmem [shape: f32[32,128], index: 1, kind: input, shape index: {}]
  %s2 = inlined_call_operand.vmem [shape: f32[1,128], index: 2, kind: input, shape index: {}]
  %s3 = inlined_call_operand.vmem [shape: f32[16,128], index: 3, kind: output, shape index: {}]
  %s4 = sld [smem:[#allocation0]]
  $region22: #{conformer_forward.7} parent=0
    _
  %s6 = ssub.s32 1, %s4
  %s7 = scalar_select 0, %s6, %s4
  // Predicated region
  $region2: #{conformer_forward.7} parent=0 // pred_check
    _
  $region3: #{conformer_forward.7} parent=0 // pred_check_branch
    %9 = sbr.rel (0) target = $region5
  $region4: #{conformer_forward.7} parent=0 // pred_region
    _
  $region5: #{conformer_forward.7} parent=0 // pred_fallthru
    _
  // Predicated region
  $region6: #{conformer_forward.7} parent=0 // pred_check
    _
  $region7: #{conformer_forward.7} parent=0 // pred_check_branch
    %11 = sbr.rel (0) target = $region9
  $region8: #{conformer_forward.7} parent=0 // pred_region
    _
  $region9: #{conformer_forward.7} parent=0 // pred_fallthru
    _
  // Predicated region
  $region10: #{conformer_forward.7} parent=0 // pred_check
    _
  $region11: #{conformer_forward.7} parent=0 // pred_check_branch
    %13 = sbr.rel (0) target = $region13
  $region12: #{conformer_forward.7} parent=0 // pred_region
    _
  $region13: #{conformer_forward.7} parent=0 // pred_fallthru
    _
  %v14 = vld [vmem:[%s0] sm:$0xff]
  %v15 = vld [vmem:[%s0 + $0x8] sm:$0xff]
  %v16 = vld [vmem:[%s1] sm:$0xff]
  %v17 = vld [vmem:[%s1 + $0x8] sm:$0xff]
  %v18 = vld [vmem:[%s1 + $0x10] sm:$0xff]
  %v19 = vld [vmem:[%s1 + $0x18] sm:$0xff]
  %v20 = vld [vmem:[%s2] sm:$0x1]
  %v22 = vlaneseq
  %v23 = vshrl.u32 %v22, 7
  %v24 = vsub.s32 0, %v23
  %v25 = vrot.slane %v20, %v24
  %vm27 = vcmask 261120
  %v29 = vsel %vm27, %v14, 0
  %v32 = vsel %vm27, %v15, 0
  %34 = vmatprep.subr.mxu0 0.0
  %35 = vmatpush1.msra.mxu0 0.0
  %36 = vmatprep.subr.mxu0 0.0
  %37 = vmatpush1.msra.mxu0 0.0
  %38 = vmatprep.subr.mxu0 0.0
  %39 = vmatpush1.msra.mxu0 0.0
  %40 = vmatprep.subr.mxu0 0.0
  %41 = vmatpush1.msra.mxu0 0.0
  %42 = vmatprep.subr.mxu0 0.0
  %43 = vmatpush1.msra.mxu0 0.0
  %44 = vmatprep.subr.mxu0 0.0
  %45 = vmatpush1.msra.mxu0 0.0
  %46 = vmatprep.subr.mxu0 0.0
  %47 = vmatpush1.msra.mxu0 0.0
  %48 = vmatprep.subr.mxu0 0.0
  %49 = vmatpush1.msra.mxu0 0.0
  %50 = vmatprep.subr.mxu0 0.0
  %51 = vmatpush1.msra.mxu0 0.0
  %52 = vmatprep.subr.mxu0 0.0
  %53 = vmatpush1.msra.mxu0 0.0
  %54 = vmatprep.subr.mxu0 0.0
  %55 = vmatpush1.msra.mxu0 0.0
  %56 = vmatprep.subr.mxu0 0.0
  %57 = vmatpush1.msra.mxu0 0.0
  %58 = vmatprep.subr.mxu0 0.0
  %59 = vmatpush1.msra.mxu0 %v19
  %60 = vmatprep.subr.mxu0 0.0
  %61 = vmatpush1.msra.mxu0 %v18
  %62 = vmatprep.subr.mxu0 0.0
  %63 = vmatpush1.msra.mxu0 %v17
  %64 = vmatprep.subr.mxu0 0.0
  %65 = vmatpush1.msra.mxu0 %v16
  %66 = vmatprep.subr.mxu0 0.0
  %67 = vmatpush2.msra.mxu0 0.0
  %68 = vmatprep.subr.mxu0 0.0
  %69 = vmatpush2.msra.mxu0 0.0
  %70 = vmatprep.subr.mxu0 0.0
  %71 = vmatpush2.msra.mxu0 0.0
  %72 = vmatprep.subr.mxu0 0.0
  %73 = vmatpush2.msra.mxu0 0.0
  %74 = vmatprep.subr.mxu0 0.0
  %75 = vmatpush2.msra.mxu0 0.0
  %76 = vmatprep.subr.mxu0 0.0
  %77 = vmatpush2.msra.mxu0 0.0
  %78 = vmatprep.subr.mxu0 0.0
  %79 = vmatpush2.msra.mxu0 0.0
  %80 = vmatprep.subr.mxu0 0.0
  %81 = vmatpush2.msra.mxu0 0.0
  %82 = vmatprep.subr.mxu0 0.0
  %83 = vmatpush2.msra.mxu0 0.0
  %84 = vmatprep.subr.mxu0 0.0
  %85 = vmatpush2.msra.mxu0 0.0
  %86 = vmatprep.subr.mxu0 0.0
  %87 = vmatpush2.msra.mxu0 0.0
  %88 = vmatprep.subr.mxu0 0.0
  %89 = vmatpush2.msra.mxu0 0.0
  %90 = vmatprep.subr.mxu0 0.0
  %91 = vmatpush2.msra.mxu0 0.0
  %92 = vmatprep.subr.mxu0 0.0
  %93 = vmatpush2.msra.mxu0 0.0
  %94 = vmatprep.subr.mxu0 0.0
  %95 = vmatpush2.msra.mxu0 0.0
  %96 = vmatprep.subr.mxu0 0.0
  %97 = vmatpush2.msra.mxu0 0.0
  %98 = vmatprep.mubr.f32.mxu0 0.0
  %99 = vmatmul.mubr.f32.gmra.mxu0 %v29
  %v100 = vpop.f32.mrf.mxu0
  %v101 = vadd.f32 %v25, %v100
  %v102 = vpop.f32.mrf.mxu0
  %103 = vmatprep.mubr.f32.mxu0 0.0
  %104 = vmatmul.mubr.f32.gmra.mxu0 %v32
  %v105 = vpop.f32.mrf.mxu0
  %v106 = vadd.f32 %v25, %v105
  %v107 = vpop.f32.mrf.mxu0
  %108 = vdwg.mxu0
  %109 = vmax.xlane.f32.xlu0 %v101
  %v110 = vpop.xlane.xlu0 %109
  %111 = vmax.xlane.f32.xlu0 %v106
  %v112 = vpop.xlane.xlu0 %111
  %v113 = vsub.f32 %v101, %v110
  %v114 = vsub.f32 %v106, %v112
  %v115 = vmul.f32 %v113, 1.442695
  %v116 = vpow.pop %v115
  %v117 = vmul.f32 %v114, 1.442695
  %v118 = vpow.pop %v117
  %119 = vadd.xlane.f32.xlu0 %v116
  %v120 = vpop.xlane.xlu0 %119
  %121 = vadd.xlane.f32.xlu0 %v118
  %v122 = vpop.xlane.xlu0 %121
  %v123 = vlog2.pop %v120
  %v124 = vmul.f32 %v123, 0.6931472
  %v125 = vlog2.pop %v122
  %v126 = vmul.f32 %v125, 0.6931472
  %v127 = vsub.f32 %v113, %v124
  %v128 = vsub.f32 %v114, %v126
  %129 = vst [vmem:[%s3] sm:$0xff] %v127
  %130 = vst [vmem:[%s3 + $0x8] sm:$0xff] %v128
  // Predicated region
  $region14: #{conformer_forward.7} parent=0 // pred_check
    _
  $region15: #{conformer_forward.7} parent=0 // pred_check_branch
    %132 = sbr.rel (0) target = $region17
  $region16: #{conformer_forward.7} parent=0 // pred_region
    _
  $region17: #{conformer_forward.7} parent=0 // pred_fallthru
    _
  // Predicated region
  $region18: #{conformer_forward.7} parent=0 // pred_check
    _
  $region19: #{conformer_forward.7} parent=0 // pred_check_branch
    %134 = sbr.rel (0) target = $region21
  $region20: #{conformer_forward.7} parent=0 // pred_region
    _
  $region21: #{conformer_forward.7} parent=0 // pred_fallthru
    _

// kernel: conformer_forward.5
$region0: #{conformer_forward.5}
  #allocation0 [shape = 'u32[]', space=smem, size = 0x4, offset = 0x4, fixed_abs, tag = 'smem constant byte address 0x4 - core index']
  #allocation1 [shape = 'u32[144,128]{1,0:T(1,128)}', space=vmem, size = 0x12000, scoped, tag = 'internal scratch']
  %s0 = inlined_call_operand.smem [shape: u32[32], index: -1, kind: input, shape index: {}]
  %s1 = sld [smem:[%s0]]
  %s2 = scalar_lea.smem %s0, 1
  %s3 = sld [smem:[%s2]]
  %s4 = scalar_lea.smem %s0, 2
  %s5 = sld [smem:[%s4]]
  %s6 = scalar_lea.smem %s0, 3
  %s7 = sld [smem:[%s6]]
  %s8 = scalar_lea.smem %s0, 4
  %s9 = sld [smem:[%s8]]
  %s10 = scalar_lea.smem %s0, 5
  %s11 = sld [smem:[%s10]]
  %s12 = scalar_lea.smem %s0, 6
  %s13 = sld [smem:[%s12]]
  %s14 = scalar_lea.smem %s0, 7
  %s15 = sld [smem:[%s14]]
  %s16 = scalar_lea.smem %s0, 8
  %s17 = sld [smem:[%s16]]
  %s18 = scalar_lea.smem %s0, 9
  %s19 = sld [smem:[%s18]]
  %s20 = scalar_lea.smem %s0, 10
  %s21 = sld [smem:[%s20]]
  %s22 = scalar_lea.smem %s0, 11
  %s23 = sld [smem:[%s22]]
  %s24 = scalar_lea.smem %s0, 12
  %s25 = sld [smem:[%s24]]
  %s26 = scalar_lea.smem %s0, 13
  %s27 = sld [smem:[%s26]]
  %s28 = scalar_lea.smem %s0, 14
  %s29 = sld [smem:[%s28]]
  %s30 = scalar_lea.smem %s0, 15
  %s31 = sld [smem:[%s30]]
  %s32 = scalar_lea.smem %s0, 16
  %s33 = sld [smem:[%s32]]
  %s34 = scalar_lea.smem %s0, 17
  %s35 = sld [smem:[%s34]]
  %s36 = scalar_lea.smem %s0, 18
  %s37 = sld [smem:[%s36]]
  %s38 = scalar_lea.smem %s0, 19
  %s39 = sld [smem:[%s38]]
  %s40 = scalar_lea.smem %s0, 20
  %s41 = sld [smem:[%s40]]
  %s42 = scalar_lea.smem %s0, 21
  %s43 = sld [smem:[%s42]]
  %s44 = scalar_lea.smem %s0, 22
  %s45 = sld [smem:[%s44]]
  %s46 = scalar_lea.smem %s0, 23
  %s47 = sld [smem:[%s46]]
  %s48 = scalar_lea.smem %s0, 24
  %s49 = sld [smem:[%s48]]
  %s50 = scalar_lea.smem %s0, 25
  %s51 = sld [smem:[%s50]]
  %s52 = scalar_lea.smem %s0, 26
  %s53 = sld [smem:[%s52]]
  %s54 = scalar_lea.smem %s0, 27
  %s55 = sld [smem:[%s54]]
  %s56 = scalar_lea.smem %s0, 28
  %s57 = sld [smem:[%s56]]
  %s58 = scalar_lea.smem %s0, 29
  %s59 = sld [smem:[%s58]]
  %s60 = scalar_lea.smem %s0, 30
  %s61 = sld [smem:[%s60]]
  %s62 = scalar_lea.smem %s0, 31
  %s63 = sld [smem:[%s62]]
  %s64 = sld [smem:[#allocation0]]
  $region157: #{conformer_forward.5} parent=0
    _
  %s66 = ssub.s32 1, %s64
  %s67 = scalar_select 0, %s66, %s64
  loop: start=0, step=1, limit=4
  $region2: #{conformer_forward.5} parent=0 // loop_pre_header
    _
  $region3: #{conformer_forward.5} parent=0 // loop_header
    %s69 = sphi 0, %s73
    %p70 = scmp.ge.s32.totalorder %s69, 4
    %s79 = sphi 0, %s81
    %s82 = sphi 0, %s79
    %s83 = sphi 0, %s82
    %s99 = sphi 0, %s83
    %s103 = sphi 0, %s103
    %s105 = sphi 0, %s103
    %s106 = sphi 0, %s105
    %s120 = sphi 0, %s106
    %s124 = sphi 0, %s124
    %s126 = sphi 0, %s124
    %s127 = sphi 0, %s126
    %s141 = sphi 0, %s127
    %s145 = sphi 0, %s145
    %s147 = sphi 0, %s145
    %s148 = sphi 0, %s147
    %s162 = sphi 0, %s148
    %s166 = sphi 0, %s166
    %s168 = sphi 0, %s166
    %s169 = sphi 0, %s168
    %s183 = sphi 0, %s169
    %s187 = sphi 0, %s187
    %s189 = sphi 0, %s187
    %s190 = sphi 0, %s189
    %s204 = sphi 0, %s190
    %s208 = sphi 0, %s208
    %s210 = sphi 0, %s208
    %s211 = sphi 0, %s210
    %s225 = sphi 0, %s211
    %s229 = sphi 0, %s229
    %s231 = sphi 0, %s229
    %s232 = sphi 0, %s231
    %s246 = sphi 0, %s232
    %s250 = sphi 0, %s250
    %s252 = sphi 0, %s250
    %s253 = sphi 0, %s252
    %s267 = sphi 0, %s253
    %s271 = sphi 0, %s271
    %s273 = sphi 0, %s271
    %s274 = sphi 0, %s273
    %s288 = sphi 0, %s274
    %s292 = sphi 0, %s292
    %s294 = sphi 0, %s292
    %s295 = sphi 0, %s294
    %s309 = sphi 0, %s295
    %s313 = sphi 0, %s313
    %s315 = sphi 0, %s313
    %s316 = sphi 0, %s315
    %s330 = sphi 0, %s316
    %s334 = sphi 0, %s334
    %s336 = sphi 0, %s334
    %s337 = sphi 0, %s336
    %s351 = sphi 0, %s337
    %s355 = sphi 0, %s355
    %s357 = sphi 0, %s355
    %s358 = sphi 0, %s357
    %s372 = sphi 0, %s358
    %s376 = sphi 0, %s376
    %s378 = sphi 0, %s376
    %s379 = sphi 0, %s378
    %s393 = sphi 0, %s379
    %s397 = sphi 0, %s397
    %s399 = sphi 0, %s397
    %s400 = sphi 0, %s399
    %s414 = sphi 0, %s400
    %s418 = sphi 0, %s418
    %s420 = sphi 0, %s418
    %s421 = sphi 0, %s420
    %s435 = sphi 0, %s421
    %s439 = sphi 0, %s439
    %s441 = sphi 0, %s439
    %s442 = sphi 0, %s441
    %s456 = sphi 0, %s442
    %s460 = sphi 0, %s460
    %s462 = sphi 0, %s460
    %s463 = sphi 0, %s462
    %s477 = sphi 0, %s463
    %s481 = sphi 0, %s481
    %s483 = sphi 0, %s481
    %s484 = sphi 0, %s483
    %s498 = sphi 0, %s484
    %s502 = sphi 0, %s502
    %s504 = sphi 0, %s502
    %s505 = sphi 0, %s504
    %s519 = sphi 0, %s505
    %s523 = sphi 0, %s523
    %s525 = sphi 0, %s523
    %s526 = sphi 0, %s525
    %s540 = sphi 0, %s526
    %s544 = sphi 0, %s544
    %s546 = sphi 0, %s544
    %s547 = sphi 0, %s546
    %s561 = sphi 0, %s547
    %s565 = sphi 0, %s565
    %s567 = sphi 0, %s565
    %s568 = sphi 0, %s567
    %s582 = sphi 0, %s568
    %s586 = sphi 0, %s586
    %s588 = sphi 0, %s586
    %s589 = sphi 0, %s588
    %s603 = sphi 0, %s589
    %s607 = sphi 0, %s607
    %s609 = sphi 0, %s607
    %s610 = sphi 0, %s609
    %s624 = sphi 0, %s610
    %s628 = sphi 0, %s628
    %s630 = sphi 0, %s628
    %s631 = sphi 0, %s630
    %s645 = sphi 0, %s631
    %s649 = sphi 0, %s649
    %s651 = sphi 0, %s649
    %s652 = sphi 0, %s651
    %s666 = sphi 0, %s652
    %s670 = sphi 0, %s670
    %s672 = sphi 0, %s670
    %s673 = sphi 0, %s672
    %s687 = sphi 0, %s673
    %s691 = sphi 0, %s691
    %s693 = sphi 0, %s691
    %s694 = sphi 0, %s693
    %s708 = sphi 0, %s694
    %s712 = sphi 0, %s712
    %s714 = sphi 0, %s712
    %s715 = sphi 0, %s714
    %s729 = sphi 0, %s715
    %s735 = sphi 0, %s737
    %s738 = sphi 0, %s735
    %s739 = sphi 0, %s738
    %s755 = sphi 0, %s739
  $region4: #{conformer_forward.5} parent=0 // loop_header_branch
    %72 = sbr.rel (%p70) target = $region8
  $region5: #{conformer_forward.5} parent=0 // loop_body
    %s74 = ssub.s32 %s69, 1
    %s75 = ssub.s32 %s69, 2
    %s76 = sadd.s32 %s69, 1
    %s77 = ssub.s32 %s69, %s76
    %p78 = scmp.eq.s32.totalorder %s77, 0
    %s80 = sadd.s32 %s79, 1
    %s81 = scalar_select %p78, %s79, %s80
    %p84 = pneg %p78
    %p85 = scmp.eq.s32.totalorder %s69, 1
    %p86 = por %p84, %p85
    %p87 = scmp.ne.s32.totalorder %s79, %s82
    %p88 = scmp.eq.s32.totalorder %s69, 0
    %p89 = por %p87, %p88
    %p90 = scmp.ne.s32.totalorder %s79, %s82
    %p91 = scmp.eq.s32.totalorder %s74, 1
    %p92 = por %p90, %p91
    %p93 = scmp.ne.s32.totalorder %s82, %s83
    %p94 = scmp.eq.s32.totalorder %s74, 0
    %p95 = por %p93, %p94
    %p96 = scmp.ne.s32.totalorder %s82, %s83
    %p97 = scmp.eq.s32.totalorder %s75, 1
    %p98 = por %p96, %p97
    %p100 = scmp.ne.s32.totalorder %s83, %s99
    %p101 = scmp.eq.s32.totalorder %s75, 0
    %p102 = por %p100, %p101
    %s104 = sadd.s32 %s103, 1
    %p107 = scmp.eq.s32.totalorder %s69, 1
    %p108 = scmp.ne.s32.totalorder %s103, %s105
    %p109 = scmp.eq.s32.totalorder %s69, 0
    %p110 = por %p108, %p109
    %p111 = scmp.ne.s32.totalorder %s103, %s105
    %p112 = scmp.eq.s32.totalorder %s74, 1
    %p113 = por %p111, %p112
    %p114 = scmp.ne.s32.totalorder %s105, %s106
    %p115 = scmp.eq.s32.totalorder %s74, 0
    %p116 = por %p114, %p115
    %p117 = scmp.ne.s32.totalorder %s105, %s106
    %p118 = scmp.eq.s32.totalorder %s75, 1
    %p119 = por %p117, %p118
    %p121 = scmp.ne.s32.totalorder %s106, %s120
    %p122 = scmp.eq.s32.totalorder %s75, 0
    %p123 = por %p121, %p122
    %s125 = sadd.s32 %s124, 1
    %p128 = scmp.eq.s32.totalorder %s69, 1
    %p129 = scmp.ne.s32.totalorder %s124, %s126
    %p130 = scmp.eq.s32.totalorder %s69, 0
    %p131 = por %p129, %p130
    %p132 = scmp.ne.s32.totalorder %s124, %s126
    %p133 = scmp.eq.s32.totalorder %s74, 1
    %p134 = por %p132, %p133
    %p135 = scmp.ne.s32.totalorder %s126, %s127
    %p136 = scmp.eq.s32.totalorder %s74, 0
    %p137 = por %p135, %p136
    %p138 = scmp.ne.s32.totalorder %s126, %s127
    %p139 = scmp.eq.s32.totalorder %s75, 1
    %p140 = por %p138, %p139
    %p142 = scmp.ne.s32.totalorder %s127, %s141
    %p143 = scmp.eq.s32.totalorder %s75, 0
    %p144 = por %p142, %p143
    %s146 = sadd.s32 %s145, 1
    %p149 = scmp.eq.s32.totalorder %s69, 1
    %p150 = scmp.ne.s32.totalorder %s145, %s147
    %p151 = scmp.eq.s32.totalorder %s69, 0
    %p152 = por %p150, %p151
    %p153 = scmp.ne.s32.totalorder %s145, %s147
    %p154 = scmp.eq.s32.totalorder %s74, 1
    %p155 = por %p153, %p154
    %p156 = scmp.ne.s32.totalorder %s147, %s148
    %p157 = scmp.eq.s32.totalorder %s74, 0
    %p158 = por %p156, %p157
    %p159 = scmp.ne.s32.totalorder %s147, %s148
    %p160 = scmp.eq.s32.totalorder %s75, 1
    %p161 = por %p159, %p160
    %p163 = scmp.ne.s32.totalorder %s148, %s162
    %p164 = scmp.eq.s32.totalorder %s75, 0
    %p165 = por %p163, %p164
    %s167 = sadd.s32 %s166, 1
    %p170 = scmp.eq.s32.totalorder %s69, 1
    %p171 = scmp.ne.s32.totalorder %s166, %s168
    %p172 = scmp.eq.s32.totalorder %s69, 0
    %p173 = por %p171, %p172
    %p174 = scmp.ne.s32.totalorder %s166, %s168
    %p175 = scmp.eq.s32.totalorder %s74, 1
    %p176 = por %p174, %p175
    %p177 = scmp.ne.s32.totalorder %s168, %s169
    %p178 = scmp.eq.s32.totalorder %s74, 0
    %p179 = por %p177, %p178
    %p180 = scmp.ne.s32.totalorder %s168, %s169
    %p181 = scmp.eq.s32.totalorder %s75, 1
    %p182 = por %p180, %p181
    %p184 = scmp.ne.s32.totalorder %s169, %s183
    %p185 = scmp.eq.s32.totalorder %s75, 0
    %p186 = por %p184, %p185
    %s188 = sadd.s32 %s187, 1
    %p191 = scmp.eq.s32.totalorder %s69, 1
    %p192 = scmp.ne.s32.totalorder %s187, %s189
    %p193 = scmp.eq.s32.totalorder %s69, 0
    %p194 = por %p192, %p193
    %p195 = scmp.ne.s32.totalorder %s187, %s189
    %p196 = scmp.eq.s32.totalorder %s74, 1
    %p197 = por %p195, %p196
    %p198 = scmp.ne.s32.totalorder %s189, %s190
    %p199 = scmp.eq.s32.totalorder %s74, 0
    %p200 = por %p198, %p199
    %p201 = scmp.ne.s32.totalorder %s189, %s190
    %p202 = scmp.eq.s32.totalorder %s75, 1
    %p203 = por %p201, %p202
    %p205 = scmp.ne.s32.totalorder %s190, %s204
    %p206 = scmp.eq.s32.totalorder %s75, 0
    %p207 = por %p205, %p206
    %s209 = sadd.s32 %s208, 1
    %p212 = scmp.eq.s32.totalorder %s69, 1
    %p213 = scmp.ne.s32.totalorder %s208, %s210
    %p214 = scmp.eq.s32.totalorder %s69, 0
    %p215 = por %p213, %p214
    %p216 = scmp.ne.s32.totalorder %s208, %s210
    %p217 = scmp.eq.s32.totalorder %s74, 1
    %p218 = por %p216, %p217
    %p219 = scmp.ne.s32.totalorder %s210, %s211
    %p220 = scmp.eq.s32.totalorder %s74, 0
    %p221 = por %p219, %p220
    %p222 = scmp.ne.s32.totalorder %s210, %s211
    %p223 = scmp.eq.s32.totalorder %s75, 1
    %p224 = por %p222, %p223
    %p226 = scmp.ne.s32.totalorder %s211, %s225
    %p227 = scmp.eq.s32.totalorder %s75, 0
    %p228 = por %p226, %p227
    %s230 = sadd.s32 %s229, 1
    %p233 = scmp.eq.s32.totalorder %s69, 1
    %p234 = scmp.ne.s32.totalorder %s229, %s231
    %p235 = scmp.eq.s32.totalorder %s69, 0
    %p236 = por %p234, %p235
    %p237 = scmp.ne.s32.totalorder %s229, %s231
    %p238 = scmp.eq.s32.totalorder %s74, 1
    %p239 = por %p237, %p238
    %p240 = scmp.ne.s32.totalorder %s231, %s232
    %p241 = scmp.eq.s32.totalorder %s74, 0
    %p242 = por %p240, %p241
    %p243 = scmp.ne.s32.totalorder %s231, %s232
    %p244 = scmp.eq.s32.totalorder %s75, 1
    %p245 = por %p243, %p244
    %p247 = scmp.ne.s32.totalorder %s232, %s246
    %p248 = scmp.eq.s32.totalorder %s75, 0
    %p249 = por %p247, %p248
    %s251 = sadd.s32 %s250, 1
    %p254 = scmp.eq.s32.totalorder %s69, 1
    %p255 = scmp.ne.s32.totalorder %s250, %s252
    %p256 = scmp.eq.s32.totalorder %s69, 0
    %p257 = por %p255, %p256
    %p258 = scmp.ne.s32.totalorder %s250, %s252
    %p259 = scmp.eq.s32.totalorder %s74, 1
    %p260 = por %p258, %p259
    %p261 = scmp.ne.s32.totalorder %s252, %s253
    %p262 = scmp.eq.s32.totalorder %s74, 0
    %p263 = por %p261, %p262
    %p264 = scmp.ne.s32.totalorder %s252, %s253
    %p265 = scmp.eq.s32.totalorder %s75, 1
    %p266 = por %p264, %p265
    %p268 = scmp.ne.s32.totalorder %s253, %s267
    %p269 = scmp.eq.s32.totalorder %s75, 0
    %p270 = por %p268, %p269
    %s272 = sadd.s32 %s271, 1
    %p275 = scmp.eq.s32.totalorder %s69, 1
    %p276 = scmp.ne.s32.totalorder %s271, %s273
    %p277 = scmp.eq.s32.totalorder %s69, 0
    %p278 = por %p276, %p277
    %p279 = scmp.ne.s32.totalorder %s271, %s273
    %p280 = scmp.eq.s32.totalorder %s74, 1
    %p281 = por %p279, %p280
    %p282 = scmp.ne.s32.totalorder %s273, %s274
    %p283 = scmp.eq.s32.totalorder %s74, 0
    %p284 = por %p282, %p283
    %p285 = scmp.ne.s32.totalorder %s273, %s274
    %p286 = scmp.eq.s32.totalorder %s75, 1
    %p287 = por %p285, %p286
    %p289 = scmp.ne.s32.totalorder %s274, %s288
    %p290 = scmp.eq.s32.totalorder %s75, 0
    %p291 = por %p289, %p290
    %s293 = sadd.s32 %s292, 1
    %p296 = scmp.eq.s32.totalorder %s69, 1
    %p297 = scmp.ne.s32.totalorder %s292, %s294
    %p298 = scmp.eq.s32.totalorder %s69, 0
    %p299 = por %p297, %p298
    %p300 = scmp.ne.s32.totalorder %s292, %s294
    %p301 = scmp.eq.s32.totalorder %s74, 1
    %p302 = por %p300, %p301
    %p303 = scmp.ne.s32.totalorder %s294, %s295
    %p304 = scmp.eq.s32.totalorder %s74, 0
    %p305 = por %p303, %p304
    %p306 = scmp.ne.s32.totalorder %s294, %s295
    %p307 = scmp.eq.s32.totalorder %s75, 1
    %p308 = por %p306, %p307
    %p310 = scmp.ne.s32.totalorder %s295, %s309
    %p311 = scmp.eq.s32.totalorder %s75, 0
    %p312 = por %p310, %p311
    %s314 = sadd.s32 %s313, 1
    %p317 = scmp.eq.s32.totalorder %s69, 1
    %p318 = scmp.ne.s32.totalorder %s313, %s315
    %p319 = scmp.eq.s32.totalorder %s69, 0
    %p320 = por %p318, %p319
    %p321 = scmp.ne.s32.totalorder %s313, %s315
    %p322 = scmp.eq.s32.totalorder %s74, 1
    %p323 = por %p321, %p322
    %p324 = scmp.ne.s32.totalorder %s315, %s316
    %p325 = scmp.eq.s32.totalorder %s74, 0
    %p326 = por %p324, %p325
    %p327 = scmp.ne.s32.totalorder %s315, %s316
    %p328 = scmp.eq.s32.totalorder %s75, 1
    %p329 = por %p327, %p328
    %p331 = scmp.ne.s32.totalorder %s316, %s330
    %p332 = scmp.eq.s32.totalorder %s75, 0
    %p333 = por %p331, %p332
    %s335 = sadd.s32 %s334, 1
    %p338 = scmp.eq.s32.totalorder %s69, 1
    %p339 = scmp.ne.s32.totalorder %s334, %s336
    %p340 = scmp.eq.s32.totalorder %s69, 0
    %p341 = por %p339, %p340
    %p342 = scmp.ne.s32.totalorder %s334, %s336
    %p343 = scmp.eq.s32.totalorder %s74, 1
    %p344 = por %p342, %p343
    %p345 = scmp.ne.s32.totalorder %s336, %s337
    %p346 = scmp.eq.s32.totalorder %s74, 0
    %p347 = por %p345, %p346
    %p348 = scmp.ne.s32.totalorder %s336, %s337
    %p349 = scmp.eq.s32.totalorder %s75, 1
    %p350 = por %p348, %p349
    %p352 = scmp.ne.s32.totalorder %s337, %s351
    %p353 = scmp.eq.s32.totalorder %s75, 0
    %p354 = por %p352, %p353
    %s356 = sadd.s32 %s355, 1
    %p359 = scmp.eq.s32.totalorder %s69, 1
    %p360 = scmp.ne.s32.totalorder %s355, %s357
    %p361 = scmp.eq.s32.totalorder %s69, 0
    %p362 = por %p360, %p361
    %p363 = scmp.ne.s32.totalorder %s355, %s357
    %p364 = scmp.eq.s32.totalorder %s74, 1
    %p365 = por %p363, %p364
    %p366 = scmp.ne.s32.totalorder %s357, %s358
    %p367 = scmp.eq.s32.totalorder %s74, 0
    %p368 = por %p366, %p367
    %p369 = scmp.ne.s32.totalorder %s357, %s358
    %p370 = scmp.eq.s32.totalorder %s75, 1
    %p371 = por %p369, %p370
    %p373 = scmp.ne.s32.totalorder %s358, %s372
    %p374 = scmp.eq.s32.totalorder %s75, 0
    %p375 = por %p373, %p374
    %s377 = sadd.s32 %s376, 1
    %p380 = scmp.eq.s32.totalorder %s69, 1
    %p381 = scmp.ne.s32.totalorder %s376, %s378
    %p382 = scmp.eq.s32.totalorder %s69, 0
    %p383 = por %p381, %p382
    %p384 = scmp.ne.s32.totalorder %s376, %s378
    %p385 = scmp.eq.s32.totalorder %s74, 1
    %p386 = por %p384, %p385
    %p387 = scmp.ne.s32.totalorder %s378, %s379
    %p388 = scmp.eq.s32.totalorder %s74, 0
    %p389 = por %p387, %p388
    %p390 = scmp.ne.s32.totalorder %s378, %s379
    %p391 = scmp.eq.s32.totalorder %s75, 1
    %p392 = por %p390, %p391
    %p394 = scmp.ne.s32.totalorder %s379, %s393
    %p395 = scmp.eq.s32.totalorder %s75, 0
    %p396 = por %p394, %p395
    %s398 = sadd.s32 %s397, 1
    %p401 = scmp.eq.s32.totalorder %s69, 1
    %p402 = scmp.ne.s32.totalorder %s397, %s399
    %p403 = scmp.eq.s32.totalorder %s69, 0
    %p404 = por %p402, %p403
    %p405 = scmp.ne.s32.totalorder %s397, %s399
    %p406 = scmp.eq.s32.totalorder %s74, 1
    %p407 = por %p405, %p406
    %p408 = scmp.ne.s32.totalorder %s399, %s400
    %p409 = scmp.eq.s32.totalorder %s74, 0
    %p410 = por %p408, %p409
    %p411 = scmp.ne.s32.totalorder %s399, %s400
    %p412 = scmp.eq.s32.totalorder %s75, 1
    %p413 = por %p411, %p412
    %p415 = scmp.ne.s32.totalorder %s400, %s414
    %p416 = scmp.eq.s32.totalorder %s75, 0
    %p417 = por %p415, %p416
    %s419 = sadd.s32 %s418, 1
    %p422 = scmp.eq.s32.totalorder %s69, 1
    %p423 = scmp.ne.s32.totalorder %s418, %s420
    %p424 = scmp.eq.s32.totalorder %s69, 0
    %p425 = por %p423, %p424
    %p426 = scmp.ne.s32.totalorder %s418, %s420
    %p427 = scmp.eq.s32.totalorder %s74, 1
    %p428 = por %p426, %p427
    %p429 = scmp.ne.s32.totalorder %s420, %s421
    %p430 = scmp.eq.s32.totalorder %s74, 0
    %p431 = por %p429, %p430
    %p432 = scmp.ne.s32.totalorder %s420, %s421
    %p433 = scmp.eq.s32.totalorder %s75, 1
    %p434 = por %p432, %p433
    %p436 = scmp.ne.s32.totalorder %s421, %s435
    %p437 = scmp.eq.s32.totalorder %s75, 0
    %p438 = por %p436, %p437
    %s440 = sadd.s32 %s439, 1
    %p443 = scmp.eq.s32.totalorder %s69, 1
    %p444 = scmp.ne.s32.totalorder %s439, %s441
    %p445 = scmp.eq.s32.totalorder %s69, 0
    %p446 = por %p444, %p445
    %p447 = scmp.ne.s32.totalorder %s439, %s441
    %p448 = scmp.eq.s32.totalorder %s74, 1
    %p449 = por %p447, %p448
    %p450 = scmp.ne.s32.totalorder %s441, %s442
    %p451 = scmp.eq.s32.totalorder %s74, 0
    %p452 = por %p450, %p451
    %p453 = scmp.ne.s32.totalorder %s441, %s442
    %p454 = scmp.eq.s32.totalorder %s75, 1
    %p455 = por %p453, %p454
    %p457 = scmp.ne.s32.totalorder %s442, %s456
    %p458 = scmp.eq.s32.totalorder %s75, 0
    %p459 = por %p457, %p458
    %s461 = sadd.s32 %s460, 1
    %p464 = scmp.eq.s32.totalorder %s69, 1
    %p465 = scmp.ne.s32.totalorder %s460, %s462
    %p466 = scmp.eq.s32.totalorder %s69, 0
    %p467 = por %p465, %p466
    %p468 = scmp.ne.s32.totalorder %s460, %s462
    %p469 = scmp.eq.s32.totalorder %s74, 1
    %p470 = por %p468, %p469
    %p471 = scmp.ne.s32.totalorder %s462, %s463
    %p472 = scmp.eq.s32.totalorder %s74, 0
    %p473 = por %p471, %p472
    %p474 = scmp.ne.s32.totalorder %s462, %s463
    %p475 = scmp.eq.s32.totalorder %s75, 1
    %p476 = por %p474, %p475
    %p478 = scmp.ne.s32.totalorder %s463, %s477
    %p479 = scmp.eq.s32.totalorder %s75, 0
    %p480 = por %p478, %p479
    %s482 = sadd.s32 %s481, 1
    %p485 = scmp.eq.s32.totalorder %s69, 1
    %p486 = scmp.ne.s32.totalorder %s481, %s483
    %p487 = scmp.eq.s32.totalorder %s69, 0
    %p488 = por %p486, %p487
    %p489 = scmp.ne.s32.totalorder %s481, %s483
    %p490 = scmp.eq.s32.totalorder %s74, 1
    %p491 = por %p489, %p490
    %p492 = scmp.ne.s32.totalorder %s483, %s484
    %p493 = scmp.eq.s32.totalorder %s74, 0
    %p494 = por %p492, %p493
    %p495 = scmp.ne.s32.totalorder %s483, %s484
    %p496 = scmp.eq.s32.totalorder %s75, 1
    %p497 = por %p495, %p496
    %p499 = scmp.ne.s32.totalorder %s484, %s498
    %p500 = scmp.eq.s32.totalorder %s75, 0
    %p501 = por %p499, %p500
    %s503 = sadd.s32 %s502, 1
    %p506 = scmp.eq.s32.totalorder %s69, 1
    %p507 = scmp.ne.s32.totalorder %s502, %s504
    %p508 = scmp.eq.s32.totalorder %s69, 0
    %p509 = por %p507, %p508
    %p510 = scmp.ne.s32.totalorder %s502, %s504
    %p511 = scmp.eq.s32.totalorder %s74, 1
    %p512 = por %p510, %p511
    %p513 = scmp.ne.s32.totalorder %s504, %s505
    %p514 = scmp.eq.s32.totalorder %s74, 0
    %p515 = por %p513, %p514
    %p516 = scmp.ne.s32.totalorder %s504, %s505
    %p517 = scmp.eq.s32.totalorder %s75, 1
    %p518 = por %p516, %p517
    %p520 = scmp.ne.s32.totalorder %s505, %s519
    %p521 = scmp.eq.s32.totalorder %s75, 0
    %p522 = por %p520, %p521
    %s524 = sadd.s32 %s523, 1
    %p527 = scmp.eq.s32.totalorder %s69, 1
    %p528 = scmp.ne.s32.totalorder %s523, %s525
    %p529 = scmp.eq.s32.totalorder %s69, 0
    %p530 = por %p528, %p529
    %p531 = scmp.ne.s32.totalorder %s523, %s525
    %p532 = scmp.eq.s32.totalorder %s74, 1
    %p533 = por %p531, %p532
    %p534 = scmp.ne.s32.totalorder %s525, %s526
    %p535 = scmp.eq.s32.totalorder %s74, 0
    %p536 = por %p534, %p535
    %p537 = scmp.ne.s32.totalorder %s525, %s526
    %p538 = scmp.eq.s32.totalorder %s75, 1
    %p539 = por %p537, %p538
    %p541 = scmp.ne.s32.totalorder %s526, %s540
    %p542 = scmp.eq.s32.totalorder %s75, 0
    %p543 = por %p541, %p542
    %s545 = sadd.s32 %s544, 1
    %p548 = scmp.eq.s32.totalorder %s69, 1
    %p549 = scmp.ne.s32.totalorder %s544, %s546
    %p550 = scmp.eq.s32.totalorder %s69, 0
    %p551 = por %p549, %p550
    %p552 = scmp.ne.s32.totalorder %s544, %s546
    %p553 = scmp.eq.s32.totalorder %s74, 1
    %p554 = por %p552, %p553
    %p555 = scmp.ne.s32.totalorder %s546, %s547
    %p556 = scmp.eq.s32.totalorder %s74, 0
    %p557 = por %p555, %p556
    %p558 = scmp.ne.s32.totalorder %s546, %s547
    %p559 = scmp.eq.s32.totalorder %s75, 1
    %p560 = por %p558, %p559
    %p562 = scmp.ne.s32.totalorder %s547, %s561
    %p563 = scmp.eq.s32.totalorder %s75, 0
    %p564 = por %p562, %p563
    %s566 = sadd.s32 %s565, 1
    %p569 = scmp.eq.s32.totalorder %s69, 1
    %p570 = scmp.ne.s32.totalorder %s565, %s567
    %p571 = scmp.eq.s32.totalorder %s69, 0
    %p572 = por %p570, %p571
    %p573 = scmp.ne.s32.totalorder %s565, %s567
    %p574 = scmp.eq.s32.totalorder %s74, 1
    %p575 = por %p573, %p574
    %p576 = scmp.ne.s32.totalorder %s567, %s568
    %p577 = scmp.eq.s32.totalorder %s74, 0
    %p578 = por %p576, %p577
    %p579 = scmp.ne.s32.totalorder %s567, %s568
    %p580 = scmp.eq.s32.totalorder %s75, 1
    %p581 = por %p579, %p580
    %p583 = scmp.ne.s32.totalorder %s568, %s582
    %p584 = scmp.eq.s32.totalorder %s75, 0
    %p585 = por %p583, %p584
    %s587 = sadd.s32 %s586, 1
    %p590 = scmp.eq.s32.totalorder %s69, 1
    %p591 = scmp.ne.s32.totalorder %s586, %s588
    %p592 = scmp.eq.s32.totalorder %s69, 0
    %p593 = por %p591, %p592
    %p594 = scmp.ne.s32.totalorder %s586, %s588
    %p595 = scmp.eq.s32.totalorder %s74, 1
    %p596 = por %p594, %p595
    %p597 = scmp.ne.s32.totalorder %s588, %s589
    %p598 = scmp.eq.s32.totalorder %s74, 0
    %p599 = por %p597, %p598
    %p600 = scmp.ne.s32.totalorder %s588, %s589
    %p601 = scmp.eq.s32.totalorder %s75, 1
    %p602 = por %p600, %p601
    %p604 = scmp.ne.s32.totalorder %s589, %s603
    %p605 = scmp.eq.s32.totalorder %s75, 0
    %p606 = por %p604, %p605
    %s608 = sadd.s32 %s607, 1
    %p611 = scmp.eq.s32.totalorder %s69, 1
    %p612 = scmp.ne.s32.totalorder %s607, %s609
    %p613 = scmp.eq.s32.totalorder %s69, 0
    %p614 = por %p612, %p613
    %p615 = scmp.ne.s32.totalorder %s607, %s609
    %p616 = scmp.eq.s32.totalorder %s74, 1
    %p617 = por %p615, %p616
    %p618 = scmp.ne.s32.totalorder %s609, %s610
    %p619 = scmp.eq.s32.totalorder %s74, 0
    %p620 = por %p618, %p619
    %p621 = scmp.ne.s32.totalorder %s609, %s610
    %p622 = scmp.eq.s32.totalorder %s75, 1
    %p623 = por %p621, %p622
    %p625 = scmp.ne.s32.totalorder %s610, %s624
    %p626 = scmp.eq.s32.totalorder %s75, 0
    %p627 = por %p625, %p626
    %s629 = sadd.s32 %s628, 1
    %p632 = scmp.eq.s32.totalorder %s69, 1
    %p633 = scmp.ne.s32.totalorder %s628, %s630
    %p634 = scmp.eq.s32.totalorder %s69, 0
    %p635 = por %p633, %p634
    %p636 = scmp.ne.s32.totalorder %s628, %s630
    %p637 = scmp.eq.s32.totalorder %s74, 1
    %p638 = por %p636, %p637
    %p639 = scmp.ne.s32.totalorder %s630, %s631
    %p640 = scmp.eq.s32.totalorder %s74, 0
    %p641 = por %p639, %p640
    %p642 = scmp.ne.s32.totalorder %s630, %s631
    %p643 = scmp.eq.s32.totalorder %s75, 1
    %p644 = por %p642, %p643
    %p646 = scmp.ne.s32.totalorder %s631, %s645
    %p647 = scmp.eq.s32.totalorder %s75, 0
    %p648 = por %p646, %p647
    %s650 = sadd.s32 %s649, 1
    %p653 = scmp.eq.s32.totalorder %s69, 1
    %p654 = scmp.ne.s32.totalorder %s649, %s651
    %p655 = scmp.eq.s32.totalorder %s69, 0
    %p656 = por %p654, %p655
    %p657 = scmp.ne.s32.totalorder %s649, %s651
    %p658 = scmp.eq.s32.totalorder %s74, 1
    %p659 = por %p657, %p658
    %p660 = scmp.ne.s32.totalorder %s651, %s652
    %p661 = scmp.eq.s32.totalorder %s74, 0
    %p662 = por %p660, %p661
    %p663 = scmp.ne.s32.totalorder %s651, %s652
    %p664 = scmp.eq.s32.totalorder %s75, 1
    %p665 = por %p663, %p664
    %p667 = scmp.ne.s32.totalorder %s652, %s666
    %p668 = scmp.eq.s32.totalorder %s75, 0
    %p669 = por %p667, %p668
    %s671 = sadd.s32 %s670, 1
    %p674 = scmp.eq.s32.totalorder %s69, 1
    %p675 = scmp.ne.s32.totalorder %s670, %s672
    %p676 = scmp.eq.s32.totalorder %s69, 0
    %p677 = por %p675, %p676
    %p678 = scmp.ne.s32.totalorder %s670, %s672
    %p679 = scmp.eq.s32.totalorder %s74, 1
    %p680 = por %p678, %p679
    %p681 = scmp.ne.s32.totalorder %s672, %s673
    %p682 = scmp.eq.s32.totalorder %s74, 0
    %p683 = por %p681, %p682
    %p684 = scmp.ne.s32.totalorder %s672, %s673
    %p685 = scmp.eq.s32.totalorder %s75, 1
    %p686 = por %p684, %p685
    %p688 = scmp.ne.s32.totalorder %s673, %s687
    %p689 = scmp.eq.s32.totalorder %s75, 0
    %p690 = por %p688, %p689
    %s692 = sadd.s32 %s691, 1
    %p695 = scmp.eq.s32.totalorder %s69, 1
    %p696 = scmp.ne.s32.totalorder %s691, %s693
    %p697 = scmp.eq.s32.totalorder %s69, 0
    %p698 = por %p696, %p697
    %p699 = scmp.ne.s32.totalorder %s691, %s693
    %p700 = scmp.eq.s32.totalorder %s74, 1
    %p701 = por %p699, %p700
    %p702 = scmp.ne.s32.totalorder %s693, %s694
    %p703 = scmp.eq.s32.totalorder %s74, 0
    %p704 = por %p702, %p703
    %p705 = scmp.ne.s32.totalorder %s693, %s694
    %p706 = scmp.eq.s32.totalorder %s75, 1
    %p707 = por %p705, %p706
    %p709 = scmp.ne.s32.totalorder %s694, %s708
    %p710 = scmp.eq.s32.totalorder %s75, 0
    %p711 = por %p709, %p710
    %s713 = sadd.s32 %s712, 1
    %p716 = scmp.eq.s32.totalorder %s69, 1
    %p717 = scmp.ne.s32.totalorder %s712, %s714
    %p718 = scmp.eq.s32.totalorder %s69, 0
    %p719 = por %p717, %p718
    %p720 = scmp.ne.s32.totalorder %s712, %s714
    %p721 = scmp.eq.s32.totalorder %s74, 1
    %p722 = por %p720, %p721
    %p723 = scmp.ne.s32.totalorder %s714, %s715
    %p724 = scmp.eq.s32.totalorder %s74, 0
    %p725 = por %p723, %p724
    %p726 = scmp.ne.s32.totalorder %s714, %s715
    %p727 = scmp.eq.s32.totalorder %s75, 1
    %p728 = por %p726, %p727
    %p730 = scmp.ne.s32.totalorder %s715, %s729
    %p731 = scmp.eq.s32.totalorder %s75, 0
    %p732 = por %p730, %p731
    %s733 = ssub.s32 %s69, %s76
    %p734 = scmp.eq.s32.totalorder %s733, 0
    %s736 = sadd.s32 %s735, 1
    %s737 = scalar_select %p734, %s735, %s736
    %p740 = pneg %p734
    %p741 = scmp.eq.s32.totalorder %s69, 1
    %p742 = por %p740, %p741
    %p743 = scmp.ne.s32.totalorder %s735, %s738
    %p744 = scmp.eq.s32.totalorder %s69, 0
    %p745 = por %p743, %p744
    %p746 = scmp.ne.s32.totalorder %s735, %s738
    %p747 = scmp.eq.s32.totalorder %s74, 1
    %p748 = por %p746, %p747
    %p749 = scmp.ne.s32.totalorder %s738, %s739
    %p750 = scmp.eq.s32.totalorder %s74, 0
    %p751 = por %p749, %p750
    %p752 = scmp.ne.s32.totalorder %s738, %s739
    %p753 = scmp.eq.s32.totalorder %s75, 1
    %p754 = por %p752, %p753
    %p756 = scmp.ne.s32.totalorder %s739, %s755
    %p757 = scmp.eq.s32.totalorder %s75, 0
    %p758 = por %p756, %p757
    %p759 = scmp.le.s32.totalorder 1, %s69
    %p760 = scmp.lt.s32.totalorder %s69, 3
    %p761 = pnand %p759, %p760
    %p762 = pneg %p761
    // Predicated region
    $region9: #{conformer_forward.5} parent=5 // pred_check
      _
    $region10: #{conformer_forward.5} parent=5 // pred_check_branch
      %764 = sbr.rel (%p761) target = $region12
    $region11: #{conformer_forward.5} parent=5 // pred_region
      %s765 = ssub.s32 %s69, 1
      // Predicated region
      $region13: #{conformer_forward.5} parent=11 // pred_check
        %p766 = pneg %p116
      $region14: #{conformer_forward.5} parent=11 // pred_check_branch
        %768 = sbr.rel (%p766) target = $region16
      $region15: #{conformer_forward.5} parent=11 // pred_region
        _
      $region16: #{conformer_forward.5} parent=11 // pred_fallthru
        _
      // Predicated region
      $region17: #{conformer_forward.5} parent=11 // pred_check
        %p769 = pneg %p137
      $region18: #{conformer_forward.5} parent=11 // pred_check_branch
        %771 = sbr.rel (%p769) target = $region20
      $region19: #{conformer_forward.5} parent=11 // pred_region
        _
      $region20: #{conformer_forward.5} parent=11 // pred_fallthru
        _
      // Predicated region
      $region21: #{conformer_forward.5} parent=11 // pred_check
        %p772 = pneg %p158
      $region22: #{conformer_forward.5} parent=11 // pred_check_branch
        %774 = sbr.rel (%p772) target = $region24
      $region23: #{conformer_forward.5} parent=11 // pred_region
        _
      $region24: #{conformer_forward.5} parent=11 // pred_fallthru
        _
      // Predicated region
      $region25: #{conformer_forward.5} parent=11 // pred_check
        %p775 = pneg %p179
      $region26: #{conformer_forward.5} parent=11 // pred_check_branch
        %777 = sbr.rel (%p775) target = $region28
      $region27: #{conformer_forward.5} parent=11 // pred_region
        _
      $region28: #{conformer_forward.5} parent=11 // pred_fallthru
        _
      // Predicated region
      $region29: #{conformer_forward.5} parent=11 // pred_check
        %p778 = pneg %p200
      $region30: #{conformer_forward.5} parent=11 // pred_check_branch
        %780 = sbr.rel (%p778) target = $region32
      $region31: #{conformer_forward.5} parent=11 // pred_region
        _
      $region32: #{conformer_forward.5} parent=11 // pred_fallthru
        _
      // Predicated region
      $region33: #{conformer_forward.5} parent=11 // pred_check
        %p781 = pneg %p221
      $region34: #{conformer_forward.5} parent=11 // pred_check_branch
        %783 = sbr.rel (%p781) target = $region36
      $region35: #{conformer_forward.5} parent=11 // pred_region
        _
      $region36: #{conformer_forward.5} parent=11 // pred_fallthru
        _
      // Predicated region
      $region37: #{conformer_forward.5} parent=11 // pred_check
        %p784 = pneg %p242
      $region38: #{conformer_forward.5} parent=11 // pred_check_branch
        %786 = sbr.rel (%p784) target = $region40
      $region39: #{conformer_forward.5} parent=11 // pred_region
        _
      $region40: #{conformer_forward.5} parent=11 // pred_fallthru
        _
      // Predicated region
      $region41: #{conformer_forward.5} parent=11 // pred_check
        %p787 = pneg %p263
      $region42: #{conformer_forward.5} parent=11 // pred_check_branch
        %789 = sbr.rel (%p787) target = $region44
      $region43: #{conformer_forward.5} parent=11 // pred_region
        _
      $region44: #{conformer_forward.5} parent=11 // pred_fallthru
        _
      // Predicated region
      $region45: #{conformer_forward.5} parent=11 // pred_check
        %p790 = pneg %p284
      $region46: #{conformer_forward.5} parent=11 // pred_check_branch
        %792 = sbr.rel (%p790) target = $region48
      $region47: #{conformer_forward.5} parent=11 // pred_region
        _
      $region48: #{conformer_forward.5} parent=11 // pred_fallthru
        _
      // Predicated region
      $region49: #{conformer_forward.5} parent=11 // pred_check
        %p793 = pneg %p305
      $region50: #{conformer_forward.5} parent=11 // pred_check_branch
        %795 = sbr.rel (%p793) target = $region52
      $region51: #{conformer_forward.5} parent=11 // pred_region
        _
      $region52: #{conformer_forward.5} parent=11 // pred_fallthru
        _
      // Predicated region
      $region53: #{conformer_forward.5} parent=11 // pred_check
        %p796 = pneg %p326
      $region54: #{conformer_forward.5} parent=11 // pred_check_branch
        %798 = sbr.rel (%p796) target = $region56
      $region55: #{conformer_forward.5} parent=11 // pred_region
        _
      $region56: #{conformer_forward.5} parent=11 // pred_fallthru
        _
      // Predicated region
      $region57: #{conformer_forward.5} parent=11 // pred_check
        %p799 = pneg %p347
      $region58: #{conformer_forward.5} parent=11 // pred_check_branch
        %801 = sbr.rel (%p799) target = $region60
      $region59: #{conformer_forward.5} parent=11 // pred_region
        _
      $region60: #{conformer_forward.5} parent=11 // pred_fallthru
        _
      // Predicated region
      $region61: #{conformer_forward.5} parent=11 // pred_check
        %p802 = pneg %p368
      $region62: #{conformer_forward.5} parent=11 // pred_check_branch
        %804 = sbr.rel (%p802) target = $region64
      $region63: #{conformer_forward.5} parent=11 // pred_region
        _
      $region64: #{conformer_forward.5} parent=11 // pred_fallthru
        _
      // Predicated region
      $region65: #{conformer_forward.5} parent=11 // pred_check
        %p805 = pneg %p389
      $region66: #{conformer_forward.5} parent=11 // pred_check_branch
        %807 = sbr.rel (%p805) target = $region68
      $region67: #{conformer_forward.5} parent=11 // pred_region
        _
      $region68: #{conformer_forward.5} parent=11 // pred_fallthru
        _
      // Predicated region
      $region69: #{conformer_forward.5} parent=11 // pred_check
        %p808 = pneg %p410
      $region70: #{conformer_forward.5} parent=11 // pred_check_branch
        %810 = sbr.rel (%p808) target = $region72
      $region71: #{conformer_forward.5} parent=11 // pred_region
        _
      $region72: #{conformer_forward.5} parent=11 // pred_fallthru
        _
      // Predicated region
      $region73: #{conformer_forward.5} parent=11 // pred_check
        %p811 = pneg %p431
      $region74: #{conformer_forward.5} parent=11 // pred_check_branch
        %813 = sbr.rel (%p811) target = $region76
      $region75: #{conformer_forward.5} parent=11 // pred_region
        _
      $region76: #{conformer_forward.5} parent=11 // pred_fallthru
        _
      // Predicated region
      $region77: #{conformer_forward.5} parent=11 // pred_check
        %p814 = pneg %p452
      $region78: #{conformer_forward.5} parent=11 // pred_check_branch
        %816 = sbr.rel (%p814) target = $region80
      $region79: #{conformer_forward.5} parent=11 // pred_region
        _
      $region80: #{conformer_forward.5} parent=11 // pred_fallthru
        _
      // Predicated region
      $region81: #{conformer_forward.5} parent=11 // pred_check
        %p817 = pneg %p473
      $region82: #{conformer_forward.5} parent=11 // pred_check_branch
        %819 = sbr.rel (%p817) target = $region84
      $region83: #{conformer_forward.5} parent=11 // pred_region
        _
      $region84: #{conformer_forward.5} parent=11 // pred_fallthru
        _
      // Predicated region
      $region85: #{conformer_forward.5} parent=11 // pred_check
        %p820 = pneg %p494
      $region86: #{conformer_forward.5} parent=11 // pred_check_branch
        %822 = sbr.rel (%p820) target = $region88
      $region87: #{conformer_forward.5} parent=11 // pred_region
        _
      $region88: #{conformer_forward.5} parent=11 // pred_fallthru
        _
      // Predicated region
      $region89: #{conformer_forward.5} parent=11 // pred_check
        %p823 = pneg %p515
      $region90: #{conformer_forward.5} parent=11 // pred_check_branch
        %825 = sbr.rel (%p823) target = $region92
      $region91: #{conformer_forward.5} parent=11 // pred_region
        _
      $region92: #{conformer_forward.5} parent=11 // pred_fallthru
        _
      // Predicated region
      $region93: #{conformer_forward.5} parent=11 // pred_check
        %p826 = pneg %p536
      $region94: #{conformer_forward.5} parent=11 // pred_check_branch
        %828 = sbr.rel (%p826) target = $region96
      $region95: #{conformer_forward.5} parent=11 // pred_region
        _
      $region96: #{conformer_forward.5} parent=11 // pred_fallthru
        _
      // Predicated region
      $region97: #{conformer_forward.5} parent=11 // pred_check
        %p829 = pneg %p557
      $region98: #{conformer_forward.5} parent=11 // pred_check_branch
        %831 = sbr.rel (%p829) target = $region100
      $region99: #{conformer_forward.5} parent=11 // pred_region
        _
      $region100: #{conformer_forward.5} parent=11 // pred_fallthru
        _
      // Predicated region
      $region101: #{conformer_forward.5} parent=11 // pred_check
        %p832 = pneg %p578
      $region102: #{conformer_forward.5} parent=11 // pred_check_branch
        %834 = sbr.rel (%p832) target = $region104
      $region103: #{conformer_forward.5} parent=11 // pred_region
        _
      $region104: #{conformer_forward.5} parent=11 // pred_fallthru
        _
      // Predicated region
      $region105: #{conformer_forward.5} parent=11 // pred_check
        %p835 = pneg %p599
      $region106: #{conformer_forward.5} parent=11 // pred_check_branch
        %837 = sbr.rel (%p835) target = $region108
      $region107: #{conformer_forward.5} parent=11 // pred_region
        _
      $region108: #{conformer_forward.5} parent=11 // pred_fallthru
        _
      // Predicated region
      $region109: #{conformer_forward.5} parent=11 // pred_check
        %p838 = pneg %p620
      $region110: #{conformer_forward.5} parent=11 // pred_check_branch
        %840 = sbr.rel (%p838) target = $region112
      $region111: #{conformer_forward.5} parent=11 // pred_region
        _
      $region112: #{conformer_forward.5} parent=11 // pred_fallthru
        _
      // Predicated region
      $region113: #{conformer_forward.5} parent=11 // pred_check
        %p841 = pneg %p641
      $region114: #{conformer_forward.5} parent=11 // pred_check_branch
        %843 = sbr.rel (%p841) target = $region116
      $region115: #{conformer_forward.5} parent=11 // pred_region
        _
      $region116: #{conformer_forward.5} parent=11 // pred_fallthru
        _
      // Predicated region
      $region117: #{conformer_forward.5} parent=11 // pred_check
        %p844 = pneg %p662
      $region118: #{conformer_forward.5} parent=11 // pred_check_branch
        %846 = sbr.rel (%p844) target = $region120
      $region119: #{conformer_forward.5} parent=11 // pred_region
        _
      $region120: #{conformer_forward.5} parent=11 // pred_fallthru
        _
      // Predicated region
      $region121: #{conformer_forward.5} parent=11 // pred_check
        %p847 = pneg %p683
      $region122: #{conformer_forward.5} parent=11 // pred_check_branch
        %849 = sbr.rel (%p847) target = $region124
      $region123: #{conformer_forward.5} parent=11 // pred_region
        _
      $region124: #{conformer_forward.5} parent=11 // pred_fallthru
        _
      // Predicated region
      $region125: #{conformer_forward.5} parent=11 // pred_check
        %p850 = pneg %p704
      $region126: #{conformer_forward.5} parent=11 // pred_check_branch
        %852 = sbr.rel (%p850) target = $region128
      $region127: #{conformer_forward.5} parent=11 // pred_region
        _
      $region128: #{conformer_forward.5} parent=11 // pred_fallthru
        _
      // Predicated region
      $region129: #{conformer_forward.5} parent=11 // pred_check
        %p853 = pneg %p725
      $region130: #{conformer_forward.5} parent=11 // pred_check_branch
        %855 = sbr.rel (%p853) target = $region132
      $region131: #{conformer_forward.5} parent=11 // pred_region
        _
      $region132: #{conformer_forward.5} parent=11 // pred_fallthru
        _
    $region12: #{conformer_forward.5} parent=5 // pred_fallthru
      _
    %p856 = scmp.lt.s32.totalorder %s69, 2
    // Predicated region
    $region133: #{conformer_forward.5} parent=5 // pred_check
      %p857 = pneg %p856
    $region134: #{conformer_forward.5} parent=5 // pred_check_branch
      %859 = sbr.rel (%p857) target = $region136
    $region135: #{conformer_forward.5} parent=5 // pred_region
      // Predicated region
      $region137: #{conformer_forward.5} parent=135 // pred_check
        %p860 = pneg %p89
      $region138: #{conformer_forward.5} parent=135 // pred_check_branch
        %862 = sbr.rel (%p860) target = $region140
      $region139: #{conformer_forward.5} parent=135 // pred_region
        %p863 = scmp.lt.s32.totalorder %s69, 1
        %s864 = scalar_select %p863, %s69, 1
        %s865 = smul.addr %s864, 8
        %s866 = scalar_lea.vmem %s1, %s865
      $region140: #{conformer_forward.5} parent=135 // pred_fallthru
        _
    $region136: #{conformer_forward.5} parent=5 // pred_fallthru
      _
    %p867 = scmp.le.s32.totalorder 1, %s69
    %p868 = scmp.lt.s32.totalorder %s69, 3
    %p869 = pnand %p867, %p868
    %p870 = pneg %p869
    // Predicated region
    $region141: #{conformer_forward.5} parent=5 // pred_check
      _
    $region142: #{conformer_forward.5} parent=5 // pred_check_branch
      %872 = sbr.rel (%p869) target = $region144
    $region143: #{conformer_forward.5} parent=5 // pred_region
      %s873 = ssub.s32 %s69, 1
      %p874 = scmp.lt.s32.totalorder %s74, 1
      %s875 = scalar_select %p874, %s74, 1
      %s876 = smul.addr %s875, 8
      %s877 = scalar_lea.vmem %s1, %s876
      %p878 = pneg %p95
      %p879 = pneg %p92
      %p880 = pneg %p116
      %p881 = pneg %p113
      %p882 = pneg %p137
      %p883 = pneg %p134
      %p884 = pneg %p158
      %p885 = pneg %p155
      %p886 = pneg %p179
      %p887 = pneg %p176
      %p888 = pneg %p200
      %p889 = pneg %p197
      %p890 = pneg %p221
      %p891 = pneg %p218
      %p892 = pneg %p242
      %p893 = pneg %p239
      %p894 = pneg %p263
      %p895 = pneg %p260
      %p896 = pneg %p284
      %p897 = pneg %p281
      %p898 = pneg %p305
      %p899 = pneg %p302
      %p900 = pneg %p326
      %p901 = pneg %p323
      %p902 = pneg %p347
      %p903 = pneg %p344
      %p904 = pneg %p368
      %p905 = pneg %p365
      %p906 = pneg %p389
      %p907 = pneg %p386
      %p908 = pneg %p410
      %p909 = pneg %p407
      %p910 = pneg %p431
      %p911 = pneg %p428
      %p912 = pneg %p452
      %p913 = pneg %p449
      %p914 = pneg %p473
      %p915 = pneg %p470
      %p916 = pneg %p494
      %p917 = pneg %p491
      %p918 = pneg %p515
      %p919 = pneg %p512
      %p920 = pneg %p536
      %p921 = pneg %p533
      %p922 = pneg %p557
      %p923 = pneg %p554
      %p924 = pneg %p578
      %p925 = pneg %p575
      %p926 = pneg %p599
      %p927 = pneg %p596
      %p928 = pneg %p620
      %p929 = pneg %p617
      %p930 = pneg %p641
      %p931 = pneg %p638
      %p932 = pneg %p662
      %p933 = pneg %p659
      %p934 = pneg %p683
      %p935 = pneg %p680
      %p936 = pneg %p704
      %p937 = pneg %p701
      %p938 = pneg %p725
      %p939 = pneg %p722
      %p940 = pneg %p751
      %p941 = pneg %p748
      %p942 = scmp.lt.s32.totalorder %s74, 1
      %s943 = scalar_select %p942, %s74, 1
      %s944 = smul.addr %s943, 8
      %s945 = scalar_lea.vmem %s63, %s944
      %p946 = scmp.lt.s32.totalorder %s74, 1
      %s947 = scalar_select %p946, %s74, 1
      %s948 = smul.addr %s947, 8
      %s949 = scalar_lea.vmem %s1, %s948
      %p950 = scmp.lt.s32.totalorder %s74, 1
      %s951 = scalar_select %p950, %s74, 1
      %s952 = smul.addr %s951, 8
      %s953 = scalar_lea.vmem %s63, %s952
      %v954 = vld [vmem:[%s949] sm:$0xff]
      %v955 = vld [vmem:[%s3] sm:$0x1]
      %v956 = vld [vmem:[%s5] sm:$0x1]
      %vm957 = vcmask 261120
      %v958 = vsel %vm957, %v954, 0.0
      %959 = vadd.xlane.f32.xlu0 %v958
      %v960 = vpop.xlane.xlu0 %959
      %v961 = vrcp.pop 32.0
      %v962 = vmul.f32 %v960, %v961
      %v963 = vsub.f32 %v954, %v962
      %v964 = vmul.f32 %v963, %v963
      %v965 = vsel %vm957, %v964, 0.0
      %966 = vadd.xlane.f32.xlu0 %v965
      %v967 = vpop.xlane.xlu0 %966
      %v968 = vmul.f32 %v967, %v961
      %v969 = vadd.f32 %v968, 1e-05
      %v970 = vrsqrt.pop %v969
      %v971 = vmul.f32 %v963, %v970
      %v973 = vlaneseq
      %v974 = vshrl.u32 %v973, 7
      %v975 = vsub.s32 0, %v974
      %v976 = vrot.slane %v955, %v975
      %v978 = vmul.f32 %v971, %v976
      %v980 = vlaneseq
      %v981 = vshrl.u32 %v980, 7
      %v982 = vsub.s32 0, %v981
      %v983 = vrot.slane %v956, %v982
      %v985 = vadd.f32 %v978, %v983
      %v986 = vld [vmem:[%s7] sm:$0xff]
      %v987 = vld [vmem:[%s7 + $0x8] sm:$0xff]
      %v988 = vld [vmem:[%s7 + $0x10] sm:$0xff]
      %v989 = vld [vmem:[%s7 + $0x18] sm:$0xff]
      %v990 = vld [vmem:[%s9] sm:$0x1]
      %v992 = vlaneseq
      %v993 = vshrl.u32 %v992, 7
      %v994 = vsub.s32 0, %v993
      %v995 = vrot.slane %v990, %v994
      %v998 = vsel %vm957, %v985, 0
      %1000 = vmatprep.subr.mxu0 0.0
      %1001 = vmatpush1.msra.mxu0 0.0
      %1002 = vmatprep.subr.mxu0 0.0
      %1003 = vmatpush1.msra.mxu0 0.0
      %1004 = vmatprep.subr.mxu0 0.0
      %1005 = vmatpush1.msra.mxu0 0.0
      %1006 = vmatprep.subr.mxu0 0.0
      %1007 = vmatpush1.msra.mxu0 0.0
      %1008 = vmatprep.subr.mxu0 0.0
      %1009 = vmatpush1.msra.mxu0 0.0
      %1010 = vmatprep.subr.mxu0 0.0
      %1011 = vmatpush1.msra.mxu0 0.0
      %1012 = vmatprep.subr.mxu0 0.0
      %1013 = vmatpush1.msra.mxu0 0.0
      %1014 = vmatprep.subr.mxu0 0.0
      %1015 = vmatpush1.msra.mxu0 0.0
      %1016 = vmatprep.subr.mxu0 0.0
      %1017 = vmatpush1.msra.mxu0 0.0
      %1018 = vmatprep.subr.mxu0 0.0
      %1019 = vmatpush1.msra.mxu0 0.0
      %1020 = vmatprep.subr.mxu0 0.0
      %1021 = vmatpush1.msra.mxu0 0.0
      %1022 = vmatprep.subr.mxu0 0.0
      %1023 = vmatpush1.msra.mxu0 0.0
      %1024 = vmatprep.subr.mxu0 0.0
      %1025 = vmatpush1.msra.mxu0 %v989
      %1026 = vmatprep.subr.mxu0 0.0
      %1027 = vmatpush1.msra.mxu0 %v988
      %1028 = vmatprep.subr.mxu0 0.0
      %1029 = vmatpush1.msra.mxu0 %v987
      %1030 = vmatprep.subr.mxu0 0.0
      %1031 = vmatpush1.msra.mxu0 %v986
      %1032 = vmatprep.subr.mxu0 0.0
      %1033 = vmatpush2.msra.mxu0 0.0
      %1034 = vmatprep.subr.mxu0 0.0
      %1035 = vmatpush2.msra.mxu0 0.0
      %1036 = vmatprep.subr.mxu0 0.0
      %1037 = vmatpush2.msra.mxu0 0.0
      %1038 = vmatprep.subr.mxu0 0.0
      %1039 = vmatpush2.msra.mxu0 0.0
      %1040 = vmatprep.subr.mxu0 0.0
      %1041 = vmatpush2.msra.mxu0 0.0
      %1042 = vmatprep.subr.mxu0 0.0
      %1043 = vmatpush2.msra.mxu0 0.0
      %1044 = vmatprep.subr.mxu0 0.0
      %1045 = vmatpush2.msra.mxu0 0.0
      %1046 = vmatprep.subr.mxu0 0.0
      %1047 = vmatpush2.msra.mxu0 0.0
      %1048 = vmatprep.subr.mxu0 0.0
      %1049 = vmatpush2.msra.mxu0 0.0
      %1050 = vmatprep.subr.mxu0 0.0
      %1051 = vmatpush2.msra.mxu0 0.0
      %1052 = vmatprep.subr.mxu0 0.0
      %1053 = vmatpush2.msra.mxu0 0.0
      %1054 = vmatprep.subr.mxu0 0.0
      %1055 = vmatpush2.msra.mxu0 0.0
      %1056 = vmatprep.subr.mxu0 0.0
      %1057 = vmatpush2.msra.mxu0 0.0
      %1058 = vmatprep.subr.mxu0 0.0
      %1059 = vmatpush2.msra.mxu0 0.0
      %1060 = vmatprep.subr.mxu0 0.0
      %1061 = vmatpush2.msra.mxu0 0.0
      %1062 = vmatprep.subr.mxu0 0.0
      %1063 = vmatpush2.msra.mxu0 0.0
      %1064 = vmatprep.mubr.f32.mxu0 0.0
      %1065 = vmatmul.mubr.f32.gmra.mxu0 %v998
      %v1066 = vpop.f32.mrf.mxu0
      %v1067 = vadd.f32 %v995, %v1066
      %v1068 = vpop.f32.mrf.mxu0
      %1069 = vdwg.mxu0
      %v1070 = vsub.f32 0.0, %v1067
      %v1071 = vmul.f32 %v1070, 1.442695
      %v1072 = vpow.pop %v1071
      %v1073 = vadd.f32 %v1072, 1.0
      %v1074 = vrcp.pop %v1073
      %v1075 = vmul.f32 %v1067, %v1074
      %v1076 = vld [vmem:[%s11] sm:$0xff]
      %v1077 = vld [vmem:[%s11 + $0x8] sm:$0xff]
      %v1078 = vld [vmem:[%s11 + $0x10] sm:$0xff]
      %v1079 = vld [vmem:[%s11 + $0x18] sm:$0xff]
      %v1080 = vld [vmem:[%s11 + $0x20] sm:$0xff]
      %v1081 = vld [vmem:[%s11 + $0x28] sm:$0xff]
      %v1082 = vld [vmem:[%s11 + $0x30] sm:$0xff]
      %v1083 = vld [vmem:[%s11 + $0x38] sm:$0xff]
      %v1084 = vld [vmem:[%s11 + $0x40] sm:$0xff]
      %v1085 = vld [vmem:[%s11 + $0x48] sm:$0xff]
      %v1086 = vld [vmem:[%s11 + $0x50] sm:$0xff]
      %v1087 = vld [vmem:[%s11 + $0x58] sm:$0xff]
      %v1088 = vld [vmem:[%s11 + $0x60] sm:$0xff]
      %v1089 = vld [vmem:[%s11 + $0x68] sm:$0xff]
      %v1090 = vld [vmem:[%s11 + $0x70] sm:$0xff]
      %v1091 = vld [vmem:[%s11 + $0x78] sm:$0xff]
      %v1092 = vld [vmem:[%s13] sm:$0x1]
      %v1094 = vlaneseq
      %v1095 = vshrl.u32 %v1094, 7
      %v1096 = vsub.s32 0, %v1095
      %v1097 = vrot.slane %v1092, %v1096
      %1099 = vmatprep.subr.mxu0 0.0
      %1100 = vmatpush1.msra.mxu0 %v1091
      %1101 = vmatprep.subr.mxu0 0.0
      %1102 = vmatpush1.msra.mxu0 %v1090
      %1103 = vmatprep.subr.mxu0 0.0
      %1104 = vmatpush1.msra.mxu0 %v1089
      %1105 = vmatprep.subr.mxu0 0.0
      %1106 = vmatpush1.msra.mxu0 %v1088
      %1107 = vmatprep.subr.mxu0 0.0
      %1108 = vmatpush1.msra.mxu0 %v1087
      %1109 = vmatprep.subr.mxu0 0.0
      %1110 = vmatpush1.msra.mxu0 %v1086
      %1111 = vmatprep.subr.mxu0 0.0
      %1112 = vmatpush1.msra.mxu0 %v1085
      %1113 = vmatprep.subr.mxu0 0.0
      %1114 = vmatpush1.msra.mxu0 %v1084
      %1115 = vmatprep.subr.mxu0 0.0
      %1116 = vmatpush1.msra.mxu0 %v1083
      %1117 = vmatprep.subr.mxu0 0.0
      %1118 = vmatpush1.msra.mxu0 %v1082
      %1119 = vmatprep.subr.mxu0 0.0
      %1120 = vmatpush1.msra.mxu0 %v1081
      %1121 = vmatprep.subr.mxu0 0.0
      %1122 = vmatpush1.msra.mxu0 %v1080
      %1123 = vmatprep.subr.mxu0 0.0
      %1124 = vmatpush1.msra.mxu0 %v1079
      %1125 = vmatprep.subr.mxu0 0.0
      %1126 = vmatpush1.msra.mxu0 %v1078
      %1127 = vmatprep.subr.mxu0 0.0
      %1128 = vmatpush1.msra.mxu0 %v1077
      %1129 = vmatprep.subr.mxu0 0.0
      %1130 = vmatpush1.msra.mxu0 %v1076
      %1131 = vmatprep.subr.mxu0 0.0
      %1132 = vmatpush2.msra.mxu0 0.0
      %1133 = vmatprep.subr.mxu0 0.0
      %1134 = vmatpush2.msra.mxu0 0.0
      %1135 = vmatprep.subr.mxu0 0.0
      %1136 = vmatpush2.msra.mxu0 0.0
      %1137 = vmatprep.subr.mxu0 0.0
      %1138 = vmatpush2.msra.mxu0 0.0
      %1139 = vmatprep.subr.mxu0 0.0
      %1140 = vmatpush2.msra.mxu0 0.0
      %1141 = vmatprep.subr.mxu0 0.0
      %1142 = vmatpush2.msra.mxu0 0.0
      %1143 = vmatprep.subr.mxu0 0.0
      %1144 = vmatpush2.msra.mxu0 0.0
      %1145 = vmatprep.subr.mxu0 0.0
      %1146 = vmatpush2.msra.mxu0 0.0
      %1147 = vmatprep.subr.mxu0 0.0
      %1148 = vmatpush2.msra.mxu0 0.0
      %1149 = vmatprep.subr.mxu0 0.0
      %1150 = vmatpush2.msra.mxu0 0.0
      %1151 = vmatprep.subr.mxu0 0.0
      %1152 = vmatpush2.msra.mxu0 0.0
      %1153 = vmatprep.subr.mxu0 0.0
      %1154 = vmatpush2.msra.mxu0 0.0
      %1155 = vmatprep.subr.mxu0 0.0
      %1156 = vmatpush2.msra.mxu0 0.0
      %1157 = vmatprep.subr.mxu0 0.0
      %1158 = vmatpush2.msra.mxu0 0.0
      %1159 = vmatprep.subr.mxu0 0.0
      %1160 = vmatpush2.msra.mxu0 0.0
      %1161 = vmatprep.subr.mxu0 0.0
      %1162 = vmatpush2.msra.mxu0 0.0
      %1163 = vmatprep.mubr.f32.mxu0 0.0
      %1164 = vmatmul.mubr.f32.gmra.mxu0 %v1075
      %v1165 = vpop.f32.mrf.mxu0
      %v1166 = vadd.f32 %v1097, %v1165
      %v1167 = vpop.f32.mrf.mxu0
      %1168 = vdwg.mxu0
      %v1169 = vmul.f32 %v1166, 0.5
      %v1170 = vadd.f32 %v954, %v1169
      %v1171 = vld [vmem:[%s15] sm:$0x1]
      %v1172 = vld [vmem:[%s17] sm:$0x1]
      %v1173 = vsel %vm957, %v1170, 0.0
      %1174 = vadd.xlane.f32.xlu0 %v1173
      %v1175 = vpop.xlane.xlu0 %1174
      %v1176 = vmul.f32 %v1175, %v961
      %v1177 = vsub.f32 %v1170, %v1176
      %v1178 = vmul.f32 %v1177, %v1177
      %v1179 = vsel %vm957, %v1178, 0.0
      %1180 = vadd.xlane.f32.xlu0 %v1179
      %v1181 = vpop.xlane.xlu0 %1180
      %v1182 = vmul.f32 %v1181, %v961
      %v1183 = vadd.f32 %v1182, 1e-05
      %v1184 = vrsqrt.pop %v1183
      %v1185 = vmul.f32 %v1177, %v1184
      %v1187 = vlaneseq
      %v1188 = vshrl.u32 %v1187, 7
      %v1189 = vsub.s32 0, %v1188
      %v1190 = vrot.slane %v1171, %v1189
      %v1192 = vmul.f32 %v1185, %v1190
      %v1194 = vlaneseq
      %v1195 = vshrl.u32 %v1194, 7
      %v1196 = vsub.s32 0, %v1195
      %v1197 = vrot.slane %v1172, %v1196
      %v1199 = vadd.f32 %v1192, %v1197
      %v1200 = vld [vmem:[%s19] sm:$0xff]
      %v1201 = vld [vmem:[%s19 + $0x8] sm:$0xff]
      %v1202 = vld [vmem:[%s19 + $0x10] sm:$0xff]
      %v1203 = vld [vmem:[%s19 + $0x18] sm:$0xff]
      %v1204 = vld [vmem:[%s21] sm:$0x1]
      %v1206 = vlaneseq
      %v1207 = vshrl.u32 %v1206, 7
      %v1208 = vsub.s32 0, %v1207
      %v1209 = vrot.slane %v1204, %v1208
      %v1212 = vsel %vm957, %v1199, 0
      %1214 = vmatprep.subr.mxu0 0.0
      %1215 = vmatpush1.msra.mxu0 0.0
      %1216 = vmatprep.subr.mxu0 0.0
      %1217 = vmatpush1.msra.mxu0 0.0
      %1218 = vmatprep.subr.mxu0 0.0
      %1219 = vmatpush1.msra.mxu0 0.0
      %1220 = vmatprep.subr.mxu0 0.0
      %1221 = vmatpush1.msra.mxu0 0.0
      %1222 = vmatprep.subr.mxu0 0.0
      %1223 = vmatpush1.msra.mxu0 0.0
      %1224 = vmatprep.subr.mxu0 0.0
      %1225 = vmatpush1.msra.mxu0 0.0
      %1226 = vmatprep.subr.mxu0 0.0
      %1227 = vmatpush1.msra.mxu0 0.0
      %1228 = vmatprep.subr.mxu0 0.0
      %1229 = vmatpush1.msra.mxu0 0.0
      %1230 = vmatprep.subr.mxu0 0.0
      %1231 = vmatpush1.msra.mxu0 0.0
      %1232 = vmatprep.subr.mxu0 0.0
      %1233 = vmatpush1.msra.mxu0 0.0
      %1234 = vmatprep.subr.mxu0 0.0
      %1235 = vmatpush1.msra.mxu0 0.0
      %1236 = vmatprep.subr.mxu0 0.0
      %1237 = vmatpush1.msra.mxu0 0.0
      %1238 = vmatprep.subr.mxu0 0.0
      %1239 = vmatpush1.msra.mxu0 %v1203
      %1240 = vmatprep.subr.mxu0 0.0
      %1241 = vmatpush1.msra.mxu0 %v1202
      %1242 = vmatprep.subr.mxu0 0.0
      %1243 = vmatpush1.msra.mxu0 %v1201
      %1244 = vmatprep.subr.mxu0 0.0
      %1245 = vmatpush1.msra.mxu0 %v1200
      %1246 = vmatprep.subr.mxu0 0.0
      %1247 = vmatpush2.msra.mxu0 0.0
      %1248 = vmatprep.subr.mxu0 0.0
      %1249 = vmatpush2.msra.mxu0 0.0
      %1250 = vmatprep.subr.mxu0 0.0
      %1251 = vmatpush2.msra.mxu0 0.0
      %1252 = vmatprep.subr.mxu0 0.0
      %1253 = vmatpush2.msra.mxu0 0.0
      %1254 = vmatprep.subr.mxu0 0.0
      %1255 = vmatpush2.msra.mxu0 0.0
      %1256 = vmatprep.subr.mxu0 0.0
      %1257 = vmatpush2.msra.mxu0 0.0
      %1258 = vmatprep.subr.mxu0 0.0
      %1259 = vmatpush2.msra.mxu0 0.0
      %1260 = vmatprep.subr.mxu0 0.0
      %1261 = vmatpush2.msra.mxu0 0.0
      %1262 = vmatprep.subr.mxu0 0.0
      %1263 = vmatpush2.msra.mxu0 0.0
      %1264 = vmatprep.subr.mxu0 0.0
      %1265 = vmatpush2.msra.mxu0 0.0
      %1266 = vmatprep.subr.mxu0 0.0
      %1267 = vmatpush2.msra.mxu0 0.0
      %1268 = vmatprep.subr.mxu0 0.0
      %1269 = vmatpush2.msra.mxu0 0.0
      %1270 = vmatprep.subr.mxu0 0.0
      %1271 = vmatpush2.msra.mxu0 0.0
      %1272 = vmatprep.subr.mxu0 0.0
      %1273 = vmatpush2.msra.mxu0 0.0
      %1274 = vmatprep.subr.mxu0 0.0
      %1275 = vmatpush2.msra.mxu0 0.0
      %1276 = vmatprep.subr.mxu0 0.0
      %1277 = vmatpush2.msra.mxu0 0.0
      %1278 = vmatprep.mubr.f32.mxu0 0.0
      %1279 = vmatmul.mubr.f32.gmra.mxu0 %v1212
      %v1280 = vpop.f32.mrf.mxu0
      %v1281 = vadd.f32 %v1209, %v1280
      %v1282 = vpop.f32.mrf.mxu0
      %1283 = vdwg.mxu0
      %1285 = vrot.lane.b32.xlu0 %v1281, 96
      %v1286 = vpop.permute.xlu0 %1285
      %vm1287 = vcmask 64512
      %v1288 = vsel %vm1287, %v1281, 0
      %v1290 = vsel %vm1287, %v1286, 0
      %1292 = vmatprep.subr.mxu0 0.0
      %1293 = vmatpush1.xpose.msra.mxu0 0.0
      %1294 = vmatprep.subr.mxu0 0.0
      %1295 = vmatpush1.xpose.msra.mxu0 0.0
      %1296 = vmatprep.subr.mxu0 0.0
      %1297 = vmatpush1.xpose.msra.mxu0 0.0
      %1298 = vmatprep.subr.mxu0 0.0
      %1299 = vmatpush1.xpose.msra.mxu0 0.0
      %1300 = vmatprep.subr.mxu0 0.0
      %1301 = vmatpush1.xpose.msra.mxu0 0.0
      %1302 = vmatprep.subr.mxu0 0.0
      %1303 = vmatpush1.xpose.msra.mxu0 0.0
      %1304 = vmatprep.subr.mxu0 0.0
      %1305 = vmatpush1.xpose.msra.mxu0 0.0
      %1306 = vmatprep.subr.mxu0 0.0
      %1307 = vmatpush1.xpose.msra.mxu0 0.0
      %1308 = vmatprep.subr.mxu0 0.0
      %1309 = vmatpush1.xpose.msra.mxu0 0.0
      %1310 = vmatprep.subr.mxu0 0.0
      %1311 = vmatpush1.xpose.msra.mxu0 0.0
      %1312 = vmatprep.subr.mxu0 0.0
      %1313 = vmatpush1.xpose.msra.mxu0 0.0
      %1314 = vmatprep.subr.mxu0 0.0
      %1315 = vmatpush1.xpose.msra.mxu0 0.0
      %1316 = vmatprep.subr.mxu0 0.0
      %1317 = vmatpush1.xpose.msra.mxu0 0.0
      %1318 = vmatprep.subr.mxu0 0.0
      %1319 = vmatpush1.xpose.msra.mxu0 0.0
      %1320 = vmatprep.subr.mxu0 0.0
      %1321 = vmatpush1.xpose.msra.mxu0 0.0
      %1322 = vmatprep.subr.mxu0 0.0
      %1323 = vmatpush1.xpose.msra.mxu0 %v1290
      %1324 = vmatprep.subr.mxu0 0.0
      %1325 = vmatpush2.xpose.msra.mxu0 0.0
      %1326 = vmatprep.subr.mxu0 0.0
      %1327 = vmatpush2.xpose.msra.mxu0 0.0
      %1328 = vmatprep.subr.mxu0 0.0
      %1329 = vmatpush2.xpose.msra.mxu0 0.0
      %1330 = vmatprep.subr.mxu0 0.0
      %1331 = vmatpush2.xpose.msra.mxu0 0.0
      %1332 = vmatprep.subr.mxu0 0.0
      %1333 = vmatpush2.xpose.msra.mxu0 0.0
      %1334 = vmatprep.subr.mxu0 0.0
      %1335 = vmatpush2.xpose.msra.mxu0 0.0
      %1336 = vmatprep.subr.mxu0 0.0
      %1337 = vmatpush2.xpose.msra.mxu0 0.0
      %1338 = vmatprep.subr.mxu0 0.0
      %1339 = vmatpush2.xpose.msra.mxu0 0.0
      %1340 = vmatprep.subr.mxu0 0.0
      %1341 = vmatpush2.xpose.msra.mxu0 0.0
      %1342 = vmatprep.subr.mxu0 0.0
      %1343 = vmatpush2.xpose.msra.mxu0 0.0
      %1344 = vmatprep.subr.mxu0 0.0
      %1345 = vmatpush2.xpose.msra.mxu0 0.0
      %1346 = vmatprep.subr.mxu0 0.0
      %1347 = vmatpush2.xpose.msra.mxu0 0.0
      %1348 = vmatprep.subr.mxu0 0.0
      %1349 = vmatpush2.xpose.msra.mxu0 0.0
      %1350 = vmatprep.subr.mxu0 0.0
      %1351 = vmatpush2.xpose.msra.mxu0 0.0
      %1352 = vmatprep.subr.mxu0 0.0
      %1353 = vmatpush2.xpose.msra.mxu0 0.0
      %1354 = vmatprep.subr.mxu0 0.0
      %1355 = vmatpush2.xpose.msra.mxu0 0.0
      %1356 = vmatprep.mubr.f32.mxu0 0.0
      %1357 = vmatmul.mubr.f32.gmra.mxu0 %v1288
      %v1358 = vpop.f32.mrf.mxu0
      %v1359 = vadd.f32 0.0, %v1358
      %v1360 = vpop.f32.mrf.mxu0
      %1361 = vdwg.mxu0
      %v1362 = vmul.f32 %v1359, 0.35355338
      %v1363 = vsel %vm1287, %v1362, -inf
      %1364 = vmax.xlane.f32.xlu0 %v1363
      %v1365 = vpop.xlane.xlu0 %1364
      %v1366 = vsub.f32 %v1362, %v1365
      %v1367 = vmul.f32 %v1366, 1.442695
      %v1368 = vpow.pop %v1367
      %v1369 = vsel %vm1287, %v1368, 0.0
      %1370 = vadd.xlane.f32.xlu0 %v1369
      %v1371 = vpop.xlane.xlu0 %1370
      %v1372 = vrcp.pop %v1371
      %v1373 = vmul.f32 %v1368, %v1372
      %1374 = vrot.lane.b32.xlu0 %v1281, 64
      %v1375 = vpop.permute.xlu0 %1374
      %v1378 = vsel %vm1287, %v1373, 0
      %1380 = vmatprep.subr.mxu0 0.0
      %1381 = vmatpush1.msra.mxu0 0.0
      %1382 = vmatprep.subr.mxu0 0.0
      %1383 = vmatpush1.msra.mxu0 0.0
      %1384 = vmatprep.subr.mxu0 0.0
      %1385 = vmatpush1.msra.mxu0 0.0
      %1386 = vmatprep.subr.mxu0 0.0
      %1387 = vmatpush1.msra.mxu0 0.0
      %1388 = vmatprep.subr.mxu0 0.0
      %1389 = vmatpush1.msra.mxu0 0.0
      %1390 = vmatprep.subr.mxu0 0.0
      %1391 = vmatpush1.msra.mxu0 0.0
      %1392 = vmatprep.subr.mxu0 0.0
      %1393 = vmatpush1.msra.mxu0 0.0
      %1394 = vmatprep.subr.mxu0 0.0
      %1395 = vmatpush1.msra.mxu0 0.0
      %1396 = vmatprep.subr.mxu0 0.0
      %1397 = vmatpush1.msra.mxu0 0.0
      %1398 = vmatprep.subr.mxu0 0.0
      %1399 = vmatpush1.msra.mxu0 0.0
      %1400 = vmatprep.subr.mxu0 0.0
      %1401 = vmatpush1.msra.mxu0 0.0
      %1402 = vmatprep.subr.mxu0 0.0
      %1403 = vmatpush1.msra.mxu0 0.0
      %1404 = vmatprep.subr.mxu0 0.0
      %1405 = vmatpush1.msra.mxu0 0.0
      %1406 = vmatprep.subr.mxu0 0.0
      %1407 = vmatpush1.msra.mxu0 0.0
      %1408 = vmatprep.subr.mxu0 0.0
      %1409 = vmatpush1.msra.mxu0 0.0
      %1410 = vmatprep.subr.mxu0 0.0
      %1411 = vmatpush1.msra.mxu0 %v1375
      %1412 = vmatprep.subr.mxu0 0.0
      %1413 = vmatpush2.msra.mxu0 0.0
      %1414 = vmatprep.subr.mxu0 0.0
      %1415 = vmatpush2.msra.mxu0 0.0
      %1416 = vmatprep.subr.mxu0 0.0
      %1417 = vmatpush2.msra.mxu0 0.0
      %1418 = vmatprep.subr.mxu0 0.0
      %1419 = vmatpush2.msra.mxu0 0.0
      %1420 = vmatprep.subr.mxu0 0.0
      %1421 = vmatpush2.msra.mxu0 0.0
      %1422 = vmatprep.subr.mxu0 0.0
      %1423 = vmatpush2.msra.mxu0 0.0
      %1424 = vmatprep.subr.mxu0 0.0
      %1425 = vmatpush2.msra.mxu0 0.0
      %1426 = vmatprep.subr.mxu0 0.0
      %1427 = vmatpush2.msra.mxu0 0.0
      %1428 = vmatprep.subr.mxu0 0.0
      %1429 = vmatpush2.msra.mxu0 0.0
      %1430 = vmatprep.subr.mxu0 0.0
      %1431 = vmatpush2.msra.mxu0 0.0
      %1432 = vmatprep.subr.mxu0 0.0
      %1433 = vmatpush2.msra.mxu0 0.0
      %1434 = vmatprep.subr.mxu0 0.0
      %1435 = vmatpush2.msra.mxu0 0.0
      %1436 = vmatprep.subr.mxu0 0.0
      %1437 = vmatpush2.msra.mxu0 0.0
      %1438 = vmatprep.subr.mxu0 0.0
      %1439 = vmatpush2.msra.mxu0 0.0
      %1440 = vmatprep.subr.mxu0 0.0
      %1441 = vmatpush2.msra.mxu0 0.0
      %1442 = vmatprep.subr.mxu0 0.0
      %1443 = vmatpush2.msra.mxu0 0.0
      %1444 = vmatprep.mubr.f32.mxu0 0.0
      %1445 = vmatmul.mubr.f32.gmra.mxu0 %v1378
      %v1446 = vpop.f32.mrf.mxu0
      %v1447 = vadd.f32 0.0, %v1446
      %v1448 = vpop.f32.mrf.mxu0
      %1449 = vdwg.mxu0
      %1450 = vrot.lane.b32.xlu0 %v1281, 120
      %v1451 = vpop.permute.xlu0 %1450
      %1452 = vrot.lane.b32.xlu0 %v1281, 88
      %v1453 = vpop.permute.xlu0 %1452
      %v1454 = vsel %vm1287, %v1451, 0
      %v1456 = vsel %vm1287, %v1453, 0
      %1458 = vmatprep.subr.mxu0 0.0
      %1459 = vmatpush1.xpose.msra.mxu0 0.0
      %1460 = vmatprep.subr.mxu0 0.0
      %1461 = vmatpush1.xpose.msra.mxu0 0.0
      %1462 = vmatprep.subr.mxu0 0.0
      %1463 = vmatpush1.xpose.msra.mxu0 0.0
      %1464 = vmatprep.subr.mxu0 0.0
      %1465 = vmatpush1.xpose.msra.mxu0 0.0
      %1466 = vmatprep.subr.mxu0 0.0
      %1467 = vmatpush1.xpose.msra.mxu0 0.0
      %1468 = vmatprep.subr.mxu0 0.0
      %1469 = vmatpush1.xpose.msra.mxu0 0.0
      %1470 = vmatprep.subr.mxu0 0.0
      %1471 = vmatpush1.xpose.msra.mxu0 0.0
      %1472 = vmatprep.subr.mxu0 0.0
      %1473 = vmatpush1.xpose.msra.mxu0 0.0
      %1474 = vmatprep.subr.mxu0 0.0
      %1475 = vmatpush1.xpose.msra.mxu0 0.0
      %1476 = vmatprep.subr.mxu0 0.0
      %1477 = vmatpush1.xpose.msra.mxu0 0.0
      %1478 = vmatprep.subr.mxu0 0.0
      %1479 = vmatpush1.xpose.msra.mxu0 0.0
      %1480 = vmatprep.subr.mxu0 0.0
      %1481 = vmatpush1.xpose.msra.mxu0 0.0
      %1482 = vmatprep.subr.mxu0 0.0
      %1483 = vmatpush1.xpose.msra.mxu0 0.0
      %1484 = vmatprep.subr.mxu0 0.0
      %1485 = vmatpush1.xpose.msra.mxu0 0.0
      %1486 = vmatprep.subr.mxu0 0.0
      %1487 = vmatpush1.xpose.msra.mxu0 0.0
      %1488 = vmatprep.subr.mxu0 0.0
      %1489 = vmatpush1.xpose.msra.mxu0 %v1456
      %1490 = vmatprep.subr.mxu0 0.0
      %1491 = vmatpush2.xpose.msra.mxu0 0.0
      %1492 = vmatprep.subr.mxu0 0.0
      %1493 = vmatpush2.xpose.msra.mxu0 0.0
      %1494 = vmatprep.subr.mxu0 0.0
      %1495 = vmatpush2.xpose.msra.mxu0 0.0
      %1496 = vmatprep.subr.mxu0 0.0
      %1497 = vmatpush2.xpose.msra.mxu0 0.0
      %1498 = vmatprep.subr.mxu0 0.0
      %1499 = vmatpush2.xpose.msra.mxu0 0.0
      %1500 = vmatprep.subr.mxu0 0.0
      %1501 = vmatpush2.xpose.msra.mxu0 0.0
      %1502 = vmatprep.subr.mxu0 0.0
      %1503 = vmatpush2.xpose.msra.mxu0 0.0
      %1504 = vmatprep.subr.mxu0 0.0
      %1505 = vmatpush2.xpose.msra.mxu0 0.0
      %1506 = vmatprep.subr.mxu0 0.0
      %1507 = vmatpush2.xpose.msra.mxu0 0.0
      %1508 = vmatprep.subr.mxu0 0.0
      %1509 = vmatpush2.xpose.msra.mxu0 0.0
      %1510 = vmatprep.subr.mxu0 0.0
      %1511 = vmatpush2.xpose.msra.mxu0 0.0
      %1512 = vmatprep.subr.mxu0 0.0
      %1513 = vmatpush2.xpose.msra.mxu0 0.0
      %1514 = vmatprep.subr.mxu0 0.0
      %1515 = vmatpush2.xpose.msra.mxu0 0.0
      %1516 = vmatprep.subr.mxu0 0.0
      %1517 = vmatpush2.xpose.msra.mxu0 0.0
      %1518 = vmatprep.subr.mxu0 0.0
      %1519 = vmatpush2.xpose.msra.mxu0 0.0
      %1520 = vmatprep.subr.mxu0 0.0
      %1521 = vmatpush2.xpose.msra.mxu0 0.0
      %1522 = vmatprep.mubr.f32.mxu0 0.0
      %1523 = vmatmul.mubr.f32.gmra.mxu0 %v1454
      %v1524 = vpop.f32.mrf.mxu0
      %v1525 = vadd.f32 0.0, %v1524
      %v1526 = vpop.f32.mrf.mxu0
      %1527 = vdwg.mxu0
      %v1528 = vmul.f32 %v1525, 0.35355338
      %v1529 = vsel %vm1287, %v1528, -inf
      %1530 = vmax.xlane.f32.xlu0 %v1529
      %v1531 = vpop.xlane.xlu0 %1530
      %v1532 = vsub.f32 %v1528, %v1531
      %v1533 = vmul.f32 %v1532, 1.442695
      %v1534 = vpow.pop %v1533
      %v1535 = vsel %vm1287, %v1534, 0.0
      %1536 = vadd.xlane.f32.xlu0 %v1535
      %v1537 = vpop.xlane.xlu0 %1536
      %v1538 = vrcp.pop %v1537
      %v1539 = vmul.f32 %v1534, %v1538
      %1540 = vrot.lane.b32.xlu0 %v1281, 56
      %v1541 = vpop.permute.xlu0 %1540
      %v1544 = vsel %vm1287, %v1539, 0
      %1546 = vmatprep.subr.mxu0 0.0
      %1547 = vmatpush1.msra.mxu0 0.0
      %1548 = vmatprep.subr.mxu0 0.0
      %1549 = vmatpush1.msra.mxu0 0.0
      %1550 = vmatprep.subr.mxu0 0.0
      %1551 = vmatpush1.msra.mxu0 0.0
      %1552 = vmatprep.subr.mxu0 0.0
      %1553 = vmatpush1.msra.mxu0 0.0
      %1554 = vmatprep.subr.mxu0 0.0
      %1555 = vmatpush1.msra.mxu0 0.0
      %1556 = vmatprep.subr.mxu0 0.0
      %1557 = vmatpush1.msra.mxu0 0.0
      %1558 = vmatprep.subr.mxu0 0.0
      %1559 = vmatpush1.msra.mxu0 0.0
      %1560 = vmatprep.subr.mxu0 0.0
      %1561 = vmatpush1.msra.mxu0 0.0
      %1562 = vmatprep.subr.mxu0 0.0
      %1563 = vmatpush1.msra.mxu0 0.0
      %1564 = vmatprep.subr.mxu0 0.0
      %1565 = vmatpush1.msra.mxu0 0.0
      %1566 = vmatprep.subr.mxu0 0.0
      %1567 = vmatpush1.msra.mxu0 0.0
      %1568 = vmatprep.subr.mxu0 0.0
      %1569 = vmatpush1.msra.mxu0 0.0
      %1570 = vmatprep.subr.mxu0 0.0
      %1571 = vmatpush1.msra.mxu0 0.0
      %1572 = vmatprep.subr.mxu0 0.0
      %1573 = vmatpush1.msra.mxu0 0.0
      %1574 = vmatprep.subr.mxu0 0.0
      %1575 = vmatpush1.msra.mxu0 0.0
      %1576 = vmatprep.subr.mxu0 0.0
      %1577 = vmatpush1.msra.mxu0 %v1541
      %1578 = vmatprep.subr.mxu0 0.0
      %1579 = vmatpush2.msra.mxu0 0.0
      %1580 = vmatprep.subr.mxu0 0.0
      %1581 = vmatpush2.msra.mxu0 0.0
      %1582 = vmatprep.subr.mxu0 0.0
      %1583 = vmatpush2.msra.mxu0 0.0
      %1584 = vmatprep.subr.mxu0 0.0
      %1585 = vmatpush2.msra.mxu0 0.0
      %1586 = vmatprep.subr.mxu0 0.0
      %1587 = vmatpush2.msra.mxu0 0.0
      %1588 = vmatprep.subr.mxu0 0.0
      %1589 = vmatpush2.msra.mxu0 0.0
      %1590 = vmatprep.subr.mxu0 0.0
      %1591 = vmatpush2.msra.mxu0 0.0
      %1592 = vmatprep.subr.mxu0 0.0
      %1593 = vmatpush2.msra.mxu0 0.0
      %1594 = vmatprep.subr.mxu0 0.0
      %1595 = vmatpush2.msra.mxu0 0.0
      %1596 = vmatprep.subr.mxu0 0.0
      %1597 = vmatpush2.msra.mxu0 0.0
      %1598 = vmatprep.subr.mxu0 0.0
      %1599 = vmatpush2.msra.mxu0 0.0
      %1600 = vmatprep.subr.mxu0 0.0
      %1601 = vmatpush2.msra.mxu0 0.0
      %1602 = vmatprep.subr.mxu0 0.0
      %1603 = vmatpush2.msra.mxu0 0.0
      %1604 = vmatprep.subr.mxu0 0.0
      %1605 = vmatpush2.msra.mxu0 0.0
      %1606 = vmatprep.subr.mxu0 0.0
      %1607 = vmatpush2.msra.mxu0 0.0
      %1608 = vmatprep.subr.mxu0 0.0
      %1609 = vmatpush2.msra.mxu0 0.0
      %1610 = vmatprep.mubr.f32.mxu0 0.0
      %1611 = vmatmul.mubr.f32.gmra.mxu0 %v1544
      %v1612 = vpop.f32.mrf.mxu0
      %v1613 = vadd.f32 0.0, %v1612
      %v1614 = vpop.f32.mrf.mxu0
      %1615 = vdwg.mxu0
      %1616 = vrot.lane.b32.xlu0 %v1281, 112
      %v1617 = vpop.permute.xlu0 %1616
      %1618 = vrot.lane.b32.xlu0 %v1281, 80
      %v1619 = vpop.permute.xlu0 %1618
      %v1620 = vsel %vm1287, %v1617, 0
      %v1622 = vsel %vm1287, %v1619, 0
      %1624 = vmatprep.subr.mxu0 0.0
      %1625 = vmatpush1.xpose.msra.mxu0 0.0
      %1626 = vmatprep.subr.mxu0 0.0
      %1627 = vmatpush1.xpose.msra.mxu0 0.0
      %1628 = vmatprep.subr.mxu0 0.0
      %1629 = vmatpush1.xpose.msra.mxu0 0.0
      %1630 = vmatprep.subr.mxu0 0.0
      %1631 = vmatpush1.xpose.msra.mxu0 0.0
      %1632 = vmatprep.subr.mxu0 0.0
      %1633 = vmatpush1.xpose.msra.mxu0 0.0
      %1634 = vmatprep.subr.mxu0 0.0
      %1635 = vmatpush1.xpose.msra.mxu0 0.0
      %1636 = vmatprep.subr.mxu0 0.0
      %1637 = vmatpush1.xpose.msra.mxu0 0.0
      %1638 = vmatprep.subr.mxu0 0.0
      %1639 = vmatpush1.xpose.msra.mxu0 0.0
      %1640 = vmatprep.subr.mxu0 0.0
      %1641 = vmatpush1.xpose.msra.mxu0 0.0
      %1642 = vmatprep.subr.mxu0 0.0
      %1643 = vmatpush1.xpose.msra.mxu0 0.0
      %1644 = vmatprep.subr.mxu0 0.0
      %1645 = vmatpush1.xpose.msra.mxu0 0.0
      %1646 = vmatprep.subr.mxu0 0.0
      %1647 = vmatpush1.xpose.msra.mxu0 0.0
      %1648 = vmatprep.subr.mxu0 0.0
      %1649 = vmatpush1.xpose.msra.mxu0 0.0
      %1650 = vmatprep.subr.mxu0 0.0
      %1651 = vmatpush1.xpose.msra.mxu0 0.0
      %1652 = vmatprep.subr.mxu0 0.0
      %1653 = vmatpush1.xpose.msra.mxu0 0.0
      %1654 = vmatprep.subr.mxu0 0.0
      %1655 = vmatpush1.xpose.msra.mxu0 %v1622
      %1656 = vmatprep.subr.mxu0 0.0
      %1657 = vmatpush2.xpose.msra.mxu0 0.0
      %1658 = vmatprep.subr.mxu0 0.0
      %1659 = vmatpush2.xpose.msra.mxu0 0.0
      %1660 = vmatprep.subr.mxu0 0.0
      %1661 = vmatpush2.xpose.msra.mxu0 0.0
      %1662 = vmatprep.subr.mxu0 0.0
      %1663 = vmatpush2.xpose.msra.mxu0 0.0
      %1664 = vmatprep.subr.mxu0 0.0
      %1665 = vmatpush2.xpose.msra.mxu0 0.0
      %1666 = vmatprep.subr.mxu0 0.0
      %1667 = vmatpush2.xpose.msra.mxu0 0.0
      %1668 = vmatprep.subr.mxu0 0.0
      %1669 = vmatpush2.xpose.msra.mxu0 0.0
      %1670 = vmatprep.subr.mxu0 0.0
      %1671 = vmatpush2.xpose.msra.mxu0 0.0
      %1672 = vmatprep.subr.mxu0 0.0
      %1673 = vmatpush2.xpose.msra.mxu0 0.0
      %1674 = vmatprep.subr.mxu0 0.0
      %1675 = vmatpush2.xpose.msra.mxu0 0.0
      %1676 = vmatprep.subr.mxu0 0.0
      %1677 = vmatpush2.xpose.msra.mxu0 0.0
      %1678 = vmatprep.subr.mxu0 0.0
      %1679 = vmatpush2.xpose.msra.mxu0 0.0
      %1680 = vmatprep.subr.mxu0 0.0
      %1681 = vmatpush2.xpose.msra.mxu0 0.0
      %1682 = vmatprep.subr.mxu0 0.0
      %1683 = vmatpush2.xpose.msra.mxu0 0.0
      %1684 = vmatprep.subr.mxu0 0.0
      %1685 = vmatpush2.xpose.msra.mxu0 0.0
      %1686 = vmatprep.subr.mxu0 0.0
      %1687 = vmatpush2.xpose.msra.mxu0 0.0
      %1688 = vmatprep.mubr.f32.mxu0 0.0
      %1689 = vmatmul.mubr.f32.gmra.mxu0 %v1620
      %v1690 = vpop.f32.mrf.mxu0
      %v1691 = vadd.f32 0.0, %v1690
      %v1692 = vpop.f32.mrf.mxu0
      %1693 = vdwg.mxu0
      %v1694 = vmul.f32 %v1691, 0.35355338
      %v1695 = vsel %vm1287, %v1694, -inf
      %1696 = vmax.xlane.f32.xlu0 %v1695
      %v1697 = vpop.xlane.xlu0 %1696
      %v1698 = vsub.f32 %v1694, %v1697
      %v1699 = vmul.f32 %v1698, 1.442695
      %v1700 = vpow.pop %v1699
      %v1701 = vsel %vm1287, %v1700, 0.0
      %1702 = vadd.xlane.f32.xlu0 %v1701
      %v1703 = vpop.xlane.xlu0 %1702
      %v1704 = vrcp.pop %v1703
      %v1705 = vmul.f32 %v1700, %v1704
      %1706 = vrot.lane.b32.xlu0 %v1281, 48
      %v1707 = vpop.permute.xlu0 %1706
      %v1710 = vsel %vm1287, %v1705, 0
      %1712 = vmatprep.subr.mxu0 0.0
      %1713 = vmatpush1.msra.mxu0 0.0
      %1714 = vmatprep.subr.mxu0 0.0
      %1715 = vmatpush1.msra.mxu0 0.0
      %1716 = vmatprep.subr.mxu0 0.0
      %1717 = vmatpush1.msra.mxu0 0.0
      %1718 = vmatprep.subr.mxu0 0.0
      %1719 = vmatpush1.msra.mxu0 0.0
      %1720 = vmatprep.subr.mxu0 0.0
      %1721 = vmatpush1.msra.mxu0 0.0
      %1722 = vmatprep.subr.mxu0 0.0
      %1723 = vmatpush1.msra.mxu0 0.0
      %1724 = vmatprep.subr.mxu0 0.0
      %1725 = vmatpush1.msra.mxu0 0.0
      %1726 = vmatprep.subr.mxu0 0.0
      %1727 = vmatpush1.msra.mxu0 0.0
      %1728 = vmatprep.subr.mxu0 0.0
      %1729 = vmatpush1.msra.mxu0 0.0
      %1730 = vmatprep.subr.mxu0 0.0
      %1731 = vmatpush1.msra.mxu0 0.0
      %1732 = vmatprep.subr.mxu0 0.0
      %1733 = vmatpush1.msra.mxu0 0.0
      %1734 = vmatprep.subr.mxu0 0.0
      %1735 = vmatpush1.msra.mxu0 0.0
      %1736 = vmatprep.subr.mxu0 0.0
      %1737 = vmatpush1.msra.mxu0 0.0
      %1738 = vmatprep.subr.mxu0 0.0
      %1739 = vmatpush1.msra.mxu0 0.0
      %1740 = vmatprep.subr.mxu0 0.0
      %1741 = vmatpush1.msra.mxu0 0.0
      %1742 = vmatprep.subr.mxu0 0.0
      %1743 = vmatpush1.msra.mxu0 %v1707
      %1744 = vmatprep.subr.mxu0 0.0
      %1745 = vmatpush2.msra.mxu0 0.0
      %1746 = vmatprep.subr.mxu0 0.0
      %1747 = vmatpush2.msra.mxu0 0.0
      %1748 = vmatprep.subr.mxu0 0.0
      %1749 = vmatpush2.msra.mxu0 0.0
      %1750 = vmatprep.subr.mxu0 0.0
      %1751 = vmatpush2.msra.mxu0 0.0
      %1752 = vmatprep.subr.mxu0 0.0
      %1753 = vmatpush2.msra.mxu0 0.0
      %1754 = vmatprep.subr.mxu0 0.0
      %1755 = vmatpush2.msra.mxu0 0.0
      %1756 = vmatprep.subr.mxu0 0.0
      %1757 = vmatpush2.msra.mxu0 0.0
      %1758 = vmatprep.subr.mxu0 0.0
      %1759 = vmatpush2.msra.mxu0 0.0
      %1760 = vmatprep.subr.mxu0 0.0
      %1761 = vmatpush2.msra.mxu0 0.0
      %1762 = vmatprep.subr.mxu0 0.0
      %1763 = vmatpush2.msra.mxu0 0.0
      %1764 = vmatprep.subr.mxu0 0.0
      %1765 = vmatpush2.msra.mxu0 0.0
      %1766 = vmatprep.subr.mxu0 0.0
      %1767 = vmatpush2.msra.mxu0 0.0
      %1768 = vmatprep.subr.mxu0 0.0
      %1769 = vmatpush2.msra.mxu0 0.0
      %1770 = vmatprep.subr.mxu0 0.0
      %1771 = vmatpush2.msra.mxu0 0.0
      %1772 = vmatprep.subr.mxu0 0.0
      %1773 = vmatpush2.msra.mxu0 0.0
      %1774 = vmatprep.subr.mxu0 0.0
      %1775 = vmatpush2.msra.mxu0 0.0
      %1776 = vmatprep.mubr.f32.mxu0 0.0
      %1777 = vmatmul.mubr.f32.gmra.mxu0 %v1710
      %v1778 = vpop.f32.mrf.mxu0
      %v1779 = vadd.f32 0.0, %v1778
      %v1780 = vpop.f32.mrf.mxu0
      %1781 = vdwg.mxu0
      %1782 = vrot.lane.b32.xlu0 %v1281, 104
      %v1783 = vpop.permute.xlu0 %1782
      %1784 = vrot.lane.b32.xlu0 %v1281, 72
      %v1785 = vpop.permute.xlu0 %1784
      %v1786 = vsel %vm1287, %v1783, 0
      %v1788 = vsel %vm1287, %v1785, 0
      %1790 = vmatprep.subr.mxu0 0.0
      %1791 = vmatpush1.xpose.msra.mxu0 0.0
      %1792 = vmatprep.subr.mxu0 0.0
      %1793 = vmatpush1.xpose.msra.mxu0 0.0
      %1794 = vmatprep.subr.mxu0 0.0
      %1795 = vmatpush1.xpose.msra.mxu0 0.0
      %1796 = vmatprep.subr.mxu0 0.0
      %1797 = vmatpush1.xpose.msra.mxu0 0.0
      %1798 = vmatprep.subr.mxu0 0.0
      %1799 = vmatpush1.xpose.msra.mxu0 0.0
      %1800 = vmatprep.subr.mxu0 0.0
      %1801 = vmatpush1.xpose.msra.mxu0 0.0
      %1802 = vmatprep.subr.mxu0 0.0
      %1803 = vmatpush1.xpose.msra.mxu0 0.0
      %1804 = vmatprep.subr.mxu0 0.0
      %1805 = vmatpush1.xpose.msra.mxu0 0.0
      %1806 = vmatprep.subr.mxu0 0.0
      %1807 = vmatpush1.xpose.msra.mxu0 0.0
      %1808 = vmatprep.subr.mxu0 0.0
      %1809 = vmatpush1.xpose.msra.mxu0 0.0
      %1810 = vmatprep.subr.mxu0 0.0
      %1811 = vmatpush1.xpose.msra.mxu0 0.0
      %1812 = vmatprep.subr.mxu0 0.0
      %1813 = vmatpush1.xpose.msra.mxu0 0.0
      %1814 = vmatprep.subr.mxu0 0.0
      %1815 = vmatpush1.xpose.msra.mxu0 0.0
      %1816 = vmatprep.subr.mxu0 0.0
      %1817 = vmatpush1.xpose.msra.mxu0 0.0
      %1818 = vmatprep.subr.mxu0 0.0
      %1819 = vmatpush1.xpose.msra.mxu0 0.0
      %1820 = vmatprep.subr.mxu0 0.0
      %1821 = vmatpush1.xpose.msra.mxu0 %v1788
      %1822 = vmatprep.subr.mxu0 0.0
      %1823 = vmatpush2.xpose.msra.mxu0 0.0
      %1824 = vmatprep.subr.mxu0 0.0
      %1825 = vmatpush2.xpose.msra.mxu0 0.0
      %1826 = vmatprep.subr.mxu0 0.0
      %1827 = vmatpush2.xpose.msra.mxu0 0.0
      %1828 = vmatprep.subr.mxu0 0.0
      %1829 = vmatpush2.xpose.msra.mxu0 0.0
      %1830 = vmatprep.subr.mxu0 0.0
      %1831 = vmatpush2.xpose.msra.mxu0 0.0
      %1832 = vmatprep.subr.mxu0 0.0
      %1833 = vmatpush2.xpose.msra.mxu0 0.0
      %1834 = vmatprep.subr.mxu0 0.0
      %1835 = vmatpush2.xpose.msra.mxu0 0.0
      %1836 = vmatprep.subr.mxu0 0.0
      %1837 = vmatpush2.xpose.msra.mxu0 0.0
      %1838 = vmatprep.subr.mxu0 0.0
      %1839 = vmatpush2.xpose.msra.mxu0 0.0
      %1840 = vmatprep.subr.mxu0 0.0
      %1841 = vmatpush2.xpose.msra.mxu0 0.0
      %1842 = vmatprep.subr.mxu0 0.0
      %1843 = vmatpush2.xpose.msra.mxu0 0.0
      %1844 = vmatprep.subr.mxu0 0.0
      %1845 = vmatpush2.xpose.msra.mxu0 0.0
      %1846 = vmatprep.subr.mxu0 0.0
      %1847 = vmatpush2.xpose.msra.mxu0 0.0
      %1848 = vmatprep.subr.mxu0 0.0
      %1849 = vmatpush2.xpose.msra.mxu0 0.0
      %1850 = vmatprep.subr.mxu0 0.0
      %1851 = vmatpush2.xpose.msra.mxu0 0.0
      %1852 = vmatprep.subr.mxu0 0.0
      %1853 = vmatpush2.xpose.msra.mxu0 0.0
      %1854 = vmatprep.mubr.f32.mxu0 0.0
      %1855 = vmatmul.mubr.f32.gmra.mxu0 %v1786
      %v1856 = vpop.f32.mrf.mxu0
      %v1857 = vadd.f32 0.0, %v1856
      %v1858 = vpop.f32.mrf.mxu0
      %1859 = vdwg.mxu0
      %v1860 = vmul.f32 %v1857, 0.35355338
      %v1861 = vsel %vm1287, %v1860, -inf
      %1862 = vmax.xlane.f32.xlu0 %v1861
      %v1863 = vpop.xlane.xlu0 %1862
      %v1864 = vsub.f32 %v1860, %v1863
      %v1865 = vmul.f32 %v1864, 1.442695
      %v1866 = vpow.pop %v1865
      %v1867 = vsel %vm1287, %v1866, 0.0
      %1868 = vadd.xlane.f32.xlu0 %v1867
      %v1869 = vpop.xlane.xlu0 %1868
      %v1870 = vrcp.pop %v1869
      %v1871 = vmul.f32 %v1866, %v1870
      %1872 = vrot.lane.b32.xlu0 %v1281, 40
      %v1873 = vpop.permute.xlu0 %1872
      %v1876 = vsel %vm1287, %v1871, 0
      %1878 = vmatprep.subr.mxu0 0.0
      %1879 = vmatpush1.msra.mxu0 0.0
      %1880 = vmatprep.subr.mxu0 0.0
      %1881 = vmatpush1.msra.mxu0 0.0
      %1882 = vmatprep.subr.mxu0 0.0
      %1883 = vmatpush1.msra.mxu0 0.0
      %1884 = vmatprep.subr.mxu0 0.0
      %1885 = vmatpush1.msra.mxu0 0.0
      %1886 = vmatprep.subr.mxu0 0.0
      %1887 = vmatpush1.msra.mxu0 0.0
      %1888 = vmatprep.subr.mxu0 0.0
      %1889 = vmatpush1.msra.mxu0 0.0
      %1890 = vmatprep.subr.mxu0 0.0
      %1891 = vmatpush1.msra.mxu0 0.0
      %1892 = vmatprep.subr.mxu0 0.0
      %1893 = vmatpush1.msra.mxu0 0.0
      %1894 = vmatprep.subr.mxu0 0.0
      %1895 = vmatpush1.msra.mxu0 0.0
      %1896 = vmatprep.subr.mxu0 0.0
      %1897 = vmatpush1.msra.mxu0 0.0
      %1898 = vmatprep.subr.mxu0 0.0
      %1899 = vmatpush1.msra.mxu0 0.0
      %1900 = vmatprep.subr.mxu0 0.0
      %1901 = vmatpush1.msra.mxu0 0.0
      %1902 = vmatprep.subr.mxu0 0.0
      %1903 = vmatpush1.msra.mxu0 0.0
      %1904 = vmatprep.subr.mxu0 0.0
      %1905 = vmatpush1.msra.mxu0 0.0
      %1906 = vmatprep.subr.mxu0 0.0
      %1907 = vmatpush1.msra.mxu0 0.0
      %1908 = vmatprep.subr.mxu0 0.0
      %1909 = vmatpush1.msra.mxu0 %v1873
      %1910 = vmatprep.subr.mxu0 0.0
      %1911 = vmatpush2.msra.mxu0 0.0
      %1912 = vmatprep.subr.mxu0 0.0
      %1913 = vmatpush2.msra.mxu0 0.0
      %1914 = vmatprep.subr.mxu0 0.0
      %1915 = vmatpush2.msra.mxu0 0.0
      %1916 = vmatprep.subr.mxu0 0.0
      %1917 = vmatpush2.msra.mxu0 0.0
      %1918 = vmatprep.subr.mxu0 0.0
      %1919 = vmatpush2.msra.mxu0 0.0
      %1920 = vmatprep.subr.mxu0 0.0
      %1921 = vmatpush2.msra.mxu0 0.0
      %1922 = vmatprep.subr.mxu0 0.0
      %1923 = vmatpush2.msra.mxu0 0.0
      %1924 = vmatprep.subr.mxu0 0.0
      %1925 = vmatpush2.msra.mxu0 0.0
      %1926 = vmatprep.subr.mxu0 0.0
      %1927 = vmatpush2.msra.mxu0 0.0
      %1928 = vmatprep.subr.mxu0 0.0
      %1929 = vmatpush2.msra.mxu0 0.0
      %1930 = vmatprep.subr.mxu0 0.0
      %1931 = vmatpush2.msra.mxu0 0.0
      %1932 = vmatprep.subr.mxu0 0.0
      %1933 = vmatpush2.msra.mxu0 0.0
      %1934 = vmatprep.subr.mxu0 0.0
      %1935 = vmatpush2.msra.mxu0 0.0
      %1936 = vmatprep.subr.mxu0 0.0
      %1937 = vmatpush2.msra.mxu0 0.0
      %1938 = vmatprep.subr.mxu0 0.0
      %1939 = vmatpush2.msra.mxu0 0.0
      %1940 = vmatprep.subr.mxu0 0.0
      %1941 = vmatpush2.msra.mxu0 0.0
      %1942 = vmatprep.mubr.f32.mxu0 0.0
      %1943 = vmatmul.mubr.f32.gmra.mxu0 %v1876
      %v1944 = vpop.f32.mrf.mxu0
      %v1945 = vadd.f32 0.0, %v1944
      %v1946 = vpop.f32.mrf.mxu0
      %1947 = vdwg.mxu0
      %1949 = vrot.lane.b32.xlu0 %v1613, 8
      %v1950 = vpop.permute.xlu0 %1949
      %1953 = vrot.lane.b32.xlu0 %v1779, 16
      %v1954 = vpop.permute.xlu0 %1953
      %1957 = vrot.lane.b32.xlu0 %v1945, 24
      %v1958 = vpop.permute.xlu0 %1957
      %v1960 = vsel %vm1287, %v1447, %v1950
      %vm1961 = vcmask 130048
      %v1962 = vsel %vm1961, %v1960, %v1954
      %vm1963 = vcmask 195584
      %v1964 = vsel %vm1963, %v1962, %v1958
      %v1965 = vld [vmem:[%s23] sm:$0xff]
      %v1966 = vld [vmem:[%s23 + $0x8] sm:$0xff]
      %v1967 = vld [vmem:[%s23 + $0x10] sm:$0xff]
      %v1968 = vld [vmem:[%s23 + $0x18] sm:$0xff]
      %v1969 = vld [vmem:[%s25] sm:$0x1]
      %v1971 = vlaneseq
      %v1972 = vshrl.u32 %v1971, 7
      %v1973 = vsub.s32 0, %v1972
      %v1974 = vrot.slane %v1969, %v1973
      %v1977 = vsel %vm957, %v1964, 0
      %1979 = vmatprep.subr.mxu0 0.0
      %1980 = vmatpush1.msra.mxu0 0.0
      %1981 = vmatprep.subr.mxu0 0.0
      %1982 = vmatpush1.msra.mxu0 0.0
      %1983 = vmatprep.subr.mxu0 0.0
      %1984 = vmatpush1.msra.mxu0 0.0
      %1985 = vmatprep.subr.mxu0 0.0
      %1986 = vmatpush1.msra.mxu0 0.0
      %1987 = vmatprep.subr.mxu0 0.0
      %1988 = vmatpush1.msra.mxu0 0.0
      %1989 = vmatprep.subr.mxu0 0.0
      %1990 = vmatpush1.msra.mxu0 0.0
      %1991 = vmatprep.subr.mxu0 0.0
      %1992 = vmatpush1.msra.mxu0 0.0
      %1993 = vmatprep.subr.mxu0 0.0
      %1994 = vmatpush1.msra.mxu0 0.0
      %1995 = vmatprep.subr.mxu0 0.0
      %1996 = vmatpush1.msra.mxu0 0.0
      %1997 = vmatprep.subr.mxu0 0.0
      %1998 = vmatpush1.msra.mxu0 0.0
      %1999 = vmatprep.subr.mxu0 0.0
      %2000 = vmatpush1.msra.mxu0 0.0
      %2001 = vmatprep.subr.mxu0 0.0
      %2002 = vmatpush1.msra.mxu0 0.0
      %2003 = vmatprep.subr.mxu0 0.0
      %2004 = vmatpush1.msra.mxu0 %v1968
      %2005 = vmatprep.subr.mxu0 0.0
      %2006 = vmatpush1.msra.mxu0 %v1967
      %2007 = vmatprep.subr.mxu0 0.0
      %2008 = vmatpush1.msra.mxu0 %v1966
      %2009 = vmatprep.subr.mxu0 0.0
      %2010 = vmatpush1.msra.mxu0 %v1965
      %2011 = vmatprep.subr.mxu0 0.0
      %2012 = vmatpush2.msra.mxu0 0.0
      %2013 = vmatprep.subr.mxu0 0.0
      %2014 = vmatpush2.msra.mxu0 0.0
      %2015 = vmatprep.subr.mxu0 0.0
      %2016 = vmatpush2.msra.mxu0 0.0
      %2017 = vmatprep.subr.mxu0 0.0
      %2018 = vmatpush2.msra.mxu0 0.0
      %2019 = vmatprep.subr.mxu0 0.0
      %2020 = vmatpush2.msra.mxu0 0.0
      %2021 = vmatprep.subr.mxu0 0.0
      %2022 = vmatpush2.msra.mxu0 0.0
      %2023 = vmatprep.subr.mxu0 0.0
      %2024 = vmatpush2.msra.mxu0 0.0
      %2025 = vmatprep.subr.mxu0 0.0
      %2026 = vmatpush2.msra.mxu0 0.0
      %2027 = vmatprep.subr.mxu0 0.0
      %2028 = vmatpush2.msra.mxu0 0.0
      %2029 = vmatprep.subr.mxu0 0.0
      %2030 = vmatpush2.msra.mxu0 0.0
      %2031 = vmatprep.subr.mxu0 0.0
      %2032 = vmatpush2.msra.mxu0 0.0
      %2033 = vmatprep.subr.mxu0 0.0
      %2034 = vmatpush2.msra.mxu0 0.0
      %2035 = vmatprep.subr.mxu0 0.0
      %2036 = vmatpush2.msra.mxu0 0.0
      %2037 = vmatprep.subr.mxu0 0.0
      %2038 = vmatpush2.msra.mxu0 0.0
      %2039 = vmatprep.subr.mxu0 0.0
      %2040 = vmatpush2.msra.mxu0 0.0
      %2041 = vmatprep.subr.mxu0 0.0
      %2042 = vmatpush2.msra.mxu0 0.0
      %2043 = vmatprep.mubr.f32.mxu0 0.0
      %2044 = vmatmul.mubr.f32.gmra.mxu0 %v1977
      %v2045 = vpop.f32.mrf.mxu0
      %v2046 = vadd.f32 %v1974, %v2045
      %v2047 = vpop.f32.mrf.mxu0
      %2048 = vdwg.mxu0
      %v2049 = vadd.f32 %v1170, %v2046
      %v2050 = vld [vmem:[%s27] sm:$0x1]
      %v2051 = vld [vmem:[%s29] sm:$0x1]
      %v2052 = vsel %vm957, %v2049, 0.0
      %2053 = vadd.xlane.f32.xlu0 %v2052
      %v2054 = vpop.xlane.xlu0 %2053
      %v2055 = vmul.f32 %v2054, %v961
      %v2056 = vsub.f32 %v2049, %v2055
      %v2057 = vmul.f32 %v2056, %v2056
      %v2058 = vsel %vm957, %v2057, 0.0
      %2059 = vadd.xlane.f32.xlu0 %v2058
      %v2060 = vpop.xlane.xlu0 %2059
      %v2061 = vmul.f32 %v2060, %v961
      %v2062 = vadd.f32 %v2061, 1e-05
      %v2063 = vrsqrt.pop %v2062
      %v2064 = vmul.f32 %v2056, %v2063
      %v2066 = vlaneseq
      %v2067 = vshrl.u32 %v2066, 7
      %v2068 = vsub.s32 0, %v2067
      %v2069 = vrot.slane %v2050, %v2068
      %v2071 = vmul.f32 %v2064, %v2069
      %v2073 = vlaneseq
      %v2074 = vshrl.u32 %v2073, 7
      %v2075 = vsub.s32 0, %v2074
      %v2076 = vrot.slane %v2051, %v2075
      %v2078 = vadd.f32 %v2071, %v2076
      %v2079 = vld [vmem:[%s31] sm:$0xff]
      %v2080 = vld [vmem:[%s31 + $0x8] sm:$0xff]
      %v2081 = vld [vmem:[%s31 + $0x10] sm:$0xff]
      %v2082 = vld [vmem:[%s31 + $0x18] sm:$0xff]
      %v2083 = vld [vmem:[%s33] sm:$0x1]
      %v2085 = vlaneseq
      %v2086 = vshrl.u32 %v2085, 7
      %v2087 = vsub.s32 0, %v2086
      %v2088 = vrot.slane %v2083, %v2087
      %v2091 = vsel %vm957, %v2078, 0
      %2093 = vmatprep.subr.mxu0 0.0
      %2094 = vmatpush1.msra.mxu0 0.0
      %2095 = vmatprep.subr.mxu0 0.0
      %2096 = vmatpush1.msra.mxu0 0.0
      %2097 = vmatprep.subr.mxu0 0.0
      %2098 = vmatpush1.msra.mxu0 0.0
      %2099 = vmatprep.subr.mxu0 0.0
      %2100 = vmatpush1.msra.mxu0 0.0
      %2101 = vmatprep.subr.mxu0 0.0
      %2102 = vmatpush1.msra.mxu0 0.0
      %2103 = vmatprep.subr.mxu0 0.0
      %2104 = vmatpush1.msra.mxu0 0.0
      %2105 = vmatprep.subr.mxu0 0.0
      %2106 = vmatpush1.msra.mxu0 0.0
      %2107 = vmatprep.subr.mxu0 0.0
      %2108 = vmatpush1.msra.mxu0 0.0
      %2109 = vmatprep.subr.mxu0 0.0
      %2110 = vmatpush1.msra.mxu0 0.0
      %2111 = vmatprep.subr.mxu0 0.0
      %2112 = vmatpush1.msra.mxu0 0.0
      %2113 = vmatprep.subr.mxu0 0.0
      %2114 = vmatpush1.msra.mxu0 0.0
      %2115 = vmatprep.subr.mxu0 0.0
      %2116 = vmatpush1.msra.mxu0 0.0
      %2117 = vmatprep.subr.mxu0 0.0
      %2118 = vmatpush1.msra.mxu0 %v2082
      %2119 = vmatprep.subr.mxu0 0.0
      %2120 = vmatpush1.msra.mxu0 %v2081
      %2121 = vmatprep.subr.mxu0 0.0
      %2122 = vmatpush1.msra.mxu0 %v2080
      %2123 = vmatprep.subr.mxu0 0.0
      %2124 = vmatpush1.msra.mxu0 %v2079
      %2125 = vmatprep.subr.mxu0 0.0
      %2126 = vmatpush2.msra.mxu0 0.0
      %2127 = vmatprep.subr.mxu0 0.0
      %2128 = vmatpush2.msra.mxu0 0.0
      %2129 = vmatprep.subr.mxu0 0.0
      %2130 = vmatpush2.msra.mxu0 0.0
      %2131 = vmatprep.subr.mxu0 0.0
      %2132 = vmatpush2.msra.mxu0 0.0
      %2133 = vmatprep.subr.mxu0 0.0
      %2134 = vmatpush2.msra.mxu0 0.0
      %2135 = vmatprep.subr.mxu0 0.0
      %2136 = vmatpush2.msra.mxu0 0.0
      %2137 = vmatprep.subr.mxu0 0.0
      %2138 = vmatpush2.msra.mxu0 0.0
      %2139 = vmatprep.subr.mxu0 0.0
      %2140 = vmatpush2.msra.mxu0 0.0
      %2141 = vmatprep.subr.mxu0 0.0
      %2142 = vmatpush2.msra.mxu0 0.0
      %2143 = vmatprep.subr.mxu0 0.0
      %2144 = vmatpush2.msra.mxu0 0.0
      %2145 = vmatprep.subr.mxu0 0.0
      %2146 = vmatpush2.msra.mxu0 0.0
      %2147 = vmatprep.subr.mxu0 0.0
      %2148 = vmatpush2.msra.mxu0 0.0
      %2149 = vmatprep.subr.mxu0 0.0
      %2150 = vmatpush2.msra.mxu0 0.0
      %2151 = vmatprep.subr.mxu0 0.0
      %2152 = vmatpush2.msra.mxu0 0.0
      %2153 = vmatprep.subr.mxu0 0.0
      %2154 = vmatpush2.msra.mxu0 0.0
      %2155 = vmatprep.subr.mxu0 0.0
      %2156 = vmatpush2.msra.mxu0 0.0
      %2157 = vmatprep.mubr.f32.mxu0 0.0
      %2158 = vmatmul.mubr.f32.gmra.mxu0 %v2091
      %v2159 = vpop.f32.mrf.mxu0
      %v2160 = vadd.f32 %v2088, %v2159
      %v2161 = vpop.f32.mrf.mxu0
      %2162 = vdwg.mxu0
      %v2163 = vsub.f32 0.0, %v2160
      %v2164 = vmul.f32 %v2163, 1.442695
      %v2165 = vpow.pop %v2164
      %v2166 = vadd.f32 %v2165, 1.0
      %v2167 = vrcp.pop %v2166
      %2169 = vrot.lane.b32.xlu0 %v2167, 96
      %v2170 = vpop.permute.xlu0 %2169
      %v2172 = vmul.f32 %v2160, %v2170
      %v2173 = vld [vmem:[%s35] sm:$0x7f]
      %v2174 = vlaneseq
      %v2175 = vshrl.u32 %v2174, 7
      %v2176 = vld [vmem:[%s37] sm:$0x1]
      %v2178 = vlaneseq
      %v2179 = vshrl.u32 %v2178, 7
      %v2180 = vsub.s32 0, %v2179
      %v2181 = vrot.slane %v2176, %v2180
      %v2183 = vrot.slane %v2172, 5
      %vm2184 = vcmp.ge.s32.totalorder %v2175, 3
      %vm2185 = vcmp.lt.s32.totalorder %v2175, 11
      %vm2186 = vmand %vm2184, %vm2185
      %v2187 = vsel %vm2186, %v2183, 0.0
      %v2188 = vlaneseq
      %v2189 = vshrl.u32 %v2188, 7
      %v2190 = vsub.s32 0, %v2189
      %v2191 = vrot.slane %v2173, %v2190
      %v2192 = vmul.f32 %v2187, %v2191
      %v2193 = vadd.f32 %v2181, %v2192
      %v2194 = vrot.slane %v2172, 6
      %vm2195 = vcmp.ge.s32.totalorder %v2175, 2
      %vm2196 = vcmp.lt.s32.totalorder %v2175, 10
      %vm2197 = vmand %vm2195, %vm2196
      %v2198 = vsel %vm2197, %v2194, 0.0
      %v2199 = vlaneseq
      %v2200 = vshrl.u32 %v2199, 7
      %v2201 = vsub.s32 1, %v2200
      %v2202 = vrot.slane %v2173, %v2201
      %v2203 = vmul.f32 %v2198, %v2202
      %v2204 = vadd.f32 %v2193, %v2203
      %v2205 = vrot.slane %v2172, 7
      %vm2206 = vcmp.ge.s32.totalorder %v2175, 1
      %vm2207 = vcmp.lt.s32.totalorder %v2175, 9
      %vm2208 = vmand %vm2206, %vm2207
      %v2209 = vsel %vm2208, %v2205, 0.0
      %v2210 = vlaneseq
      %v2211 = vshrl.u32 %v2210, 7
      %v2212 = vsub.s32 2, %v2211
      %v2213 = vrot.slane %v2173, %v2212
      %v2214 = vmul.f32 %v2209, %v2213
      %v2215 = vadd.f32 %v2204, %v2214
      %v2216 = vlaneseq
      %v2217 = vshrl.u32 %v2216, 7
      %v2218 = vsub.s32 3, %v2217
      %v2219 = vrot.slane %v2173, %v2218
      %v2220 = vmul.f32 %v2172, %v2219
      %v2221 = vadd.f32 %v2215, %v2220
      %v2222 = vrot.slane %v2172, 1
      %vm2223 = vcmp.ge.s32.totalorder %v2175, 4294967295
      %vm2224 = vcmp.lt.s32.totalorder %v2175, 7
      %vm2225 = vmand %vm2223, %vm2224
      %v2226 = vsel %vm2225, %v2222, 0.0
      %v2227 = vlaneseq
      %v2228 = vshrl.u32 %v2227, 7
      %v2229 = vsub.s32 4, %v2228
      %v2230 = vrot.slane %v2173, %v2229
      %v2231 = vmul.f32 %v2226, %v2230
      %v2232 = vadd.f32 %v2221, %v2231
      %v2233 = vrot.slane %v2172, 2
      %vm2234 = vcmp.ge.s32.totalorder %v2175, 4294967294
      %vm2235 = vcmp.lt.s32.totalorder %v2175, 6
      %vm2236 = vmand %vm2234, %vm2235
      %v2237 = vsel %vm2236, %v2233, 0.0
      %v2238 = vlaneseq
      %v2239 = vshrl.u32 %v2238, 7
      %v2240 = vsub.s32 5, %v2239
      %v2241 = vrot.slane %v2173, %v2240
      %v2242 = vmul.f32 %v2237, %v2241
      %v2243 = vadd.f32 %v2232, %v2242
      %v2244 = vrot.slane %v2172, 3
      %vm2245 = vcmp.ge.s32.totalorder %v2175, 4294967293
      %vm2246 = vcmp.lt.s32.totalorder %v2175, 5
      %vm2247 = vmand %vm2245, %vm2246
      %v2248 = vsel %vm2247, %v2244, 0.0
      %v2249 = vlaneseq
      %v2250 = vshrl.u32 %v2249, 7
      %v2251 = vsub.s32 6, %v2250
      %v2252 = vrot.slane %v2173, %v2251
      %v2253 = vmul.f32 %v2248, %v2252
      %v2254 = vadd.f32 %v2243, %v2253
      %v2255 = vld [vmem:[%s39] sm:$0x1]
      %v2256 = vmul.f32 %v2255, 0.999995
      %v2258 = vlaneseq
      %v2259 = vshrl.u32 %v2258, 7
      %v2260 = vsub.s32 0, %v2259
      %v2261 = vrot.slane %v2256, %v2260
      %v2263 = vmul.f32 %v2254, %v2261
      %v2264 = vld [vmem:[%s41] sm:$0x1]
      %v2266 = vlaneseq
      %v2267 = vshrl.u32 %v2266, 7
      %v2268 = vsub.s32 0, %v2267
      %v2269 = vrot.slane %v2264, %v2268
      %v2271 = vadd.f32 %v2263, %v2269
      %v2272 = vsub.f32 0.0, %v2271
      %v2273 = vmul.f32 %v2272, 1.442695
      %v2274 = vpow.pop %v2273
      %v2275 = vadd.f32 %v2274, 1.0
      %v2276 = vrcp.pop %v2275
      %v2277 = vmul.f32 %v2271, %v2276
      %v2278 = vld [vmem:[%s43] sm:$0xff]
      %v2279 = vld [vmem:[%s43 + $0x8] sm:$0xff]
      %v2280 = vld [vmem:[%s43 + $0x10] sm:$0xff]
      %v2281 = vld [vmem:[%s43 + $0x18] sm:$0xff]
      %v2282 = vld [vmem:[%s45] sm:$0x1]
      %v2284 = vlaneseq
      %v2285 = vshrl.u32 %v2284, 7
      %v2286 = vsub.s32 0, %v2285
      %v2287 = vrot.slane %v2282, %v2286
      %v2290 = vsel %vm957, %v2277, 0
      %2292 = vmatprep.subr.mxu0 0.0
      %2293 = vmatpush1.msra.mxu0 0.0
      %2294 = vmatprep.subr.mxu0 0.0
      %2295 = vmatpush1.msra.mxu0 0.0
      %2296 = vmatprep.subr.mxu0 0.0
      %2297 = vmatpush1.msra.mxu0 0.0
      %2298 = vmatprep.subr.mxu0 0.0
      %2299 = vmatpush1.msra.mxu0 0.0
      %2300 = vmatprep.subr.mxu0 0.0
      %2301 = vmatpush1.msra.mxu0 0.0
      %2302 = vmatprep.subr.mxu0 0.0
      %2303 = vmatpush1.msra.mxu0 0.0
      %2304 = vmatprep.subr.mxu0 0.0
      %2305 = vmatpush1.msra.mxu0 0.0
      %2306 = vmatprep.subr.mxu0 0.0
      %2307 = vmatpush1.msra.mxu0 0.0
      %2308 = vmatprep.subr.mxu0 0.0
      %2309 = vmatpush1.msra.mxu0 0.0
      %2310 = vmatprep.subr.mxu0 0.0
      %2311 = vmatpush1.msra.mxu0 0.0
      %2312 = vmatprep.subr.mxu0 0.0
      %2313 = vmatpush1.msra.mxu0 0.0
      %2314 = vmatprep.subr.mxu0 0.0
      %2315 = vmatpush1.msra.mxu0 0.0
      %2316 = vmatprep.subr.mxu0 0.0
      %2317 = vmatpush1.msra.mxu0 %v2281
      %2318 = vmatprep.subr.mxu0 0.0
      %2319 = vmatpush1.msra.mxu0 %v2280
      %2320 = vmatprep.subr.mxu0 0.0
      %2321 = vmatpush1.msra.mxu0 %v2279
      %2322 = vmatprep.subr.mxu0 0.0
      %2323 = vmatpush1.msra.mxu0 %v2278
      %2324 = vmatprep.subr.mxu0 0.0
      %2325 = vmatpush2.msra.mxu0 0.0
      %2326 = vmatprep.subr.mxu0 0.0
      %2327 = vmatpush2.msra.mxu0 0.0
      %2328 = vmatprep.subr.mxu0 0.0
      %2329 = vmatpush2.msra.mxu0 0.0
      %2330 = vmatprep.subr.mxu0 0.0
      %2331 = vmatpush2.msra.mxu0 0.0
      %2332 = vmatprep.subr.mxu0 0.0
      %2333 = vmatpush2.msra.mxu0 0.0
      %2334 = vmatprep.subr.mxu0 0.0
      %2335 = vmatpush2.msra.mxu0 0.0
      %2336 = vmatprep.subr.mxu0 0.0
      %2337 = vmatpush2.msra.mxu0 0.0
      %2338 = vmatprep.subr.mxu0 0.0
      %2339 = vmatpush2.msra.mxu0 0.0
      %2340 = vmatprep.subr.mxu0 0.0
      %2341 = vmatpush2.msra.mxu0 0.0
      %2342 = vmatprep.subr.mxu0 0.0
      %2343 = vmatpush2.msra.mxu0 0.0
      %2344 = vmatprep.subr.mxu0 0.0
      %2345 = vmatpush2.msra.mxu0 0.0
      %2346 = vmatprep.subr.mxu0 0.0
      %2347 = vmatpush2.msra.mxu0 0.0
      %2348 = vmatprep.subr.mxu0 0.0
      %2349 = vmatpush2.msra.mxu0 0.0
      %2350 = vmatprep.subr.mxu0 0.0
      %2351 = vmatpush2.msra.mxu0 0.0
      %2352 = vmatprep.subr.mxu0 0.0
      %2353 = vmatpush2.msra.mxu0 0.0
      %2354 = vmatprep.subr.mxu0 0.0
      %2355 = vmatpush2.msra.mxu0 0.0
      %2356 = vmatprep.mubr.f32.mxu0 0.0
      %2357 = vmatmul.mubr.f32.gmra.mxu0 %v2290
      %v2358 = vpop.f32.mrf.mxu0
      %v2359 = vadd.f32 %v2287, %v2358
      %v2360 = vpop.f32.mrf.mxu0
      %2361 = vdwg.mxu0
      %v2362 = vadd.f32 %v2049, %v2359
      %v2363 = vld [vmem:[%s47] sm:$0x1]
      %v2364 = vld [vmem:[%s49] sm:$0x1]
      %v2365 = vsel %vm957, %v2362, 0.0
      %2366 = vadd.xlane.f32.xlu0 %v2365
      %v2367 = vpop.xlane.xlu0 %2366
      %v2368 = vmul.f32 %v2367, %v961
      %v2369 = vsub.f32 %v2362, %v2368
      %v2370 = vmul.f32 %v2369, %v2369
      %v2371 = vsel %vm957, %v2370, 0.0
      %2372 = vadd.xlane.f32.xlu0 %v2371
      %v2373 = vpop.xlane.xlu0 %2372
      %v2374 = vmul.f32 %v2373, %v961
      %v2375 = vadd.f32 %v2374, 1e-05
      %v2376 = vrsqrt.pop %v2375
      %v2377 = vmul.f32 %v2369, %v2376
      %v2379 = vlaneseq
      %v2380 = vshrl.u32 %v2379, 7
      %v2381 = vsub.s32 0, %v2380
      %v2382 = vrot.slane %v2363, %v2381
      %v2384 = vmul.f32 %v2377, %v2382
      %v2386 = vlaneseq
      %v2387 = vshrl.u32 %v2386, 7
      %v2388 = vsub.s32 0, %v2387
      %v2389 = vrot.slane %v2364, %v2388
      %v2391 = vadd.f32 %v2384, %v2389
      %v2392 = vld [vmem:[%s51] sm:$0xff]
      %v2393 = vld [vmem:[%s51 + $0x8] sm:$0xff]
      %v2394 = vld [vmem:[%s51 + $0x10] sm:$0xff]
      %v2395 = vld [vmem:[%s51 + $0x18] sm:$0xff]
      %v2396 = vld [vmem:[%s53] sm:$0x1]
      %v2398 = vlaneseq
      %v2399 = vshrl.u32 %v2398, 7
      %v2400 = vsub.s32 0, %v2399
      %v2401 = vrot.slane %v2396, %v2400
      %v2404 = vsel %vm957, %v2391, 0
      %2406 = vmatprep.subr.mxu0 0.0
      %2407 = vmatpush1.msra.mxu0 0.0
      %2408 = vmatprep.subr.mxu0 0.0
      %2409 = vmatpush1.msra.mxu0 0.0
      %2410 = vmatprep.subr.mxu0 0.0
      %2411 = vmatpush1.msra.mxu0 0.0
      %2412 = vmatprep.subr.mxu0 0.0
      %2413 = vmatpush1.msra.mxu0 0.0
      %2414 = vmatprep.subr.mxu0 0.0
      %2415 = vmatpush1.msra.mxu0 0.0
      %2416 = vmatprep.subr.mxu0 0.0
      %2417 = vmatpush1.msra.mxu0 0.0
      %2418 = vmatprep.subr.mxu0 0.0
      %2419 = vmatpush1.msra.mxu0 0.0
      %2420 = vmatprep.subr.mxu0 0.0
      %2421 = vmatpush1.msra.mxu0 0.0
      %2422 = vmatprep.subr.mxu0 0.0
      %2423 = vmatpush1.msra.mxu0 0.0
      %2424 = vmatprep.subr.mxu0 0.0
      %2425 = vmatpush1.msra.mxu0 0.0
      %2426 = vmatprep.subr.mxu0 0.0
      %2427 = vmatpush1.msra.mxu0 0.0
      %2428 = vmatprep.subr.mxu0 0.0
      %2429 = vmatpush1.msra.mxu0 0.0
      %2430 = vmatprep.subr.mxu0 0.0
      %2431 = vmatpush1.msra.mxu0 %v2395
      %2432 = vmatprep.subr.mxu0 0.0
      %2433 = vmatpush1.msra.mxu0 %v2394
      %2434 = vmatprep.subr.mxu0 0.0
      %2435 = vmatpush1.msra.mxu0 %v2393
      %2436 = vmatprep.subr.mxu0 0.0
      %2437 = vmatpush1.msra.mxu0 %v2392
      %2438 = vmatprep.subr.mxu0 0.0
      %2439 = vmatpush2.msra.mxu0 0.0
      %2440 = vmatprep.subr.mxu0 0.0
      %2441 = vmatpush2.msra.mxu0 0.0
      %2442 = vmatprep.subr.mxu0 0.0
      %2443 = vmatpush2.msra.mxu0 0.0
      %2444 = vmatprep.subr.mxu0 0.0
      %2445 = vmatpush2.msra.mxu0 0.0
      %2446 = vmatprep.subr.mxu0 0.0
      %2447 = vmatpush2.msra.mxu0 0.0
      %2448 = vmatprep.subr.mxu0 0.0
      %2449 = vmatpush2.msra.mxu0 0.0
      %2450 = vmatprep.subr.mxu0 0.0
      %2451 = vmatpush2.msra.mxu0 0.0
      %2452 = vmatprep.subr.mxu0 0.0
      %2453 = vmatpush2.msra.mxu0 0.0
      %2454 = vmatprep.subr.mxu0 0.0
      %2455 = vmatpush2.msra.mxu0 0.0
      %2456 = vmatprep.subr.mxu0 0.0
      %2457 = vmatpush2.msra.mxu0 0.0
      %2458 = vmatprep.subr.mxu0 0.0
      %2459 = vmatpush2.msra.mxu0 0.0
      %2460 = vmatprep.subr.mxu0 0.0
      %2461 = vmatpush2.msra.mxu0 0.0
      %2462 = vmatprep.subr.mxu0 0.0
      %2463 = vmatpush2.msra.mxu0 0.0
      %2464 = vmatprep.subr.mxu0 0.0
      %2465 = vmatpush2.msra.mxu0 0.0
      %2466 = vmatprep.subr.mxu0 0.0
      %2467 = vmatpush2.msra.mxu0 0.0
      %2468 = vmatprep.subr.mxu0 0.0
      %2469 = vmatpush2.msra.mxu0 0.0
      %2470 = vmatprep.mubr.f32.mxu0 0.0
      %2471 = vmatmul.mubr.f32.gmra.mxu0 %v2404
      %v2472 = vpop.f32.mrf.mxu0
      %v2473 = vadd.f32 %v2401, %v2472
      %v2474 = vpop.f32.mrf.mxu0
      %2475 = vdwg.mxu0
      %v2476 = vsub.f32 0.0, %v2473
      %v2477 = vmul.f32 %v2476, 1.442695
      %v2478 = vpow.pop %v2477
      %v2479 = vadd.f32 %v2478, 1.0
      %v2480 = vrcp.pop %v2479
      %v2481 = vmul.f32 %v2473, %v2480
      %v2482 = vld [vmem:[%s55] sm:$0xff]
      %v2483 = vld [vmem:[%s55 + $0x8] sm:$0xff]
      %v2484 = vld [vmem:[%s55 + $0x10] sm:$0xff]
      %v2485 = vld [vmem:[%s55 + $0x18] sm:$0xff]
      %v2486 = vld [vmem:[%s55 + $0x20] sm:$0xff]
      %v2487 = vld [vmem:[%s55 + $0x28] sm:$0xff]
      %v2488 = vld [vmem:[%s55 + $0x30] sm:$0xff]
      %v2489 = vld [vmem:[%s55 + $0x38] sm:$0xff]
      %v2490 = vld [vmem:[%s55 + $0x40] sm:$0xff]
      %v2491 = vld [vmem:[%s55 + $0x48] sm:$0xff]
      %v2492 = vld [vmem:[%s55 + $0x50] sm:$0xff]
      %v2493 = vld [vmem:[%s55 + $0x58] sm:$0xff]
      %v2494 = vld [vmem:[%s55 + $0x60] sm:$0xff]
      %v2495 = vld [vmem:[%s55 + $0x68] sm:$0xff]
      %v2496 = vld [vmem:[%s55 + $0x70] sm:$0xff]
      %v2497 = vld [vmem:[%s55 + $0x78] sm:$0xff]
      %v2498 = vld [vmem:[%s57] sm:$0x1]
      %v2500 = vlaneseq
      %v2501 = vshrl.u32 %v2500, 7
      %v2502 = vsub.s32 0, %v2501
      %v2503 = vrot.slane %v2498, %v2502
      %2505 = vmatprep.subr.mxu0 0.0
      %2506 = vmatpush1.msra.mxu0 %v2497
      %2507 = vmatprep.subr.mxu0 0.0
      %2508 = vmatpush1.msra.mxu0 %v2496
      %2509 = vmatprep.subr.mxu0 0.0
      %2510 = vmatpush1.msra.mxu0 %v2495
      %2511 = vmatprep.subr.mxu0 0.0
      %2512 = vmatpush1.msra.mxu0 %v2494
      %2513 = vmatprep.subr.mxu0 0.0
      %2514 = vmatpush1.msra.mxu0 %v2493
      %2515 = vmatprep.subr.mxu0 0.0
      %2516 = vmatpush1.msra.mxu0 %v2492
      %2517 = vmatprep.subr.mxu0 0.0
      %2518 = vmatpush1.msra.mxu0 %v2491
      %2519 = vmatprep.subr.mxu0 0.0
      %2520 = vmatpush1.msra.mxu0 %v2490
      %2521 = vmatprep.subr.mxu0 0.0
      %2522 = vmatpush1.msra.mxu0 %v2489
      %2523 = vmatprep.subr.mxu0 0.0
      %2524 = vmatpush1.msra.mxu0 %v2488
      %2525 = vmatprep.subr.mxu0 0.0
      %2526 = vmatpush1.msra.mxu0 %v2487
      %2527 = vmatprep.subr.mxu0 0.0
      %2528 = vmatpush1.msra.mxu0 %v2486
      %2529 = vmatprep.subr.mxu0 0.0
      %2530 = vmatpush1.msra.mxu0 %v2485
      %2531 = vmatprep.subr.mxu0 0.0
      %2532 = vmatpush1.msra.mxu0 %v2484
      %2533 = vmatprep.subr.mxu0 0.0
      %2534 = vmatpush1.msra.mxu0 %v2483
      %2535 = vmatprep.subr.mxu0 0.0
      %2536 = vmatpush1.msra.mxu0 %v2482
      %2537 = vmatprep.subr.mxu0 0.0
      %2538 = vmatpush2.msra.mxu0 0.0
      %2539 = vmatprep.subr.mxu0 0.0
      %2540 = vmatpush2.msra.mxu0 0.0
      %2541 = vmatprep.subr.mxu0 0.0
      %2542 = vmatpush2.msra.mxu0 0.0
      %2543 = vmatprep.subr.mxu0 0.0
      %2544 = vmatpush2.msra.mxu0 0.0
      %2545 = vmatprep.subr.mxu0 0.0
      %2546 = vmatpush2.msra.mxu0 0.0
      %2547 = vmatprep.subr.mxu0 0.0
      %2548 = vmatpush2.msra.mxu0 0.0
      %2549 = vmatprep.subr.mxu0 0.0
      %2550 = vmatpush2.msra.mxu0 0.0
      %2551 = vmatprep.subr.mxu0 0.0
      %2552 = vmatpush2.msra.mxu0 0.0
      %2553 = vmatprep.subr.mxu0 0.0
      %2554 = vmatpush2.msra.mxu0 0.0
      %2555 = vmatprep.subr.mxu0 0.0
      %2556 = vmatpush2.msra.mxu0 0.0
      %2557 = vmatprep.subr.mxu0 0.0
      %2558 = vmatpush2.msra.mxu0 0.0
      %2559 = vmatprep.subr.mxu0 0.0
      %2560 = vmatpush2.msra.mxu0 0.0
      %2561 = vmatprep.subr.mxu0 0.0
      %2562 = vmatpush2.msra.mxu0 0.0
      %2563 = vmatprep.subr.mxu0 0.0
      %2564 = vmatpush2.msra.mxu0 0.0
      %2565 = vmatprep.subr.mxu0 0.0
      %2566 = vmatpush2.msra.mxu0 0.0
      %2567 = vmatprep.subr.mxu0 0.0
      %2568 = vmatpush2.msra.mxu0 0.0
      %2569 = vmatprep.mubr.f32.mxu0 0.0
      %2570 = vmatmul.mubr.f32.gmra.mxu0 %v2481
      %v2571 = vpop.f32.mrf.mxu0
      %v2572 = vadd.f32 %v2503, %v2571
      %v2573 = vpop.f32.mrf.mxu0
      %2574 = vdwg.mxu0
      %v2575 = vmul.f32 %v2572, 0.5
      %v2576 = vadd.f32 %v2362, %v2575
      %v2577 = vld [vmem:[%s59] sm:$0x1]
      %v2578 = vld [vmem:[%s61] sm:$0x1]
      %v2579 = vsel %vm957, %v2576, 0.0
      %2580 = vadd.xlane.f32.xlu0 %v2579
      %v2581 = vpop.xlane.xlu0 %2580
      %v2582 = vmul.f32 %v2581, %v961
      %v2583 = vsub.f32 %v2576, %v2582
      %v2584 = vmul.f32 %v2583, %v2583
      %v2585 = vsel %vm957, %v2584, 0.0
      %2586 = vadd.xlane.f32.xlu0 %v2585
      %v2587 = vpop.xlane.xlu0 %2586
      %v2588 = vmul.f32 %v2587, %v961
      %v2589 = vadd.f32 %v2588, 1e-05
      %v2590 = vrsqrt.pop %v2589
      %v2591 = vmul.f32 %v2583, %v2590
      %v2593 = vlaneseq
      %v2594 = vshrl.u32 %v2593, 7
      %v2595 = vsub.s32 0, %v2594
      %v2596 = vrot.slane %v2577, %v2595
      %v2598 = vmul.f32 %v2591, %v2596
      %v2600 = vlaneseq
      %v2601 = vshrl.u32 %v2600, 7
      %v2602 = vsub.s32 0, %v2601
      %v2603 = vrot.slane %v2578, %v2602
      %v2605 = vadd.f32 %v2598, %v2603
      %2606 = vst.msk [vmem:[%s953] sm:$0xff] %vm957, %v2605
      %p2607 = scmp.lt.s32.totalorder %s74, 1
      %s2608 = scalar_select %p2607, %s74, 1
      %s2609 = smul.addr %s2608, 8
      %s2610 = scalar_lea.vmem %s63, %s2609
      // Predicated region
      $region145: #{conformer_forward.5} parent=143 // pred_check
        %p2611 = pneg %p748
      $region146: #{conformer_forward.5} parent=143 // pred_check_branch
        %2613 = sbr.rel (%p2611) target = $region148
      $region147: #{conformer_forward.5} parent=143 // pred_region
        _
      $region148: #{conformer_forward.5} parent=143 // pred_fallthru
        _
    $region144: #{conformer_forward.5} parent=5 // pred_fallthru
      _
    %p2614 = scmp.le.s32.totalorder 2, %s69
    // Predicated region
    $region149: #{conformer_forward.5} parent=5 // pred_check
      %p2615 = pneg %p2614
    $region150: #{conformer_forward.5} parent=5 // pred_check_branch
      %2617 = sbr.rel (%p2615) target = $region152
    $region151: #{conformer_forward.5} parent=5 // pred_region
      %s2618 = ssub.s32 %s69, 2
      // Predicated region
      $region153: #{conformer_forward.5} parent=151 // pred_check
        %p2619 = pneg %p754
      $region154: #{conformer_forward.5} parent=151 // pred_check_branch
        %2621 = sbr.rel (%p2619) target = $region156
      $region155: #{conformer_forward.5} parent=151 // pred_region
        %p2622 = scmp.lt.s32.totalorder %s75, 1
        %s2623 = scalar_select %p2622, %s75, 1
        %s2624 = smul.addr %s2623, 8
        %s2625 = scalar_lea.vmem %s63, %s2624
      $region156: #{conformer_forward.5} parent=151 // pred_fallthru
        _
    $region152: #{conformer_forward.5} parent=5 // pred_fallthru
      _
  $region6: #{conformer_forward.5} parent=0 // loop_footer
    %s73 = sadd.s32 1, %s69
  $region7: #{conformer_forward.5} parent=0 // loop_footer_branch
    %68 = sbr.rel target = $region3
  $region8: #{conformer_forward.5} parent=0 // loop_exit
    _

// kernel: conformer_forward.6
$region0: #{conformer_forward.6}
  #allocation0 [shape = 'u32[]', space=smem, size = 0x4, offset = 0x4, fixed_abs, tag = 'smem constant byte address 0x4 - core index']
  #allocation1 [shape = 'u32[144,128]{1,0:T(1,128)}', space=vmem, size = 0x12000, scoped, tag = 'internal scratch']
  %s0 = inlined_call_operand.smem [shape: u32[32], index: -1, kind: input, shape index: {}]
  %s1 = sld [smem:[%s0]]
  %s2 = scalar_lea.smem %s0, 1
  %s3 = sld [smem:[%s2]]
  %s4 = scalar_lea.smem %s0, 2
  %s5 = sld [smem:[%s4]]
  %s6 = scalar_lea.smem %s0, 3
  %s7 = sld [smem:[%s6]]
  %s8 = scalar_lea.smem %s0, 4
  %s9 = sld [smem:[%s8]]
  %s10 = scalar_lea.smem %s0, 5
  %s11 = sld [smem:[%s10]]
  %s12 = scalar_lea.smem %s0, 6
  %s13 = sld [smem:[%s12]]
  %s14 = scalar_lea.smem %s0, 7
  %s15 = sld [smem:[%s14]]
  %s16 = scalar_lea.smem %s0, 8
  %s17 = sld [smem:[%s16]]
  %s18 = scalar_lea.smem %s0, 9
  %s19 = sld [smem:[%s18]]
  %s20 = scalar_lea.smem %s0, 10
  %s21 = sld [smem:[%s20]]
  %s22 = scalar_lea.smem %s0, 11
  %s23 = sld [smem:[%s22]]
  %s24 = scalar_lea.smem %s0, 12
  %s25 = sld [smem:[%s24]]
  %s26 = scalar_lea.smem %s0, 13
  %s27 = sld [smem:[%s26]]
  %s28 = scalar_lea.smem %s0, 14
  %s29 = sld [smem:[%s28]]
  %s30 = scalar_lea.smem %s0, 15
  %s31 = sld [smem:[%s30]]
  %s32 = scalar_lea.smem %s0, 16
  %s33 = sld [smem:[%s32]]
  %s34 = scalar_lea.smem %s0, 17
  %s35 = sld [smem:[%s34]]
  %s36 = scalar_lea.smem %s0, 18
  %s37 = sld [smem:[%s36]]
  %s38 = scalar_lea.smem %s0, 19
  %s39 = sld [smem:[%s38]]
  %s40 = scalar_lea.smem %s0, 20
  %s41 = sld [smem:[%s40]]
  %s42 = scalar_lea.smem %s0, 21
  %s43 = sld [smem:[%s42]]
  %s44 = scalar_lea.smem %s0, 22
  %s45 = sld [smem:[%s44]]
  %s46 = scalar_lea.smem %s0, 23
  %s47 = sld [smem:[%s46]]
  %s48 = scalar_lea.smem %s0, 24
  %s49 = sld [smem:[%s48]]
  %s50 = scalar_lea.smem %s0, 25
  %s51 = sld [smem:[%s50]]
  %s52 = scalar_lea.smem %s0, 26
  %s53 = sld [smem:[%s52]]
  %s54 = scalar_lea.smem %s0, 27
  %s55 = sld [smem:[%s54]]
  %s56 = scalar_lea.smem %s0, 28
  %s57 = sld [smem:[%s56]]
  %s58 = scalar_lea.smem %s0, 29
  %s59 = sld [smem:[%s58]]
  %s60 = scalar_lea.smem %s0, 30
  %s61 = sld [smem:[%s60]]
  %s62 = scalar_lea.smem %s0, 31
  %s63 = sld [smem:[%s62]]
  %s64 = sld [smem:[#allocation0]]
  $region233: #{conformer_forward.6} parent=0
    _
  %s66 = ssub.s32 1, %s64
  %s67 = scalar_select 0, %s66, %s64
  $region1: #{conformer_forward.6} parent=0
    #allocation2 [shape = 'u8[512]{0}', space=vmem, size = 0x400, scoped, tag = 'input window, operand 4, single buffered']
    #allocation3 [shape = 's32[2]{0}', space=sflag, size = 0x8, scoped, tag = 'scoped memory for conformer_forward.6']
    #allocation4 [shape = 'u8[512]{0}', space=vmem, size = 0x400, scoped, tag = 'input window, operand 6, single buffered']
    #allocation5 [shape = 's32[1]{0}', space=sflag, size = 0x4, scoped, tag = 'scoped memory for conformer_forward.6']
    #allocation6 [shape = 'u8[512]{0}', space=vmem, size = 0x400, scoped, tag = 'input window, operand 7, single buffered']
    #allocation7 [shape = 'u8[512]{0}', space=vmem, size = 0x400, scoped, tag = 'input window, operand 8, single buffered']
    #allocation8 [shape = 's32[1]{0}', space=sflag, size = 0x4, scoped, tag = 'scoped memory for conformer_forward.6']
    #allocation9 [shape = 'u8[512]{0}', space=vmem, size = 0x400, scoped, tag = 'input window, operand 10, single buffered']
    #allocation10 [shape = 'u8[512]{0}', space=vmem, size = 0x400, scoped, tag = 'input window, operand 12, single buffered']
    #allocation11 [shape = 's32[1]{0}', space=sflag, size = 0x4, scoped, tag = 'scoped memory for conformer_forward.6']
    #allocation12 [shape = 'u8[512]{0}', space=vmem, size = 0x400, scoped, tag = 'input window, operand 13, single buffered']
    #allocation13 [shape = 'u8[512]{0}', space=vmem, size = 0x400, scoped, tag = 'input window, operand 14, single buffered']
    #allocation14 [shape = 's32[1]{0}', space=sflag, size = 0x4, scoped, tag = 'scoped memory for conformer_forward.6']
    #allocation15 [shape = 'u8[512]{0}', space=vmem, size = 0x400, scoped, tag = 'input window, operand 16, single buffered']
    #allocation16 [shape = 'u8[512]{0}', space=vmem, size = 0x400, scoped, tag = 'input window, operand 18, single buffered']
    #allocation17 [shape = 's32[1]{0}', space=sflag, size = 0x4, scoped, tag = 'scoped memory for conformer_forward.6']
    #allocation18 [shape = 'u8[512]{0}', space=vmem, size = 0x400, scoped, tag = 'input window, operand 19, single buffered']
    #allocation19 [shape = 'u8[512]{0}', space=vmem, size = 0x400, scoped, tag = 'input window, operand 20, single buffered']
    #allocation20 [shape = 's32[1]{0}', space=sflag, size = 0x4, scoped, tag = 'scoped memory for conformer_forward.6']
    #allocation21 [shape = 'u8[512]{0}', space=vmem, size = 0x400, scoped, tag = 'input window, operand 22, single buffered']
    #allocation22 [shape = 'u8[512]{0}', space=vmem, size = 0x400, scoped, tag = 'input window, operand 23, single buffered']
    #allocation23 [shape = 's32[1]{0}', space=sflag, size = 0x4, scoped, tag = 'scoped memory for conformer_forward.6']
    #allocation24 [shape = 'u8[512]{0}', space=vmem, size = 0x400, scoped, tag = 'input window, operand 24, single buffered']
    #allocation25 [shape = 'u8[512]{0}', space=vmem, size = 0x400, scoped, tag = 'input window, operand 26, single buffered']
    #allocation26 [shape = 's32[1]{0}', space=sflag, size = 0x4, scoped, tag = 'scoped memory for conformer_forward.6']
    #allocation27 [shape = 'u8[512]{0}', space=vmem, size = 0x400, scoped, tag = 'input window, operand 28, single buffered']
    #allocation28 [shape = 'u8[512]{0}', space=vmem, size = 0x400, scoped, tag = 'input window, operand 29, single buffered']
    #allocation29 [shape = 's32[1]{0}', space=sflag, size = 0x4, scoped, tag = 'scoped memory for conformer_forward.6']
    #allocation30 [shape = 'u8[512]{0}', space=vmem, size = 0x400, scoped, tag = 'input window, operand 30, single buffered']
    %68 = vsyncpa [#allocation3], 0
    %69 = vsyncpa [#allocation5], 0
    %70 = vsyncpa [#allocation8], 0
    %71 = vsyncpa [#allocation11], 0
    %72 = vsyncpa [#allocation14], 0
    %73 = vsyncpa [#allocation17], 0
    %74 = vsyncpa [#allocation20], 0
    %75 = vsyncpa [#allocation23], 0
    %76 = vsyncpa [#allocation26], 0
    %77 = vsyncpa [#allocation29], 0
    loop: start=0, step=1, limit=4
    $region2: #{conformer_forward.6} parent=1 // loop_pre_header
      _
    $region3: #{conformer_forward.6} parent=1 // loop_header
      %s79 = sphi 0, %s83
      %p80 = scmp.ge.s32.totalorder %s79, 4
      %s89 = sphi 0, %s91
      %s92 = sphi 0, %s89
      %s93 = sphi 0, %s92
      %s109 = sphi 0, %s93
      %s113 = sphi 0, %s113
      %s115 = sphi 0, %s113
      %s116 = sphi 0, %s115
      %s130 = sphi 0, %s116
      %s134 = sphi 0, %s134
      %s136 = sphi 0, %s134
      %s137 = sphi 0, %s136
      %s151 = sphi 0, %s137
      %s155 = sphi 0, %s155
      %s157 = sphi 0, %s155
      %s158 = sphi 0, %s157
      %s172 = sphi 0, %s158
      %s176 = sphi 0, %s176
      %s178 = sphi 0, %s176
      %s179 = sphi 0, %s178
      %s193 = sphi 0, %s179
      %s197 = sphi 0, %s197
      %s199 = sphi 0, %s197
      %s200 = sphi 0, %s199
      %s214 = sphi 0, %s200
      %s218 = sphi 0, %s218
      %s220 = sphi 0, %s218
      %s221 = sphi 0, %s220
      %s235 = sphi 0, %s221
      %s239 = sphi 0, %s239
      %s241 = sphi 0, %s239
      %s242 = sphi 0, %s241
      %s256 = sphi 0, %s242
      %s260 = sphi 0, %s260
      %s262 = sphi 0, %s260
      %s263 = sphi 0, %s262
      %s277 = sphi 0, %s263
      %s281 = sphi 0, %s281
      %s283 = sphi 0, %s281
      %s284 = sphi 0, %s283
      %s298 = sphi 0, %s284
      %s302 = sphi 0, %s302
      %s304 = sphi 0, %s302
      %s305 = sphi 0, %s304
      %s319 = sphi 0, %s305
      %s323 = sphi 0, %s323
      %s325 = sphi 0, %s323
      %s326 = sphi 0, %s325
      %s340 = sphi 0, %s326
      %s344 = sphi 0, %s344
      %s346 = sphi 0, %s344
      %s347 = sphi 0, %s346
      %s361 = sphi 0, %s347
      %s365 = sphi 0, %s365
      %s367 = sphi 0, %s365
      %s368 = sphi 0, %s367
      %s382 = sphi 0, %s368
      %s386 = sphi 0, %s386
      %s388 = sphi 0, %s386
      %s389 = sphi 0, %s388
      %s403 = sphi 0, %s389
      %s407 = sphi 0, %s407
      %s409 = sphi 0, %s407
      %s410 = sphi 0, %s409
      %s424 = sphi 0, %s410
      %s428 = sphi 0, %s428
      %s430 = sphi 0, %s428
      %s431 = sphi 0, %s430
      %s445 = sphi 0, %s431
      %s449 = sphi 0, %s449
      %s451 = sphi 0, %s449
      %s452 = sphi 0, %s451
      %s466 = sphi 0, %s452
      %s470 = sphi 0, %s470
      %s472 = sphi 0, %s470
      %s473 = sphi 0, %s472
      %s487 = sphi 0, %s473
      %s491 = sphi 0, %s491
      %s493 = sphi 0, %s491
      %s494 = sphi 0, %s493
      %s508 = sphi 0, %s494
      %s512 = sphi 0, %s512
      %s514 = sphi 0, %s512
      %s515 = sphi 0, %s514
      %s529 = sphi 0, %s515
      %s533 = sphi 0, %s533
      %s535 = sphi 0, %s533
      %s536 = sphi 0, %s535
      %s550 = sphi 0, %s536
      %s554 = sphi 0, %s554
      %s556 = sphi 0, %s554
      %s557 = sphi 0, %s556
      %s571 = sphi 0, %s557
      %s575 = sphi 0, %s575
      %s577 = sphi 0, %s575
      %s578 = sphi 0, %s577
      %s592 = sphi 0, %s578
      %s596 = sphi 0, %s596
      %s598 = sphi 0, %s596
      %s599 = sphi 0, %s598
      %s613 = sphi 0, %s599
      %s617 = sphi 0, %s617
      %s619 = sphi 0, %s617
      %s620 = sphi 0, %s619
      %s634 = sphi 0, %s620
      %s638 = sphi 0, %s638
      %s640 = sphi 0, %s638
      %s641 = sphi 0, %s640
      %s655 = sphi 0, %s641
      %s659 = sphi 0, %s659
      %s661 = sphi 0, %s659
      %s662 = sphi 0, %s661
      %s676 = sphi 0, %s662
      %s680 = sphi 0, %s680
      %s682 = sphi 0, %s680
      %s683 = sphi 0, %s682
      %s697 = sphi 0, %s683
      %s701 = sphi 0, %s701
      %s703 = sphi 0, %s701
      %s704 = sphi 0, %s703
      %s718 = sphi 0, %s704
      %s722 = sphi 0, %s722
      %s724 = sphi 0, %s722
      %s725 = sphi 0, %s724
      %s739 = sphi 0, %s725
      %s745 = sphi 0, %s747
      %s748 = sphi 0, %s745
      %s749 = sphi 0, %s748
      %s765 = sphi 0, %s749
    $region4: #{conformer_forward.6} parent=1 // loop_header_branch
      %82 = sbr.rel (%p80) target = $region8
    $region5: #{conformer_forward.6} parent=1 // loop_body
      %s84 = ssub.s32 %s79, 1
      %s85 = ssub.s32 %s79, 2
      %s86 = sadd.s32 %s79, 1
      %s87 = ssub.s32 %s79, %s86
      %p88 = scmp.eq.s32.totalorder %s87, 0
      %s90 = sadd.s32 %s89, 1
      %s91 = scalar_select %p88, %s89, %s90
      %p94 = pneg %p88
      %p95 = scmp.eq.s32.totalorder %s79, 1
      %p96 = por %p94, %p95
      %p97 = scmp.ne.s32.totalorder %s89, %s92
      %p98 = scmp.eq.s32.totalorder %s79, 0
      %p99 = por %p97, %p98
      %p100 = scmp.ne.s32.totalorder %s89, %s92
      %p101 = scmp.eq.s32.totalorder %s84, 1
      %p102 = por %p100, %p101
      %p103 = scmp.ne.s32.totalorder %s92, %s93
      %p104 = scmp.eq.s32.totalorder %s84, 0
      %p105 = por %p103, %p104
      %p106 = scmp.ne.s32.totalorder %s92, %s93
      %p107 = scmp.eq.s32.totalorder %s85, 1
      %p108 = por %p106, %p107
      %p110 = scmp.ne.s32.totalorder %s93, %s109
      %p111 = scmp.eq.s32.totalorder %s85, 0
      %p112 = por %p110, %p111
      %s114 = sadd.s32 %s113, 1
      %p117 = scmp.eq.s32.totalorder %s79, 1
      %p118 = scmp.ne.s32.totalorder %s113, %s115
      %p119 = scmp.eq.s32.totalorder %s79, 0
      %p120 = por %p118, %p119
      %p121 = scmp.ne.s32.totalorder %s113, %s115
      %p122 = scmp.eq.s32.totalorder %s84, 1
      %p123 = por %p121, %p122
      %p124 = scmp.ne.s32.totalorder %s115, %s116
      %p125 = scmp.eq.s32.totalorder %s84, 0
      %p126 = por %p124, %p125
      %p127 = scmp.ne.s32.totalorder %s115, %s116
      %p128 = scmp.eq.s32.totalorder %s85, 1
      %p129 = por %p127, %p128
      %p131 = scmp.ne.s32.totalorder %s116, %s130
      %p132 = scmp.eq.s32.totalorder %s85, 0
      %p133 = por %p131, %p132
      %s135 = sadd.s32 %s134, 1
      %p138 = scmp.eq.s32.totalorder %s79, 1
      %p139 = scmp.ne.s32.totalorder %s134, %s136
      %p140 = scmp.eq.s32.totalorder %s79, 0
      %p141 = por %p139, %p140
      %p142 = scmp.ne.s32.totalorder %s134, %s136
      %p143 = scmp.eq.s32.totalorder %s84, 1
      %p144 = por %p142, %p143
      %p145 = scmp.ne.s32.totalorder %s136, %s137
      %p146 = scmp.eq.s32.totalorder %s84, 0
      %p147 = por %p145, %p146
      %p148 = scmp.ne.s32.totalorder %s136, %s137
      %p149 = scmp.eq.s32.totalorder %s85, 1
      %p150 = por %p148, %p149
      %p152 = scmp.ne.s32.totalorder %s137, %s151
      %p153 = scmp.eq.s32.totalorder %s85, 0
      %p154 = por %p152, %p153
      %s156 = sadd.s32 %s155, 1
      %p159 = scmp.eq.s32.totalorder %s79, 1
      %p160 = scmp.ne.s32.totalorder %s155, %s157
      %p161 = scmp.eq.s32.totalorder %s79, 0
      %p162 = por %p160, %p161
      %p163 = scmp.ne.s32.totalorder %s155, %s157
      %p164 = scmp.eq.s32.totalorder %s84, 1
      %p165 = por %p163, %p164
      %p166 = scmp.ne.s32.totalorder %s157, %s158
      %p167 = scmp.eq.s32.totalorder %s84, 0
      %p168 = por %p166, %p167
      %p169 = scmp.ne.s32.totalorder %s157, %s158
      %p170 = scmp.eq.s32.totalorder %s85, 1
      %p171 = por %p169, %p170
      %p173 = scmp.ne.s32.totalorder %s158, %s172
      %p174 = scmp.eq.s32.totalorder %s85, 0
      %p175 = por %p173, %p174
      %s177 = sadd.s32 %s176, 1
      %p180 = scmp.eq.s32.totalorder %s79, 1
      %p181 = scmp.ne.s32.totalorder %s176, %s178
      %p182 = scmp.eq.s32.totalorder %s79, 0
      %p183 = por %p181, %p182
      %p184 = scmp.ne.s32.totalorder %s176, %s178
      %p185 = scmp.eq.s32.totalorder %s84, 1
      %p186 = por %p184, %p185
      %p187 = scmp.ne.s32.totalorder %s178, %s179
      %p188 = scmp.eq.s32.totalorder %s84, 0
      %p189 = por %p187, %p188
      %p190 = scmp.ne.s32.totalorder %s178, %s179
      %p191 = scmp.eq.s32.totalorder %s85, 1
      %p192 = por %p190, %p191
      %p194 = scmp.ne.s32.totalorder %s179, %s193
      %p195 = scmp.eq.s32.totalorder %s85, 0
      %p196 = por %p194, %p195
      %s198 = sadd.s32 %s197, 1
      %p201 = scmp.eq.s32.totalorder %s79, 1
      %p202 = scmp.ne.s32.totalorder %s197, %s199
      %p203 = scmp.eq.s32.totalorder %s79, 0
      %p204 = por %p202, %p203
      %p205 = scmp.ne.s32.totalorder %s197, %s199
      %p206 = scmp.eq.s32.totalorder %s84, 1
      %p207 = por %p205, %p206
      %p208 = scmp.ne.s32.totalorder %s199, %s200
      %p209 = scmp.eq.s32.totalorder %s84, 0
      %p210 = por %p208, %p209
      %p211 = scmp.ne.s32.totalorder %s199, %s200
      %p212 = scmp.eq.s32.totalorder %s85, 1
      %p213 = por %p211, %p212
      %p215 = scmp.ne.s32.totalorder %s200, %s214
      %p216 = scmp.eq.s32.totalorder %s85, 0
      %p217 = por %p215, %p216
      %s219 = sadd.s32 %s218, 1
      %p222 = scmp.eq.s32.totalorder %s79, 1
      %p223 = scmp.ne.s32.totalorder %s218, %s220
      %p224 = scmp.eq.s32.totalorder %s79, 0
      %p225 = por %p223, %p224
      %p226 = scmp.ne.s32.totalorder %s218, %s220
      %p227 = scmp.eq.s32.totalorder %s84, 1
      %p228 = por %p226, %p227
      %p229 = scmp.ne.s32.totalorder %s220, %s221
      %p230 = scmp.eq.s32.totalorder %s84, 0
      %p231 = por %p229, %p230
      %p232 = scmp.ne.s32.totalorder %s220, %s221
      %p233 = scmp.eq.s32.totalorder %s85, 1
      %p234 = por %p232, %p233
      %p236 = scmp.ne.s32.totalorder %s221, %s235
      %p237 = scmp.eq.s32.totalorder %s85, 0
      %p238 = por %p236, %p237
      %s240 = sadd.s32 %s239, 1
      %p243 = scmp.eq.s32.totalorder %s79, 1
      %p244 = scmp.ne.s32.totalorder %s239, %s241
      %p245 = scmp.eq.s32.totalorder %s79, 0
      %p246 = por %p244, %p245
      %p247 = scmp.ne.s32.totalorder %s239, %s241
      %p248 = scmp.eq.s32.totalorder %s84, 1
      %p249 = por %p247, %p248
      %p250 = scmp.ne.s32.totalorder %s241, %s242
      %p251 = scmp.eq.s32.totalorder %s84, 0
      %p252 = por %p250, %p251
      %p253 = scmp.ne.s32.totalorder %s241, %s242
      %p254 = scmp.eq.s32.totalorder %s85, 1
      %p255 = por %p253, %p254
      %p257 = scmp.ne.s32.totalorder %s242, %s256
      %p258 = scmp.eq.s32.totalorder %s85, 0
      %p259 = por %p257, %p258
      %s261 = sadd.s32 %s260, 1
      %p264 = scmp.eq.s32.totalorder %s79, 1
      %p265 = scmp.ne.s32.totalorder %s260, %s262
      %p266 = scmp.eq.s32.totalorder %s79, 0
      %p267 = por %p265, %p266
      %p268 = scmp.ne.s32.totalorder %s260, %s262
      %p269 = scmp.eq.s32.totalorder %s84, 1
      %p270 = por %p268, %p269
      %p271 = scmp.ne.s32.totalorder %s262, %s263
      %p272 = scmp.eq.s32.totalorder %s84, 0
      %p273 = por %p271, %p272
      %p274 = scmp.ne.s32.totalorder %s262, %s263
      %p275 = scmp.eq.s32.totalorder %s85, 1
      %p276 = por %p274, %p275
      %p278 = scmp.ne.s32.totalorder %s263, %s277
      %p279 = scmp.eq.s32.totalorder %s85, 0
      %p280 = por %p278, %p279
      %s282 = sadd.s32 %s281, 1
      %p285 = scmp.eq.s32.totalorder %s79, 1
      %p286 = scmp.ne.s32.totalorder %s281, %s283
      %p287 = scmp.eq.s32.totalorder %s79, 0
      %p288 = por %p286, %p287
      %p289 = scmp.ne.s32.totalorder %s281, %s283
      %p290 = scmp.eq.s32.totalorder %s84, 1
      %p291 = por %p289, %p290
      %p292 = scmp.ne.s32.totalorder %s283, %s284
      %p293 = scmp.eq.s32.totalorder %s84, 0
      %p294 = por %p292, %p293
      %p295 = scmp.ne.s32.totalorder %s283, %s284
      %p296 = scmp.eq.s32.totalorder %s85, 1
      %p297 = por %p295, %p296
      %p299 = scmp.ne.s32.totalorder %s284, %s298
      %p300 = scmp.eq.s32.totalorder %s85, 0
      %p301 = por %p299, %p300
      %s303 = sadd.s32 %s302, 1
      %p306 = scmp.eq.s32.totalorder %s79, 1
      %p307 = scmp.ne.s32.totalorder %s302, %s304
      %p308 = scmp.eq.s32.totalorder %s79, 0
      %p309 = por %p307, %p308
      %p310 = scmp.ne.s32.totalorder %s302, %s304
      %p311 = scmp.eq.s32.totalorder %s84, 1
      %p312 = por %p310, %p311
      %p313 = scmp.ne.s32.totalorder %s304, %s305
      %p314 = scmp.eq.s32.totalorder %s84, 0
      %p315 = por %p313, %p314
      %p316 = scmp.ne.s32.totalorder %s304, %s305
      %p317 = scmp.eq.s32.totalorder %s85, 1
      %p318 = por %p316, %p317
      %p320 = scmp.ne.s32.totalorder %s305, %s319
      %p321 = scmp.eq.s32.totalorder %s85, 0
      %p322 = por %p320, %p321
      %s324 = sadd.s32 %s323, 1
      %p327 = scmp.eq.s32.totalorder %s79, 1
      %p328 = scmp.ne.s32.totalorder %s323, %s325
      %p329 = scmp.eq.s32.totalorder %s79, 0
      %p330 = por %p328, %p329
      %p331 = scmp.ne.s32.totalorder %s323, %s325
      %p332 = scmp.eq.s32.totalorder %s84, 1
      %p333 = por %p331, %p332
      %p334 = scmp.ne.s32.totalorder %s325, %s326
      %p335 = scmp.eq.s32.totalorder %s84, 0
      %p336 = por %p334, %p335
      %p337 = scmp.ne.s32.totalorder %s325, %s326
      %p338 = scmp.eq.s32.totalorder %s85, 1
      %p339 = por %p337, %p338
      %p341 = scmp.ne.s32.totalorder %s326, %s340
      %p342 = scmp.eq.s32.totalorder %s85, 0
      %p343 = por %p341, %p342
      %s345 = sadd.s32 %s344, 1
      %p348 = scmp.eq.s32.totalorder %s79, 1
      %p349 = scmp.ne.s32.totalorder %s344, %s346
      %p350 = scmp.eq.s32.totalorder %s79, 0
      %p351 = por %p349, %p350
      %p352 = scmp.ne.s32.totalorder %s344, %s346
      %p353 = scmp.eq.s32.totalorder %s84, 1
      %p354 = por %p352, %p353
      %p355 = scmp.ne.s32.totalorder %s346, %s347
      %p356 = scmp.eq.s32.totalorder %s84, 0
      %p357 = por %p355, %p356
      %p358 = scmp.ne.s32.totalorder %s346, %s347
      %p359 = scmp.eq.s32.totalorder %s85, 1
      %p360 = por %p358, %p359
      %p362 = scmp.ne.s32.totalorder %s347, %s361
      %p363 = scmp.eq.s32.totalorder %s85, 0
      %p364 = por %p362, %p363
      %s366 = sadd.s32 %s365, 1
      %p369 = scmp.eq.s32.totalorder %s79, 1
      %p370 = scmp.ne.s32.totalorder %s365, %s367
      %p371 = scmp.eq.s32.totalorder %s79, 0
      %p372 = por %p370, %p371
      %p373 = scmp.ne.s32.totalorder %s365, %s367
      %p374 = scmp.eq.s32.totalorder %s84, 1
      %p375 = por %p373, %p374
      %p376 = scmp.ne.s32.totalorder %s367, %s368
      %p377 = scmp.eq.s32.totalorder %s84, 0
      %p378 = por %p376, %p377
      %p379 = scmp.ne.s32.totalorder %s367, %s368
      %p380 = scmp.eq.s32.totalorder %s85, 1
      %p381 = por %p379, %p380
      %p383 = scmp.ne.s32.totalorder %s368, %s382
      %p384 = scmp.eq.s32.totalorder %s85, 0
      %p385 = por %p383, %p384
      %s387 = sadd.s32 %s386, 1
      %p390 = scmp.eq.s32.totalorder %s79, 1
      %p391 = scmp.ne.s32.totalorder %s386, %s388
      %p392 = scmp.eq.s32.totalorder %s79, 0
      %p393 = por %p391, %p392
      %p394 = scmp.ne.s32.totalorder %s386, %s388
      %p395 = scmp.eq.s32.totalorder %s84, 1
      %p396 = por %p394, %p395
      %p397 = scmp.ne.s32.totalorder %s388, %s389
      %p398 = scmp.eq.s32.totalorder %s84, 0
      %p399 = por %p397, %p398
      %p400 = scmp.ne.s32.totalorder %s388, %s389
      %p401 = scmp.eq.s32.totalorder %s85, 1
      %p402 = por %p400, %p401
      %p404 = scmp.ne.s32.totalorder %s389, %s403
      %p405 = scmp.eq.s32.totalorder %s85, 0
      %p406 = por %p404, %p405
      %s408 = sadd.s32 %s407, 1
      %p411 = scmp.eq.s32.totalorder %s79, 1
      %p412 = scmp.ne.s32.totalorder %s407, %s409
      %p413 = scmp.eq.s32.totalorder %s79, 0
      %p414 = por %p412, %p413
      %p415 = scmp.ne.s32.totalorder %s407, %s409
      %p416 = scmp.eq.s32.totalorder %s84, 1
      %p417 = por %p415, %p416
      %p418 = scmp.ne.s32.totalorder %s409, %s410
      %p419 = scmp.eq.s32.totalorder %s84, 0
      %p420 = por %p418, %p419
      %p421 = scmp.ne.s32.totalorder %s409, %s410
      %p422 = scmp.eq.s32.totalorder %s85, 1
      %p423 = por %p421, %p422
      %p425 = scmp.ne.s32.totalorder %s410, %s424
      %p426 = scmp.eq.s32.totalorder %s85, 0
      %p427 = por %p425, %p426
      %s429 = sadd.s32 %s428, 1
      %p432 = scmp.eq.s32.totalorder %s79, 1
      %p433 = scmp.ne.s32.totalorder %s428, %s430
      %p434 = scmp.eq.s32.totalorder %s79, 0
      %p435 = por %p433, %p434
      %p436 = scmp.ne.s32.totalorder %s428, %s430
      %p437 = scmp.eq.s32.totalorder %s84, 1
      %p438 = por %p436, %p437
      %p439 = scmp.ne.s32.totalorder %s430, %s431
      %p440 = scmp.eq.s32.totalorder %s84, 0
      %p441 = por %p439, %p440
      %p442 = scmp.ne.s32.totalorder %s430, %s431
      %p443 = scmp.eq.s32.totalorder %s85, 1
      %p444 = por %p442, %p443
      %p446 = scmp.ne.s32.totalorder %s431, %s445
      %p447 = scmp.eq.s32.totalorder %s85, 0
      %p448 = por %p446, %p447
      %s450 = sadd.s32 %s449, 1
      %p453 = scmp.eq.s32.totalorder %s79, 1
      %p454 = scmp.ne.s32.totalorder %s449, %s451
      %p455 = scmp.eq.s32.totalorder %s79, 0
      %p456 = por %p454, %p455
      %p457 = scmp.ne.s32.totalorder %s449, %s451
      %p458 = scmp.eq.s32.totalorder %s84, 1
      %p459 = por %p457, %p458
      %p460 = scmp.ne.s32.totalorder %s451, %s452
      %p461 = scmp.eq.s32.totalorder %s84, 0
      %p462 = por %p460, %p461
      %p463 = scmp.ne.s32.totalorder %s451, %s452
      %p464 = scmp.eq.s32.totalorder %s85, 1
      %p465 = por %p463, %p464
      %p467 = scmp.ne.s32.totalorder %s452, %s466
      %p468 = scmp.eq.s32.totalorder %s85, 0
      %p469 = por %p467, %p468
      %s471 = sadd.s32 %s470, 1
      %p474 = scmp.eq.s32.totalorder %s79, 1
      %p475 = scmp.ne.s32.totalorder %s470, %s472
      %p476 = scmp.eq.s32.totalorder %s79, 0
      %p477 = por %p475, %p476
      %p478 = scmp.ne.s32.totalorder %s470, %s472
      %p479 = scmp.eq.s32.totalorder %s84, 1
      %p480 = por %p478, %p479
      %p481 = scmp.ne.s32.totalorder %s472, %s473
      %p482 = scmp.eq.s32.totalorder %s84, 0
      %p483 = por %p481, %p482
      %p484 = scmp.ne.s32.totalorder %s472, %s473
      %p485 = scmp.eq.s32.totalorder %s85, 1
      %p486 = por %p484, %p485
      %p488 = scmp.ne.s32.totalorder %s473, %s487
      %p489 = scmp.eq.s32.totalorder %s85, 0
      %p490 = por %p488, %p489
      %s492 = sadd.s32 %s491, 1
      %p495 = scmp.eq.s32.totalorder %s79, 1
      %p496 = scmp.ne.s32.totalorder %s491, %s493
      %p497 = scmp.eq.s32.totalorder %s79, 0
      %p498 = por %p496, %p497
      %p499 = scmp.ne.s32.totalorder %s491, %s493
      %p500 = scmp.eq.s32.totalorder %s84, 1
      %p501 = por %p499, %p500
      %p502 = scmp.ne.s32.totalorder %s493, %s494
      %p503 = scmp.eq.s32.totalorder %s84, 0
      %p504 = por %p502, %p503
      %p505 = scmp.ne.s32.totalorder %s493, %s494
      %p506 = scmp.eq.s32.totalorder %s85, 1
      %p507 = por %p505, %p506
      %p509 = scmp.ne.s32.totalorder %s494, %s508
      %p510 = scmp.eq.s32.totalorder %s85, 0
      %p511 = por %p509, %p510
      %s513 = sadd.s32 %s512, 1
      %p516 = scmp.eq.s32.totalorder %s79, 1
      %p517 = scmp.ne.s32.totalorder %s512, %s514
      %p518 = scmp.eq.s32.totalorder %s79, 0
      %p519 = por %p517, %p518
      %p520 = scmp.ne.s32.totalorder %s512, %s514
      %p521 = scmp.eq.s32.totalorder %s84, 1
      %p522 = por %p520, %p521
      %p523 = scmp.ne.s32.totalorder %s514, %s515
      %p524 = scmp.eq.s32.totalorder %s84, 0
      %p525 = por %p523, %p524
      %p526 = scmp.ne.s32.totalorder %s514, %s515
      %p527 = scmp.eq.s32.totalorder %s85, 1
      %p528 = por %p526, %p527
      %p530 = scmp.ne.s32.totalorder %s515, %s529
      %p531 = scmp.eq.s32.totalorder %s85, 0
      %p532 = por %p530, %p531
      %s534 = sadd.s32 %s533, 1
      %p537 = scmp.eq.s32.totalorder %s79, 1
      %p538 = scmp.ne.s32.totalorder %s533, %s535
      %p539 = scmp.eq.s32.totalorder %s79, 0
      %p540 = por %p538, %p539
      %p541 = scmp.ne.s32.totalorder %s533, %s535
      %p542 = scmp.eq.s32.totalorder %s84, 1
      %p543 = por %p541, %p542
      %p544 = scmp.ne.s32.totalorder %s535, %s536
      %p545 = scmp.eq.s32.totalorder %s84, 0
      %p546 = por %p544, %p545
      %p547 = scmp.ne.s32.totalorder %s535, %s536
      %p548 = scmp.eq.s32.totalorder %s85, 1
      %p549 = por %p547, %p548
      %p551 = scmp.ne.s32.totalorder %s536, %s550
      %p552 = scmp.eq.s32.totalorder %s85, 0
      %p553 = por %p551, %p552
      %s555 = sadd.s32 %s554, 1
      %p558 = scmp.eq.s32.totalorder %s79, 1
      %p559 = scmp.ne.s32.totalorder %s554, %s556
      %p560 = scmp.eq.s32.totalorder %s79, 0
      %p561 = por %p559, %p560
      %p562 = scmp.ne.s32.totalorder %s554, %s556
      %p563 = scmp.eq.s32.totalorder %s84, 1
      %p564 = por %p562, %p563
      %p565 = scmp.ne.s32.totalorder %s556, %s557
      %p566 = scmp.eq.s32.totalorder %s84, 0
      %p567 = por %p565, %p566
      %p568 = scmp.ne.s32.totalorder %s556, %s557
      %p569 = scmp.eq.s32.totalorder %s85, 1
      %p570 = por %p568, %p569
      %p572 = scmp.ne.s32.totalorder %s557, %s571
      %p573 = scmp.eq.s32.totalorder %s85, 0
      %p574 = por %p572, %p573
      %s576 = sadd.s32 %s575, 1
      %p579 = scmp.eq.s32.totalorder %s79, 1
      %p580 = scmp.ne.s32.totalorder %s575, %s577
      %p581 = scmp.eq.s32.totalorder %s79, 0
      %p582 = por %p580, %p581
      %p583 = scmp.ne.s32.totalorder %s575, %s577
      %p584 = scmp.eq.s32.totalorder %s84, 1
      %p585 = por %p583, %p584
      %p586 = scmp.ne.s32.totalorder %s577, %s578
      %p587 = scmp.eq.s32.totalorder %s84, 0
      %p588 = por %p586, %p587
      %p589 = scmp.ne.s32.totalorder %s577, %s578
      %p590 = scmp.eq.s32.totalorder %s85, 1
      %p591 = por %p589, %p590
      %p593 = scmp.ne.s32.totalorder %s578, %s592
      %p594 = scmp.eq.s32.totalorder %s85, 0
      %p595 = por %p593, %p594
      %s597 = sadd.s32 %s596, 1
      %p600 = scmp.eq.s32.totalorder %s79, 1
      %p601 = scmp.ne.s32.totalorder %s596, %s598
      %p602 = scmp.eq.s32.totalorder %s79, 0
      %p603 = por %p601, %p602
      %p604 = scmp.ne.s32.totalorder %s596, %s598
      %p605 = scmp.eq.s32.totalorder %s84, 1
      %p606 = por %p604, %p605
      %p607 = scmp.ne.s32.totalorder %s598, %s599
      %p608 = scmp.eq.s32.totalorder %s84, 0
      %p609 = por %p607, %p608
      %p610 = scmp.ne.s32.totalorder %s598, %s599
      %p611 = scmp.eq.s32.totalorder %s85, 1
      %p612 = por %p610, %p611
      %p614 = scmp.ne.s32.totalorder %s599, %s613
      %p615 = scmp.eq.s32.totalorder %s85, 0
      %p616 = por %p614, %p615
      %s618 = sadd.s32 %s617, 1
      %p621 = scmp.eq.s32.totalorder %s79, 1
      %p622 = scmp.ne.s32.totalorder %s617, %s619
      %p623 = scmp.eq.s32.totalorder %s79, 0
      %p624 = por %p622, %p623
      %p625 = scmp.ne.s32.totalorder %s617, %s619
      %p626 = scmp.eq.s32.totalorder %s84, 1
      %p627 = por %p625, %p626
      %p628 = scmp.ne.s32.totalorder %s619, %s620
      %p629 = scmp.eq.s32.totalorder %s84, 0
      %p630 = por %p628, %p629
      %p631 = scmp.ne.s32.totalorder %s619, %s620
      %p632 = scmp.eq.s32.totalorder %s85, 1
      %p633 = por %p631, %p632
      %p635 = scmp.ne.s32.totalorder %s620, %s634
      %p636 = scmp.eq.s32.totalorder %s85, 0
      %p637 = por %p635, %p636
      %s639 = sadd.s32 %s638, 1
      %p642 = scmp.eq.s32.totalorder %s79, 1
      %p643 = scmp.ne.s32.totalorder %s638, %s640
      %p644 = scmp.eq.s32.totalorder %s79, 0
      %p645 = por %p643, %p644
      %p646 = scmp.ne.s32.totalorder %s638, %s640
      %p647 = scmp.eq.s32.totalorder %s84, 1
      %p648 = por %p646, %p647
      %p649 = scmp.ne.s32.totalorder %s640, %s641
      %p650 = scmp.eq.s32.totalorder %s84, 0
      %p651 = por %p649, %p650
      %p652 = scmp.ne.s32.totalorder %s640, %s641
      %p653 = scmp.eq.s32.totalorder %s85, 1
      %p654 = por %p652, %p653
      %p656 = scmp.ne.s32.totalorder %s641, %s655
      %p657 = scmp.eq.s32.totalorder %s85, 0
      %p658 = por %p656, %p657
      %s660 = sadd.s32 %s659, 1
      %p663 = scmp.eq.s32.totalorder %s79, 1
      %p664 = scmp.ne.s32.totalorder %s659, %s661
      %p665 = scmp.eq.s32.totalorder %s79, 0
      %p666 = por %p664, %p665
      %p667 = scmp.ne.s32.totalorder %s659, %s661
      %p668 = scmp.eq.s32.totalorder %s84, 1
      %p669 = por %p667, %p668
      %p670 = scmp.ne.s32.totalorder %s661, %s662
      %p671 = scmp.eq.s32.totalorder %s84, 0
      %p672 = por %p670, %p671
      %p673 = scmp.ne.s32.totalorder %s661, %s662
      %p674 = scmp.eq.s32.totalorder %s85, 1
      %p675 = por %p673, %p674
      %p677 = scmp.ne.s32.totalorder %s662, %s676
      %p678 = scmp.eq.s32.totalorder %s85, 0
      %p679 = por %p677, %p678
      %s681 = sadd.s32 %s680, 1
      %p684 = scmp.eq.s32.totalorder %s79, 1
      %p685 = scmp.ne.s32.totalorder %s680, %s682
      %p686 = scmp.eq.s32.totalorder %s79, 0
      %p687 = por %p685, %p686
      %p688 = scmp.ne.s32.totalorder %s680, %s682
      %p689 = scmp.eq.s32.totalorder %s84, 1
      %p690 = por %p688, %p689
      %p691 = scmp.ne.s32.totalorder %s682, %s683
      %p692 = scmp.eq.s32.totalorder %s84, 0
      %p693 = por %p691, %p692
      %p694 = scmp.ne.s32.totalorder %s682, %s683
      %p695 = scmp.eq.s32.totalorder %s85, 1
      %p696 = por %p694, %p695
      %p698 = scmp.ne.s32.totalorder %s683, %s697
      %p699 = scmp.eq.s32.totalorder %s85, 0
      %p700 = por %p698, %p699
      %s702 = sadd.s32 %s701, 1
      %p705 = scmp.eq.s32.totalorder %s79, 1
      %p706 = scmp.ne.s32.totalorder %s701, %s703
      %p707 = scmp.eq.s32.totalorder %s79, 0
      %p708 = por %p706, %p707
      %p709 = scmp.ne.s32.totalorder %s701, %s703
      %p710 = scmp.eq.s32.totalorder %s84, 1
      %p711 = por %p709, %p710
      %p712 = scmp.ne.s32.totalorder %s703, %s704
      %p713 = scmp.eq.s32.totalorder %s84, 0
      %p714 = por %p712, %p713
      %p715 = scmp.ne.s32.totalorder %s703, %s704
      %p716 = scmp.eq.s32.totalorder %s85, 1
      %p717 = por %p715, %p716
      %p719 = scmp.ne.s32.totalorder %s704, %s718
      %p720 = scmp.eq.s32.totalorder %s85, 0
      %p721 = por %p719, %p720
      %s723 = sadd.s32 %s722, 1
      %p726 = scmp.eq.s32.totalorder %s79, 1
      %p727 = scmp.ne.s32.totalorder %s722, %s724
      %p728 = scmp.eq.s32.totalorder %s79, 0
      %p729 = por %p727, %p728
      %p730 = scmp.ne.s32.totalorder %s722, %s724
      %p731 = scmp.eq.s32.totalorder %s84, 1
      %p732 = por %p730, %p731
      %p733 = scmp.ne.s32.totalorder %s724, %s725
      %p734 = scmp.eq.s32.totalorder %s84, 0
      %p735 = por %p733, %p734
      %p736 = scmp.ne.s32.totalorder %s724, %s725
      %p737 = scmp.eq.s32.totalorder %s85, 1
      %p738 = por %p736, %p737
      %p740 = scmp.ne.s32.totalorder %s725, %s739
      %p741 = scmp.eq.s32.totalorder %s85, 0
      %p742 = por %p740, %p741
      %s743 = ssub.s32 %s79, %s86
      %p744 = scmp.eq.s32.totalorder %s743, 0
      %s746 = sadd.s32 %s745, 1
      %s747 = scalar_select %p744, %s745, %s746
      %p750 = pneg %p744
      %p751 = scmp.eq.s32.totalorder %s79, 1
      %p752 = por %p750, %p751
      %p753 = scmp.ne.s32.totalorder %s745, %s748
      %p754 = scmp.eq.s32.totalorder %s79, 0
      %p755 = por %p753, %p754
      %p756 = scmp.ne.s32.totalorder %s745, %s748
      %p757 = scmp.eq.s32.totalorder %s84, 1
      %p758 = por %p756, %p757
      %p759 = scmp.ne.s32.totalorder %s748, %s749
      %p760 = scmp.eq.s32.totalorder %s84, 0
      %p761 = por %p759, %p760
      %p762 = scmp.ne.s32.totalorder %s748, %s749
      %p763 = scmp.eq.s32.totalorder %s85, 1
      %p764 = por %p762, %p763
      %p766 = scmp.ne.s32.totalorder %s749, %s765
      %p767 = scmp.eq.s32.totalorder %s85, 0
      %p768 = por %p766, %p767
      %p769 = scmp.le.s32.totalorder 1, %s79
      %p770 = scmp.lt.s32.totalorder %s79, 3
      %p771 = pnand %p769, %p770
      %p772 = pneg %p771
      // Predicated region
      $region9: #{conformer_forward.6} parent=5 // pred_check
        _
      $region10: #{conformer_forward.6} parent=5 // pred_check_branch
        %774 = sbr.rel (%p771) target = $region12
      $region11: #{conformer_forward.6} parent=5 // pred_region
        %s775 = ssub.s32 %s79, 1
        // Predicated region
        $region13: #{conformer_forward.6} parent=11 // pred_check
          %p776 = pneg %p126
        $region14: #{conformer_forward.6} parent=11 // pred_check_branch
          %778 = sbr.rel (%p776) target = $region16
        $region15: #{conformer_forward.6} parent=11 // pred_region
          _
        $region16: #{conformer_forward.6} parent=11 // pred_fallthru
          _
        // Predicated region
        $region17: #{conformer_forward.6} parent=11 // pred_check
          %p779 = pneg %p147
        $region18: #{conformer_forward.6} parent=11 // pred_check_branch
          %781 = sbr.rel (%p779) target = $region20
        $region19: #{conformer_forward.6} parent=11 // pred_region
          _
        $region20: #{conformer_forward.6} parent=11 // pred_fallthru
          _
        // Predicated region
        $region21: #{conformer_forward.6} parent=11 // pred_check
          %p782 = pneg %p168
        $region22: #{conformer_forward.6} parent=11 // pred_check_branch
          %784 = sbr.rel (%p782) target = $region24
        $region23: #{conformer_forward.6} parent=11 // pred_region
          _
        $region24: #{conformer_forward.6} parent=11 // pred_fallthru
          _
        // Predicated region
        $region25: #{conformer_forward.6} parent=11 // pred_check
          %p785 = pneg %p189
        $region26: #{conformer_forward.6} parent=11 // pred_check_branch
          %787 = sbr.rel (%p785) target = $region28
        $region27: #{conformer_forward.6} parent=11 // pred_region
          %s789 = ssub.s32 16, 16
          %790 = vsyncadd [#allocation3], %s789
          %s792 = sshll.u32 [#allocation2], 4
          %s793 = int_to_ptr.vmem [resolvable:$true] %s792
          %795 = dma.hbm_to_vmem [thread:$0]  %s9, 16, %s793, [#allocation3]
        $region28: #{conformer_forward.6} parent=11 // pred_fallthru
          _
        // Predicated region
        $region29: #{conformer_forward.6} parent=11 // pred_check
          %p796 = pneg %p210
        $region30: #{conformer_forward.6} parent=11 // pred_check_branch
          %798 = sbr.rel (%p796) target = $region32
        $region31: #{conformer_forward.6} parent=11 // pred_region
          _
        $region32: #{conformer_forward.6} parent=11 // pred_fallthru
          _
        // Predicated region
        $region33: #{conformer_forward.6} parent=11 // pred_check
          %p799 = pneg %p231
        $region34: #{conformer_forward.6} parent=11 // pred_check_branch
          %801 = sbr.rel (%p799) target = $region36
        $region35: #{conformer_forward.6} parent=11 // pred_region
          %s803 = ssub.s32 16, 16
          %804 = vsyncadd [#allocation5], %s803
          %s806 = sshll.u32 [#allocation4], 4
          %s807 = int_to_ptr.vmem [resolvable:$true] %s806
          %809 = dma.hbm_to_vmem [thread:$0]  %s13, 16, %s807, [#allocation5]
        $region36: #{conformer_forward.6} parent=11 // pred_fallthru
          _
        // Predicated region
        $region37: #{conformer_forward.6} parent=11 // pred_check
          %p810 = pneg %p252
        $region38: #{conformer_forward.6} parent=11 // pred_check_branch
          %812 = sbr.rel (%p810) target = $region40
        $region39: #{conformer_forward.6} parent=11 // pred_region
          %s814 = ssub.s32 16, 16
          %815 = vsyncadd [#allocation5], %s814
          %s817 = sshll.u32 [#allocation6], 4
          %s818 = int_to_ptr.vmem [resolvable:$true] %s817
          %820 = dma.hbm_to_vmem [thread:$0]  %s15, 16, %s818, [#allocation5]
        $region40: #{conformer_forward.6} parent=11 // pred_fallthru
          _
        // Predicated region
        $region41: #{conformer_forward.6} parent=11 // pred_check
          %p821 = pneg %p273
        $region42: #{conformer_forward.6} parent=11 // pred_check_branch
          %823 = sbr.rel (%p821) target = $region44
        $region43: #{conformer_forward.6} parent=11 // pred_region
          %s825 = ssub.s32 16, 16
          %826 = vsyncadd [#allocation8], %s825
          %s828 = sshll.u32 [#allocation7], 4
          %s829 = int_to_ptr.vmem [resolvable:$true] %s828
          %831 = dma.hbm_to_vmem [thread:$0]  %s17, 16, %s829, [#allocation8]
        $region44: #{conformer_forward.6} parent=11 // pred_fallthru
          _
        // Predicated region
        $region45: #{conformer_forward.6} parent=11 // pred_check
          %p832 = pneg %p294
        $region46: #{conformer_forward.6} parent=11 // pred_check_branch
          %834 = sbr.rel (%p832) target = $region48
        $region47: #{conformer_forward.6} parent=11 // pred_region
          _
        $region48: #{conformer_forward.6} parent=11 // pred_fallthru
          _
        // Predicated region
        $region49: #{conformer_forward.6} parent=11 // pred_check
          %p835 = pneg %p315
        $region50: #{conformer_forward.6} parent=11 // pred_check_branch
          %837 = sbr.rel (%p835) target = $region52
        $region51: #{conformer_forward.6} parent=11 // pred_region
          %s839 = ssub.s32 16, 16
          %840 = vsyncadd [#allocation8], %s839
          %s842 = sshll.u32 [#allocation9], 4
          %s843 = int_to_ptr.vmem [resolvable:$true] %s842
          %845 = dma.hbm_to_vmem [thread:$0]  %s21, 16, %s843, [#allocation8]
        $region52: #{conformer_forward.6} parent=11 // pred_fallthru
          _
        // Predicated region
        $region53: #{conformer_forward.6} parent=11 // pred_check
          %p846 = pneg %p336
        $region54: #{conformer_forward.6} parent=11 // pred_check_branch
          %848 = sbr.rel (%p846) target = $region56
        $region55: #{conformer_forward.6} parent=11 // pred_region
          _
        $region56: #{conformer_forward.6} parent=11 // pred_fallthru
          _
        // Predicated region
        $region57: #{conformer_forward.6} parent=11 // pred_check
          %p849 = pneg %p357
        $region58: #{conformer_forward.6} parent=11 // pred_check_branch
          %851 = sbr.rel (%p849) target = $region60
        $region59: #{conformer_forward.6} parent=11 // pred_region
          %s853 = ssub.s32 16, 16
          %854 = vsyncadd [#allocation11], %s853
          %s856 = sshll.u32 [#allocation10], 4
          %s857 = int_to_ptr.vmem [resolvable:$true] %s856
          %859 = dma.hbm_to_vmem [thread:$0]  %s25, 16, %s857, [#allocation11]
        $region60: #{conformer_forward.6} parent=11 // pred_fallthru
          _
        // Predicated region
        $region61: #{conformer_forward.6} parent=11 // pred_check
          %p860 = pneg %p378
        $region62: #{conformer_forward.6} parent=11 // pred_check_branch
          %862 = sbr.rel (%p860) target = $region64
        $region63: #{conformer_forward.6} parent=11 // pred_region
          %s864 = ssub.s32 16, 16
          %865 = vsyncadd [#allocation11], %s864
          %s867 = sshll.u32 [#allocation12], 4
          %s868 = int_to_ptr.vmem [resolvable:$true] %s867
          %870 = dma.hbm_to_vmem [thread:$0]  %s27, 16, %s868, [#allocation11]
        $region64: #{conformer_forward.6} parent=11 // pred_fallthru
          _
        // Predicated region
        $region65: #{conformer_forward.6} parent=11 // pred_check
          %p871 = pneg %p399
        $region66: #{conformer_forward.6} parent=11 // pred_check_branch
          %873 = sbr.rel (%p871) target = $region68
        $region67: #{conformer_forward.6} parent=11 // pred_region
          %s875 = ssub.s32 16, 16
          %876 = vsyncadd [#allocation14], %s875
          %s878 = sshll.u32 [#allocation13], 4
          %s879 = int_to_ptr.vmem [resolvable:$true] %s878
          %881 = dma.hbm_to_vmem [thread:$0]  %s29, 16, %s879, [#allocation14]
        $region68: #{conformer_forward.6} parent=11 // pred_fallthru
          _
        // Predicated region
        $region69: #{conformer_forward.6} parent=11 // pred_check
          %p882 = pneg %p420
        $region70: #{conformer_forward.6} parent=11 // pred_check_branch
          %884 = sbr.rel (%p882) target = $region72
        $region71: #{conformer_forward.6} parent=11 // pred_region
          _
        $region72: #{conformer_forward.6} parent=11 // pred_fallthru
          _
        // Predicated region
        $region73: #{conformer_forward.6} parent=11 // pred_check
          %p885 = pneg %p441
        $region74: #{conformer_forward.6} parent=11 // pred_check_branch
          %887 = sbr.rel (%p885) target = $region76
        $region75: #{conformer_forward.6} parent=11 // pred_region
          %s889 = ssub.s32 16, 16
          %890 = vsyncadd [#allocation14], %s889
          %s892 = sshll.u32 [#allocation15], 4
          %s893 = int_to_ptr.vmem [resolvable:$true] %s892
          %895 = dma.hbm_to_vmem [thread:$0]  %s33, 16, %s893, [#allocation14]
        $region76: #{conformer_forward.6} parent=11 // pred_fallthru
          _
        // Predicated region
        $region77: #{conformer_forward.6} parent=11 // pred_check
          %p896 = pneg %p462
        $region78: #{conformer_forward.6} parent=11 // pred_check_branch
          %898 = sbr.rel (%p896) target = $region80
        $region79: #{conformer_forward.6} parent=11 // pred_region
          _
        $region80: #{conformer_forward.6} parent=11 // pred_fallthru
          _
        // Predicated region
        $region81: #{conformer_forward.6} parent=11 // pred_check
          %p899 = pneg %p483
        $region82: #{conformer_forward.6} parent=11 // pred_check_branch
          %901 = sbr.rel (%p899) target = $region84
        $region83: #{conformer_forward.6} parent=11 // pred_region
          %s903 = ssub.s32 16, 16
          %904 = vsyncadd [#allocation17], %s903
          %s906 = sshll.u32 [#allocation16], 4
          %s907 = int_to_ptr.vmem [resolvable:$true] %s906
          %909 = dma.hbm_to_vmem [thread:$0]  %s37, 16, %s907, [#allocation17]
        $region84: #{conformer_forward.6} parent=11 // pred_fallthru
          _
        // Predicated region
        $region85: #{conformer_forward.6} parent=11 // pred_check
          %p910 = pneg %p504
        $region86: #{conformer_forward.6} parent=11 // pred_check_branch
          %912 = sbr.rel (%p910) target = $region88
        $region87: #{conformer_forward.6} parent=11 // pred_region
          %s914 = ssub.s32 16, 16
          %915 = vsyncadd [#allocation17], %s914
          %s917 = sshll.u32 [#allocation18], 4
          %s918 = int_to_ptr.vmem [resolvable:$true] %s917
          %920 = dma.hbm_to_vmem [thread:$0]  %s39, 16, %s918, [#allocation17]
        $region88: #{conformer_forward.6} parent=11 // pred_fallthru
          _
        // Predicated region
        $region89: #{conformer_forward.6} parent=11 // pred_check
          %p921 = pneg %p525
        $region90: #{conformer_forward.6} parent=11 // pred_check_branch
          %923 = sbr.rel (%p921) target = $region92
        $region91: #{conformer_forward.6} parent=11 // pred_region
          %s925 = ssub.s32 16, 16
          %926 = vsyncadd [#allocation20], %s925
          %s928 = sshll.u32 [#allocation19], 4
          %s929 = int_to_ptr.vmem [resolvable:$true] %s928
          %931 = dma.hbm_to_vmem [thread:$0]  %s41, 16, %s929, [#allocation20]
        $region92: #{conformer_forward.6} parent=11 // pred_fallthru
          _
        // Predicated region
        $region93: #{conformer_forward.6} parent=11 // pred_check
          %p932 = pneg %p546
        $region94: #{conformer_forward.6} parent=11 // pred_check_branch
          %934 = sbr.rel (%p932) target = $region96
        $region95: #{conformer_forward.6} parent=11 // pred_region
          _
        $region96: #{conformer_forward.6} parent=11 // pred_fallthru
          _
        // Predicated region
        $region97: #{conformer_forward.6} parent=11 // pred_check
          %p935 = pneg %p567
        $region98: #{conformer_forward.6} parent=11 // pred_check_branch
          %937 = sbr.rel (%p935) target = $region100
        $region99: #{conformer_forward.6} parent=11 // pred_region
          %s939 = ssub.s32 16, 16
          %940 = vsyncadd [#allocation20], %s939
          %s942 = sshll.u32 [#allocation21], 4
          %s943 = int_to_ptr.vmem [resolvable:$true] %s942
          %945 = dma.hbm_to_vmem [thread:$0]  %s45, 16, %s943, [#allocation20]
        $region100: #{conformer_forward.6} parent=11 // pred_fallthru
          _
        // Predicated region
        $region101: #{conformer_forward.6} parent=11 // pred_check
          %p946 = pneg %p588
        $region102: #{conformer_forward.6} parent=11 // pred_check_branch
          %948 = sbr.rel (%p946) target = $region104
        $region103: #{conformer_forward.6} parent=11 // pred_region
          %s950 = ssub.s32 16, 16
          %951 = vsyncadd [#allocation23], %s950
          %s953 = sshll.u32 [#allocation22], 4
          %s954 = int_to_ptr.vmem [resolvable:$true] %s953
          %956 = dma.hbm_to_vmem [thread:$0]  %s47, 16, %s954, [#allocation23]
        $region104: #{conformer_forward.6} parent=11 // pred_fallthru
          _
        // Predicated region
        $region105: #{conformer_forward.6} parent=11 // pred_check
          %p957 = pneg %p609
        $region106: #{conformer_forward.6} parent=11 // pred_check_branch
          %959 = sbr.rel (%p957) target = $region108
        $region107: #{conformer_forward.6} parent=11 // pred_region
          %s961 = ssub.s32 16, 16
          %962 = vsyncadd [#allocation23], %s961
          %s964 = sshll.u32 [#allocation24], 4
          %s965 = int_to_ptr.vmem [resolvable:$true] %s964
          %967 = dma.hbm_to_vmem [thread:$0]  %s49, 16, %s965, [#allocation23]
        $region108: #{conformer_forward.6} parent=11 // pred_fallthru
          _
        // Predicated region
        $region109: #{conformer_forward.6} parent=11 // pred_check
          %p968 = pneg %p630
        $region110: #{conformer_forward.6} parent=11 // pred_check_branch
          %970 = sbr.rel (%p968) target = $region112
        $region111: #{conformer_forward.6} parent=11 // pred_region
          _
        $region112: #{conformer_forward.6} parent=11 // pred_fallthru
          _
        // Predicated region
        $region113: #{conformer_forward.6} parent=11 // pred_check
          %p971 = pneg %p651
        $region114: #{conformer_forward.6} parent=11 // pred_check_branch
          %973 = sbr.rel (%p971) target = $region116
        $region115: #{conformer_forward.6} parent=11 // pred_region
          %s975 = ssub.s32 16, 16
          %976 = vsyncadd [#allocation26], %s975
          %s978 = sshll.u32 [#allocation25], 4
          %s979 = int_to_ptr.vmem [resolvable:$true] %s978
          %981 = dma.hbm_to_vmem [thread:$0]  %s53, 16, %s979, [#allocation26]
        $region116: #{conformer_forward.6} parent=11 // pred_fallthru
          _
        // Predicated region
        $region117: #{conformer_forward.6} parent=11 // pred_check
          %p982 = pneg %p672
        $region118: #{conformer_forward.6} parent=11 // pred_check_branch
          %984 = sbr.rel (%p982) target = $region120
        $region119: #{conformer_forward.6} parent=11 // pred_region
          _
        $region120: #{conformer_forward.6} parent=11 // pred_fallthru
          _
        // Predicated region
        $region121: #{conformer_forward.6} parent=11 // pred_check
          %p985 = pneg %p693
        $region122: #{conformer_forward.6} parent=11 // pred_check_branch
          %987 = sbr.rel (%p985) target = $region124
        $region123: #{conformer_forward.6} parent=11 // pred_region
          %s989 = ssub.s32 16, 16
          %990 = vsyncadd [#allocation26], %s989
          %s992 = sshll.u32 [#allocation27], 4
          %s993 = int_to_ptr.vmem [resolvable:$true] %s992
          %995 = dma.hbm_to_vmem [thread:$0]  %s57, 16, %s993, [#allocation26]
        $region124: #{conformer_forward.6} parent=11 // pred_fallthru
          _
        // Predicated region
        $region125: #{conformer_forward.6} parent=11 // pred_check
          %p996 = pneg %p714
        $region126: #{conformer_forward.6} parent=11 // pred_check_branch
          %998 = sbr.rel (%p996) target = $region128
        $region127: #{conformer_forward.6} parent=11 // pred_region
          %s1000 = ssub.s32 16, 16
          %1001 = vsyncadd [#allocation29], %s1000
          %s1003 = sshll.u32 [#allocation28], 4
          %s1004 = int_to_ptr.vmem [resolvable:$true] %s1003
          %1006 = dma.hbm_to_vmem [thread:$0]  %s59, 16, %s1004, [#allocation29]
        $region128: #{conformer_forward.6} parent=11 // pred_fallthru
          _
        // Predicated region
        $region129: #{conformer_forward.6} parent=11 // pred_check
          %p1007 = pneg %p735
        $region130: #{conformer_forward.6} parent=11 // pred_check_branch
          %1009 = sbr.rel (%p1007) target = $region132
        $region131: #{conformer_forward.6} parent=11 // pred_region
          %s1011 = ssub.s32 16, 16
          %1012 = vsyncadd [#allocation29], %s1011
          %s1014 = sshll.u32 [#allocation30], 4
          %s1015 = int_to_ptr.vmem [resolvable:$true] %s1014
          %1017 = dma.hbm_to_vmem [thread:$0]  %s61, 16, %s1015, [#allocation29]
        $region132: #{conformer_forward.6} parent=11 // pred_fallthru
          _
      $region12: #{conformer_forward.6} parent=5 // pred_fallthru
        _
      %p1018 = scmp.lt.s32.totalorder %s79, 2
      // Predicated region
      $region133: #{conformer_forward.6} parent=5 // pred_check
        %p1019 = pneg %p1018
      $region134: #{conformer_forward.6} parent=5 // pred_check_branch
        %1021 = sbr.rel (%p1019) target = $region136
      $region135: #{conformer_forward.6} parent=5 // pred_region
        // Predicated region
        $region137: #{conformer_forward.6} parent=135 // pred_check
          %p1022 = pneg %p99
        $region138: #{conformer_forward.6} parent=135 // pred_check_branch
          %1024 = sbr.rel (%p1022) target = $region140
        $region139: #{conformer_forward.6} parent=135 // pred_region
          %p1025 = scmp.lt.s32.totalorder %s79, 1
          %s1026 = scalar_select %p1025, %s79, 1
          %s1027 = smul.addr %s1026, 8
          %s1028 = scalar_lea.vmem %s1, %s1027
        $region140: #{conformer_forward.6} parent=135 // pred_fallthru
          _
      $region136: #{conformer_forward.6} parent=5 // pred_fallthru
        _
      %p1029 = scmp.le.s32.totalorder 1, %s79
      %p1030 = scmp.lt.s32.totalorder %s79, 3
      %p1031 = pnand %p1029, %p1030
      %p1032 = pneg %p1031
      // Predicated region
      $region141: #{conformer_forward.6} parent=5 // pred_check
        _
      $region142: #{conformer_forward.6} parent=5 // pred_check_branch
        %1034 = sbr.rel (%p1031) target = $region144
      $region143: #{conformer_forward.6} parent=5 // pred_region
        %s1035 = ssub.s32 %s79, 1
        // Predicated region
        $region145: #{conformer_forward.6} parent=143 // pred_check
          %p1036 = pneg %p189
        $region146: #{conformer_forward.6} parent=143 // pred_check_branch
          %1038 = sbr.rel (%p1036) target = $region148
        $region147: #{conformer_forward.6} parent=143 // pred_region
          %1039 = dma.done [#allocation3], 16
        $region148: #{conformer_forward.6} parent=143 // pred_fallthru
          _
        // Predicated region
        $region149: #{conformer_forward.6} parent=143 // pred_check
          %p1040 = pneg %p231
        $region150: #{conformer_forward.6} parent=143 // pred_check_branch
          %1042 = sbr.rel (%p1040) target = $region152
        $region151: #{conformer_forward.6} parent=143 // pred_region
          %1043 = dma.done [#allocation5], 16
        $region152: #{conformer_forward.6} parent=143 // pred_fallthru
          _
        // Predicated region
        $region153: #{conformer_forward.6} parent=143 // pred_check
          %p1044 = pneg %p252
        $region154: #{conformer_forward.6} parent=143 // pred_check_branch
          %1046 = sbr.rel (%p1044) target = $region156
        $region155: #{conformer_forward.6} parent=143 // pred_region
          %1047 = dma.done [#allocation5], 16
        $region156: #{conformer_forward.6} parent=143 // pred_fallthru
          _
        // Predicated region
        $region157: #{conformer_forward.6} parent=143 // pred_check
          %p1048 = pneg %p273
        $region158: #{conformer_forward.6} parent=143 // pred_check_branch
          %1050 = sbr.rel (%p1048) target = $region160
        $region159: #{conformer_forward.6} parent=143 // pred_region
          %1051 = dma.done [#allocation8], 16
        $region160: #{conformer_forward.6} parent=143 // pred_fallthru
          _
        // Predicated region
        $region161: #{conformer_forward.6} parent=143 // pred_check
          %p1052 = pneg %p315
        $region162: #{conformer_forward.6} parent=143 // pred_check_branch
          %1054 = sbr.rel (%p1052) target = $region164
        $region163: #{conformer_forward.6} parent=143 // pred_region
          %1055 = dma.done [#allocation8], 16
        $region164: #{conformer_forward.6} parent=143 // pred_fallthru
          _
        // Predicated region
        $region165: #{conformer_forward.6} parent=143 // pred_check
          %p1056 = pneg %p357
        $region166: #{conformer_forward.6} parent=143 // pred_check_branch
          %1058 = sbr.rel (%p1056) target = $region168
        $region167: #{conformer_forward.6} parent=143 // pred_region
          %1059 = dma.done [#allocation11], 16
        $region168: #{conformer_forward.6} parent=143 // pred_fallthru
          _
        // Predicated region
        $region169: #{conformer_forward.6} parent=143 // pred_check
          %p1060 = pneg %p378
        $region170: #{conformer_forward.6} parent=143 // pred_check_branch
          %1062 = sbr.rel (%p1060) target = $region172
        $region171: #{conformer_forward.6} parent=143 // pred_region
          %1063 = dma.done [#allocation11], 16
        $region172: #{conformer_forward.6} parent=143 // pred_fallthru
          _
        // Predicated region
        $region173: #{conformer_forward.6} parent=143 // pred_check
          %p1064 = pneg %p399
        $region174: #{conformer_forward.6} parent=143 // pred_check_branch
          %1066 = sbr.rel (%p1064) target = $region176
        $region175: #{conformer_forward.6} parent=143 // pred_region
          %1067 = dma.done [#allocation14], 16
        $region176: #{conformer_forward.6} parent=143 // pred_fallthru
          _
        // Predicated region
        $region177: #{conformer_forward.6} parent=143 // pred_check
          %p1068 = pneg %p441
        $region178: #{conformer_forward.6} parent=143 // pred_check_branch
          %1070 = sbr.rel (%p1068) target = $region180
        $region179: #{conformer_forward.6} parent=143 // pred_region
          %1071 = dma.done [#allocation14], 16
        $region180: #{conformer_forward.6} parent=143 // pred_fallthru
          _
        // Predicated region
        $region181: #{conformer_forward.6} parent=143 // pred_check
          %p1072 = pneg %p483
        $region182: #{conformer_forward.6} parent=143 // pred_check_branch
          %1074 = sbr.rel (%p1072) target = $region184
        $region183: #{conformer_forward.6} parent=143 // pred_region
          %1075 = dma.done [#allocation17], 16
        $region184: #{conformer_forward.6} parent=143 // pred_fallthru
          _
        // Predicated region
        $region185: #{conformer_forward.6} parent=143 // pred_check
          %p1076 = pneg %p504
        $region186: #{conformer_forward.6} parent=143 // pred_check_branch
          %1078 = sbr.rel (%p1076) target = $region188
        $region187: #{conformer_forward.6} parent=143 // pred_region
          %1079 = dma.done [#allocation17], 16
        $region188: #{conformer_forward.6} parent=143 // pred_fallthru
          _
        // Predicated region
        $region189: #{conformer_forward.6} parent=143 // pred_check
          %p1080 = pneg %p525
        $region190: #{conformer_forward.6} parent=143 // pred_check_branch
          %1082 = sbr.rel (%p1080) target = $region192
        $region191: #{conformer_forward.6} parent=143 // pred_region
          %1083 = dma.done [#allocation20], 16
        $region192: #{conformer_forward.6} parent=143 // pred_fallthru
          _
        // Predicated region
        $region193: #{conformer_forward.6} parent=143 // pred_check
          %p1084 = pneg %p567
        $region194: #{conformer_forward.6} parent=143 // pred_check_branch
          %1086 = sbr.rel (%p1084) target = $region196
        $region195: #{conformer_forward.6} parent=143 // pred_region
          %1087 = dma.done [#allocation20], 16
        $region196: #{conformer_forward.6} parent=143 // pred_fallthru
          _
        // Predicated region
        $region197: #{conformer_forward.6} parent=143 // pred_check
          %p1088 = pneg %p588
        $region198: #{conformer_forward.6} parent=143 // pred_check_branch
          %1090 = sbr.rel (%p1088) target = $region200
        $region199: #{conformer_forward.6} parent=143 // pred_region
          %1091 = dma.done [#allocation23], 16
        $region200: #{conformer_forward.6} parent=143 // pred_fallthru
          _
        // Predicated region
        $region201: #{conformer_forward.6} parent=143 // pred_check
          %p1092 = pneg %p609
        $region202: #{conformer_forward.6} parent=143 // pred_check_branch
          %1094 = sbr.rel (%p1092) target = $region204
        $region203: #{conformer_forward.6} parent=143 // pred_region
          %1095 = dma.done [#allocation23], 16
        $region204: #{conformer_forward.6} parent=143 // pred_fallthru
          _
        // Predicated region
        $region205: #{conformer_forward.6} parent=143 // pred_check
          %p1096 = pneg %p651
        $region206: #{conformer_forward.6} parent=143 // pred_check_branch
          %1098 = sbr.rel (%p1096) target = $region208
        $region207: #{conformer_forward.6} parent=143 // pred_region
          %1099 = dma.done [#allocation26], 16
        $region208: #{conformer_forward.6} parent=143 // pred_fallthru
          _
        // Predicated region
        $region209: #{conformer_forward.6} parent=143 // pred_check
          %p1100 = pneg %p693
        $region210: #{conformer_forward.6} parent=143 // pred_check_branch
          %1102 = sbr.rel (%p1100) target = $region212
        $region211: #{conformer_forward.6} parent=143 // pred_region
          %1103 = dma.done [#allocation26], 16
        $region212: #{conformer_forward.6} parent=143 // pred_fallthru
          _
        // Predicated region
        $region213: #{conformer_forward.6} parent=143 // pred_check
          %p1104 = pneg %p714
        $region214: #{conformer_forward.6} parent=143 // pred_check_branch
          %1106 = sbr.rel (%p1104) target = $region216
        $region215: #{conformer_forward.6} parent=143 // pred_region
          %1107 = dma.done [#allocation29], 16
        $region216: #{conformer_forward.6} parent=143 // pred_fallthru
          _
        // Predicated region
        $region217: #{conformer_forward.6} parent=143 // pred_check
          %p1108 = pneg %p735
        $region218: #{conformer_forward.6} parent=143 // pred_check_branch
          %1110 = sbr.rel (%p1108) target = $region220
        $region219: #{conformer_forward.6} parent=143 // pred_region
          %1111 = dma.done [#allocation29], 16
        $region220: #{conformer_forward.6} parent=143 // pred_fallthru
          _
        %p1112 = scmp.lt.s32.totalorder %s84, 1
        %s1113 = scalar_select %p1112, %s84, 1
        %s1114 = smul.addr %s1113, 8
        %s1115 = scalar_lea.vmem %s1, %s1114
        %p1116 = pneg %p105
        %p1117 = pneg %p102
        %p1118 = pneg %p126
        %p1119 = pneg %p123
        %p1120 = pneg %p147
        %p1121 = pneg %p144
        %p1122 = pneg %p168
        %p1123 = pneg %p165
        %p1124 = pneg %p189
        %p1125 = pneg %p186
        %p1126 = pneg %p210
        %p1127 = pneg %p207
        %p1128 = pneg %p231
        %p1129 = pneg %p228
        %p1130 = pneg %p252
        %p1131 = pneg %p249
        %p1132 = pneg %p273
        %p1133 = pneg %p270
        %p1134 = pneg %p294
        %p1135 = pneg %p291
        %p1136 = pneg %p315
        %p1137 = pneg %p312
        %p1138 = pneg %p336
        %p1139 = pneg %p333
        %p1140 = pneg %p357
        %p1141 = pneg %p354
        %p1142 = pneg %p378
        %p1143 = pneg %p375
        %p1144 = pneg %p399
        %p1145 = pneg %p396
        %p1146 = pneg %p420
        %p1147 = pneg %p417
        %p1148 = pneg %p441
        %p1149 = pneg %p438
        %p1150 = pneg %p462
        %p1151 = pneg %p459
        %p1152 = pneg %p483
        %p1153 = pneg %p480
        %p1154 = pneg %p504
        %p1155 = pneg %p501
        %p1156 = pneg %p525
        %p1157 = pneg %p522
        %p1158 = pneg %p546
        %p1159 = pneg %p543
        %p1160 = pneg %p567
        %p1161 = pneg %p564
        %p1162 = pneg %p588
        %p1163 = pneg %p585
        %p1164 = pneg %p609
        %p1165 = pneg %p606
        %p1166 = pneg %p630
        %p1167 = pneg %p627
        %p1168 = pneg %p651
        %p1169 = pneg %p648
        %p1170 = pneg %p672
        %p1171 = pneg %p669
        %p1172 = pneg %p693
        %p1173 = pneg %p690
        %p1174 = pneg %p714
        %p1175 = pneg %p711
        %p1176 = pneg %p735
        %p1177 = pneg %p732
        %p1178 = pneg %p761
        %p1179 = pneg %p758
        %p1180 = scmp.lt.s32.totalorder %s84, 1
        %s1181 = scalar_select %p1180, %s84, 1
        %s1182 = smul.addr %s1181, 8
        %s1183 = scalar_lea.vmem %s63, %s1182
        %p1184 = scmp.lt.s32.totalorder %s84, 1
        %s1185 = scalar_select %p1184, %s84, 1
        %s1186 = smul.addr %s1185, 8
        %s1187 = scalar_lea.vmem %s1, %s1186
        %p1188 = scmp.lt.s32.totalorder %s84, 1
        %s1189 = scalar_select %p1188, %s84, 1
        %s1190 = smul.addr %s1189, 8
        %s1191 = scalar_lea.vmem %s63, %s1190
        %v1192 = vld [vmem:[%s1187] sm:$0xff]
        %v1193 = vld [vmem:[%s3] sm:$0x1]
        %v1194 = vld [vmem:[%s5] sm:$0x1]
        %vm1195 = vcmask 261120
        %v1196 = vsel %vm1195, %v1192, 0.0
        %1197 = vadd.xlane.f32.xlu0 %v1196
        %v1198 = vpop.xlane.xlu0 %1197
        %v1199 = vrcp.pop 32.0
        %v1200 = vmul.f32 %v1198, %v1199
        %v1201 = vsub.f32 %v1192, %v1200
        %v1202 = vmul.f32 %v1201, %v1201
        %v1203 = vsel %vm1195, %v1202, 0.0
        %1204 = vadd.xlane.f32.xlu0 %v1203
        %v1205 = vpop.xlane.xlu0 %1204
        %v1206 = vmul.f32 %v1205, %v1199
        %v1207 = vadd.f32 %v1206, 1e-05
        %v1208 = vrsqrt.pop %v1207
        %v1209 = vmul.f32 %v1201, %v1208
        %v1211 = vlaneseq
        %v1212 = vshrl.u32 %v1211, 7
        %v1213 = vsub.s32 0, %v1212
        %v1214 = vrot.slane %v1193, %v1213
        %v1216 = vmul.f32 %v1209, %v1214
        %v1218 = vlaneseq
        %v1219 = vshrl.u32 %v1218, 7
        %v1220 = vsub.s32 0, %v1219
        %v1221 = vrot.slane %v1194, %v1220
        %v1223 = vadd.f32 %v1216, %v1221
        %v1224 = vld [vmem:[%s7] sm:$0xff]
        %v1225 = vld [vmem:[%s7 + $0x8] sm:$0xff]
        %v1226 = vld [vmem:[%s7 + $0x10] sm:$0xff]
        %v1227 = vld [vmem:[%s7 + $0x18] sm:$0xff]
        %v1228 = vld [vmem:[#allocation2] sm:$0x1]
        %v1230 = vlaneseq
        %v1231 = vshrl.u32 %v1230, 7
        %v1232 = vsub.s32 0, %v1231
        %v1233 = vrot.slane %v1228, %v1232
        %v1236 = vsel %vm1195, %v1223, 0
        %1238 = vmatprep.subr.mxu0 0.0
        %1239 = vmatpush1.msra.mxu0 0.0
        %1240 = vmatprep.subr.mxu0 0.0
        %1241 = vmatpush1.msra.mxu0 0.0
        %1242 = vmatprep.subr.mxu0 0.0
        %1243 = vmatpush1.msra.mxu0 0.0
        %1244 = vmatprep.subr.mxu0 0.0
        %1245 = vmatpush1.msra.mxu0 0.0
        %1246 = vmatprep.subr.mxu0 0.0
        %1247 = vmatpush1.msra.mxu0 0.0
        %1248 = vmatprep.subr.mxu0 0.0
        %1249 = vmatpush1.msra.mxu0 0.0
        %1250 = vmatprep.subr.mxu0 0.0
        %1251 = vmatpush1.msra.mxu0 0.0
        %1252 = vmatprep.subr.mxu0 0.0
        %1253 = vmatpush1.msra.mxu0 0.0
        %1254 = vmatprep.subr.mxu0 0.0
        %1255 = vmatpush1.msra.mxu0 0.0
        %1256 = vmatprep.subr.mxu0 0.0
        %1257 = vmatpush1.msra.mxu0 0.0
        %1258 = vmatprep.subr.mxu0 0.0
        %1259 = vmatpush1.msra.mxu0 0.0
        %1260 = vmatprep.subr.mxu0 0.0
        %1261 = vmatpush1.msra.mxu0 0.0
        %1262 = vmatprep.subr.mxu0 0.0
        %1263 = vmatpush1.msra.mxu0 %v1227
        %1264 = vmatprep.subr.mxu0 0.0
        %1265 = vmatpush1.msra.mxu0 %v1226
        %1266 = vmatprep.subr.mxu0 0.0
        %1267 = vmatpush1.msra.mxu0 %v1225
        %1268 = vmatprep.subr.mxu0 0.0
        %1269 = vmatpush1.msra.mxu0 %v1224
        %1270 = vmatprep.subr.mxu0 0.0
        %1271 = vmatpush2.msra.mxu0 0.0
        %1272 = vmatprep.subr.mxu0 0.0
        %1273 = vmatpush2.msra.mxu0 0.0
        %1274 = vmatprep.subr.mxu0 0.0
        %1275 = vmatpush2.msra.mxu0 0.0
        %1276 = vmatprep.subr.mxu0 0.0
        %1277 = vmatpush2.msra.mxu0 0.0
        %1278 = vmatprep.subr.mxu0 0.0
        %1279 = vmatpush2.msra.mxu0 0.0
        %1280 = vmatprep.subr.mxu0 0.0
        %1281 = vmatpush2.msra.mxu0 0.0
        %1282 = vmatprep.subr.mxu0 0.0
        %1283 = vmatpush2.msra.mxu0 0.0
        %1284 = vmatprep.subr.mxu0 0.0
        %1285 = vmatpush2.msra.mxu0 0.0
        %1286 = vmatprep.subr.mxu0 0.0
        %1287 = vmatpush2.msra.mxu0 0.0
        %1288 = vmatprep.subr.mxu0 0.0
        %1289 = vmatpush2.msra.mxu0 0.0
        %1290 = vmatprep.subr.mxu0 0.0
        %1291 = vmatpush2.msra.mxu0 0.0
        %1292 = vmatprep.subr.mxu0 0.0
        %1293 = vmatpush2.msra.mxu0 0.0
        %1294 = vmatprep.subr.mxu0 0.0
        %1295 = vmatpush2.msra.mxu0 0.0
        %1296 = vmatprep.subr.mxu0 0.0
        %1297 = vmatpush2.msra.mxu0 0.0
        %1298 = vmatprep.subr.mxu0 0.0
        %1299 = vmatpush2.msra.mxu0 0.0
        %1300 = vmatprep.subr.mxu0 0.0
        %1301 = vmatpush2.msra.mxu0 0.0
        %1302 = vmatprep.mubr.f32.mxu0 0.0
        %1303 = vmatmul.mubr.f32.gmra.mxu0 %v1236
        %v1304 = vpop.f32.mrf.mxu0
        %v1305 = vadd.f32 %v1233, %v1304
        %v1306 = vpop.f32.mrf.mxu0
        %1307 = vdwg.mxu0
        %v1308 = vsub.f32 0.0, %v1305
        %v1309 = vmul.f32 %v1308, 1.442695
        %v1310 = vpow.pop %v1309
        %v1311 = vadd.f32 %v1310, 1.0
        %v1312 = vrcp.pop %v1311
        %v1313 = vmul.f32 %v1305, %v1312
        %v1314 = vld [vmem:[%s11] sm:$0xff]
        %v1315 = vld [vmem:[%s11 + $0x8] sm:$0xff]
        %v1316 = vld [vmem:[%s11 + $0x10] sm:$0xff]
        %v1317 = vld [vmem:[%s11 + $0x18] sm:$0xff]
        %v1318 = vld [vmem:[%s11 + $0x20] sm:$0xff]
        %v1319 = vld [vmem:[%s11 + $0x28] sm:$0xff]
        %v1320 = vld [vmem:[%s11 + $0x30] sm:$0xff]
        %v1321 = vld [vmem:[%s11 + $0x38] sm:$0xff]
        %v1322 = vld [vmem:[%s11 + $0x40] sm:$0xff]
        %v1323 = vld [vmem:[%s11 + $0x48] sm:$0xff]
        %v1324 = vld [vmem:[%s11 + $0x50] sm:$0xff]
        %v1325 = vld [vmem:[%s11 + $0x58] sm:$0xff]
        %v1326 = vld [vmem:[%s11 + $0x60] sm:$0xff]
        %v1327 = vld [vmem:[%s11 + $0x68] sm:$0xff]
        %v1328 = vld [vmem:[%s11 + $0x70] sm:$0xff]
        %v1329 = vld [vmem:[%s11 + $0x78] sm:$0xff]
        %v1330 = vld [vmem:[#allocation4] sm:$0x1]
        %v1332 = vlaneseq
        %v1333 = vshrl.u32 %v1332, 7
        %v1334 = vsub.s32 0, %v1333
        %v1335 = vrot.slane %v1330, %v1334
        %1337 = vmatprep.subr.mxu0 0.0
        %1338 = vmatpush1.msra.mxu0 %v1329
        %1339 = vmatprep.subr.mxu0 0.0
        %1340 = vmatpush1.msra.mxu0 %v1328
        %1341 = vmatprep.subr.mxu0 0.0
        %1342 = vmatpush1.msra.mxu0 %v1327
        %1343 = vmatprep.subr.mxu0 0.0
        %1344 = vmatpush1.msra.mxu0 %v1326
        %1345 = vmatprep.subr.mxu0 0.0
        %1346 = vmatpush1.msra.mxu0 %v1325
        %1347 = vmatprep.subr.mxu0 0.0
        %1348 = vmatpush1.msra.mxu0 %v1324
        %1349 = vmatprep.subr.mxu0 0.0
        %1350 = vmatpush1.msra.mxu0 %v1323
        %1351 = vmatprep.subr.mxu0 0.0
        %1352 = vmatpush1.msra.mxu0 %v1322
        %1353 = vmatprep.subr.mxu0 0.0
        %1354 = vmatpush1.msra.mxu0 %v1321
        %1355 = vmatprep.subr.mxu0 0.0
        %1356 = vmatpush1.msra.mxu0 %v1320
        %1357 = vmatprep.subr.mxu0 0.0
        %1358 = vmatpush1.msra.mxu0 %v1319
        %1359 = vmatprep.subr.mxu0 0.0
        %1360 = vmatpush1.msra.mxu0 %v1318
        %1361 = vmatprep.subr.mxu0 0.0
        %1362 = vmatpush1.msra.mxu0 %v1317
        %1363 = vmatprep.subr.mxu0 0.0
        %1364 = vmatpush1.msra.mxu0 %v1316
        %1365 = vmatprep.subr.mxu0 0.0
        %1366 = vmatpush1.msra.mxu0 %v1315
        %1367 = vmatprep.subr.mxu0 0.0
        %1368 = vmatpush1.msra.mxu0 %v1314
        %1369 = vmatprep.subr.mxu0 0.0
        %1370 = vmatpush2.msra.mxu0 0.0
        %1371 = vmatprep.subr.mxu0 0.0
        %1372 = vmatpush2.msra.mxu0 0.0
        %1373 = vmatprep.subr.mxu0 0.0
        %1374 = vmatpush2.msra.mxu0 0.0
        %1375 = vmatprep.subr.mxu0 0.0
        %1376 = vmatpush2.msra.mxu0 0.0
        %1377 = vmatprep.subr.mxu0 0.0
        %1378 = vmatpush2.msra.mxu0 0.0
        %1379 = vmatprep.subr.mxu0 0.0
        %1380 = vmatpush2.msra.mxu0 0.0
        %1381 = vmatprep.subr.mxu0 0.0
        %1382 = vmatpush2.msra.mxu0 0.0
        %1383 = vmatprep.subr.mxu0 0.0
        %1384 = vmatpush2.msra.mxu0 0.0
        %1385 = vmatprep.subr.mxu0 0.0
        %1386 = vmatpush2.msra.mxu0 0.0
        %1387 = vmatprep.subr.mxu0 0.0
        %1388 = vmatpush2.msra.mxu0 0.0
        %1389 = vmatprep.subr.mxu0 0.0
        %1390 = vmatpush2.msra.mxu0 0.0
        %1391 = vmatprep.subr.mxu0 0.0
        %1392 = vmatpush2.msra.mxu0 0.0
        %1393 = vmatprep.subr.mxu0 0.0
        %1394 = vmatpush2.msra.mxu0 0.0
        %1395 = vmatprep.subr.mxu0 0.0
        %1396 = vmatpush2.msra.mxu0 0.0
        %1397 = vmatprep.subr.mxu0 0.0
        %1398 = vmatpush2.msra.mxu0 0.0
        %1399 = vmatprep.subr.mxu0 0.0
        %1400 = vmatpush2.msra.mxu0 0.0
        %1401 = vmatprep.mubr.f32.mxu0 0.0
        %1402 = vmatmul.mubr.f32.gmra.mxu0 %v1313
        %v1403 = vpop.f32.mrf.mxu0
        %v1404 = vadd.f32 %v1335, %v1403
        %v1405 = vpop.f32.mrf.mxu0
        %1406 = vdwg.mxu0
        %v1407 = vmul.f32 %v1404, 0.5
        %v1408 = vadd.f32 %v1192, %v1407
        %v1409 = vld [vmem:[#allocation6] sm:$0x1]
        %v1410 = vld [vmem:[#allocation7] sm:$0x1]
        %v1411 = vsel %vm1195, %v1408, 0.0
        %1412 = vadd.xlane.f32.xlu0 %v1411
        %v1413 = vpop.xlane.xlu0 %1412
        %v1414 = vmul.f32 %v1413, %v1199
        %v1415 = vsub.f32 %v1408, %v1414
        %v1416 = vmul.f32 %v1415, %v1415
        %v1417 = vsel %vm1195, %v1416, 0.0
        %1418 = vadd.xlane.f32.xlu0 %v1417
        %v1419 = vpop.xlane.xlu0 %1418
        %v1420 = vmul.f32 %v1419, %v1199
        %v1421 = vadd.f32 %v1420, 1e-05
        %v1422 = vrsqrt.pop %v1421
        %v1423 = vmul.f32 %v1415, %v1422
        %v1425 = vlaneseq
        %v1426 = vshrl.u32 %v1425, 7
        %v1427 = vsub.s32 0, %v1426
        %v1428 = vrot.slane %v1409, %v1427
        %v1430 = vmul.f32 %v1423, %v1428
        %v1432 = vlaneseq
        %v1433 = vshrl.u32 %v1432, 7
        %v1434 = vsub.s32 0, %v1433
        %v1435 = vrot.slane %v1410, %v1434
        %v1437 = vadd.f32 %v1430, %v1435
        %v1438 = vld [vmem:[%s19] sm:$0xff]
        %v1439 = vld [vmem:[%s19 + $0x8] sm:$0xff]
        %v1440 = vld [vmem:[%s19 + $0x10] sm:$0xff]
        %v1441 = vld [vmem:[%s19 + $0x18] sm:$0xff]
        %v1442 = vld [vmem:[#allocation9] sm:$0x1]
        %v1444 = vlaneseq
        %v1445 = vshrl.u32 %v1444, 7
        %v1446 = vsub.s32 0, %v1445
        %v1447 = vrot.slane %v1442, %v1446
        %v1450 = vsel %vm1195, %v1437, 0
        %1452 = vmatprep.subr.mxu0 0.0
        %1453 = vmatpush1.msra.mxu0 0.0
        %1454 = vmatprep.subr.mxu0 0.0
        %1455 = vmatpush1.msra.mxu0 0.0
        %1456 = vmatprep.subr.mxu0 0.0
        %1457 = vmatpush1.msra.mxu0 0.0
        %1458 = vmatprep.subr.mxu0 0.0
        %1459 = vmatpush1.msra.mxu0 0.0
        %1460 = vmatprep.subr.mxu0 0.0
        %1461 = vmatpush1.msra.mxu0 0.0
        %1462 = vmatprep.subr.mxu0 0.0
        %1463 = vmatpush1.msra.mxu0 0.0
        %1464 = vmatprep.subr.mxu0 0.0
        %1465 = vmatpush1.msra.mxu0 0.0
        %1466 = vmatprep.subr.mxu0 0.0
        %1467 = vmatpush1.msra.mxu0 0.0
        %1468 = vmatprep.subr.mxu0 0.0
        %1469 = vmatpush1.msra.mxu0 0.0
        %1470 = vmatprep.subr.mxu0 0.0
        %1471 = vmatpush1.msra.mxu0 0.0
        %1472 = vmatprep.subr.mxu0 0.0
        %1473 = vmatpush1.msra.mxu0 0.0
        %1474 = vmatprep.subr.mxu0 0.0
        %1475 = vmatpush1.msra.mxu0 0.0
        %1476 = vmatprep.subr.mxu0 0.0
        %1477 = vmatpush1.msra.mxu0 %v1441
        %1478 = vmatprep.subr.mxu0 0.0
        %1479 = vmatpush1.msra.mxu0 %v1440
        %1480 = vmatprep.subr.mxu0 0.0
        %1481 = vmatpush1.msra.mxu0 %v1439
        %1482 = vmatprep.subr.mxu0 0.0
        %1483 = vmatpush1.msra.mxu0 %v1438
        %1484 = vmatprep.subr.mxu0 0.0
        %1485 = vmatpush2.msra.mxu0 0.0
        %1486 = vmatprep.subr.mxu0 0.0
        %1487 = vmatpush2.msra.mxu0 0.0
        %1488 = vmatprep.subr.mxu0 0.0
        %1489 = vmatpush2.msra.mxu0 0.0
        %1490 = vmatprep.subr.mxu0 0.0
        %1491 = vmatpush2.msra.mxu0 0.0
        %1492 = vmatprep.subr.mxu0 0.0
        %1493 = vmatpush2.msra.mxu0 0.0
        %1494 = vmatprep.subr.mxu0 0.0
        %1495 = vmatpush2.msra.mxu0 0.0
        %1496 = vmatprep.subr.mxu0 0.0
        %1497 = vmatpush2.msra.mxu0 0.0
        %1498 = vmatprep.subr.mxu0 0.0
        %1499 = vmatpush2.msra.mxu0 0.0
        %1500 = vmatprep.subr.mxu0 0.0
        %1501 = vmatpush2.msra.mxu0 0.0
        %1502 = vmatprep.subr.mxu0 0.0
        %1503 = vmatpush2.msra.mxu0 0.0
        %1504 = vmatprep.subr.mxu0 0.0
        %1505 = vmatpush2.msra.mxu0 0.0
        %1506 = vmatprep.subr.mxu0 0.0
        %1507 = vmatpush2.msra.mxu0 0.0
        %1508 = vmatprep.subr.mxu0 0.0
        %1509 = vmatpush2.msra.mxu0 0.0
        %1510 = vmatprep.subr.mxu0 0.0
        %1511 = vmatpush2.msra.mxu0 0.0
        %1512 = vmatprep.subr.mxu0 0.0
        %1513 = vmatpush2.msra.mxu0 0.0
        %1514 = vmatprep.subr.mxu0 0.0
        %1515 = vmatpush2.msra.mxu0 0.0
        %1516 = vmatprep.mubr.f32.mxu0 0.0
        %1517 = vmatmul.mubr.f32.gmra.mxu0 %v1450
        %v1518 = vpop.f32.mrf.mxu0
        %v1519 = vadd.f32 %v1447, %v1518
        %v1520 = vpop.f32.mrf.mxu0
        %1521 = vdwg.mxu0
        %1523 = vrot.lane.b32.xlu0 %v1519, 96
        %v1524 = vpop.permute.xlu0 %1523
        %vm1525 = vcmask 64512
        %v1526 = vsel %vm1525, %v1519, 0
        %v1528 = vsel %vm1525, %v1524, 0
        %1530 = vmatprep.subr.mxu0 0.0
        %1531 = vmatpush1.xpose.msra.mxu0 0.0
        %1532 = vmatprep.subr.mxu0 0.0
        %1533 = vmatpush1.xpose.msra.mxu0 0.0
        %1534 = vmatprep.subr.mxu0 0.0
        %1535 = vmatpush1.xpose.msra.mxu0 0.0
        %1536 = vmatprep.subr.mxu0 0.0
        %1537 = vmatpush1.xpose.msra.mxu0 0.0
        %1538 = vmatprep.subr.mxu0 0.0
        %1539 = vmatpush1.xpose.msra.mxu0 0.0
        %1540 = vmatprep.subr.mxu0 0.0
        %1541 = vmatpush1.xpose.msra.mxu0 0.0
        %1542 = vmatprep.subr.mxu0 0.0
        %1543 = vmatpush1.xpose.msra.mxu0 0.0
        %1544 = vmatprep.subr.mxu0 0.0
        %1545 = vmatpush1.xpose.msra.mxu0 0.0
        %1546 = vmatprep.subr.mxu0 0.0
        %1547 = vmatpush1.xpose.msra.mxu0 0.0
        %1548 = vmatprep.subr.mxu0 0.0
        %1549 = vmatpush1.xpose.msra.mxu0 0.0
        %1550 = vmatprep.subr.mxu0 0.0
        %1551 = vmatpush1.xpose.msra.mxu0 0.0
        %1552 = vmatprep.subr.mxu0 0.0
        %1553 = vmatpush1.xpose.msra.mxu0 0.0
        %1554 = vmatprep.subr.mxu0 0.0
        %1555 = vmatpush1.xpose.msra.mxu0 0.0
        %1556 = vmatprep.subr.mxu0 0.0
        %1557 = vmatpush1.xpose.msra.mxu0 0.0
        %1558 = vmatprep.subr.mxu0 0.0
        %1559 = vmatpush1.xpose.msra.mxu0 0.0
        %1560 = vmatprep.subr.mxu0 0.0
        %1561 = vmatpush1.xpose.msra.mxu0 %v1528
        %1562 = vmatprep.subr.mxu0 0.0
        %1563 = vmatpush2.xpose.msra.mxu0 0.0
        %1564 = vmatprep.subr.mxu0 0.0
        %1565 = vmatpush2.xpose.msra.mxu0 0.0
        %1566 = vmatprep.subr.mxu0 0.0
        %1567 = vmatpush2.xpose.msra.mxu0 0.0
        %1568 = vmatprep.subr.mxu0 0.0
        %1569 = vmatpush2.xpose.msra.mxu0 0.0
        %1570 = vmatprep.subr.mxu0 0.0
        %1571 = vmatpush2.xpose.msra.mxu0 0.0
        %1572 = vmatprep.subr.mxu0 0.0
        %1573 = vmatpush2.xpose.msra.mxu0 0.0
        %1574 = vmatprep.subr.mxu0 0.0
        %1575 = vmatpush2.xpose.msra.mxu0 0.0
        %1576 = vmatprep.subr.mxu0 0.0
        %1577 = vmatpush2.xpose.msra.mxu0 0.0
        %1578 = vmatprep.subr.mxu0 0.0
        %1579 = vmatpush2.xpose.msra.mxu0 0.0
        %1580 = vmatprep.subr.mxu0 0.0
        %1581 = vmatpush2.xpose.msra.mxu0 0.0
        %1582 = vmatprep.subr.mxu0 0.0
        %1583 = vmatpush2.xpose.msra.mxu0 0.0
        %1584 = vmatprep.subr.mxu0 0.0
        %1585 = vmatpush2.xpose.msra.mxu0 0.0
        %1586 = vmatprep.subr.mxu0 0.0
        %1587 = vmatpush2.xpose.msra.mxu0 0.0
        %1588 = vmatprep.subr.mxu0 0.0
        %1589 = vmatpush2.xpose.msra.mxu0 0.0
        %1590 = vmatprep.subr.mxu0 0.0
        %1591 = vmatpush2.xpose.msra.mxu0 0.0
        %1592 = vmatprep.subr.mxu0 0.0
        %1593 = vmatpush2.xpose.msra.mxu0 0.0
        %1594 = vmatprep.mubr.f32.mxu0 0.0
        %1595 = vmatmul.mubr.f32.gmra.mxu0 %v1526
        %v1596 = vpop.f32.mrf.mxu0
        %v1597 = vadd.f32 0.0, %v1596
        %v1598 = vpop.f32.mrf.mxu0
        %1599 = vdwg.mxu0
        %v1600 = vmul.f32 %v1597, 0.35355338
        %v1601 = vsel %vm1525, %v1600, -inf
        %1602 = vmax.xlane.f32.xlu0 %v1601
        %v1603 = vpop.xlane.xlu0 %1602
        %v1604 = vsub.f32 %v1600, %v1603
        %v1605 = vmul.f32 %v1604, 1.442695
        %v1606 = vpow.pop %v1605
        %v1607 = vsel %vm1525, %v1606, 0.0
        %1608 = vadd.xlane.f32.xlu0 %v1607
        %v1609 = vpop.xlane.xlu0 %1608
        %v1610 = vrcp.pop %v1609
        %v1611 = vmul.f32 %v1606, %v1610
        %1612 = vrot.lane.b32.xlu0 %v1519, 64
        %v1613 = vpop.permute.xlu0 %1612
        %v1616 = vsel %vm1525, %v1611, 0
        %1618 = vmatprep.subr.mxu0 0.0
        %1619 = vmatpush1.msra.mxu0 0.0
        %1620 = vmatprep.subr.mxu0 0.0
        %1621 = vmatpush1.msra.mxu0 0.0
        %1622 = vmatprep.subr.mxu0 0.0
        %1623 = vmatpush1.msra.mxu0 0.0
        %1624 = vmatprep.subr.mxu0 0.0
        %1625 = vmatpush1.msra.mxu0 0.0
        %1626 = vmatprep.subr.mxu0 0.0
        %1627 = vmatpush1.msra.mxu0 0.0
        %1628 = vmatprep.subr.mxu0 0.0
        %1629 = vmatpush1.msra.mxu0 0.0
        %1630 = vmatprep.subr.mxu0 0.0
        %1631 = vmatpush1.msra.mxu0 0.0
        %1632 = vmatprep.subr.mxu0 0.0
        %1633 = vmatpush1.msra.mxu0 0.0
        %1634 = vmatprep.subr.mxu0 0.0
        %1635 = vmatpush1.msra.mxu0 0.0
        %1636 = vmatprep.subr.mxu0 0.0
        %1637 = vmatpush1.msra.mxu0 0.0
        %1638 = vmatprep.subr.mxu0 0.0
        %1639 = vmatpush1.msra.mxu0 0.0
        %1640 = vmatprep.subr.mxu0 0.0
        %1641 = vmatpush1.msra.mxu0 0.0
        %1642 = vmatprep.subr.mxu0 0.0
        %1643 = vmatpush1.msra.mxu0 0.0
        %1644 = vmatprep.subr.mxu0 0.0
        %1645 = vmatpush1.msra.mxu0 0.0
        %1646 = vmatprep.subr.mxu0 0.0
        %1647 = vmatpush1.msra.mxu0 0.0
        %1648 = vmatprep.subr.mxu0 0.0
        %1649 = vmatpush1.msra.mxu0 %v1613
        %1650 = vmatprep.subr.mxu0 0.0
        %1651 = vmatpush2.msra.mxu0 0.0
        %1652 = vmatprep.subr.mxu0 0.0
        %1653 = vmatpush2.msra.mxu0 0.0
        %1654 = vmatprep.subr.mxu0 0.0
        %1655 = vmatpush2.msra.mxu0 0.0
        %1656 = vmatprep.subr.mxu0 0.0
        %1657 = vmatpush2.msra.mxu0 0.0
        %1658 = vmatprep.subr.mxu0 0.0
        %1659 = vmatpush2.msra.mxu0 0.0
        %1660 = vmatprep.subr.mxu0 0.0
        %1661 = vmatpush2.msra.mxu0 0.0
        %1662 = vmatprep.subr.mxu0 0.0
        %1663 = vmatpush2.msra.mxu0 0.0
        %1664 = vmatprep.subr.mxu0 0.0
        %1665 = vmatpush2.msra.mxu0 0.0
        %1666 = vmatprep.subr.mxu0 0.0
        %1667 = vmatpush2.msra.mxu0 0.0
        %1668 = vmatprep.subr.mxu0 0.0
        %1669 = vmatpush2.msra.mxu0 0.0
        %1670 = vmatprep.subr.mxu0 0.0
        %1671 = vmatpush2.msra.mxu0 0.0
        %1672 = vmatprep.subr.mxu0 0.0
        %1673 = vmatpush2.msra.mxu0 0.0
        %1674 = vmatprep.subr.mxu0 0.0
        %1675 = vmatpush2.msra.mxu0 0.0
        %1676 = vmatprep.subr.mxu0 0.0
        %1677 = vmatpush2.msra.mxu0 0.0
        %1678 = vmatprep.subr.mxu0 0.0
        %1679 = vmatpush2.msra.mxu0 0.0
        %1680 = vmatprep.subr.mxu0 0.0
        %1681 = vmatpush2.msra.mxu0 0.0
        %1682 = vmatprep.mubr.f32.mxu0 0.0
        %1683 = vmatmul.mubr.f32.gmra.mxu0 %v1616
        %v1684 = vpop.f32.mrf.mxu0
        %v1685 = vadd.f32 0.0, %v1684
        %v1686 = vpop.f32.mrf.mxu0
        %1687 = vdwg.mxu0
        %1688 = vrot.lane.b32.xlu0 %v1519, 120
        %v1689 = vpop.permute.xlu0 %1688
        %1690 = vrot.lane.b32.xlu0 %v1519, 88
        %v1691 = vpop.permute.xlu0 %1690
        %v1692 = vsel %vm1525, %v1689, 0
        %v1694 = vsel %vm1525, %v1691, 0
        %1696 = vmatprep.subr.mxu0 0.0
        %1697 = vmatpush1.xpose.msra.mxu0 0.0
        %1698 = vmatprep.subr.mxu0 0.0
        %1699 = vmatpush1.xpose.msra.mxu0 0.0
        %1700 = vmatprep.subr.mxu0 0.0
        %1701 = vmatpush1.xpose.msra.mxu0 0.0
        %1702 = vmatprep.subr.mxu0 0.0
        %1703 = vmatpush1.xpose.msra.mxu0 0.0
        %1704 = vmatprep.subr.mxu0 0.0
        %1705 = vmatpush1.xpose.msra.mxu0 0.0
        %1706 = vmatprep.subr.mxu0 0.0
        %1707 = vmatpush1.xpose.msra.mxu0 0.0
        %1708 = vmatprep.subr.mxu0 0.0
        %1709 = vmatpush1.xpose.msra.mxu0 0.0
        %1710 = vmatprep.subr.mxu0 0.0
        %1711 = vmatpush1.xpose.msra.mxu0 0.0
        %1712 = vmatprep.subr.mxu0 0.0
        %1713 = vmatpush1.xpose.msra.mxu0 0.0
        %1714 = vmatprep.subr.mxu0 0.0
        %1715 = vmatpush1.xpose.msra.mxu0 0.0
        %1716 = vmatprep.subr.mxu0 0.0
        %1717 = vmatpush1.xpose.msra.mxu0 0.0
        %1718 = vmatprep.subr.mxu0 0.0
        %1719 = vmatpush1.xpose.msra.mxu0 0.0
        %1720 = vmatprep.subr.mxu0 0.0
        %1721 = vmatpush1.xpose.msra.mxu0 0.0
        %1722 = vmatprep.subr.mxu0 0.0
        %1723 = vmatpush1.xpose.msra.mxu0 0.0
        %1724 = vmatprep.subr.mxu0 0.0
        %1725 = vmatpush1.xpose.msra.mxu0 0.0
        %1726 = vmatprep.subr.mxu0 0.0
        %1727 = vmatpush1.xpose.msra.mxu0 %v1694
        %1728 = vmatprep.subr.mxu0 0.0
        %1729 = vmatpush2.xpose.msra.mxu0 0.0
        %1730 = vmatprep.subr.mxu0 0.0
        %1731 = vmatpush2.xpose.msra.mxu0 0.0
        %1732 = vmatprep.subr.mxu0 0.0
        %1733 = vmatpush2.xpose.msra.mxu0 0.0
        %1734 = vmatprep.subr.mxu0 0.0
        %1735 = vmatpush2.xpose.msra.mxu0 0.0
        %1736 = vmatprep.subr.mxu0 0.0
        %1737 = vmatpush2.xpose.msra.mxu0 0.0
        %1738 = vmatprep.subr.mxu0 0.0
        %1739 = vmatpush2.xpose.msra.mxu0 0.0
        %1740 = vmatprep.subr.mxu0 0.0
        %1741 = vmatpush2.xpose.msra.mxu0 0.0
        %1742 = vmatprep.subr.mxu0 0.0
        %1743 = vmatpush2.xpose.msra.mxu0 0.0
        %1744 = vmatprep.subr.mxu0 0.0
        %1745 = vmatpush2.xpose.msra.mxu0 0.0
        %1746 = vmatprep.subr.mxu0 0.0
        %1747 = vmatpush2.xpose.msra.mxu0 0.0
        %1748 = vmatprep.subr.mxu0 0.0
        %1749 = vmatpush2.xpose.msra.mxu0 0.0
        %1750 = vmatprep.subr.mxu0 0.0
        %1751 = vmatpush2.xpose.msra.mxu0 0.0
        %1752 = vmatprep.subr.mxu0 0.0
        %1753 = vmatpush2.xpose.msra.mxu0 0.0
        %1754 = vmatprep.subr.mxu0 0.0
        %1755 = vmatpush2.xpose.msra.mxu0 0.0
        %1756 = vmatprep.subr.mxu0 0.0
        %1757 = vmatpush2.xpose.msra.mxu0 0.0
        %1758 = vmatprep.subr.mxu0 0.0
        %1759 = vmatpush2.xpose.msra.mxu0 0.0
        %1760 = vmatprep.mubr.f32.mxu0 0.0
        %1761 = vmatmul.mubr.f32.gmra.mxu0 %v1692
        %v1762 = vpop.f32.mrf.mxu0
        %v1763 = vadd.f32 0.0, %v1762
        %v1764 = vpop.f32.mrf.mxu0
        %1765 = vdwg.mxu0
        %v1766 = vmul.f32 %v1763, 0.35355338
        %v1767 = vsel %vm1525, %v1766, -inf
        %1768 = vmax.xlane.f32.xlu0 %v1767
        %v1769 = vpop.xlane.xlu0 %1768
        %v1770 = vsub.f32 %v1766, %v1769
        %v1771 = vmul.f32 %v1770, 1.442695
        %v1772 = vpow.pop %v1771
        %v1773 = vsel %vm1525, %v1772, 0.0
        %1774 = vadd.xlane.f32.xlu0 %v1773
        %v1775 = vpop.xlane.xlu0 %1774
        %v1776 = vrcp.pop %v1775
        %v1777 = vmul.f32 %v1772, %v1776
        %1778 = vrot.lane.b32.xlu0 %v1519, 56
        %v1779 = vpop.permute.xlu0 %1778
        %v1782 = vsel %vm1525, %v1777, 0
        %1784 = vmatprep.subr.mxu0 0.0
        %1785 = vmatpush1.msra.mxu0 0.0
        %1786 = vmatprep.subr.mxu0 0.0
        %1787 = vmatpush1.msra.mxu0 0.0
        %1788 = vmatprep.subr.mxu0 0.0
        %1789 = vmatpush1.msra.mxu0 0.0
        %1790 = vmatprep.subr.mxu0 0.0
        %1791 = vmatpush1.msra.mxu0 0.0
        %1792 = vmatprep.subr.mxu0 0.0
        %1793 = vmatpush1.msra.mxu0 0.0
        %1794 = vmatprep.subr.mxu0 0.0
        %1795 = vmatpush1.msra.mxu0 0.0
        %1796 = vmatprep.subr.mxu0 0.0
        %1797 = vmatpush1.msra.mxu0 0.0
        %1798 = vmatprep.subr.mxu0 0.0
        %1799 = vmatpush1.msra.mxu0 0.0
        %1800 = vmatprep.subr.mxu0 0.0
        %1801 = vmatpush1.msra.mxu0 0.0
        %1802 = vmatprep.subr.mxu0 0.0
        %1803 = vmatpush1.msra.mxu0 0.0
        %1804 = vmatprep.subr.mxu0 0.0
        %1805 = vmatpush1.msra.mxu0 0.0
        %1806 = vmatprep.subr.mxu0 0.0
        %1807 = vmatpush1.msra.mxu0 0.0
        %1808 = vmatprep.subr.mxu0 0.0
        %1809 = vmatpush1.msra.mxu0 0.0
        %1810 = vmatprep.subr.mxu0 0.0
        %1811 = vmatpush1.msra.mxu0 0.0
        %1812 = vmatprep.subr.mxu0 0.0
        %1813 = vmatpush1.msra.mxu0 0.0
        %1814 = vmatprep.subr.mxu0 0.0
        %1815 = vmatpush1.msra.mxu0 %v1779
        %1816 = vmatprep.subr.mxu0 0.0
        %1817 = vmatpush2.msra.mxu0 0.0
        %1818 = vmatprep.subr.mxu0 0.0
        %1819 = vmatpush2.msra.mxu0 0.0
        %1820 = vmatprep.subr.mxu0 0.0
        %1821 = vmatpush2.msra.mxu0 0.0
        %1822 = vmatprep.subr.mxu0 0.0
        %1823 = vmatpush2.msra.mxu0 0.0
        %1824 = vmatprep.subr.mxu0 0.0
        %1825 = vmatpush2.msra.mxu0 0.0
        %1826 = vmatprep.subr.mxu0 0.0
        %1827 = vmatpush2.msra.mxu0 0.0
        %1828 = vmatprep.subr.mxu0 0.0
        %1829 = vmatpush2.msra.mxu0 0.0
        %1830 = vmatprep.subr.mxu0 0.0
        %1831 = vmatpush2.msra.mxu0 0.0
        %1832 = vmatprep.subr.mxu0 0.0
        %1833 = vmatpush2.msra.mxu0 0.0
        %1834 = vmatprep.subr.mxu0 0.0
        %1835 = vmatpush2.msra.mxu0 0.0
        %1836 = vmatprep.subr.mxu0 0.0
        %1837 = vmatpush2.msra.mxu0 0.0
        %1838 = vmatprep.subr.mxu0 0.0
        %1839 = vmatpush2.msra.mxu0 0.0
        %1840 = vmatprep.subr.mxu0 0.0
        %1841 = vmatpush2.msra.mxu0 0.0
        %1842 = vmatprep.subr.mxu0 0.0
        %1843 = vmatpush2.msra.mxu0 0.0
        %1844 = vmatprep.subr.mxu0 0.0
        %1845 = vmatpush2.msra.mxu0 0.0
        %1846 = vmatprep.subr.mxu0 0.0
        %1847 = vmatpush2.msra.mxu0 0.0
        %1848 = vmatprep.mubr.f32.mxu0 0.0
        %1849 = vmatmul.mubr.f32.gmra.mxu0 %v1782
        %v1850 = vpop.f32.mrf.mxu0
        %v1851 = vadd.f32 0.0, %v1850
        %v1852 = vpop.f32.mrf.mxu0
        %1853 = vdwg.mxu0
        %1854 = vrot.lane.b32.xlu0 %v1519, 112
        %v1855 = vpop.permute.xlu0 %1854
        %1856 = vrot.lane.b32.xlu0 %v1519, 80
        %v1857 = vpop.permute.xlu0 %1856
        %v1858 = vsel %vm1525, %v1855, 0
        %v1860 = vsel %vm1525, %v1857, 0
        %1862 = vmatprep.subr.mxu0 0.0
        %1863 = vmatpush1.xpose.msra.mxu0 0.0
        %1864 = vmatprep.subr.mxu0 0.0
        %1865 = vmatpush1.xpose.msra.mxu0 0.0
        %1866 = vmatprep.subr.mxu0 0.0
        %1867 = vmatpush1.xpose.msra.mxu0 0.0
        %1868 = vmatprep.subr.mxu0 0.0
        %1869 = vmatpush1.xpose.msra.mxu0 0.0
        %1870 = vmatprep.subr.mxu0 0.0
        %1871 = vmatpush1.xpose.msra.mxu0 0.0
        %1872 = vmatprep.subr.mxu0 0.0
        %1873 = vmatpush1.xpose.msra.mxu0 0.0
        %1874 = vmatprep.subr.mxu0 0.0
        %1875 = vmatpush1.xpose.msra.mxu0 0.0
        %1876 = vmatprep.subr.mxu0 0.0
        %1877 = vmatpush1.xpose.msra.mxu0 0.0
        %1878 = vmatprep.subr.mxu0 0.0
        %1879 = vmatpush1.xpose.msra.mxu0 0.0
        %1880 = vmatprep.subr.mxu0 0.0
        %1881 = vmatpush1.xpose.msra.mxu0 0.0
        %1882 = vmatprep.subr.mxu0 0.0
        %1883 = vmatpush1.xpose.msra.mxu0 0.0
        %1884 = vmatprep.subr.mxu0 0.0
        %1885 = vmatpush1.xpose.msra.mxu0 0.0
        %1886 = vmatprep.subr.mxu0 0.0
        %1887 = vmatpush1.xpose.msra.mxu0 0.0
        %1888 = vmatprep.subr.mxu0 0.0
        %1889 = vmatpush1.xpose.msra.mxu0 0.0
        %1890 = vmatprep.subr.mxu0 0.0
        %1891 = vmatpush1.xpose.msra.mxu0 0.0
        %1892 = vmatprep.subr.mxu0 0.0
        %1893 = vmatpush1.xpose.msra.mxu0 %v1860
        %1894 = vmatprep.subr.mxu0 0.0
        %1895 = vmatpush2.xpose.msra.mxu0 0.0
        %1896 = vmatprep.subr.mxu0 0.0
        %1897 = vmatpush2.xpose.msra.mxu0 0.0
        %1898 = vmatprep.subr.mxu0 0.0
        %1899 = vmatpush2.xpose.msra.mxu0 0.0
        %1900 = vmatprep.subr.mxu0 0.0
        %1901 = vmatpush2.xpose.msra.mxu0 0.0
        %1902 = vmatprep.subr.mxu0 0.0
        %1903 = vmatpush2.xpose.msra.mxu0 0.0
        %1904 = vmatprep.subr.mxu0 0.0
        %1905 = vmatpush2.xpose.msra.mxu0 0.0
        %1906 = vmatprep.subr.mxu0 0.0
        %1907 = vmatpush2.xpose.msra.mxu0 0.0
        %1908 = vmatprep.subr.mxu0 0.0
        %1909 = vmatpush2.xpose.msra.mxu0 0.0
        %1910 = vmatprep.subr.mxu0 0.0
        %1911 = vmatpush2.xpose.msra.mxu0 0.0
        %1912 = vmatprep.subr.mxu0 0.0
        %1913 = vmatpush2.xpose.msra.mxu0 0.0
        %1914 = vmatprep.subr.mxu0 0.0
        %1915 = vmatpush2.xpose.msra.mxu0 0.0
        %1916 = vmatprep.subr.mxu0 0.0
        %1917 = vmatpush2.xpose.msra.mxu0 0.0
        %1918 = vmatprep.subr.mxu0 0.0
        %1919 = vmatpush2.xpose.msra.mxu0 0.0
        %1920 = vmatprep.subr.mxu0 0.0
        %1921 = vmatpush2.xpose.msra.mxu0 0.0
        %1922 = vmatprep.subr.mxu0 0.0
        %1923 = vmatpush2.xpose.msra.mxu0 0.0
        %1924 = vmatprep.subr.mxu0 0.0
        %1925 = vmatpush2.xpose.msra.mxu0 0.0
        %1926 = vmatprep.mubr.f32.mxu0 0.0
        %1927 = vmatmul.mubr.f32.gmra.mxu0 %v1858
        %v1928 = vpop.f32.mrf.mxu0
        %v1929 = vadd.f32 0.0, %v1928
        %v1930 = vpop.f32.mrf.mxu0
        %1931 = vdwg.mxu0
        %v1932 = vmul.f32 %v1929, 0.35355338
        %v1933 = vsel %vm1525, %v1932, -inf
        %1934 = vmax.xlane.f32.xlu0 %v1933
        %v1935 = vpop.xlane.xlu0 %1934
        %v1936 = vsub.f32 %v1932, %v1935
        %v1937 = vmul.f32 %v1936, 1.442695
        %v1938 = vpow.pop %v1937
        %v1939 = vsel %vm1525, %v1938, 0.0
        %1940 = vadd.xlane.f32.xlu0 %v1939
        %v1941 = vpop.xlane.xlu0 %1940
        %v1942 = vrcp.pop %v1941
        %v1943 = vmul.f32 %v1938, %v1942
        %1944 = vrot.lane.b32.xlu0 %v1519, 48
        %v1945 = vpop.permute.xlu0 %1944
        %v1948 = vsel %vm1525, %v1943, 0
        %1950 = vmatprep.subr.mxu0 0.0
        %1951 = vmatpush1.msra.mxu0 0.0
        %1952 = vmatprep.subr.mxu0 0.0
        %1953 = vmatpush1.msra.mxu0 0.0
        %1954 = vmatprep.subr.mxu0 0.0
        %1955 = vmatpush1.msra.mxu0 0.0
        %1956 = vmatprep.subr.mxu0 0.0
        %1957 = vmatpush1.msra.mxu0 0.0
        %1958 = vmatprep.subr.mxu0 0.0
        %1959 = vmatpush1.msra.mxu0 0.0
        %1960 = vmatprep.subr.mxu0 0.0
        %1961 = vmatpush1.msra.mxu0 0.0
        %1962 = vmatprep.subr.mxu0 0.0
        %1963 = vmatpush1.msra.mxu0 0.0
        %1964 = vmatprep.subr.mxu0 0.0
        %1965 = vmatpush1.msra.mxu0 0.0
        %1966 = vmatprep.subr.mxu0 0.0
        %1967 = vmatpush1.msra.mxu0 0.0
        %1968 = vmatprep.subr.mxu0 0.0
        %1969 = vmatpush1.msra.mxu0 0.0
        %1970 = vmatprep.subr.mxu0 0.0
        %1971 = vmatpush1.msra.mxu0 0.0
        %1972 = vmatprep.subr.mxu0 0.0
        %1973 = vmatpush1.msra.mxu0 0.0
        %1974 = vmatprep.subr.mxu0 0.0
        %1975 = vmatpush1.msra.mxu0 0.0
        %1976 = vmatprep.subr.mxu0 0.0
        %1977 = vmatpush1.msra.mxu0 0.0
        %1978 = vmatprep.subr.mxu0 0.0
        %1979 = vmatpush1.msra.mxu0 0.0
        %1980 = vmatprep.subr.mxu0 0.0
        %1981 = vmatpush1.msra.mxu0 %v1945
        %1982 = vmatprep.subr.mxu0 0.0
        %1983 = vmatpush2.msra.mxu0 0.0
        %1984 = vmatprep.subr.mxu0 0.0
        %1985 = vmatpush2.msra.mxu0 0.0
        %1986 = vmatprep.subr.mxu0 0.0
        %1987 = vmatpush2.msra.mxu0 0.0
        %1988 = vmatprep.subr.mxu0 0.0
        %1989 = vmatpush2.msra.mxu0 0.0
        %1990 = vmatprep.subr.mxu0 0.0
        %1991 = vmatpush2.msra.mxu0 0.0
        %1992 = vmatprep.subr.mxu0 0.0
        %1993 = vmatpush2.msra.mxu0 0.0
        %1994 = vmatprep.subr.mxu0 0.0
        %1995 = vmatpush2.msra.mxu0 0.0
        %1996 = vmatprep.subr.mxu0 0.0
        %1997 = vmatpush2.msra.mxu0 0.0
        %1998 = vmatprep.subr.mxu0 0.0
        %1999 = vmatpush2.msra.mxu0 0.0
        %2000 = vmatprep.subr.mxu0 0.0
        %2001 = vmatpush2.msra.mxu0 0.0
        %2002 = vmatprep.subr.mxu0 0.0
        %2003 = vmatpush2.msra.mxu0 0.0
        %2004 = vmatprep.subr.mxu0 0.0
        %2005 = vmatpush2.msra.mxu0 0.0
        %2006 = vmatprep.subr.mxu0 0.0
        %2007 = vmatpush2.msra.mxu0 0.0
        %2008 = vmatprep.subr.mxu0 0.0
        %2009 = vmatpush2.msra.mxu0 0.0
        %2010 = vmatprep.subr.mxu0 0.0
        %2011 = vmatpush2.msra.mxu0 0.0
        %2012 = vmatprep.subr.mxu0 0.0
        %2013 = vmatpush2.msra.mxu0 0.0
        %2014 = vmatprep.mubr.f32.mxu0 0.0
        %2015 = vmatmul.mubr.f32.gmra.mxu0 %v1948
        %v2016 = vpop.f32.mrf.mxu0
        %v2017 = vadd.f32 0.0, %v2016
        %v2018 = vpop.f32.mrf.mxu0
        %2019 = vdwg.mxu0
        %2020 = vrot.lane.b32.xlu0 %v1519, 104
        %v2021 = vpop.permute.xlu0 %2020
        %2022 = vrot.lane.b32.xlu0 %v1519, 72
        %v2023 = vpop.permute.xlu0 %2022
        %v2024 = vsel %vm1525, %v2021, 0
        %v2026 = vsel %vm1525, %v2023, 0
        %2028 = vmatprep.subr.mxu0 0.0
        %2029 = vmatpush1.xpose.msra.mxu0 0.0
        %2030 = vmatprep.subr.mxu0 0.0
        %2031 = vmatpush1.xpose.msra.mxu0 0.0
        %2032 = vmatprep.subr.mxu0 0.0
        %2033 = vmatpush1.xpose.msra.mxu0 0.0
        %2034 = vmatprep.subr.mxu0 0.0
        %2035 = vmatpush1.xpose.msra.mxu0 0.0
        %2036 = vmatprep.subr.mxu0 0.0
        %2037 = vmatpush1.xpose.msra.mxu0 0.0
        %2038 = vmatprep.subr.mxu0 0.0
        %2039 = vmatpush1.xpose.msra.mxu0 0.0
        %2040 = vmatprep.subr.mxu0 0.0
        %2041 = vmatpush1.xpose.msra.mxu0 0.0
        %2042 = vmatprep.subr.mxu0 0.0
        %2043 = vmatpush1.xpose.msra.mxu0 0.0
        %2044 = vmatprep.subr.mxu0 0.0
        %2045 = vmatpush1.xpose.msra.mxu0 0.0
        %2046 = vmatprep.subr.mxu0 0.0
        %2047 = vmatpush1.xpose.msra.mxu0 0.0
        %2048 = vmatprep.subr.mxu0 0.0
        %2049 = vmatpush1.xpose.msra.mxu0 0.0
        %2050 = vmatprep.subr.mxu0 0.0
        %2051 = vmatpush1.xpose.msra.mxu0 0.0
        %2052 = vmatprep.subr.mxu0 0.0
        %2053 = vmatpush1.xpose.msra.mxu0 0.0
        %2054 = vmatprep.subr.mxu0 0.0
        %2055 = vmatpush1.xpose.msra.mxu0 0.0
        %2056 = vmatprep.subr.mxu0 0.0
        %2057 = vmatpush1.xpose.msra.mxu0 0.0
        %2058 = vmatprep.subr.mxu0 0.0
        %2059 = vmatpush1.xpose.msra.mxu0 %v2026
        %2060 = vmatprep.subr.mxu0 0.0
        %2061 = vmatpush2.xpose.msra.mxu0 0.0
        %2062 = vmatprep.subr.mxu0 0.0
        %2063 = vmatpush2.xpose.msra.mxu0 0.0
        %2064 = vmatprep.subr.mxu0 0.0
        %2065 = vmatpush2.xpose.msra.mxu0 0.0
        %2066 = vmatprep.subr.mxu0 0.0
        %2067 = vmatpush2.xpose.msra.mxu0 0.0
        %2068 = vmatprep.subr.mxu0 0.0
        %2069 = vmatpush2.xpose.msra.mxu0 0.0
        %2070 = vmatprep.subr.mxu0 0.0
        %2071 = vmatpush2.xpose.msra.mxu0 0.0
        %2072 = vmatprep.subr.mxu0 0.0
        %2073 = vmatpush2.xpose.msra.mxu0 0.0
        %2074 = vmatprep.subr.mxu0 0.0
        %2075 = vmatpush2.xpose.msra.mxu0 0.0
        %2076 = vmatprep.subr.mxu0 0.0
        %2077 = vmatpush2.xpose.msra.mxu0 0.0
        %2078 = vmatprep.subr.mxu0 0.0
        %2079 = vmatpush2.xpose.msra.mxu0 0.0
        %2080 = vmatprep.subr.mxu0 0.0
        %2081 = vmatpush2.xpose.msra.mxu0 0.0
        %2082 = vmatprep.subr.mxu0 0.0
        %2083 = vmatpush2.xpose.msra.mxu0 0.0
        %2084 = vmatprep.subr.mxu0 0.0
        %2085 = vmatpush2.xpose.msra.mxu0 0.0
        %2086 = vmatprep.subr.mxu0 0.0
        %2087 = vmatpush2.xpose.msra.mxu0 0.0
        %2088 = vmatprep.subr.mxu0 0.0
        %2089 = vmatpush2.xpose.msra.mxu0 0.0
        %2090 = vmatprep.subr.mxu0 0.0
        %2091 = vmatpush2.xpose.msra.mxu0 0.0
        %2092 = vmatprep.mubr.f32.mxu0 0.0
        %2093 = vmatmul.mubr.f32.gmra.mxu0 %v2024
        %v2094 = vpop.f32.mrf.mxu0
        %v2095 = vadd.f32 0.0, %v2094
        %v2096 = vpop.f32.mrf.mxu0
        %2097 = vdwg.mxu0
        %v2098 = vmul.f32 %v2095, 0.35355338
        %v2099 = vsel %vm1525, %v2098, -inf
        %2100 = vmax.xlane.f32.xlu0 %v2099
        %v2101 = vpop.xlane.xlu0 %2100
        %v2102 = vsub.f32 %v2098, %v2101
        %v2103 = vmul.f32 %v2102, 1.442695
        %v2104 = vpow.pop %v2103
        %v2105 = vsel %vm1525, %v2104, 0.0
        %2106 = vadd.xlane.f32.xlu0 %v2105
        %v2107 = vpop.xlane.xlu0 %2106
        %v2108 = vrcp.pop %v2107
        %v2109 = vmul.f32 %v2104, %v2108
        %2110 = vrot.lane.b32.xlu0 %v1519, 40
        %v2111 = vpop.permute.xlu0 %2110
        %v2114 = vsel %vm1525, %v2109, 0
        %2116 = vmatprep.subr.mxu0 0.0
        %2117 = vmatpush1.msra.mxu0 0.0
        %2118 = vmatprep.subr.mxu0 0.0
        %2119 = vmatpush1.msra.mxu0 0.0
        %2120 = vmatprep.subr.mxu0 0.0
        %2121 = vmatpush1.msra.mxu0 0.0
        %2122 = vmatprep.subr.mxu0 0.0
        %2123 = vmatpush1.msra.mxu0 0.0
        %2124 = vmatprep.subr.mxu0 0.0
        %2125 = vmatpush1.msra.mxu0 0.0
        %2126 = vmatprep.subr.mxu0 0.0
        %2127 = vmatpush1.msra.mxu0 0.0
        %2128 = vmatprep.subr.mxu0 0.0
        %2129 = vmatpush1.msra.mxu0 0.0
        %2130 = vmatprep.subr.mxu0 0.0
        %2131 = vmatpush1.msra.mxu0 0.0
        %2132 = vmatprep.subr.mxu0 0.0
        %2133 = vmatpush1.msra.mxu0 0.0
        %2134 = vmatprep.subr.mxu0 0.0
        %2135 = vmatpush1.msra.mxu0 0.0
        %2136 = vmatprep.subr.mxu0 0.0
        %2137 = vmatpush1.msra.mxu0 0.0
        %2138 = vmatprep.subr.mxu0 0.0
        %2139 = vmatpush1.msra.mxu0 0.0
        %2140 = vmatprep.subr.mxu0 0.0
        %2141 = vmatpush1.msra.mxu0 0.0
        %2142 = vmatprep.subr.mxu0 0.0
        %2143 = vmatpush1.msra.mxu0 0.0
        %2144 = vmatprep.subr.mxu0 0.0
        %2145 = vmatpush1.msra.mxu0 0.0
        %2146 = vmatprep.subr.mxu0 0.0
        %2147 = vmatpush1.msra.mxu0 %v2111
        %2148 = vmatprep.subr.mxu0 0.0
        %2149 = vmatpush2.msra.mxu0 0.0
        %2150 = vmatprep.subr.mxu0 0.0
        %2151 = vmatpush2.msra.mxu0 0.0
        %2152 = vmatprep.subr.mxu0 0.0
        %2153 = vmatpush2.msra.mxu0 0.0
        %2154 = vmatprep.subr.mxu0 0.0
        %2155 = vmatpush2.msra.mxu0 0.0
        %2156 = vmatprep.subr.mxu0 0.0
        %2157 = vmatpush2.msra.mxu0 0.0
        %2158 = vmatprep.subr.mxu0 0.0
        %2159 = vmatpush2.msra.mxu0 0.0
        %2160 = vmatprep.subr.mxu0 0.0
        %2161 = vmatpush2.msra.mxu0 0.0
        %2162 = vmatprep.subr.mxu0 0.0
        %2163 = vmatpush2.msra.mxu0 0.0
        %2164 = vmatprep.subr.mxu0 0.0
        %2165 = vmatpush2.msra.mxu0 0.0
        %2166 = vmatprep.subr.mxu0 0.0
        %2167 = vmatpush2.msra.mxu0 0.0
        %2168 = vmatprep.subr.mxu0 0.0
        %2169 = vmatpush2.msra.mxu0 0.0
        %2170 = vmatprep.subr.mxu0 0.0
        %2171 = vmatpush2.msra.mxu0 0.0
        %2172 = vmatprep.subr.mxu0 0.0
        %2173 = vmatpush2.msra.mxu0 0.0
        %2174 = vmatprep.subr.mxu0 0.0
        %2175 = vmatpush2.msra.mxu0 0.0
        %2176 = vmatprep.subr.mxu0 0.0
        %2177 = vmatpush2.msra.mxu0 0.0
        %2178 = vmatprep.subr.mxu0 0.0
        %2179 = vmatpush2.msra.mxu0 0.0
        %2180 = vmatprep.mubr.f32.mxu0 0.0
        %2181 = vmatmul.mubr.f32.gmra.mxu0 %v2114
        %v2182 = vpop.f32.mrf.mxu0
        %v2183 = vadd.f32 0.0, %v2182
        %v2184 = vpop.f32.mrf.mxu0
        %2185 = vdwg.mxu0
        %2187 = vrot.lane.b32.xlu0 %v1851, 8
        %v2188 = vpop.permute.xlu0 %2187
        %2191 = vrot.lane.b32.xlu0 %v2017, 16
        %v2192 = vpop.permute.xlu0 %2191
        %2195 = vrot.lane.b32.xlu0 %v2183, 24
        %v2196 = vpop.permute.xlu0 %2195
        %v2198 = vsel %vm1525, %v1685, %v2188
        %vm2199 = vcmask 130048
        %v2200 = vsel %vm2199, %v2198, %v2192
        %vm2201 = vcmask 195584
        %v2202 = vsel %vm2201, %v2200, %v2196
        %v2203 = vld [vmem:[%s23] sm:$0xff]
        %v2204 = vld [vmem:[%s23 + $0x8] sm:$0xff]
        %v2205 = vld [vmem:[%s23 + $0x10] sm:$0xff]
        %v2206 = vld [vmem:[%s23 + $0x18] sm:$0xff]
        %v2207 = vld [vmem:[#allocation10] sm:$0x1]
        %v2209 = vlaneseq
        %v2210 = vshrl.u32 %v2209, 7
        %v2211 = vsub.s32 0, %v2210
        %v2212 = vrot.slane %v2207, %v2211
        %v2215 = vsel %vm1195, %v2202, 0
        %2217 = vmatprep.subr.mxu0 0.0
        %2218 = vmatpush1.msra.mxu0 0.0
        %2219 = vmatprep.subr.mxu0 0.0
        %2220 = vmatpush1.msra.mxu0 0.0
        %2221 = vmatprep.subr.mxu0 0.0
        %2222 = vmatpush1.msra.mxu0 0.0
        %2223 = vmatprep.subr.mxu0 0.0
        %2224 = vmatpush1.msra.mxu0 0.0
        %2225 = vmatprep.subr.mxu0 0.0
        %2226 = vmatpush1.msra.mxu0 0.0
        %2227 = vmatprep.subr.mxu0 0.0
        %2228 = vmatpush1.msra.mxu0 0.0
        %2229 = vmatprep.subr.mxu0 0.0
        %2230 = vmatpush1.msra.mxu0 0.0
        %2231 = vmatprep.subr.mxu0 0.0
        %2232 = vmatpush1.msra.mxu0 0.0
        %2233 = vmatprep.subr.mxu0 0.0
        %2234 = vmatpush1.msra.mxu0 0.0
        %2235 = vmatprep.subr.mxu0 0.0
        %2236 = vmatpush1.msra.mxu0 0.0
        %2237 = vmatprep.subr.mxu0 0.0
        %2238 = vmatpush1.msra.mxu0 0.0
        %2239 = vmatprep.subr.mxu0 0.0
        %2240 = vmatpush1.msra.mxu0 0.0
        %2241 = vmatprep.subr.mxu0 0.0
        %2242 = vmatpush1.msra.mxu0 %v2206
        %2243 = vmatprep.subr.mxu0 0.0
        %2244 = vmatpush1.msra.mxu0 %v2205
        %2245 = vmatprep.subr.mxu0 0.0
        %2246 = vmatpush1.msra.mxu0 %v2204
        %2247 = vmatprep.subr.mxu0 0.0
        %2248 = vmatpush1.msra.mxu0 %v2203
        %2249 = vmatprep.subr.mxu0 0.0
        %2250 = vmatpush2.msra.mxu0 0.0
        %2251 = vmatprep.subr.mxu0 0.0
        %2252 = vmatpush2.msra.mxu0 0.0
        %2253 = vmatprep.subr.mxu0 0.0
        %2254 = vmatpush2.msra.mxu0 0.0
        %2255 = vmatprep.subr.mxu0 0.0
        %2256 = vmatpush2.msra.mxu0 0.0
        %2257 = vmatprep.subr.mxu0 0.0
        %2258 = vmatpush2.msra.mxu0 0.0
        %2259 = vmatprep.subr.mxu0 0.0
        %2260 = vmatpush2.msra.mxu0 0.0
        %2261 = vmatprep.subr.mxu0 0.0
        %2262 = vmatpush2.msra.mxu0 0.0
        %2263 = vmatprep.subr.mxu0 0.0
        %2264 = vmatpush2.msra.mxu0 0.0
        %2265 = vmatprep.subr.mxu0 0.0
        %2266 = vmatpush2.msra.mxu0 0.0
        %2267 = vmatprep.subr.mxu0 0.0
        %2268 = vmatpush2.msra.mxu0 0.0
        %2269 = vmatprep.subr.mxu0 0.0
        %2270 = vmatpush2.msra.mxu0 0.0
        %2271 = vmatprep.subr.mxu0 0.0
        %2272 = vmatpush2.msra.mxu0 0.0
        %2273 = vmatprep.subr.mxu0 0.0
        %2274 = vmatpush2.msra.mxu0 0.0
        %2275 = vmatprep.subr.mxu0 0.0
        %2276 = vmatpush2.msra.mxu0 0.0
        %2277 = vmatprep.subr.mxu0 0.0
        %2278 = vmatpush2.msra.mxu0 0.0
        %2279 = vmatprep.subr.mxu0 0.0
        %2280 = vmatpush2.msra.mxu0 0.0
        %2281 = vmatprep.mubr.f32.mxu0 0.0
        %2282 = vmatmul.mubr.f32.gmra.mxu0 %v2215
        %v2283 = vpop.f32.mrf.mxu0
        %v2284 = vadd.f32 %v2212, %v2283
        %v2285 = vpop.f32.mrf.mxu0
        %2286 = vdwg.mxu0
        %v2287 = vadd.f32 %v1408, %v2284
        %v2288 = vld [vmem:[#allocation12] sm:$0x1]
        %v2289 = vld [vmem:[#allocation13] sm:$0x1]
        %v2290 = vsel %vm1195, %v2287, 0.0
        %2291 = vadd.xlane.f32.xlu0 %v2290
        %v2292 = vpop.xlane.xlu0 %2291
        %v2293 = vmul.f32 %v2292, %v1199
        %v2294 = vsub.f32 %v2287, %v2293
        %v2295 = vmul.f32 %v2294, %v2294
        %v2296 = vsel %vm1195, %v2295, 0.0
        %2297 = vadd.xlane.f32.xlu0 %v2296
        %v2298 = vpop.xlane.xlu0 %2297
        %v2299 = vmul.f32 %v2298, %v1199
        %v2300 = vadd.f32 %v2299, 1e-05
        %v2301 = vrsqrt.pop %v2300
        %v2302 = vmul.f32 %v2294, %v2301
        %v2304 = vlaneseq
        %v2305 = vshrl.u32 %v2304, 7
        %v2306 = vsub.s32 0, %v2305
        %v2307 = vrot.slane %v2288, %v2306
        %v2309 = vmul.f32 %v2302, %v2307
        %v2311 = vlaneseq
        %v2312 = vshrl.u32 %v2311, 7
        %v2313 = vsub.s32 0, %v2312
        %v2314 = vrot.slane %v2289, %v2313
        %v2316 = vadd.f32 %v2309, %v2314
        %v2317 = vld [vmem:[%s31] sm:$0xff]
        %v2318 = vld [vmem:[%s31 + $0x8] sm:$0xff]
        %v2319 = vld [vmem:[%s31 + $0x10] sm:$0xff]
        %v2320 = vld [vmem:[%s31 + $0x18] sm:$0xff]
        %v2321 = vld [vmem:[#allocation15] sm:$0x1]
        %v2323 = vlaneseq
        %v2324 = vshrl.u32 %v2323, 7
        %v2325 = vsub.s32 0, %v2324
        %v2326 = vrot.slane %v2321, %v2325
        %v2329 = vsel %vm1195, %v2316, 0
        %2331 = vmatprep.subr.mxu0 0.0
        %2332 = vmatpush1.msra.mxu0 0.0
        %2333 = vmatprep.subr.mxu0 0.0
        %2334 = vmatpush1.msra.mxu0 0.0
        %2335 = vmatprep.subr.mxu0 0.0
        %2336 = vmatpush1.msra.mxu0 0.0
        %2337 = vmatprep.subr.mxu0 0.0
        %2338 = vmatpush1.msra.mxu0 0.0
        %2339 = vmatprep.subr.mxu0 0.0
        %2340 = vmatpush1.msra.mxu0 0.0
        %2341 = vmatprep.subr.mxu0 0.0
        %2342 = vmatpush1.msra.mxu0 0.0
        %2343 = vmatprep.subr.mxu0 0.0
        %2344 = vmatpush1.msra.mxu0 0.0
        %2345 = vmatprep.subr.mxu0 0.0
        %2346 = vmatpush1.msra.mxu0 0.0
        %2347 = vmatprep.subr.mxu0 0.0
        %2348 = vmatpush1.msra.mxu0 0.0
        %2349 = vmatprep.subr.mxu0 0.0
        %2350 = vmatpush1.msra.mxu0 0.0
        %2351 = vmatprep.subr.mxu0 0.0
        %2352 = vmatpush1.msra.mxu0 0.0
        %2353 = vmatprep.subr.mxu0 0.0
        %2354 = vmatpush1.msra.mxu0 0.0
        %2355 = vmatprep.subr.mxu0 0.0
        %2356 = vmatpush1.msra.mxu0 %v2320
        %2357 = vmatprep.subr.mxu0 0.0
        %2358 = vmatpush1.msra.mxu0 %v2319
        %2359 = vmatprep.subr.mxu0 0.0
        %2360 = vmatpush1.msra.mxu0 %v2318
        %2361 = vmatprep.subr.mxu0 0.0
        %2362 = vmatpush1.msra.mxu0 %v2317
        %2363 = vmatprep.subr.mxu0 0.0
        %2364 = vmatpush2.msra.mxu0 0.0
        %2365 = vmatprep.subr.mxu0 0.0
        %2366 = vmatpush2.msra.mxu0 0.0
        %2367 = vmatprep.subr.mxu0 0.0
        %2368 = vmatpush2.msra.mxu0 0.0
        %2369 = vmatprep.subr.mxu0 0.0
        %2370 = vmatpush2.msra.mxu0 0.0
        %2371 = vmatprep.subr.mxu0 0.0
        %2372 = vmatpush2.msra.mxu0 0.0
        %2373 = vmatprep.subr.mxu0 0.0
        %2374 = vmatpush2.msra.mxu0 0.0
        %2375 = vmatprep.subr.mxu0 0.0
        %2376 = vmatpush2.msra.mxu0 0.0
        %2377 = vmatprep.subr.mxu0 0.0
        %2378 = vmatpush2.msra.mxu0 0.0
        %2379 = vmatprep.subr.mxu0 0.0
        %2380 = vmatpush2.msra.mxu0 0.0
        %2381 = vmatprep.subr.mxu0 0.0
        %2382 = vmatpush2.msra.mxu0 0.0
        %2383 = vmatprep.subr.mxu0 0.0
        %2384 = vmatpush2.msra.mxu0 0.0
        %2385 = vmatprep.subr.mxu0 0.0
        %2386 = vmatpush2.msra.mxu0 0.0
        %2387 = vmatprep.subr.mxu0 0.0
        %2388 = vmatpush2.msra.mxu0 0.0
        %2389 = vmatprep.subr.mxu0 0.0
        %2390 = vmatpush2.msra.mxu0 0.0
        %2391 = vmatprep.subr.mxu0 0.0
        %2392 = vmatpush2.msra.mxu0 0.0
        %2393 = vmatprep.subr.mxu0 0.0
        %2394 = vmatpush2.msra.mxu0 0.0
        %2395 = vmatprep.mubr.f32.mxu0 0.0
        %2396 = vmatmul.mubr.f32.gmra.mxu0 %v2329
        %v2397 = vpop.f32.mrf.mxu0
        %v2398 = vadd.f32 %v2326, %v2397
        %v2399 = vpop.f32.mrf.mxu0
        %2400 = vdwg.mxu0
        %v2401 = vsub.f32 0.0, %v2398
        %v2402 = vmul.f32 %v2401, 1.442695
        %v2403 = vpow.pop %v2402
        %v2404 = vadd.f32 %v2403, 1.0
        %v2405 = vrcp.pop %v2404
        %2407 = vrot.lane.b32.xlu0 %v2405, 96
        %v2408 = vpop.permute.xlu0 %2407
        %v2410 = vmul.f32 %v2398, %v2408
        %v2411 = vld [vmem:[%s35] sm:$0x7f]
        %v2412 = vlaneseq
        %v2413 = vshrl.u32 %v2412, 7
        %v2414 = vld [vmem:[#allocation16] sm:$0x1]
        %v2416 = vlaneseq
        %v2417 = vshrl.u32 %v2416, 7
        %v2418 = vsub.s32 0, %v2417
        %v2419 = vrot.slane %v2414, %v2418
        %v2421 = vrot.slane %v2410, 5
        %vm2422 = vcmp.ge.s32.totalorder %v2413, 3
        %vm2423 = vcmp.lt.s32.totalorder %v2413, 11
        %vm2424 = vmand %vm2422, %vm2423
        %v2425 = vsel %vm2424, %v2421, 0.0
        %v2426 = vlaneseq
        %v2427 = vshrl.u32 %v2426, 7
        %v2428 = vsub.s32 0, %v2427
        %v2429 = vrot.slane %v2411, %v2428
        %v2430 = vmul.f32 %v2425, %v2429
        %v2431 = vadd.f32 %v2419, %v2430
        %v2432 = vrot.slane %v2410, 6
        %vm2433 = vcmp.ge.s32.totalorder %v2413, 2
        %vm2434 = vcmp.lt.s32.totalorder %v2413, 10
        %vm2435 = vmand %vm2433, %vm2434
        %v2436 = vsel %vm2435, %v2432, 0.0
        %v2437 = vlaneseq
        %v2438 = vshrl.u32 %v2437, 7
        %v2439 = vsub.s32 1, %v2438
        %v2440 = vrot.slane %v2411, %v2439
        %v2441 = vmul.f32 %v2436, %v2440
        %v2442 = vadd.f32 %v2431, %v2441
        %v2443 = vrot.slane %v2410, 7
        %vm2444 = vcmp.ge.s32.totalorder %v2413, 1
        %vm2445 = vcmp.lt.s32.totalorder %v2413, 9
        %vm2446 = vmand %vm2444, %vm2445
        %v2447 = vsel %vm2446, %v2443, 0.0
        %v2448 = vlaneseq
        %v2449 = vshrl.u32 %v2448, 7
        %v2450 = vsub.s32 2, %v2449
        %v2451 = vrot.slane %v2411, %v2450
        %v2452 = vmul.f32 %v2447, %v2451
        %v2453 = vadd.f32 %v2442, %v2452
        %v2454 = vlaneseq
        %v2455 = vshrl.u32 %v2454, 7
        %v2456 = vsub.s32 3, %v2455
        %v2457 = vrot.slane %v2411, %v2456
        %v2458 = vmul.f32 %v2410, %v2457
        %v2459 = vadd.f32 %v2453, %v2458
        %v2460 = vrot.slane %v2410, 1
        %vm2461 = vcmp.ge.s32.totalorder %v2413, 4294967295
        %vm2462 = vcmp.lt.s32.totalorder %v2413, 7
        %vm2463 = vmand %vm2461, %vm2462
        %v2464 = vsel %vm2463, %v2460, 0.0
        %v2465 = vlaneseq
        %v2466 = vshrl.u32 %v2465, 7
        %v2467 = vsub.s32 4, %v2466
        %v2468 = vrot.slane %v2411, %v2467
        %v2469 = vmul.f32 %v2464, %v2468
        %v2470 = vadd.f32 %v2459, %v2469
        %v2471 = vrot.slane %v2410, 2
        %vm2472 = vcmp.ge.s32.totalorder %v2413, 4294967294
        %vm2473 = vcmp.lt.s32.totalorder %v2413, 6
        %vm2474 = vmand %vm2472, %vm2473
        %v2475 = vsel %vm2474, %v2471, 0.0
        %v2476 = vlaneseq
        %v2477 = vshrl.u32 %v2476, 7
        %v2478 = vsub.s32 5, %v2477
        %v2479 = vrot.slane %v2411, %v2478
        %v2480 = vmul.f32 %v2475, %v2479
        %v2481 = vadd.f32 %v2470, %v2480
        %v2482 = vrot.slane %v2410, 3
        %vm2483 = vcmp.ge.s32.totalorder %v2413, 4294967293
        %vm2484 = vcmp.lt.s32.totalorder %v2413, 5
        %vm2485 = vmand %vm2483, %vm2484
        %v2486 = vsel %vm2485, %v2482, 0.0
        %v2487 = vlaneseq
        %v2488 = vshrl.u32 %v2487, 7
        %v2489 = vsub.s32 6, %v2488
        %v2490 = vrot.slane %v2411, %v2489
        %v2491 = vmul.f32 %v2486, %v2490
        %v2492 = vadd.f32 %v2481, %v2491
        %v2493 = vld [vmem:[#allocation18] sm:$0x1]
        %v2494 = vmul.f32 %v2493, 0.999995
        %v2496 = vlaneseq
        %v2497 = vshrl.u32 %v2496, 7
        %v2498 = vsub.s32 0, %v2497
        %v2499 = vrot.slane %v2494, %v2498
        %v2501 = vmul.f32 %v2492, %v2499
        %v2502 = vld [vmem:[#allocation19] sm:$0x1]
        %v2504 = vlaneseq
        %v2505 = vshrl.u32 %v2504, 7
        %v2506 = vsub.s32 0, %v2505
        %v2507 = vrot.slane %v2502, %v2506
        %v2509 = vadd.f32 %v2501, %v2507
        %v2510 = vsub.f32 0.0, %v2509
        %v2511 = vmul.f32 %v2510, 1.442695
        %v2512 = vpow.pop %v2511
        %v2513 = vadd.f32 %v2512, 1.0
        %v2514 = vrcp.pop %v2513
        %v2515 = vmul.f32 %v2509, %v2514
        %v2516 = vld [vmem:[%s43] sm:$0xff]
        %v2517 = vld [vmem:[%s43 + $0x8] sm:$0xff]
        %v2518 = vld [vmem:[%s43 + $0x10] sm:$0xff]
        %v2519 = vld [vmem:[%s43 + $0x18] sm:$0xff]
        %v2520 = vld [vmem:[#allocation21] sm:$0x1]
        %v2522 = vlaneseq
        %v2523 = vshrl.u32 %v2522, 7
        %v2524 = vsub.s32 0, %v2523
        %v2525 = vrot.slane %v2520, %v2524
        %v2528 = vsel %vm1195, %v2515, 0
        %2530 = vmatprep.subr.mxu0 0.0
        %2531 = vmatpush1.msra.mxu0 0.0
        %2532 = vmatprep.subr.mxu0 0.0
        %2533 = vmatpush1.msra.mxu0 0.0
        %2534 = vmatprep.subr.mxu0 0.0
        %2535 = vmatpush1.msra.mxu0 0.0
        %2536 = vmatprep.subr.mxu0 0.0
        %2537 = vmatpush1.msra.mxu0 0.0
        %2538 = vmatprep.subr.mxu0 0.0
        %2539 = vmatpush1.msra.mxu0 0.0
        %2540 = vmatprep.subr.mxu0 0.0
        %2541 = vmatpush1.msra.mxu0 0.0
        %2542 = vmatprep.subr.mxu0 0.0
        %2543 = vmatpush1.msra.mxu0 0.0
        %2544 = vmatprep.subr.mxu0 0.0
        %2545 = vmatpush1.msra.mxu0 0.0
        %2546 = vmatprep.subr.mxu0 0.0
        %2547 = vmatpush1.msra.mxu0 0.0
        %2548 = vmatprep.subr.mxu0 0.0
        %2549 = vmatpush1.msra.mxu0 0.0
        %2550 = vmatprep.subr.mxu0 0.0
        %2551 = vmatpush1.msra.mxu0 0.0
        %2552 = vmatprep.subr.mxu0 0.0
        %2553 = vmatpush1.msra.mxu0 0.0
        %2554 = vmatprep.subr.mxu0 0.0
        %2555 = vmatpush1.msra.mxu0 %v2519
        %2556 = vmatprep.subr.mxu0 0.0
        %2557 = vmatpush1.msra.mxu0 %v2518
        %2558 = vmatprep.subr.mxu0 0.0
        %2559 = vmatpush1.msra.mxu0 %v2517
        %2560 = vmatprep.subr.mxu0 0.0
        %2561 = vmatpush1.msra.mxu0 %v2516
        %2562 = vmatprep.subr.mxu0 0.0
        %2563 = vmatpush2.msra.mxu0 0.0
        %2564 = vmatprep.subr.mxu0 0.0
        %2565 = vmatpush2.msra.mxu0 0.0
        %2566 = vmatprep.subr.mxu0 0.0
        %2567 = vmatpush2.msra.mxu0 0.0
        %2568 = vmatprep.subr.mxu0 0.0
        %2569 = vmatpush2.msra.mxu0 0.0
        %2570 = vmatprep.subr.mxu0 0.0
        %2571 = vmatpush2.msra.mxu0 0.0
        %2572 = vmatprep.subr.mxu0 0.0
        %2573 = vmatpush2.msra.mxu0 0.0
        %2574 = vmatprep.subr.mxu0 0.0
        %2575 = vmatpush2.msra.mxu0 0.0
        %2576 = vmatprep.subr.mxu0 0.0
        %2577 = vmatpush2.msra.mxu0 0.0
        %2578 = vmatprep.subr.mxu0 0.0
        %2579 = vmatpush2.msra.mxu0 0.0
        %2580 = vmatprep.subr.mxu0 0.0
        %2581 = vmatpush2.msra.mxu0 0.0
        %2582 = vmatprep.subr.mxu0 0.0
        %2583 = vmatpush2.msra.mxu0 0.0
        %2584 = vmatprep.subr.mxu0 0.0
        %2585 = vmatpush2.msra.mxu0 0.0
        %2586 = vmatprep.subr.mxu0 0.0
        %2587 = vmatpush2.msra.mxu0 0.0
        %2588 = vmatprep.subr.mxu0 0.0
        %2589 = vmatpush2.msra.mxu0 0.0
        %2590 = vmatprep.subr.mxu0 0.0
        %2591 = vmatpush2.msra.mxu0 0.0
        %2592 = vmatprep.subr.mxu0 0.0
        %2593 = vmatpush2.msra.mxu0 0.0
        %2594 = vmatprep.mubr.f32.mxu0 0.0
        %2595 = vmatmul.mubr.f32.gmra.mxu0 %v2528
        %v2596 = vpop.f32.mrf.mxu0
        %v2597 = vadd.f32 %v2525, %v2596
        %v2598 = vpop.f32.mrf.mxu0
        %2599 = vdwg.mxu0
        %v2600 = vadd.f32 %v2287, %v2597
        %v2601 = vld [vmem:[#allocation22] sm:$0x1]
        %v2602 = vld [vmem:[#allocation24] sm:$0x1]
        %v2603 = vsel %vm1195, %v2600, 0.0
        %2604 = vadd.xlane.f32.xlu0 %v2603
        %v2605 = vpop.xlane.xlu0 %2604
        %v2606 = vmul.f32 %v2605, %v1199
        %v2607 = vsub.f32 %v2600, %v2606
        %v2608 = vmul.f32 %v2607, %v2607
        %v2609 = vsel %vm1195, %v2608, 0.0
        %2610 = vadd.xlane.f32.xlu0 %v2609
        %v2611 = vpop.xlane.xlu0 %2610
        %v2612 = vmul.f32 %v2611, %v1199
        %v2613 = vadd.f32 %v2612, 1e-05
        %v2614 = vrsqrt.pop %v2613
        %v2615 = vmul.f32 %v2607, %v2614
        %v2617 = vlaneseq
        %v2618 = vshrl.u32 %v2617, 7
        %v2619 = vsub.s32 0, %v2618
        %v2620 = vrot.slane %v2601, %v2619
        %v2622 = vmul.f32 %v2615, %v2620
        %v2624 = vlaneseq
        %v2625 = vshrl.u32 %v2624, 7
        %v2626 = vsub.s32 0, %v2625
        %v2627 = vrot.slane %v2602, %v2626
        %v2629 = vadd.f32 %v2622, %v2627
        %v2630 = vld [vmem:[%s51] sm:$0xff]
        %v2631 = vld [vmem:[%s51 + $0x8] sm:$0xff]
        %v2632 = vld [vmem:[%s51 + $0x10] sm:$0xff]
        %v2633 = vld [vmem:[%s51 + $0x18] sm:$0xff]
        %v2634 = vld [vmem:[#allocation25] sm:$0x1]
        %v2636 = vlaneseq
        %v2637 = vshrl.u32 %v2636, 7
        %v2638 = vsub.s32 0, %v2637
        %v2639 = vrot.slane %v2634, %v2638
        %v2642 = vsel %vm1195, %v2629, 0
        %2644 = vmatprep.subr.mxu0 0.0
        %2645 = vmatpush1.msra.mxu0 0.0
        %2646 = vmatprep.subr.mxu0 0.0
        %2647 = vmatpush1.msra.mxu0 0.0
        %2648 = vmatprep.subr.mxu0 0.0
        %2649 = vmatpush1.msra.mxu0 0.0
        %2650 = vmatprep.subr.mxu0 0.0
        %2651 = vmatpush1.msra.mxu0 0.0
        %2652 = vmatprep.subr.mxu0 0.0
        %2653 = vmatpush1.msra.mxu0 0.0
        %2654 = vmatprep.subr.mxu0 0.0
        %2655 = vmatpush1.msra.mxu0 0.0
        %2656 = vmatprep.subr.mxu0 0.0
        %2657 = vmatpush1.msra.mxu0 0.0
        %2658 = vmatprep.subr.mxu0 0.0
        %2659 = vmatpush1.msra.mxu0 0.0
        %2660 = vmatprep.subr.mxu0 0.0
        %2661 = vmatpush1.msra.mxu0 0.0
        %2662 = vmatprep.subr.mxu0 0.0
        %2663 = vmatpush1.msra.mxu0 0.0
        %2664 = vmatprep.subr.mxu0 0.0
        %2665 = vmatpush1.msra.mxu0 0.0
        %2666 = vmatprep.subr.mxu0 0.0
        %2667 = vmatpush1.msra.mxu0 0.0
        %2668 = vmatprep.subr.mxu0 0.0
        %2669 = vmatpush1.msra.mxu0 %v2633
        %2670 = vmatprep.subr.mxu0 0.0
        %2671 = vmatpush1.msra.mxu0 %v2632
        %2672 = vmatprep.subr.mxu0 0.0
        %2673 = vmatpush1.msra.mxu0 %v2631
        %2674 = vmatprep.subr.mxu0 0.0
        %2675 = vmatpush1.msra.mxu0 %v2630
        %2676 = vmatprep.subr.mxu0 0.0
        %2677 = vmatpush2.msra.mxu0 0.0
        %2678 = vmatprep.subr.mxu0 0.0
        %2679 = vmatpush2.msra.mxu0 0.0
        %2680 = vmatprep.subr.mxu0 0.0
        %2681 = vmatpush2.msra.mxu0 0.0
        %2682 = vmatprep.subr.mxu0 0.0
        %2683 = vmatpush2.msra.mxu0 0.0
        %2684 = vmatprep.subr.mxu0 0.0
        %2685 = vmatpush2.msra.mxu0 0.0
        %2686 = vmatprep.subr.mxu0 0.0
        %2687 = vmatpush2.msra.mxu0 0.0
        %2688 = vmatprep.subr.mxu0 0.0
        %2689 = vmatpush2.msra.mxu0 0.0
        %2690 = vmatprep.subr.mxu0 0.0
        %2691 = vmatpush2.msra.mxu0 0.0
        %2692 = vmatprep.subr.mxu0 0.0
        %2693 = vmatpush2.msra.mxu0 0.0
        %2694 = vmatprep.subr.mxu0 0.0
        %2695 = vmatpush2.msra.mxu0 0.0
        %2696 = vmatprep.subr.mxu0 0.0
        %2697 = vmatpush2.msra.mxu0 0.0
        %2698 = vmatprep.subr.mxu0 0.0
        %2699 = vmatpush2.msra.mxu0 0.0
        %2700 = vmatprep.subr.mxu0 0.0
        %2701 = vmatpush2.msra.mxu0 0.0
        %2702 = vmatprep.subr.mxu0 0.0
        %2703 = vmatpush2.msra.mxu0 0.0
        %2704 = vmatprep.subr.mxu0 0.0
        %2705 = vmatpush2.msra.mxu0 0.0
        %2706 = vmatprep.subr.mxu0 0.0
        %2707 = vmatpush2.msra.mxu0 0.0
        %2708 = vmatprep.mubr.f32.mxu0 0.0
        %2709 = vmatmul.mubr.f32.gmra.mxu0 %v2642
        %v2710 = vpop.f32.mrf.mxu0
        %v2711 = vadd.f32 %v2639, %v2710
        %v2712 = vpop.f32.mrf.mxu0
        %2713 = vdwg.mxu0
        %v2714 = vsub.f32 0.0, %v2711
        %v2715 = vmul.f32 %v2714, 1.442695
        %v2716 = vpow.pop %v2715
        %v2717 = vadd.f32 %v2716, 1.0
        %v2718 = vrcp.pop %v2717
        %v2719 = vmul.f32 %v2711, %v2718
        %v2720 = vld [vmem:[%s55] sm:$0xff]
        %v2721 = vld [vmem:[%s55 + $0x8] sm:$0xff]
        %v2722 = vld [vmem:[%s55 + $0x10] sm:$0xff]
        %v2723 = vld [vmem:[%s55 + $0x18] sm:$0xff]
        %v2724 = vld [vmem:[%s55 + $0x20] sm:$0xff]
        %v2725 = vld [vmem:[%s55 + $0x28] sm:$0xff]
        %v2726 = vld [vmem:[%s55 + $0x30] sm:$0xff]
        %v2727 = vld [vmem:[%s55 + $0x38] sm:$0xff]
        %v2728 = vld [vmem:[%s55 + $0x40] sm:$0xff]
        %v2729 = vld [vmem:[%s55 + $0x48] sm:$0xff]
        %v2730 = vld [vmem:[%s55 + $0x50] sm:$0xff]
        %v2731 = vld [vmem:[%s55 + $0x58] sm:$0xff]
        %v2732 = vld [vmem:[%s55 + $0x60] sm:$0xff]
        %v2733 = vld [vmem:[%s55 + $0x68] sm:$0xff]
        %v2734 = vld [vmem:[%s55 + $0x70] sm:$0xff]
        %v2735 = vld [vmem:[%s55 + $0x78] sm:$0xff]
        %v2736 = vld [vmem:[#allocation27] sm:$0x1]
        %v2738 = vlaneseq
        %v2739 = vshrl.u32 %v2738, 7
        %v2740 = vsub.s32 0, %v2739
        %v2741 = vrot.slane %v2736, %v2740
        %2743 = vmatprep.subr.mxu0 0.0
        %2744 = vmatpush1.msra.mxu0 %v2735
        %2745 = vmatprep.subr.mxu0 0.0
        %2746 = vmatpush1.msra.mxu0 %v2734
        %2747 = vmatprep.subr.mxu0 0.0
        %2748 = vmatpush1.msra.mxu0 %v2733
        %2749 = vmatprep.subr.mxu0 0.0
        %2750 = vmatpush1.msra.mxu0 %v2732
        %2751 = vmatprep.subr.mxu0 0.0
        %2752 = vmatpush1.msra.mxu0 %v2731
        %2753 = vmatprep.subr.mxu0 0.0
        %2754 = vmatpush1.msra.mxu0 %v2730
        %2755 = vmatprep.subr.mxu0 0.0
        %2756 = vmatpush1.msra.mxu0 %v2729
        %2757 = vmatprep.subr.mxu0 0.0
        %2758 = vmatpush1.msra.mxu0 %v2728
        %2759 = vmatprep.subr.mxu0 0.0
        %2760 = vmatpush1.msra.mxu0 %v2727
        %2761 = vmatprep.subr.mxu0 0.0
        %2762 = vmatpush1.msra.mxu0 %v2726
        %2763 = vmatprep.subr.mxu0 0.0
        %2764 = vmatpush1.msra.mxu0 %v2725
        %2765 = vmatprep.subr.mxu0 0.0
        %2766 = vmatpush1.msra.mxu0 %v2724
        %2767 = vmatprep.subr.mxu0 0.0
        %2768 = vmatpush1.msra.mxu0 %v2723
        %2769 = vmatprep.subr.mxu0 0.0
        %2770 = vmatpush1.msra.mxu0 %v2722
        %2771 = vmatprep.subr.mxu0 0.0
        %2772 = vmatpush1.msra.mxu0 %v2721
        %2773 = vmatprep.subr.mxu0 0.0
        %2774 = vmatpush1.msra.mxu0 %v2720
        %2775 = vmatprep.subr.mxu0 0.0
        %2776 = vmatpush2.msra.mxu0 0.0
        %2777 = vmatprep.subr.mxu0 0.0
        %2778 = vmatpush2.msra.mxu0 0.0
        %2779 = vmatprep.subr.mxu0 0.0
        %2780 = vmatpush2.msra.mxu0 0.0
        %2781 = vmatprep.subr.mxu0 0.0
        %2782 = vmatpush2.msra.mxu0 0.0
        %2783 = vmatprep.subr.mxu0 0.0
        %2784 = vmatpush2.msra.mxu0 0.0
        %2785 = vmatprep.subr.mxu0 0.0
        %2786 = vmatpush2.msra.mxu0 0.0
        %2787 = vmatprep.subr.mxu0 0.0
        %2788 = vmatpush2.msra.mxu0 0.0
        %2789 = vmatprep.subr.mxu0 0.0
        %2790 = vmatpush2.msra.mxu0 0.0
        %2791 = vmatprep.subr.mxu0 0.0
        %2792 = vmatpush2.msra.mxu0 0.0
        %2793 = vmatprep.subr.mxu0 0.0
        %2794 = vmatpush2.msra.mxu0 0.0
        %2795 = vmatprep.subr.mxu0 0.0
        %2796 = vmatpush2.msra.mxu0 0.0
        %2797 = vmatprep.subr.mxu0 0.0
        %2798 = vmatpush2.msra.mxu0 0.0
        %2799 = vmatprep.subr.mxu0 0.0
        %2800 = vmatpush2.msra.mxu0 0.0
        %2801 = vmatprep.subr.mxu0 0.0
        %2802 = vmatpush2.msra.mxu0 0.0
        %2803 = vmatprep.subr.mxu0 0.0
        %2804 = vmatpush2.msra.mxu0 0.0
        %2805 = vmatprep.subr.mxu0 0.0
        %2806 = vmatpush2.msra.mxu0 0.0
        %2807 = vmatprep.mubr.f32.mxu0 0.0
        %2808 = vmatmul.mubr.f32.gmra.mxu0 %v2719
        %v2809 = vpop.f32.mrf.mxu0
        %v2810 = vadd.f32 %v2741, %v2809
        %v2811 = vpop.f32.mrf.mxu0
        %2812 = vdwg.mxu0
        %v2813 = vmul.f32 %v2810, 0.5
        %v2814 = vadd.f32 %v2600, %v2813
        %v2815 = vld [vmem:[#allocation28] sm:$0x1]
        %v2816 = vld [vmem:[#allocation30] sm:$0x1]
        %v2817 = vsel %vm1195, %v2814, 0.0
        %2818 = vadd.xlane.f32.xlu0 %v2817
        %v2819 = vpop.xlane.xlu0 %2818
        %v2820 = vmul.f32 %v2819, %v1199
        %v2821 = vsub.f32 %v2814, %v2820
        %v2822 = vmul.f32 %v2821, %v2821
        %v2823 = vsel %vm1195, %v2822, 0.0
        %2824 = vadd.xlane.f32.xlu0 %v2823
        %v2825 = vpop.xlane.xlu0 %2824
        %v2826 = vmul.f32 %v2825, %v1199
        %v2827 = vadd.f32 %v2826, 1e-05
        %v2828 = vrsqrt.pop %v2827
        %v2829 = vmul.f32 %v2821, %v2828
        %v2831 = vlaneseq
        %v2832 = vshrl.u32 %v2831, 7
        %v2833 = vsub.s32 0, %v2832
        %v2834 = vrot.slane %v2815, %v2833
        %v2836 = vmul.f32 %v2829, %v2834
        %v2838 = vlaneseq
        %v2839 = vshrl.u32 %v2838, 7
        %v2840 = vsub.s32 0, %v2839
        %v2841 = vrot.slane %v2816, %v2840
        %v2843 = vadd.f32 %v2836, %v2841
        %2844 = vst.msk [vmem:[%s1191] sm:$0xff] %vm1195, %v2843
        %p2845 = scmp.lt.s32.totalorder %s84, 1
        %s2846 = scalar_select %p2845, %s84, 1
        %s2847 = smul.addr %s2846, 8
        %s2848 = scalar_lea.vmem %s63, %s2847
        // Predicated region
        $region221: #{conformer_forward.6} parent=143 // pred_check
          %p2849 = pneg %p758
        $region222: #{conformer_forward.6} parent=143 // pred_check_branch
          %2851 = sbr.rel (%p2849) target = $region224
        $region223: #{conformer_forward.6} parent=143 // pred_region
          _
        $region224: #{conformer_forward.6} parent=143 // pred_fallthru
          _
      $region144: #{conformer_forward.6} parent=5 // pred_fallthru
        _
      %p2852 = scmp.le.s32.totalorder 2, %s79
      // Predicated region
      $region225: #{conformer_forward.6} parent=5 // pred_check
        %p2853 = pneg %p2852
      $region226: #{conformer_forward.6} parent=5 // pred_check_branch
        %2855 = sbr.rel (%p2853) target = $region228
      $region227: #{conformer_forward.6} parent=5 // pred_region
        %s2856 = ssub.s32 %s79, 2
        // Predicated region
        $region229: #{conformer_forward.6} parent=227 // pred_check
          %p2857 = pneg %p764
        $region230: #{conformer_forward.6} parent=227 // pred_check_branch
          %2859 = sbr.rel (%p2857) target = $region232
        $region231: #{conformer_forward.6} parent=227 // pred_region
          %p2860 = scmp.lt.s32.totalorder %s85, 1
          %s2861 = scalar_select %p2860, %s85, 1
          %s2862 = smul.addr %s2861, 8
          %s2863 = scalar_lea.vmem %s63, %s2862
        $region232: #{conformer_forward.6} parent=227 // pred_fallthru
          _
      $region228: #{conformer_forward.6} parent=5 // pred_fallthru
        _
    $region6: #{conformer_forward.6} parent=1 // loop_footer
      %s83 = sadd.s32 1, %s79
    $region7: #{conformer_forward.6} parent=1 // loop_footer_branch
      %78 = sbr.rel target = $region3
    $region8: #{conformer_forward.6} parent=1 // loop_exit
      _
    %2864 = vsyncpa [#allocation3], 1
    %s2865 = scalar_lea.sflag [#allocation3], 1
    %2866 = vsyncpa %s2865, 1
    %2867 = vsyncpa [#allocation5], 1
    %2868 = vsyncpa [#allocation8], 1
    %2869 = vsyncpa [#allocation11], 1
    %2870 = vsyncpa [#allocation14], 1
    %2871 = vsyncpa [#allocation17], 1
    %2872 = vsyncpa [#allocation20], 1
    %2873 = vsyncpa [#allocation23], 1
    %2874 = vsyncpa [#allocation26], 1
    %2875 = vsyncpa [#allocation29], 1

</llo_original>
